<compile_context>
chip_gen: v6e
topology: v6e:2x2x1
jax: 0.10.0
libtpu: 0.0.40
codegen_flags: <defaults>
</compile_context>

<pallas_src>
import functools

import jax
import jax.numpy as jnp
from jax.experimental import pallas as pl
from jax.experimental.pallas import tpu as pltpu

_PARALLEL1 = pltpu.CompilerParams(dimension_semantics=("parallel",))


def _round_up(x, m):
    return ((x + m - 1) // m) * m


# ----------------------------------------------------------------------------
# Pallas matmul kernels (lane-dense outputs)
# ----------------------------------------------------------------------------
def _matmul_kernel(x_ref, w_ref, o_ref):
    o_ref[...] = jnp.dot(x_ref[...], w_ref[...], preferred_element_type=jnp.float32)


def _matmul_bias_kernel(x_ref, w_ref, b_ref, o_ref):
    o_ref[...] = (jnp.dot(x_ref[...], w_ref[...], preferred_element_type=jnp.float32)
                  + b_ref[...])


def pallas_linear(x, w, b=None):
    """y = x @ w + b   (x: [M,K], w: [K,N], b: [N] or None).

    N is zero-padded to a multiple of 128 so the kernel emits full (unmasked)
    lane-dense stores; the padding is sliced off after the call.  Small M runs
    as a single block; very large M falls back to 256-row tiles on a parallel
    grid axis.
    """
    x = x.astype(jnp.float32)
    w = w.astype(jnp.float32)
    M, K = x.shape
    N = w.shape[1]
    Np = _round_up(N, 128)
    if Np != N:
        w = jnp.pad(w, ((0, 0), (0, Np - N)))
    if b is not None:
        b = b.reshape(1, N).astype(jnp.float32)
        if Np != N:
            b = jnp.pad(b, ((0, 0), (0, Np - N)))
    if M <= 512:
        TM, Mp = M, M                         # single block -> one grid step
    else:
        TM = 256
        Mp = _round_up(M, TM)
        if Mp != M:
            x = jnp.pad(x, ((0, Mp - M), (0, 0)))
    in_specs = [pl.BlockSpec((TM, K), lambda i: (i, 0)),
                pl.BlockSpec((K, Np), lambda i: (0, 0))]
    args = [x, w]
    kernel = _matmul_kernel
    if b is not None:
        in_specs.append(pl.BlockSpec((1, Np), lambda i: (0, 0)))
        args.append(b)
        kernel = _matmul_bias_kernel
    y = pl.pallas_call(
        kernel,
        out_shape=jax.ShapeDtypeStruct((Mp, Np), jnp.float32),
        grid=(Mp // TM,),
        in_specs=in_specs,
        out_specs=pl.BlockSpec((TM, Np), lambda i: (i, 0)),
        compiler_params=_PARALLEL1,
    )(*args)
    return y[:M, :N]


# ----------------------------------------------------------------------------
# In-kernel helpers (built from iotas; constants of a few vregs)
# ----------------------------------------------------------------------------
def _avg_matrix(L, k):
    """(L, L) averaging matrix: A @ x == edge-replicated moving average of x."""
    h = (k - 1) // 2
    r = jax.lax.broadcasted_iota(jnp.int32, (L, L), 0)   # output time index
    c = jax.lax.broadcasted_iota(jnp.int32, (L, L), 1)   # source time index
    a = jnp.zeros((L, L), jnp.float32)
    for j in range(-h, h + 1):                           # static, k is small
        a = a + (c == jnp.clip(r + j, 0, L - 1)).astype(jnp.float32)
    return a * (1.0 / k)


def _cyclic_shift_matrix(L, offset):
    """(L, L) permutation matrix: P @ x == x[(t + offset) mod L]."""
    r = jax.lax.broadcasted_iota(jnp.int32, (L, L), 0)
    c = jax.lax.broadcasted_iota(jnp.int32, (L, L), 1)
    return (c == ((r + (offset + L)) % L)).astype(jnp.float32)


# ----------------------------------------------------------------------------
# Series decomposition kernels (standalone + fused variants)
# ----------------------------------------------------------------------------
def _series_decomp_kernel(x_ref, res_ref, mean_ref, *, k):
    B, L, _ = x_ref.shape
    avg = _avg_matrix(L, k)
    for b in range(B):                                   # static B loop, one block
        x = x_ref[b]
        m = jnp.dot(avg, x, preferred_element_type=jnp.float32)
        mean_ref[b] = m
        res_ref[b] = x - m


def series_decomp(x, k):
    """Autoformer series_decomp: returns (residual, moving_mean). x: [B, L, D]."""
    B, L, D = x.shape
    spec3 = pl.BlockSpec((B, L, D), lambda i: (0, 0, 0))
    return pl.pallas_call(
        functools.partial(_series_decomp_kernel, k=k),
        out_shape=(jax.ShapeDtypeStruct((B, L, D), jnp.float32),) * 2,
        grid=(1,),
        in_specs=[spec3],
        out_specs=(spec3, spec3),
        compiler_params=_PARALLEL1,
    )(x.astype(jnp.float32))


def _add_decomp_kernel(x_ref, y_ref, res_ref, mean_ref, *, k):
    B, L, _ = x_ref.shape
    avg = _avg_matrix(L, k)
    for b in range(B):
        s = x_ref[b] + y_ref[b]
        m = jnp.dot(avg, s, preferred_element_type=jnp.float32)
        mean_ref[b] = m
        res_ref[b] = s - m


def add_series_decomp(x, y, k):
    """Fused residual add + decomposition:  series_decomp(x + y)."""
    B, L, D = x.shape
    spec3 = pl.BlockSpec((B, L, D), lambda i: (0, 0, 0))
    return pl.pallas_call(
        functools.partial(_add_decomp_kernel, k=k),
        out_shape=(jax.ShapeDtypeStruct((B, L, D), jnp.float32),) * 2,
        grid=(1,),
        in_specs=[spec3, spec3],
        out_specs=(spec3, spec3),
        compiler_params=_PARALLEL1,
    )(x.astype(jnp.float32), y.astype(jnp.float32))


def _ffn_decomp_kernel(x_ref, w1_ref, w2_ref, res_ref, mean_ref, *, k):
    B, L, _ = x_ref.shape
    avg = _avg_matrix(L, k)
    w1 = w1_ref[...]
    w2 = w2_ref[...]
    for b in range(B):
        x = x_ref[b]
        h = jnp.maximum(jnp.dot(x, w1, preferred_element_type=jnp.float32), 0.0)
        y = jnp.dot(h, w2, preferred_element_type=jnp.float32)
        s = x + y
        m = jnp.dot(avg, s, preferred_element_type=jnp.float32)
        mean_ref[b] = m
        res_ref[b] = s - m


def ffn_series_decomp(x, w1, w2, k):
    """Fused Encoder/DecoderLayer tail:  series_decomp(x + relu(x @ w1) @ w2)."""
    B, L, D = x.shape
    F = w1.shape[1]
    spec3 = pl.BlockSpec((B, L, D), lambda i: (0, 0, 0))
    return pl.pallas_call(
        functools.partial(_ffn_decomp_kernel, k=k),
        out_shape=(jax.ShapeDtypeStruct((B, L, D), jnp.float32),) * 2,
        grid=(1,),
        in_specs=[spec3,
                  pl.BlockSpec((D, F), lambda i: (0, 0)),
                  pl.BlockSpec((F, D), lambda i: (0, 0))],
        out_specs=(spec3, spec3),
        compiler_params=_PARALLEL1,
    )(x.astype(jnp.float32), w1.astype(jnp.float32), w2.astype(jnp.float32))


# ----------------------------------------------------------------------------
# my_Layernorm
# ----------------------------------------------------------------------------
def _my_layernorm_kernel(x_ref, g_ref, b_ref, o_ref, *, eps):
    B = x_ref.shape[0]
    g = g_ref[...]
    bb = b_ref[...]
    for b in range(B):
        x = x_ref[b]
        mu = jnp.mean(x, axis=-1, keepdims=True)
        var = jnp.mean((x - mu) ** 2, axis=-1, keepdims=True)
        xhat = (x - mu) * jax.lax.rsqrt(var + eps) * g + bb
        o_ref[b] = xhat - jnp.mean(xhat, axis=0, keepdims=True)


def my_layernorm(x, gamma, beta, eps=1e-5):
    """my_Layernorm: LayerNorm over D, then subtract the per-sequence (time) mean."""
    B, L, D = x.shape
    spec3 = pl.BlockSpec((B, L, D), lambda i: (0, 0, 0))
    return pl.pallas_call(
        functools.partial(_my_layernorm_kernel, eps=eps),
        out_shape=jax.ShapeDtypeStruct((B, L, D), jnp.float32),
        grid=(1,),
        in_specs=[spec3,
                  pl.BlockSpec((1, D), lambda i: (0, 0)),
                  pl.BlockSpec((1, D), lambda i: (0, 0))],
        out_specs=spec3,
        compiler_params=_PARALLEL1,
    )(x.astype(jnp.float32),
      gamma.reshape(1, D).astype(jnp.float32),
      beta.reshape(1, D).astype(jnp.float32))


# ----------------------------------------------------------------------------
# Circular k=3 convolution (in-VMEM) and fused embedding
# ----------------------------------------------------------------------------
def _circ_conv_kernel(x_ref, w_ref, o_ref):
    B, L, _ = x_ref.shape
    p_m1 = _cyclic_shift_matrix(L, -1)
    p_p1 = _cyclic_shift_matrix(L, 1)
    w0, w1, w2 = w_ref[0], w_ref[1], w_ref[2]
    for b in range(B):
        x = x_ref[b]
        acc = jnp.dot(jnp.dot(p_m1, x, preferred_element_type=jnp.float32), w0,
                      preferred_element_type=jnp.float32)
        acc = acc + jnp.dot(x, w1, preferred_element_type=jnp.float32)
        acc = acc + jnp.dot(jnp.dot(p_p1, x, preferred_element_type=jnp.float32), w2,
                            preferred_element_type=jnp.float32)
        o_ref[b] = acc


def circular_conv1d_k3(x, w):
    """PyTorch Conv1d(Cin, Cout, 3, padding=1, padding_mode='circular', bias=False)
    along time. x: [B, L, Cin], w: [Cout, Cin, 3] -> [B, L, Cout]."""
    B, L, Cin = x.shape
    Cout = w.shape[0]
    wc = jnp.transpose(w, (2, 1, 0)).astype(jnp.float32)   # (3, Cin, Cout) = [j, c, o]
    return pl.pallas_call(
        _circ_conv_kernel,
        out_shape=jax.ShapeDtypeStruct((B, L, Cout), jnp.float32),
        grid=(1,),
        in_specs=[pl.BlockSpec((B, L, Cin), lambda i: (0, 0, 0)),
                  pl.BlockSpec((3, Cin, Cout), lambda i: (0, 0, 0))],
        out_specs=pl.BlockSpec((B, L, Cout), lambda i: (0, 0, 0)),
        compiler_params=_PARALLEL1,
    )(x.astype(jnp.float32), wc)


def _embed_kernel(x_ref, xm_ref, wc_ref, wt_ref, o_ref):
    B, L, _ = x_ref.shape
    p_m1 = _cyclic_shift_matrix(L, -1)
    p_p1 = _cyclic_shift_matrix(L, 1)
    w0, w1, w2 = wc_ref[0], wc_ref[1], wc_ref[2]
    wt = wt_ref[...]
    for b in range(B):
        x = x_ref[b]
        xm = xm_ref[b]
        acc = jnp.dot(jnp.dot(p_m1, x, preferred_element_type=jnp.float32), w0,
                      preferred_element_type=jnp.float32)
        acc = acc + jnp.dot(x, w1, preferred_element_type=jnp.float32)
        acc = acc + jnp.dot(jnp.dot(p_p1, x, preferred_element_type=jnp.float32), w2,
                            preferred_element_type=jnp.float32)
        acc = acc + jnp.dot(xm, wt, preferred_element_type=jnp.float32)
        o_ref[b] = acc


def data_embedding_wo_pos(x, x_mark, conv_w, time_w):
    """DataEmbedding_wo_pos (embed='timeF', dropout=0): TokenEmbedding (circular
    conv k=3) + TimeFeatureEmbedding (bias-free linear), fused in one kernel."""
    B, L, Cin = x.shape
    Dt = x_mark.shape[-1]
    D = conv_w.shape[0]
    wc = jnp.transpose(conv_w, (2, 1, 0)).astype(jnp.float32)
    return pl.pallas_call(
        _embed_kernel,
        out_shape=jax.ShapeDtypeStruct((B, L, D), jnp.float32),
        grid=(1,),
        in_specs=[pl.BlockSpec((B, L, Cin), lambda i: (0, 0, 0)),
                  pl.BlockSpec((B, L, Dt), lambda i: (0, 0, 0)),
                  pl.BlockSpec((3, Cin, D), lambda i: (0, 0, 0)),
                  pl.BlockSpec((Dt, D), lambda i: (0, 0))],
        out_specs=pl.BlockSpec((B, L, D), lambda i: (0, 0, 0)),
        compiler_params=_PARALLEL1,
    )(x.astype(jnp.float32), x_mark.astype(jnp.float32), wc,
      time_w.astype(jnp.float32))


# ----------------------------------------------------------------------------
# Frequency-domain attention (plain JAX: FFT + complex einsums)
# ----------------------------------------------------------------------------
def _gather_last(x, idx):
    if idx == list(range(len(idx))):
        return x[..., :len(idx)]
    return jnp.take(x, jnp.asarray(idx, jnp.int32), axis=-1)


def _scatter_last(vals, idx, total):
    m = vals.shape[-1]
    if idx == list(range(len(idx))):
        pad = [(0, 0)] * (vals.ndim - 1) + [(0, total - m)]
        return jnp.pad(vals, pad)
    out = jnp.zeros(vals.shape[:-1] + (total,), vals.dtype)
    return out.at[..., jnp.asarray(idx, jnp.int32)].set(vals)


def _select_modes(x_ft, index):
    """Gather the chosen frequency modes (last axis); zero-fill out-of-range ones
    (matches the reference per-mode loop)."""
    nf = x_ft.shape[-1]
    m = len(index)
    keep = [(pos, j) for pos, j in enumerate(index) if j < nf]
    if len(keep) == m:
        return _gather_last(x_ft, [j for _, j in keep])
    out = jnp.zeros(x_ft.shape[:-1] + (m,), x_ft.dtype)
    if not keep:
        return out
    pos = jnp.asarray([p for p, _ in keep], jnp.int32)
    src = jnp.asarray([j for _, j in keep], jnp.int32)
    return out.at[..., pos].set(jnp.take(x_ft, src, axis=-1))


def fourier_block(q, w_real, w_imag, index):
    # q: [B, L, H, E]; returns [B, H, E, L]  (exactly as FEDformer FourierBlock)
    B, L, H, E = q.shape
    x = jnp.transpose(q, (0, 2, 3, 1)).astype(jnp.float32)
    x_ft = jnp.fft.rfft(x, axis=-1)                       # [B, H, E, nf]
    nf = x_ft.shape[-1]
    w = (w_real + 1j * w_imag).astype(jnp.complex64)      # [H, E, E, len(index)]
    keep = [(wi, i) for wi, i in enumerate(index) if i < nf and wi < nf]
    if not keep:
        return jnp.zeros((B, H, E, L), jnp.float32)
    src = [i for _, i in keep]
    dst = [wi for wi, _ in keep]
    x_sel = _gather_last(x_ft, src)                       # [B, H, E, m]
    w_sel = _gather_last(w, dst)                          # [H, E, E, m]
    out_vals = jnp.einsum('bhem,heom->bhom', x_sel, w_sel)
    out_ft = _scatter_last(out_vals, dst, nf)
    return jnp.fft.irfft(out_ft, n=L, axis=-1)


def fourier_cross_attention(q, k, v, w_real, w_imag, index_q, index_kv,
                            in_channels, out_channels, activation='tanh'):
    B, L, H, E = q.shape
    xq = jnp.transpose(q, (0, 2, 3, 1)).astype(jnp.float32)
    xk = jnp.transpose(k, (0, 2, 3, 1)).astype(jnp.float32)
    xq_ft_ = _select_modes(jnp.fft.rfft(xq, axis=-1), list(index_q))
    xk_ft_ = _select_modes(jnp.fft.rfft(xk, axis=-1), list(index_kv))
    xqk_ft = jnp.einsum('bhex,bhey->bhxy', xq_ft_, xk_ft_)
    if activation == 'tanh':
        xqk_ft = jnp.tanh(xqk_ft)
    else:  # 'softmax'
        xqk_ft = jax.nn.softmax(jnp.abs(xqk_ft), axis=-1).astype(jnp.complex64)
    xqkv_ft = jnp.einsum('bhxy,bhey->bhex', xqk_ft, xk_ft_)
    w = (w_real + 1j * w_imag).astype(jnp.complex64)
    xqkvw = jnp.einsum('bhex,heox->bhox', xqkv_ft, w)
    nf = L // 2 + 1
    out_ft = jnp.zeros((B, H, xqkvw.shape[2], nf), jnp.complex64)
    keep = [(pos, j) for pos, j in enumerate(index_q)
            if pos < xqkvw.shape[-1] and j < nf]
    if keep:
        vals = _gather_last(xqkvw, [p for p, _ in keep])
        out_ft = _scatter_last(vals, [j for _, j in keep], nf)
    return jnp.fft.irfft(out_ft / in_channels / out_channels, n=L, axis=-1)


# ----------------------------------------------------------------------------
# Layers
# ----------------------------------------------------------------------------
def autocorrelation_layer(attn_fn, p, queries, keys, values, n_heads, needs_kv=True):
    B, L, _ = queries.shape
    _, S, _ = keys.shape
    H = n_heads
    D = p['wq'].shape[1]
    if needs_kv:
        if queries is keys:
            # fused Q/K/V projection: one lane-dense matmul (N = 3*D padded to 128)
            w = jnp.concatenate([p['wq'], p['wk'], p['wv']], axis=1)
            bb = jnp.concatenate([p['bq'], p['bk'], p['bv']])
            qkv = pallas_linear(queries.reshape(B * L, -1), w, bb)
            q = qkv[:, :D].reshape(B, L, H, -1)
            k = qkv[:, D:2 * D].reshape(B, S, H, -1)
            v = qkv[:, 2 * D:].reshape(B, S, H, -1)
        else:
            q = pallas_linear(queries.reshape(B * L, -1),
                              p['wq'], p['bq']).reshape(B, L, H, -1)
            wkv = jnp.concatenate([p['wk'], p['wv']], axis=1)     # fused K/V
            bkv = jnp.concatenate([p['bk'], p['bv']])
            kv = pallas_linear(keys.reshape(B * S, -1), wkv, bkv)
            k = kv[:, :D].reshape(B, S, H, -1)
            v = kv[:, D:].reshape(B, S, H, -1)
    else:
        # FourierBlock self-attention only consumes Q: skip the K/V projections
        # (output is identical to the reference, which ignores k/v).
        q = pallas_linear(queries.reshape(B * L, -1),
                          p['wq'], p['bq']).reshape(B, L, H, -1)
        k = v = None
    out = attn_fn(q, k, v)                # [B, H, E, L] (real)
    # reproduces torch .view(B, L, -1) on the contiguous [B, H, E, L] tensor
    out = pallas_linear(out.reshape(B * L, -1), p['wo'], p['bo']).reshape(B, L, -1)
    return out


def encoder_layer(x, p, k_ma, n_heads, enc_index):
    attn_fn = lambda q, k, v: fourier_block(q, p['fw_r'], p['fw_i'], enc_index)
    new_x = autocorrelation_layer(attn_fn, p['attn'], x, x, x, n_heads,
                                  needs_kv=False)
    x, _ = add_series_decomp(x, new_x, k_ma)
    res, _ = ffn_series_decomp(x, p['ffn_w1'], p['ffn_w2'], k_ma)
    return res


def decoder_layer(x, cross, p, k_ma, n_heads, dec_self_index,
                  cross_index_q, cross_index_kv, d_model):
    self_fn = lambda q, k, v: fourier_block(q, p['self_fw_r'], p['self_fw_i'],
                                            dec_self_index)
    new_x = autocorrelation_layer(self_fn, p['self_attn'], x, x, x, n_heads,
                                  needs_kv=False)
    x, trend1 = add_series_decomp(x, new_x, k_ma)
    cross_fn = lambda q, k, v: fourier_cross_attention(
        q, k, v, p['cross_fw_r'], p['cross_fw_i'],
        cross_index_q, cross_index_kv, d_model, d_model, activation='tanh')
    new_x = autocorrelation_layer(cross_fn, p['cross_attn'], x, cross, cross,
                                  n_heads, needs_kv=True)
    x, trend2 = add_series_decomp(x, new_x, k_ma)
    x, trend3 = ffn_series_decomp(x, p['ffn_w1'], p['ffn_w2'], k_ma)
    residual_trend = trend1 + trend2 + trend3
    residual_trend = circular_conv1d_k3(residual_trend, p['trend_proj_w'])
    return x, residual_trend


# ----------------------------------------------------------------------------
# FEDformer forward
# ----------------------------------------------------------------------------
def fedformer_forward(params, cfg, x_enc, x_dec, x_mark_enc, x_mark_dec):
    out_len = cfg['output_sequence_len']
    dec_len = cfg['decoder_sequence_len']
    k_ma = cfg['moving_average']
    n_heads = cfg['n_heads']
    d_model = cfg['d_model']

    mean = jnp.repeat(jnp.mean(x_enc, axis=1, keepdims=True), out_len, axis=1)
    seasonal_init, trend_init = series_decomp(x_enc, k_ma)
    trend_init = jnp.concatenate([trend_init[:, -dec_len:, :], mean], axis=1)
    seasonal_init = jnp.pad(seasonal_init[:, -dec_len:, :],
                            ((0, 0), (0, out_len), (0, 0)))

    enc_out = data_embedding_wo_pos(x_enc, x_mark_enc,
                                    params['enc_emb_conv_w'], params['enc_emb_time_w'])
    for lp in params['enc_layers']:
        enc_out = encoder_layer(enc_out, lp, k_ma, n_heads, cfg['enc_index'])
    enc_out = my_layernorm(enc_out, params['enc_norm_g'], params['enc_norm_b'])

    dec_out = data_embedding_wo_pos(seasonal_init, x_mark_dec,
                                    params['dec_emb_conv_w'], params['dec_emb_time_w'])
    trend = trend_init
    x = dec_out
    for lp in params['dec_layers']:
        x, residual_trend = decoder_layer(x, enc_out, lp, k_ma, n_heads,
                                          cfg['dec_self_index'],
                                          cfg['cross_index_q'], cfg['cross_index_kv'],
                                          d_model)
        trend = trend + residual_trend
    x = my_layernorm(x, params['dec_norm_g'], params['dec_norm_b'])
    Bx, Lx, Dx = x.shape
    seasonal_part = pallas_linear(x.reshape(Bx * Lx, Dx),
                                  params['dec_proj_w'], params['dec_proj_b']
                                  ).reshape(Bx, Lx, -1)
    dec_final = trend + seasonal_part
    return dec_final[:, -out_len:, :]


# ----------------------------------------------------------------------------
# Parameter init (deterministic, synthetic)
# ----------------------------------------------------------------------------
def get_frequency_modes(seq_len, modes):
    # mode_select_method='low' (deterministic)
    modes = min(modes, seq_len // 2)
    return sorted(list(range(0, modes)))


def init_params(key, cfg):
    d_model = cfg['d_model']
    enc_in = cfg['encoder_input_size']
    dec_in = cfg['decoder_input_size']
    c_out = cfg['decoder_output_size']
    d_ff_e = cfg['encoder_features_fc_layer']
    d_ff_d = cfg['decoder_features_fc_layer']
    d_time = 4  # embed='timeF', frequency='h'
    ks = iter(jax.random.split(key, 128))

    def nrm(shape, scale=0.02):
        return scale * jax.random.normal(next(ks), shape, jnp.float32)

    def uni(shape, scale):
        return scale * jax.random.uniform(next(ks), shape, jnp.float32)

    fscale = 1.0 / (d_model * d_model)

    def attn_params():
        return dict(wq=nrm((d_model, d_model)), bq=nrm((d_model,)),
                    wk=nrm((d_model, d_model)), bk=nrm((d_model,)),
                    wv=nrm((d_model, d_model)), bv=nrm((d_model,)),
                    wo=nrm((d_model, d_model)), bo=nrm((d_model,)))

    enc_layers = []
    for _ in range(cfg['n_encoder_layers']):
        enc_layers.append(dict(
            attn=attn_params(),
            fw_r=uni((8, d_model // 8, d_model // 8, len(cfg['enc_index'])), fscale),
            fw_i=uni((8, d_model // 8, d_model // 8, len(cfg['enc_index'])), fscale),
            ffn_w1=nrm((d_model, d_ff_e)), ffn_w2=nrm((d_ff_e, d_model))))
    dec_layers = []
    for _ in range(cfg['n_decoder_layers']):
        dec_layers.append(dict(
            self_attn=attn_params(),
            self_fw_r=uni((8, d_model // 8, d_model // 8,
                           len(cfg['dec_self_index'])), fscale),
            self_fw_i=uni((8, d_model // 8, d_model // 8,
                           len(cfg['dec_self_index'])), fscale),
            cross_attn=attn_params(),
            cross_fw_r=uni((8, d_model // 8, d_model // 8,
                            len(cfg['cross_index_q'])), fscale),
            cross_fw_i=uni((8, d_model // 8, d_model // 8,
                            len(cfg['cross_index_q'])), fscale),
            ffn_w1=nrm((d_model, d_ff_d)), ffn_w2=nrm((d_ff_d, d_model)),
            trend_proj_w=nrm((c_out, d_model, 3))))

    return dict(
        enc_emb_conv_w=nrm((d_model, enc_in, 3)),
        enc_emb_time_w=nrm((d_time, d_model)),
        dec_emb_conv_w=nrm((d_model, dec_in, 3)),
        dec_emb_time_w=nrm((d_time, d_model)),
        enc_layers=enc_layers,
        enc_norm_g=jnp.ones((d_model,), jnp.float32),
        enc_norm_b=jnp.zeros((d_model,), jnp.float32),
        dec_layers=dec_layers,
        dec_norm_g=jnp.ones((d_model,), jnp.float32),
        dec_norm_b=jnp.zeros((d_model,), jnp.float32),
        dec_proj_w=nrm((d_model, c_out)),
        dec_proj_b=nrm((c_out,)))


# ----------------------------------------------------------------------------
if __name__ == "__main__":
    cfg = dict(
        encoder_sequence_len=16, decoder_sequence_len=8, output_sequence_len=8,
        encoder_input_size=4, decoder_input_size=4, decoder_output_size=4,
        encoder_features_fc_layer=64, decoder_features_fc_layer=64,
        n_encoder_layers=1, n_decoder_layers=1,
        d_model=32, n_heads=8, moving_average=5, modes=4)
    enc_len = cfg['encoder_sequence_len']
    out_len = cfg['output_sequence_len']
    dec_total = enc_len // 2 + out_len          # decoder sequence length (16)
    cfg['enc_index'] = get_frequency_modes(enc_len, cfg['modes'])
    cfg['dec_self_index'] = get_frequency_modes(dec_total, cfg['modes'])
    cfg['cross_index_q'] = get_frequency_modes(dec_total, cfg['modes'])
    cfg['cross_index_kv'] = get_frequency_modes(enc_len, cfg['modes'])

    key = jax.random.PRNGKey(0)
    kp, k1, k2, k3, k4 = jax.random.split(key, 5)
    params = init_params(kp, cfg)

    B = 2
    x_enc = jax.random.normal(k1, (B, enc_len, cfg['encoder_input_size']), jnp.float32)
    x_mark_enc = jax.random.normal(k2, (B, enc_len, 4), jnp.float32)
    label_plus_pred = cfg['decoder_sequence_len'] + out_len
    x_dec = jax.random.normal(k3, (B, label_plus_pred, cfg['decoder_input_size']),
                              jnp.float32)
    x_mark_dec = jax.random.normal(k4, (B, label_plus_pred, 4), jnp.float32)

    fwd = jax.jit(lambda p, a, b_, c, d: fedformer_forward(p, cfg, a, b_, c, d))
    out = fwd(params, x_enc, x_dec, x_mark_enc, x_mark_dec)
    out = jax.block_until_ready(out)
    assert out.shape == (B, out_len, cfg['decoder_output_size'])
    assert bool(jnp.all(jnp.isfinite(out)))
    print("KERNEL_OK")
</pallas_src>

<mosaic_0001>
module attributes {stable_mosaic.version = 11 : i64} {
  func.func @_series_decomp_kernel(%arg0: i32, %arg1: memref<2x16x4xf32, #tpu.memory_space<vmem>>, %arg2: memref<2x16x4xf32, #tpu.memory_space<vmem>>, %arg3: memref<2x16x4xf32, #tpu.memory_space<vmem>>) attributes {dimension_semantics = [#tpu.dimension_semantics<parallel>], iteration_bounds = array<i64: 1>, scalar_prefetch = 0 : i64, scratch_operands = 0 : i64, tpu.core_type = #tpu.core_type<tc>, window_params = [{pipeline_mode = #tpu.pipeline_mode<synchronous>, transform_indices = @transform_0, window_bounds = array<i64: 2, 16, 4>}, {pipeline_mode = #tpu.pipeline_mode<synchronous>, transform_indices = @transform_1, window_bounds = array<i64: 2, 16, 4>}, {pipeline_mode = #tpu.pipeline_mode<synchronous>, transform_indices = @transform_2, window_bounds = array<i64: 2, 16, 4>}]} {
    %0 = tpu.iota {dimensions = array<i32: 0>} : vector<16x16xi32>
    %1 = tpu.iota {dimensions = array<i32: 1>} : vector<16x16xi32>
    %cst = arith.constant 0.000000e+00 : f32
    %2 = vector.broadcast %cst : f32 to vector<16x16xf32>
    %c-2_i32 = arith.constant -2 : i32
    %3 = vector.broadcast %c-2_i32 : i32 to vector<16x16xi32>
    %4 = arith.addi %0, %3 : vector<16x16xi32>
    %c0_i32 = arith.constant 0 : i32
    %c15_i32 = arith.constant 15 : i32
    %5 = vector.broadcast %c0_i32 : i32 to vector<16x16xi32>
    %6 = arith.maxsi %5, %4 : vector<16x16xi32>
    %7 = vector.broadcast %c15_i32 : i32 to vector<16x16xi32>
    %8 = arith.minsi %7, %6 : vector<16x16xi32>
    %9 = arith.cmpi eq, %1, %8 : vector<16x16xi32>
    %10 = arith.extui %9 : vector<16x16xi1> to vector<16x16xi32>
    %11 = arith.sitofp %10 : vector<16x16xi32> to vector<16x16xf32>
    %12 = arith.addf %2, %11 : vector<16x16xf32>
    %c-1_i32 = arith.constant -1 : i32
    %13 = vector.broadcast %c-1_i32 : i32 to vector<16x16xi32>
    %14 = arith.addi %0, %13 : vector<16x16xi32>
    %c0_i32_0 = arith.constant 0 : i32
    %c15_i32_1 = arith.constant 15 : i32
    %15 = vector.broadcast %c0_i32_0 : i32 to vector<16x16xi32>
    %16 = arith.maxsi %15, %14 : vector<16x16xi32>
    %17 = vector.broadcast %c15_i32_1 : i32 to vector<16x16xi32>
    %18 = arith.minsi %17, %16 : vector<16x16xi32>
    %19 = arith.cmpi eq, %1, %18 : vector<16x16xi32>
    %20 = arith.extui %19 : vector<16x16xi1> to vector<16x16xi32>
    %21 = arith.sitofp %20 : vector<16x16xi32> to vector<16x16xf32>
    %22 = arith.addf %12, %21 : vector<16x16xf32>
    %c0_i32_2 = arith.constant 0 : i32
    %23 = vector.broadcast %c0_i32_2 : i32 to vector<16x16xi32>
    %24 = arith.addi %0, %23 : vector<16x16xi32>
    %c0_i32_3 = arith.constant 0 : i32
    %c15_i32_4 = arith.constant 15 : i32
    %25 = vector.broadcast %c0_i32_3 : i32 to vector<16x16xi32>
    %26 = arith.maxsi %25, %24 : vector<16x16xi32>
    %27 = vector.broadcast %c15_i32_4 : i32 to vector<16x16xi32>
    %28 = arith.minsi %27, %26 : vector<16x16xi32>
    %29 = arith.cmpi eq, %1, %28 : vector<16x16xi32>
    %30 = arith.extui %29 : vector<16x16xi1> to vector<16x16xi32>
    %31 = arith.sitofp %30 : vector<16x16xi32> to vector<16x16xf32>
    %32 = arith.addf %22, %31 : vector<16x16xf32>
    %c1_i32 = arith.constant 1 : i32
    %33 = vector.broadcast %c1_i32 : i32 to vector<16x16xi32>
    %34 = arith.addi %0, %33 : vector<16x16xi32>
    %c0_i32_5 = arith.constant 0 : i32
    %c15_i32_6 = arith.constant 15 : i32
    %35 = vector.broadcast %c0_i32_5 : i32 to vector<16x16xi32>
    %36 = arith.maxsi %35, %34 : vector<16x16xi32>
    %37 = vector.broadcast %c15_i32_6 : i32 to vector<16x16xi32>
    %38 = arith.minsi %37, %36 : vector<16x16xi32>
    %39 = arith.cmpi eq, %1, %38 : vector<16x16xi32>
    %40 = arith.extui %39 : vector<16x16xi1> to vector<16x16xi32>
    %41 = arith.sitofp %40 : vector<16x16xi32> to vector<16x16xf32>
    %42 = arith.addf %32, %41 : vector<16x16xf32>
    %c2_i32 = arith.constant 2 : i32
    %43 = vector.broadcast %c2_i32 : i32 to vector<16x16xi32>
    %44 = arith.addi %0, %43 : vector<16x16xi32>
    %c0_i32_7 = arith.constant 0 : i32
    %c15_i32_8 = arith.constant 15 : i32
    %45 = vector.broadcast %c0_i32_7 : i32 to vector<16x16xi32>
    %46 = arith.maxsi %45, %44 : vector<16x16xi32>
    %47 = vector.broadcast %c15_i32_8 : i32 to vector<16x16xi32>
    %48 = arith.minsi %47, %46 : vector<16x16xi32>
    %49 = arith.cmpi eq, %1, %48 : vector<16x16xi32>
    %50 = arith.extui %49 : vector<16x16xi1> to vector<16x16xi32>
    %51 = arith.sitofp %50 : vector<16x16xi32> to vector<16x16xf32>
    %52 = arith.addf %42, %51 : vector<16x16xf32>
    %cst_9 = arith.constant 2.000000e-01 : f32
    %53 = vector.broadcast %cst_9 : f32 to vector<16x16xf32>
    %54 = arith.mulf %52, %53 : vector<16x16xf32>
    %c0 = arith.constant 0 : index
    %c0_10 = arith.constant 0 : index
    %c0_11 = arith.constant 0 : index
    %55 = vector.load %arg1[%c0, %c0_10, %c0_11] : memref<2x16x4xf32, #tpu.memory_space<vmem>>, vector<1x16x4xf32>
    %56 = vector.shape_cast %55 : vector<1x16x4xf32> to vector<16x4xf32>
    %cst_12 = arith.constant dense<0.000000e+00> : vector<16x4xf32>
    %57 = tpu.matmul %54, %56, %cst_12 {dimension_numbers = #tpu.dot_dimension_numbers<[1], [0], [0], [1], [0, 0, 1, 1], [], []>} : vector<16x16xf32>, vector<16x4xf32>, vector<16x4xf32> -> vector<16x4xf32>
    %c0_13 = arith.constant 0 : index
    %c0_14 = arith.constant 0 : index
    %c0_15 = arith.constant 0 : index
    %58 = vector.load %arg3[%c0_13, %c0_14, %c0_15] : memref<2x16x4xf32, #tpu.memory_space<vmem>>, vector<1x16x4xf32>
    %59 = vector.shape_cast %58 : vector<1x16x4xf32> to vector<16x4xf32>
    %60 = vector.shape_cast %57 : vector<16x4xf32> to vector<1x16x4xf32>
    tpu.vector_store %arg3[%c0_13, %c0_14, %c0_15], %60 {strides = array<i32>} : memref<2x16x4xf32, #tpu.memory_space<vmem>>, vector<1x16x4xf32>,
    %61 = arith.subf %56, %57 : vector<16x4xf32>
    %c0_16 = arith.constant 0 : index
    %c0_17 = arith.constant 0 : index
    %c0_18 = arith.constant 0 : index
    %62 = vector.load %arg2[%c0_16, %c0_17, %c0_18] : memref<2x16x4xf32, #tpu.memory_space<vmem>>, vector<1x16x4xf32>
    %63 = vector.shape_cast %62 : vector<1x16x4xf32> to vector<16x4xf32>
    %64 = vector.shape_cast %61 : vector<16x4xf32> to vector<1x16x4xf32>
    tpu.vector_store %arg2[%c0_16, %c0_17, %c0_18], %64 {strides = array<i32>} : memref<2x16x4xf32, #tpu.memory_space<vmem>>, vector<1x16x4xf32>,
    %c1 = arith.constant 1 : index
    %c0_19 = arith.constant 0 : index
    %c0_20 = arith.constant 0 : index
    %65 = vector.load %arg1[%c1, %c0_19, %c0_20] : memref<2x16x4xf32, #tpu.memory_space<vmem>>, vector<1x16x4xf32>
    %66 = vector.shape_cast %65 : vector<1x16x4xf32> to vector<16x4xf32>
    %cst_21 = arith.constant dense<0.000000e+00> : vector<16x4xf32>
    %67 = tpu.matmul %54, %66, %cst_21 {dimension_numbers = #tpu.dot_dimension_numbers<[1], [0], [0], [1], [0, 0, 1, 1], [], []>} : vector<16x16xf32>, vector<16x4xf32>, vector<16x4xf32> -> vector<16x4xf32>
    %c1_22 = arith.constant 1 : index
    %c0_23 = arith.constant 0 : index
    %c0_24 = arith.constant 0 : index
    %68 = vector.load %arg3[%c1_22, %c0_23, %c0_24] : memref<2x16x4xf32, #tpu.memory_space<vmem>>, vector<1x16x4xf32>
    %69 = vector.shape_cast %68 : vector<1x16x4xf32> to vector<16x4xf32>
    %70 = vector.shape_cast %67 : vector<16x4xf32> to vector<1x16x4xf32>
    tpu.vector_store %arg3[%c1_22, %c0_23, %c0_24], %70 {strides = array<i32>} : memref<2x16x4xf32, #tpu.memory_space<vmem>>, vector<1x16x4xf32>,
    %71 = arith.subf %66, %67 : vector<16x4xf32>
    %c1_25 = arith.constant 1 : index
    %c0_26 = arith.constant 0 : index
    %c0_27 = arith.constant 0 : index
    %72 = vector.load %arg2[%c1_25, %c0_26, %c0_27] : memref<2x16x4xf32, #tpu.memory_space<vmem>>, vector<1x16x4xf32>
    %73 = vector.shape_cast %72 : vector<1x16x4xf32> to vector<16x4xf32>
    %74 = vector.shape_cast %71 : vector<16x4xf32> to vector<1x16x4xf32>
    tpu.vector_store %arg2[%c1_25, %c0_26, %c0_27], %74 {strides = array<i32>} : memref<2x16x4xf32, #tpu.memory_space<vmem>>, vector<1x16x4xf32>,
    return
  }
  func.func @transform_0(%arg0: i32) -> (i32, i32, i32) {
    %c0_i32 = arith.constant 0 : i32
    %c0_i32_0 = arith.constant 0 : i32
    %c0_i32_1 = arith.constant 0 : i32
    %c0_i32_2 = arith.constant 0 : i32
    return %c0_i32, %c0_i32_0, %c0_i32_1 : i32, i32, i32
  }
  func.func @transform_1(%arg0: i32) -> (i32, i32, i32) {
    %c0_i32 = arith.constant 0 : i32
    %c0_i32_0 = arith.constant 0 : i32
    %c0_i32_1 = arith.constant 0 : i32
    %c0_i32_2 = arith.constant 0 : i32
    return %c0_i32, %c0_i32_0, %c0_i32_1 : i32, i32, i32
  }
  func.func @transform_2(%arg0: i32) -> (i32, i32, i32) {
    %c0_i32 = arith.constant 0 : i32
    %c0_i32_0 = arith.constant 0 : i32
    %c0_i32_1 = arith.constant 0 : i32
    %c0_i32_2 = arith.constant 0 : i32
    return %c0_i32, %c0_i32_0, %c0_i32_1 : i32, i32, i32
  }
}

module attributes {stable_mosaic.version = 11 : i64} {
  func.func @_matmul_bias_kernel(%arg0: i32, %arg1: memref<32x32xf32, #tpu.memory_space<vmem>>, %arg2: memref<32x128xf32, #tpu.memory_space<vmem>>, %arg3: memref<1x128xf32, #tpu.memory_space<vmem>>, %arg4: memref<32x128xf32, #tpu.memory_space<vmem>>) attributes {dimension_semantics = [#tpu.dimension_semantics<parallel>], iteration_bounds = array<i64: 1>, scalar_prefetch = 0 : i64, scratch_operands = 0 : i64, tpu.core_type = #tpu.core_type<tc>, window_params = [{transform_indices = @transform_0, window_bounds = array<i64: 32, 32>}, {pipeline_mode = #tpu.pipeline_mode<synchronous>, transform_indices = @transform_1, window_bounds = array<i64: 32, 128>}, {pipeline_mode = #tpu.pipeline_mode<synchronous>, transform_indices = @transform_2, window_bounds = array<i64: 1, 128>}, {transform_indices = @transform_3, window_bounds = array<i64: 32, 128>}]} {
    %c0 = arith.constant 0 : index
    %c0_0 = arith.constant 0 : index
    %0 = vector.load %arg1[%c0, %c0_0] : memref<32x32xf32, #tpu.memory_space<vmem>>, vector<32x32xf32>
    %c0_1 = arith.constant 0 : index
    %c0_2 = arith.constant 0 : index
    %1 = vector.load %arg2[%c0_1, %c0_2] : memref<32x128xf32, #tpu.memory_space<vmem>>, vector<32x128xf32>
    %cst = arith.constant dense<0.000000e+00> : vector<32x128xf32>
    %2 = tpu.matmul %0, %1, %cst {dimension_numbers = #tpu.dot_dimension_numbers<[1], [0], [0], [1], [0, 0, 1, 1], [], []>} : vector<32x32xf32>, vector<32x128xf32>, vector<32x128xf32> -> vector<32x128xf32>
    %c0_3 = arith.constant 0 : index
    %c0_4 = arith.constant 0 : index
    %3 = vector.load %arg3[%c0_3, %c0_4] : memref<1x128xf32, #tpu.memory_space<vmem>>, vector<1x128xf32>
    %4 = vector.broadcast %3 : vector<1x128xf32> to vector<32x128xf32>
    %5 = arith.addf %2, %4 : vector<32x128xf32>
    %c0_5 = arith.constant 0 : index
    %c0_6 = arith.constant 0 : index
    %6 = vector.load %arg4[%c0_5, %c0_6] : memref<32x128xf32, #tpu.memory_space<vmem>>, vector<32x128xf32>
    tpu.vector_store %arg4[%c0_5, %c0_6], %5 {strides = array<i32>} : memref<32x128xf32, #tpu.memory_space<vmem>>, vector<32x128xf32>,
    return
  }
  func.func @transform_0(%arg0: i32) -> (i32, i32) {
    %c0_i32 = arith.constant 0 : i32
    %c0_i32_0 = arith.constant 0 : i32
    return %arg0, %c0_i32 : i32, i32
  }
  func.func @transform_1(%arg0: i32) -> (i32, i32) {
    %c0_i32 = arith.constant 0 : i32
    %c0_i32_0 = arith.constant 0 : i32
    %c0_i32_1 = arith.constant 0 : i32
    return %c0_i32, %c0_i32_0 : i32, i32
  }
  func.func @transform_2(%arg0: i32) -> (i32, i32) {
    %c0_i32 = arith.constant 0 : i32
    %c0_i32_0 = arith.constant 0 : i32
    %c0_i32_1 = arith.constant 0 : i32
    return %c0_i32, %c0_i32_0 : i32, i32
  }
  func.func @transform_3(%arg0: i32) -> (i32, i32) {
    %c0_i32 = arith.constant 0 : i32
    %c0_i32_0 = arith.constant 0 : i32
    return %arg0, %c0_i32 : i32, i32
  }
}

module attributes {stable_mosaic.version = 11 : i64} {
  func.func @_embed_kernel(%arg0: i32, %arg1: memref<2x16x4xf32, #tpu.memory_space<vmem>>, %arg2: memref<2x16x4xf32, #tpu.memory_space<vmem>>, %arg3: memref<3x4x32xf32, #tpu.memory_space<vmem>>, %arg4: memref<4x32xf32, #tpu.memory_space<vmem>>, %arg5: memref<2x16x32xf32, #tpu.memory_space<vmem>>) attributes {dimension_semantics = [#tpu.dimension_semantics<parallel>], iteration_bounds = array<i64: 1>, scalar_prefetch = 0 : i64, scratch_operands = 0 : i64, tpu.core_type = #tpu.core_type<tc>, window_params = [{pipeline_mode = #tpu.pipeline_mode<synchronous>, transform_indices = @transform_0, window_bounds = array<i64: 2, 16, 4>}, {pipeline_mode = #tpu.pipeline_mode<synchronous>, transform_indices = @transform_1, window_bounds = array<i64: 2, 16, 4>}, {pipeline_mode = #tpu.pipeline_mode<synchronous>, transform_indices = @transform_2, window_bounds = array<i64: 3, 4, 32>}, {pipeline_mode = #tpu.pipeline_mode<synchronous>, transform_indices = @transform_3, window_bounds = array<i64: 4, 32>}, {pipeline_mode = #tpu.pipeline_mode<synchronous>, transform_indices = @transform_4, window_bounds = array<i64: 2, 16, 32>}]} {
    %0 = tpu.iota {dimensions = array<i32: 0>} : vector<16x16xi32>
    %1 = tpu.iota {dimensions = array<i32: 1>} : vector<16x16xi32>
    %c15_i32 = arith.constant 15 : i32
    %2 = vector.broadcast %c15_i32 : i32 to vector<16x16xi32>
    %3 = arith.addi %0, %2 : vector<16x16xi32>
    %c16_i32 = arith.constant 16 : i32
    %c0_i32 = arith.constant 0 : i32
    %4 = arith.cmpi eq, %c16_i32, %c0_i32 : i32
    %c1_i32 = arith.constant 1 : i32
    %5 = arith.select %4, %c1_i32, %c16_i32 : i32
    %6 = vector.broadcast %5 : i32 to vector<16x16xi32>
    %7 = arith.remsi %3, %6 : vector<16x16xi32>
    %c0_i32_0 = arith.constant 0 : i32
    %8 = vector.broadcast %c0_i32_0 : i32 to vector<16x16xi32>
    %9 = arith.cmpi ne, %7, %8 : vector<16x16xi32>
    %c0_i32_1 = arith.constant 0 : i32
    %10 = vector.broadcast %c0_i32_1 : i32 to vector<16x16xi32>
    %11 = arith.cmpi slt, %7, %10 : vector<16x16xi32>
    %c0_i32_2 = arith.constant 0 : i32
    %12 = arith.cmpi slt, %5, %c0_i32_2 : i32
    %13 = vector.broadcast %12 : i1 to vector<16x16xi1>
    %14 = vector.broadcast %13 : vector<16x16xi1> to vector<16x16xi1>
    %15 = arith.xori %11, %14 : vector<16x16xi1>
    %16 = arith.andi %15, %9 : vector<16x16xi1>
    %17 = vector.broadcast %5 : i32 to vector<16x16xi32>
    %18 = arith.addi %7, %17 : vector<16x16xi32>
    %19 = arith.select %16, %18, %7 : vector<16x16xi1>, vector<16x16xi32>
    %20 = arith.cmpi eq, %1, %19 : vector<16x16xi32>
    %21 = arith.extui %20 : vector<16x16xi1> to vector<16x16xi32>
    %22 = arith.sitofp %21 : vector<16x16xi32> to vector<16x16xf32>
    %23 = tpu.iota {dimensions = array<i32: 0>} : vector<16x16xi32>
    %24 = tpu.iota {dimensions = array<i32: 1>} : vector<16x16xi32>
    %c17_i32 = arith.constant 17 : i32
    %25 = vector.broadcast %c17_i32 : i32 to vector<16x16xi32>
    %26 = arith.addi %23, %25 : vector<16x16xi32>
    %c16_i32_3 = arith.constant 16 : i32
    %c0_i32_4 = arith.constant 0 : i32
    %27 = arith.cmpi eq, %c16_i32_3, %c0_i32_4 : i32
    %c1_i32_5 = arith.constant 1 : i32
    %28 = arith.select %27, %c1_i32_5, %c16_i32_3 : i32
    %29 = vector.broadcast %28 : i32 to vector<16x16xi32>
    %30 = arith.remsi %26, %29 : vector<16x16xi32>
    %c0_i32_6 = arith.constant 0 : i32
    %31 = vector.broadcast %c0_i32_6 : i32 to vector<16x16xi32>
    %32 = arith.cmpi ne, %30, %31 : vector<16x16xi32>
    %c0_i32_7 = arith.constant 0 : i32
    %33 = vector.broadcast %c0_i32_7 : i32 to vector<16x16xi32>
    %34 = arith.cmpi slt, %30, %33 : vector<16x16xi32>
    %c0_i32_8 = arith.constant 0 : i32
    %35 = arith.cmpi slt, %28, %c0_i32_8 : i32
    %36 = vector.broadcast %35 : i1 to vector<16x16xi1>
    %37 = vector.broadcast %36 : vector<16x16xi1> to vector<16x16xi1>
    %38 = arith.xori %34, %37 : vector<16x16xi1>
    %39 = arith.andi %38, %32 : vector<16x16xi1>
    %40 = vector.broadcast %28 : i32 to vector<16x16xi32>
    %41 = arith.addi %30, %40 : vector<16x16xi32>
    %42 = arith.select %39, %41, %30 : vector<16x16xi1>, vector<16x16xi32>
    %43 = arith.cmpi eq, %24, %42 : vector<16x16xi32>
    %44 = arith.extui %43 : vector<16x16xi1> to vector<16x16xi32>
    %45 = arith.sitofp %44 : vector<16x16xi32> to vector<16x16xf32>
    %c0 = arith.constant 0 : index
    %c0_9 = arith.constant 0 : index
    %c0_10 = arith.constant 0 : index
    %46 = vector.load %arg3[%c0, %c0_9, %c0_10] : memref<3x4x32xf32, #tpu.memory_space<vmem>>, vector<1x4x32xf32>
    %47 = vector.shape_cast %46 : vector<1x4x32xf32> to vector<4x32xf32>
    %c1 = arith.constant 1 : index
    %c0_11 = arith.constant 0 : index
    %c0_12 = arith.constant 0 : index
    %48 = vector.load %arg3[%c1, %c0_11, %c0_12] : memref<3x4x32xf32, #tpu.memory_space<vmem>>, vector<1x4x32xf32>
    %49 = vector.shape_cast %48 : vector<1x4x32xf32> to vector<4x32xf32>
    %c2 = arith.constant 2 : index
    %c0_13 = arith.constant 0 : index
    %c0_14 = arith.constant 0 : index
    %50 = vector.load %arg3[%c2, %c0_13, %c0_14] : memref<3x4x32xf32, #tpu.memory_space<vmem>>, vector<1x4x32xf32>
    %51 = vector.shape_cast %50 : vector<1x4x32xf32> to vector<4x32xf32>
    %c0_15 = arith.constant 0 : index
    %c0_16 = arith.constant 0 : index
    %52 = vector.load %arg4[%c0_15, %c0_16] : memref<4x32xf32, #tpu.memory_space<vmem>>, vector<4x32xf32>
    %c0_17 = arith.constant 0 : index
    %c0_18 = arith.constant 0 : index
    %c0_19 = arith.constant 0 : index
    %53 = vector.load %arg1[%c0_17, %c0_18, %c0_19] : memref<2x16x4xf32, #tpu.memory_space<vmem>>, vector<1x16x4xf32>
    %54 = vector.shape_cast %53 : vector<1x16x4xf32> to vector<16x4xf32>
    %c0_20 = arith.constant 0 : index
    %c0_21 = arith.constant 0 : index
    %c0_22 = arith.constant 0 : index
    %55 = vector.load %arg2[%c0_20, %c0_21, %c0_22] : memref<2x16x4xf32, #tpu.memory_space<vmem>>, vector<1x16x4xf32>
    %56 = vector.shape_cast %55 : vector<1x16x4xf32> to vector<16x4xf32>
    %cst = arith.constant dense<0.000000e+00> : vector<16x4xf32>
    %57 = tpu.matmul %22, %54, %cst {dimension_numbers = #tpu.dot_dimension_numbers<[1], [0], [0], [1], [0, 0, 1, 1], [], []>} : vector<16x16xf32>, vector<16x4xf32>, vector<16x4xf32> -> vector<16x4xf32>
    %cst_23 = arith.constant dense<0.000000e+00> : vector<16x32xf32>
    %58 = tpu.matmul %57, %47, %cst_23 {dimension_numbers = #tpu.dot_dimension_numbers<[1], [0], [0], [1], [0, 0, 1, 1], [], []>} : vector<16x4xf32>, vector<4x32xf32>, vector<16x32xf32> -> vector<16x32xf32>
    %cst_24 = arith.constant dense<0.000000e+00> : vector<16x32xf32>
    %59 = tpu.matmul %54, %49, %cst_24 {dimension_numbers = #tpu.dot_dimension_numbers<[1], [0], [0], [1], [0, 0, 1, 1], [], []>} : vector<16x4xf32>, vector<4x32xf32>, vector<16x32xf32> -> vector<16x32xf32>
    %60 = arith.addf %58, %59 : vector<16x32xf32>
    %cst_25 = arith.constant dense<0.000000e+00> : vector<16x4xf32>
    %61 = tpu.matmul %45, %54, %cst_25 {dimension_numbers = #tpu.dot_dimension_numbers<[1], [0], [0], [1], [0, 0, 1, 1], [], []>} : vector<16x16xf32>, vector<16x4xf32>, vector<16x4xf32> -> vector<16x4xf32>
    %cst_26 = arith.constant dense<0.000000e+00> : vector<16x32xf32>
    %62 = tpu.matmul %61, %51, %cst_26 {dimension_numbers = #tpu.dot_dimension_numbers<[1], [0], [0], [1], [0, 0, 1, 1], [], []>} : vector<16x4xf32>, vector<4x32xf32>, vector<16x32xf32> -> vector<16x32xf32>
    %63 = arith.addf %60, %62 : vector<16x32xf32>
    %cst_27 = arith.constant dense<0.000000e+00> : vector<16x32xf32>
    %64 = tpu.matmul %56, %52, %cst_27 {dimension_numbers = #tpu.dot_dimension_numbers<[1], [0], [0], [1], [0, 0, 1, 1], [], []>} : vector<16x4xf32>, vector<4x32xf32>, vector<16x32xf32> -> vector<16x32xf32>
    %65 = arith.addf %63, %64 : vector<16x32xf32>
    %c0_28 = arith.constant 0 : index
    %c0_29 = arith.constant 0 : index
    %c0_30 = arith.constant 0 : index
    %66 = vector.load %arg5[%c0_28, %c0_29, %c0_30] : memref<2x16x32xf32, #tpu.memory_space<vmem>>, vector<1x16x32xf32>
    %67 = vector.shape_cast %66 : vector<1x16x32xf32> to vector<16x32xf32>
    %68 = vector.shape_cast %65 : vector<16x32xf32> to vector<1x16x32xf32>
    tpu.vector_store %arg5[%c0_28, %c0_29, %c0_30], %68 {strides = array<i32>} : memref<2x16x32xf32, #tpu.memory_space<vmem>>, vector<1x16x32xf32>,
    %c1_31 = arith.constant 1 : index
    %c0_32 = arith.constant 0 : index
    %c0_33 = arith.constant 0 : index
    %69 = vector.load %arg1[%c1_31, %c0_32, %c0_33] : memref<2x16x4xf32, #tpu.memory_space<vmem>>, vector<1x16x4xf32>
    %70 = vector.shape_cast %69 : vector<1x16x4xf32> to vector<16x4xf32>
    %c1_34 = arith.constant 1 : index
    %c0_35 = arith.constant 0 : index
    %c0_36 = arith.constant 0 : index
    %71 = vector.load %arg2[%c1_34, %c0_35, %c0_36] : memref<2x16x4xf32, #tpu.memory_space<vmem>>, vector<1x16x4xf32>
    %72 = vector.shape_cast %71 : vector<1x16x4xf32> to vector<16x4xf32>
    %cst_37 = arith.constant dense<0.000000e+00> : vector<16x4xf32>
    %73 = tpu.matmul %22, %70, %cst_37 {dimension_numbers = #tpu.dot_dimension_numbers<[1], [0], [0], [1], [0, 0, 1, 1], [], []>} : vector<16x16xf32>, vector<16x4xf32>, vector<16x4xf32> -> vector<16x4xf32>
    %cst_38 = arith.constant dense<0.000000e+00> : vector<16x32xf32>
    %74 = tpu.matmul %73, %47, %cst_38 {dimension_numbers = #tpu.dot_dimension_numbers<[1], [0], [0], [1], [0, 0, 1, 1], [], []>} : vector<16x4xf32>, vector<4x32xf32>, vector<16x32xf32> -> vector<16x32xf32>
    %cst_39 = arith.constant dense<0.000000e+00> : vector<16x32xf32>
    %75 = tpu.matmul %70, %49, %cst_39 {dimension_numbers = #tpu.dot_dimension_numbers<[1], [0], [0], [1], [0, 0, 1, 1], [], []>} : vector<16x4xf32>, vector<4x32xf32>, vector<16x32xf32> -> vector<16x32xf32>
    %76 = arith.addf %74, %75 : vector<16x32xf32>
    %cst_40 = arith.constant dense<0.000000e+00> : vector<16x4xf32>
    %77 = tpu.matmul %45, %70, %cst_40 {dimension_numbers = #tpu.dot_dimension_numbers<[1], [0], [0], [1], [0, 0, 1, 1], [], []>} : vector<16x16xf32>, vector<16x4xf32>, vector<16x4xf32> -> vector<16x4xf32>
    %cst_41 = arith.constant dense<0.000000e+00> : vector<16x32xf32>
    %78 = tpu.matmul %77, %51, %cst_41 {dimension_numbers = #tpu.dot_dimension_numbers<[1], [0], [0], [1], [0, 0, 1, 1], [], []>} : vector<16x4xf32>, vector<4x32xf32>, vector<16x32xf32> -> vector<16x32xf32>
    %79 = arith.addf %76, %78 : vector<16x32xf32>
    %cst_42 = arith.constant dense<0.000000e+00> : vector<16x32xf32>
    %80 = tpu.matmul %72, %52, %cst_42 {dimension_numbers = #tpu.dot_dimension_numbers<[1], [0], [0], [1], [0, 0, 1, 1], [], []>} : vector<16x4xf32>, vector<4x32xf32>, vector<16x32xf32> -> vector<16x32xf32>
    %81 = arith.addf %79, %80 : vector<16x32xf32>
    %c1_43 = arith.constant 1 : index
    %c0_44 = arith.constant 0 : index
    %c0_45 = arith.constant 0 : index
    %82 = vector.load %arg5[%c1_43, %c0_44, %c0_45] : memref<2x16x32xf32, #tpu.memory_space<vmem>>, vector<1x16x32xf32>
    %83 = vector.shape_cast %82 : vector<1x16x32xf32> to vector<16x32xf32>
    %84 = vector.shape_cast %81 : vector<16x32xf32> to vector<1x16x32xf32>
    tpu.vector_store %arg5[%c1_43, %c0_44, %c0_45], %84 {strides = array<i32>} : memref<2x16x32xf32, #tpu.memory_space<vmem>>, vector<1x16x32xf32>,
    return
  }
  func.func @transform_0(%arg0: i32) -> (i32, i32, i32) {
    %c0_i32 = arith.constant 0 : i32
    %c0_i32_0 = arith.constant 0 : i32
    %c0_i32_1 = arith.constant 0 : i32
    %c0_i32_2 = arith.constant 0 : i32
    return %c0_i32, %c0_i32_0, %c0_i32_1 : i32, i32, i32
  }
  func.func @transform_1(%arg0: i32) -> (i32, i32, i32) {
    %c0_i32 = arith.constant 0 : i32
    %c0_i32_0 = arith.constant 0 : i32
    %c0_i32_1 = arith.constant 0 : i32
    %c0_i32_2 = arith.constant 0 : i32
    return %c0_i32, %c0_i32_0, %c0_i32_1 : i32, i32, i32
  }
  func.func @transform_2(%arg0: i32) -> (i32, i32, i32) {
    %c0_i32 = arith.constant 0 : i32
    %c0_i32_0 = arith.constant 0 : i32
    %c0_i32_1 = arith.constant 0 : i32
    %c0_i32_2 = arith.constant 0 : i32
    return %c0_i32, %c0_i32_0, %c0_i32_1 : i32, i32, i32
  }
  func.func @transform_3(%arg0: i32) -> (i32, i32) {
    %c0_i32 = arith.constant 0 : i32
    %c0_i32_0 = arith.constant 0 : i32
    %c0_i32_1 = arith.constant 0 : i32
    return %c0_i32, %c0_i32_0 : i32, i32
  }
  func.func @transform_4(%arg0: i32) -> (i32, i32, i32) {
    %c0_i32 = arith.constant 0 : i32
    %c0_i32_0 = arith.constant 0 : i32
    %c0_i32_1 = arith.constant 0 : i32
    %c0_i32_2 = arith.constant 0 : i32
    return %c0_i32, %c0_i32_0, %c0_i32_1 : i32, i32, i32
  }
}

module attributes {stable_mosaic.version = 11 : i64} {
  func.func @_add_decomp_kernel(%arg0: i32, %arg1: memref<2x16x32xf32, #tpu.memory_space<vmem>>, %arg2: memref<2x16x32xf32, #tpu.memory_space<vmem>>, %arg3: memref<2x16x32xf32, #tpu.memory_space<vmem>>, %arg4: memref<2x16x32xf32, #tpu.memory_space<vmem>>) attributes {dimension_semantics = [#tpu.dimension_semantics<parallel>], iteration_bounds = array<i64: 1>, scalar_prefetch = 0 : i64, scratch_operands = 0 : i64, tpu.core_type = #tpu.core_type<tc>, window_params = [{pipeline_mode = #tpu.pipeline_mode<synchronous>, transform_indices = @transform_0, window_bounds = array<i64: 2, 16, 32>}, {pipeline_mode = #tpu.pipeline_mode<synchronous>, transform_indices = @transform_1, window_bounds = array<i64: 2, 16, 32>}, {pipeline_mode = #tpu.pipeline_mode<synchronous>, transform_indices = @transform_2, window_bounds = array<i64: 2, 16, 32>}, {pipeline_mode = #tpu.pipeline_mode<synchronous>, transform_indices = @transform_3, window_bounds = array<i64: 2, 16, 32>}]} {
    %0 = tpu.iota {dimensions = array<i32: 0>} : vector<16x16xi32>
    %1 = tpu.iota {dimensions = array<i32: 1>} : vector<16x16xi32>
    %cst = arith.constant 0.000000e+00 : f32
    %2 = vector.broadcast %cst : f32 to vector<16x16xf32>
    %c-2_i32 = arith.constant -2 : i32
    %3 = vector.broadcast %c-2_i32 : i32 to vector<16x16xi32>
    %4 = arith.addi %0, %3 : vector<16x16xi32>
    %c0_i32 = arith.constant 0 : i32
    %c15_i32 = arith.constant 15 : i32
    %5 = vector.broadcast %c0_i32 : i32 to vector<16x16xi32>
    %6 = arith.maxsi %5, %4 : vector<16x16xi32>
    %7 = vector.broadcast %c15_i32 : i32 to vector<16x16xi32>
    %8 = arith.minsi %7, %6 : vector<16x16xi32>
    %9 = arith.cmpi eq, %1, %8 : vector<16x16xi32>
    %10 = arith.extui %9 : vector<16x16xi1> to vector<16x16xi32>
    %11 = arith.sitofp %10 : vector<16x16xi32> to vector<16x16xf32>
    %12 = arith.addf %2, %11 : vector<16x16xf32>
    %c-1_i32 = arith.constant -1 : i32
    %13 = vector.broadcast %c-1_i32 : i32 to vector<16x16xi32>
    %14 = arith.addi %0, %13 : vector<16x16xi32>
    %c0_i32_0 = arith.constant 0 : i32
    %c15_i32_1 = arith.constant 15 : i32
    %15 = vector.broadcast %c0_i32_0 : i32 to vector<16x16xi32>
    %16 = arith.maxsi %15, %14 : vector<16x16xi32>
    %17 = vector.broadcast %c15_i32_1 : i32 to vector<16x16xi32>
    %18 = arith.minsi %17, %16 : vector<16x16xi32>
    %19 = arith.cmpi eq, %1, %18 : vector<16x16xi32>
    %20 = arith.extui %19 : vector<16x16xi1> to vector<16x16xi32>
    %21 = arith.sitofp %20 : vector<16x16xi32> to vector<16x16xf32>
    %22 = arith.addf %12, %21 : vector<16x16xf32>
    %c0_i32_2 = arith.constant 0 : i32
    %23 = vector.broadcast %c0_i32_2 : i32 to vector<16x16xi32>
    %24 = arith.addi %0, %23 : vector<16x16xi32>
    %c0_i32_3 = arith.constant 0 : i32
    %c15_i32_4 = arith.constant 15 : i32
    %25 = vector.broadcast %c0_i32_3 : i32 to vector<16x16xi32>
    %26 = arith.maxsi %25, %24 : vector<16x16xi32>
    %27 = vector.broadcast %c15_i32_4 : i32 to vector<16x16xi32>
    %28 = arith.minsi %27, %26 : vector<16x16xi32>
    %29 = arith.cmpi eq, %1, %28 : vector<16x16xi32>
    %30 = arith.extui %29 : vector<16x16xi1> to vector<16x16xi32>
    %31 = arith.sitofp %30 : vector<16x16xi32> to vector<16x16xf32>
    %32 = arith.addf %22, %31 : vector<16x16xf32>
    %c1_i32 = arith.constant 1 : i32
    %33 = vector.broadcast %c1_i32 : i32 to vector<16x16xi32>
    %34 = arith.addi %0, %33 : vector<16x16xi32>
    %c0_i32_5 = arith.constant 0 : i32
    %c15_i32_6 = arith.constant 15 : i32
    %35 = vector.broadcast %c0_i32_5 : i32 to vector<16x16xi32>
    %36 = arith.maxsi %35, %34 : vector<16x16xi32>
    %37 = vector.broadcast %c15_i32_6 : i32 to vector<16x16xi32>
    %38 = arith.minsi %37, %36 : vector<16x16xi32>
    %39 = arith.cmpi eq, %1, %38 : vector<16x16xi32>
    %40 = arith.extui %39 : vector<16x16xi1> to vector<16x16xi32>
    %41 = arith.sitofp %40 : vector<16x16xi32> to vector<16x16xf32>
    %42 = arith.addf %32, %41 : vector<16x16xf32>
    %c2_i32 = arith.constant 2 : i32
    %43 = vector.broadcast %c2_i32 : i32 to vector<16x16xi32>
    %44 = arith.addi %0, %43 : vector<16x16xi32>
    %c0_i32_7 = arith.constant 0 : i32
    %c15_i32_8 = arith.constant 15 : i32
    %45 = vector.broadcast %c0_i32_7 : i32 to vector<16x16xi32>
    %46 = arith.maxsi %45, %44 : vector<16x16xi32>
    %47 = vector.broadcast %c15_i32_8 : i32 to vector<16x16xi32>
    %48 = arith.minsi %47, %46 : vector<16x16xi32>
    %49 = arith.cmpi eq, %1, %48 : vector<16x16xi32>
    %50 = arith.extui %49 : vector<16x16xi1> to vector<16x16xi32>
    %51 = arith.sitofp %50 : vector<16x16xi32> to vector<16x16xf32>
    %52 = arith.addf %42, %51 : vector<16x16xf32>
    %cst_9 = arith.constant 2.000000e-01 : f32
    %53 = vector.broadcast %cst_9 : f32 to vector<16x16xf32>
    %54 = arith.mulf %52, %53 : vector<16x16xf32>
    %c0 = arith.constant 0 : index
    %c0_10 = arith.constant 0 : index
    %c0_11 = arith.constant 0 : index
    %55 = vector.load %arg1[%c0, %c0_10, %c0_11] : memref<2x16x32xf32, #tpu.memory_space<vmem>>, vector<1x16x32xf32>
    %56 = vector.shape_cast %55 : vector<1x16x32xf32> to vector<16x32xf32>
    %c0_12 = arith.constant 0 : index
    %c0_13 = arith.constant 0 : index
    %c0_14 = arith.constant 0 : index
    %57 = vector.load %arg2[%c0_12, %c0_13, %c0_14] : memref<2x16x32xf32, #tpu.memory_space<vmem>>, vector<1x16x32xf32>
    %58 = vector.shape_cast %57 : vector<1x16x32xf32> to vector<16x32xf32>
    %59 = arith.addf %56, %58 : vector<16x32xf32>
    %cst_15 = arith.constant dense<0.000000e+00> : vector<16x32xf32>
    %60 = tpu.matmul %54, %59, %cst_15 {dimension_numbers = #tpu.dot_dimension_numbers<[1], [0], [0], [1], [0, 0, 1, 1], [], []>} : vector<16x16xf32>, vector<16x32xf32>, vector<16x32xf32> -> vector<16x32xf32>
    %c0_16 = arith.constant 0 : index
    %c0_17 = arith.constant 0 : index
    %c0_18 = arith.constant 0 : index
    %61 = vector.load %arg4[%c0_16, %c0_17, %c0_18] : memref<2x16x32xf32, #tpu.memory_space<vmem>>, vector<1x16x32xf32>
    %62 = vector.shape_cast %61 : vector<1x16x32xf32> to vector<16x32xf32>
    %63 = vector.shape_cast %60 : vector<16x32xf32> to vector<1x16x32xf32>
    tpu.vector_store %arg4[%c0_16, %c0_17, %c0_18], %63 {strides = array<i32>} : memref<2x16x32xf32, #tpu.memory_space<vmem>>, vector<1x16x32xf32>,
    %64 = arith.subf %59, %60 : vector<16x32xf32>
    %c0_19 = arith.constant 0 : index
    %c0_20 = arith.constant 0 : index
    %c0_21 = arith.constant 0 : index
    %65 = vector.load %arg3[%c0_19, %c0_20, %c0_21] : memref<2x16x32xf32, #tpu.memory_space<vmem>>, vector<1x16x32xf32>
    %66 = vector.shape_cast %65 : vector<1x16x32xf32> to vector<16x32xf32>
    %67 = vector.shape_cast %64 : vector<16x32xf32> to vector<1x16x32xf32>
    tpu.vector_store %arg3[%c0_19, %c0_20, %c0_21], %67 {strides = array<i32>} : memref<2x16x32xf32, #tpu.memory_space<vmem>>, vector<1x16x32xf32>,
    %c1 = arith.constant 1 : index
    %c0_22 = arith.constant 0 : index
    %c0_23 = arith.constant 0 : index
    %68 = vector.load %arg1[%c1, %c0_22, %c0_23] : memref<2x16x32xf32, #tpu.memory_space<vmem>>, vector<1x16x32xf32>
    %69 = vector.shape_cast %68 : vector<1x16x32xf32> to vector<16x32xf32>
    %c1_24 = arith.constant 1 : index
    %c0_25 = arith.constant 0 : index
    %c0_26 = arith.constant 0 : index
    %70 = vector.load %arg2[%c1_24, %c0_25, %c0_26] : memref<2x16x32xf32, #tpu.memory_space<vmem>>, vector<1x16x32xf32>
    %71 = vector.shape_cast %70 : vector<1x16x32xf32> to vector<16x32xf32>
    %72 = arith.addf %69, %71 : vector<16x32xf32>
    %cst_27 = arith.constant dense<0.000000e+00> : vector<16x32xf32>
    %73 = tpu.matmul %54, %72, %cst_27 {dimension_numbers = #tpu.dot_dimension_numbers<[1], [0], [0], [1], [0, 0, 1, 1], [], []>} : vector<16x16xf32>, vector<16x32xf32>, vector<16x32xf32> -> vector<16x32xf32>
    %c1_28 = arith.constant 1 : index
    %c0_29 = arith.constant 0 : index
    %c0_30 = arith.constant 0 : index
    %74 = vector.load %arg4[%c1_28, %c0_29, %c0_30] : memref<2x16x32xf32, #tpu.memory_space<vmem>>, vector<1x16x32xf32>
    %75 = vector.shape_cast %74 : vector<1x16x32xf32> to vector<16x32xf32>
    %76 = vector.shape_cast %73 : vector<16x32xf32> to vector<1x16x32xf32>
    tpu.vector_store %arg4[%c1_28, %c0_29, %c0_30], %76 {strides = array<i32>} : memref<2x16x32xf32, #tpu.memory_space<vmem>>, vector<1x16x32xf32>,
    %77 = arith.subf %72, %73 : vector<16x32xf32>
    %c1_31 = arith.constant 1 : index
    %c0_32 = arith.constant 0 : index
    %c0_33 = arith.constant 0 : index
    %78 = vector.load %arg3[%c1_31, %c0_32, %c0_33] : memref<2x16x32xf32, #tpu.memory_space<vmem>>, vector<1x16x32xf32>
    %79 = vector.shape_cast %78 : vector<1x16x32xf32> to vector<16x32xf32>
    %80 = vector.shape_cast %77 : vector<16x32xf32> to vector<1x16x32xf32>
    tpu.vector_store %arg3[%c1_31, %c0_32, %c0_33], %80 {strides = array<i32>} : memref<2x16x32xf32, #tpu.memory_space<vmem>>, vector<1x16x32xf32>,
    return
  }
  func.func @transform_0(%arg0: i32) -> (i32, i32, i32) {
    %c0_i32 = arith.constant 0 : i32
    %c0_i32_0 = arith.constant 0 : i32
    %c0_i32_1 = arith.constant 0 : i32
    %c0_i32_2 = arith.constant 0 : i32
    return %c0_i32, %c0_i32_0, %c0_i32_1 : i32, i32, i32
  }
  func.func @transform_1(%arg0: i32) -> (i32, i32, i32) {
    %c0_i32 = arith.constant 0 : i32
    %c0_i32_0 = arith.constant 0 : i32
    %c0_i32_1 = arith.constant 0 : i32
    %c0_i32_2 = arith.constant 0 : i32
    return %c0_i32, %c0_i32_0, %c0_i32_1 : i32, i32, i32
  }
  func.func @transform_2(%arg0: i32) -> (i32, i32, i32) {
    %c0_i32 = arith.constant 0 : i32
    %c0_i32_0 = arith.constant 0 : i32
    %c0_i32_1 = arith.constant 0 : i32
    %c0_i32_2 = arith.constant 0 : i32
    return %c0_i32, %c0_i32_0, %c0_i32_1 : i32, i32, i32
  }
  func.func @transform_3(%arg0: i32) -> (i32, i32, i32) {
    %c0_i32 = arith.constant 0 : i32
    %c0_i32_0 = arith.constant 0 : i32
    %c0_i32_1 = arith.constant 0 : i32
    %c0_i32_2 = arith.constant 0 : i32
    return %c0_i32, %c0_i32_0, %c0_i32_1 : i32, i32, i32
  }
}

module attributes {stable_mosaic.version = 11 : i64} {
  func.func @_ffn_decomp_kernel(%arg0: i32, %arg1: memref<2x16x32xf32, #tpu.memory_space<vmem>>, %arg2: memref<32x64xf32, #tpu.memory_space<vmem>>, %arg3: memref<64x32xf32, #tpu.memory_space<vmem>>, %arg4: memref<2x16x32xf32, #tpu.memory_space<vmem>>, %arg5: memref<2x16x32xf32, #tpu.memory_space<vmem>>) attributes {dimension_semantics = [#tpu.dimension_semantics<parallel>], iteration_bounds = array<i64: 1>, scalar_prefetch = 0 : i64, scratch_operands = 0 : i64, tpu.core_type = #tpu.core_type<tc>, window_params = [{pipeline_mode = #tpu.pipeline_mode<synchronous>, transform_indices = @transform_0, window_bounds = array<i64: 2, 16, 32>}, {pipeline_mode = #tpu.pipeline_mode<synchronous>, transform_indices = @transform_1, window_bounds = array<i64: 32, 64>}, {pipeline_mode = #tpu.pipeline_mode<synchronous>, transform_indices = @transform_2, window_bounds = array<i64: 64, 32>}, {pipeline_mode = #tpu.pipeline_mode<synchronous>, transform_indices = @transform_3, window_bounds = array<i64: 2, 16, 32>}, {pipeline_mode = #tpu.pipeline_mode<synchronous>, transform_indices = @transform_4, window_bounds = array<i64: 2, 16, 32>}]} {
    %0 = tpu.iota {dimensions = array<i32: 0>} : vector<16x16xi32>
    %1 = tpu.iota {dimensions = array<i32: 1>} : vector<16x16xi32>
    %cst = arith.constant 0.000000e+00 : f32
    %2 = vector.broadcast %cst : f32 to vector<16x16xf32>
    %c-2_i32 = arith.constant -2 : i32
    %3 = vector.broadcast %c-2_i32 : i32 to vector<16x16xi32>
    %4 = arith.addi %0, %3 : vector<16x16xi32>
    %c0_i32 = arith.constant 0 : i32
    %c15_i32 = arith.constant 15 : i32
    %5 = vector.broadcast %c0_i32 : i32 to vector<16x16xi32>
    %6 = arith.maxsi %5, %4 : vector<16x16xi32>
    %7 = vector.broadcast %c15_i32 : i32 to vector<16x16xi32>
    %8 = arith.minsi %7, %6 : vector<16x16xi32>
    %9 = arith.cmpi eq, %1, %8 : vector<16x16xi32>
    %10 = arith.extui %9 : vector<16x16xi1> to vector<16x16xi32>
    %11 = arith.sitofp %10 : vector<16x16xi32> to vector<16x16xf32>
    %12 = arith.addf %2, %11 : vector<16x16xf32>
    %c-1_i32 = arith.constant -1 : i32
    %13 = vector.broadcast %c-1_i32 : i32 to vector<16x16xi32>
    %14 = arith.addi %0, %13 : vector<16x16xi32>
    %c0_i32_0 = arith.constant 0 : i32
    %c15_i32_1 = arith.constant 15 : i32
    %15 = vector.broadcast %c0_i32_0 : i32 to vector<16x16xi32>
    %16 = arith.maxsi %15, %14 : vector<16x16xi32>
    %17 = vector.broadcast %c15_i32_1 : i32 to vector<16x16xi32>
    %18 = arith.minsi %17, %16 : vector<16x16xi32>
    %19 = arith.cmpi eq, %1, %18 : vector<16x16xi32>
    %20 = arith.extui %19 : vector<16x16xi1> to vector<16x16xi32>
    %21 = arith.sitofp %20 : vector<16x16xi32> to vector<16x16xf32>
    %22 = arith.addf %12, %21 : vector<16x16xf32>
    %c0_i32_2 = arith.constant 0 : i32
    %23 = vector.broadcast %c0_i32_2 : i32 to vector<16x16xi32>
    %24 = arith.addi %0, %23 : vector<16x16xi32>
    %c0_i32_3 = arith.constant 0 : i32
    %c15_i32_4 = arith.constant 15 : i32
    %25 = vector.broadcast %c0_i32_3 : i32 to vector<16x16xi32>
    %26 = arith.maxsi %25, %24 : vector<16x16xi32>
    %27 = vector.broadcast %c15_i32_4 : i32 to vector<16x16xi32>
    %28 = arith.minsi %27, %26 : vector<16x16xi32>
    %29 = arith.cmpi eq, %1, %28 : vector<16x16xi32>
    %30 = arith.extui %29 : vector<16x16xi1> to vector<16x16xi32>
    %31 = arith.sitofp %30 : vector<16x16xi32> to vector<16x16xf32>
    %32 = arith.addf %22, %31 : vector<16x16xf32>
    %c1_i32 = arith.constant 1 : i32
    %33 = vector.broadcast %c1_i32 : i32 to vector<16x16xi32>
    %34 = arith.addi %0, %33 : vector<16x16xi32>
    %c0_i32_5 = arith.constant 0 : i32
    %c15_i32_6 = arith.constant 15 : i32
    %35 = vector.broadcast %c0_i32_5 : i32 to vector<16x16xi32>
    %36 = arith.maxsi %35, %34 : vector<16x16xi32>
    %37 = vector.broadcast %c15_i32_6 : i32 to vector<16x16xi32>
    %38 = arith.minsi %37, %36 : vector<16x16xi32>
    %39 = arith.cmpi eq, %1, %38 : vector<16x16xi32>
    %40 = arith.extui %39 : vector<16x16xi1> to vector<16x16xi32>
    %41 = arith.sitofp %40 : vector<16x16xi32> to vector<16x16xf32>
    %42 = arith.addf %32, %41 : vector<16x16xf32>
    %c2_i32 = arith.constant 2 : i32
    %43 = vector.broadcast %c2_i32 : i32 to vector<16x16xi32>
    %44 = arith.addi %0, %43 : vector<16x16xi32>
    %c0_i32_7 = arith.constant 0 : i32
    %c15_i32_8 = arith.constant 15 : i32
    %45 = vector.broadcast %c0_i32_7 : i32 to vector<16x16xi32>
    %46 = arith.maxsi %45, %44 : vector<16x16xi32>
    %47 = vector.broadcast %c15_i32_8 : i32 to vector<16x16xi32>
    %48 = arith.minsi %47, %46 : vector<16x16xi32>
    %49 = arith.cmpi eq, %1, %48 : vector<16x16xi32>
    %50 = arith.extui %49 : vector<16x16xi1> to vector<16x16xi32>
    %51 = arith.sitofp %50 : vector<16x16xi32> to vector<16x16xf32>
    %52 = arith.addf %42, %51 : vector<16x16xf32>
    %cst_9 = arith.constant 2.000000e-01 : f32
    %53 = vector.broadcast %cst_9 : f32 to vector<16x16xf32>
    %54 = arith.mulf %52, %53 : vector<16x16xf32>
    %c0 = arith.constant 0 : index
    %c0_10 = arith.constant 0 : index
    %55 = vector.load %arg2[%c0, %c0_10] : memref<32x64xf32, #tpu.memory_space<vmem>>, vector<32x64xf32>
    %c0_11 = arith.constant 0 : index
    %c0_12 = arith.constant 0 : index
    %56 = vector.load %arg3[%c0_11, %c0_12] : memref<64x32xf32, #tpu.memory_space<vmem>>, vector<64x32xf32>
    %c0_13 = arith.constant 0 : index
    %c0_14 = arith.constant 0 : index
    %c0_15 = arith.constant 0 : index
    %57 = vector.load %arg1[%c0_13, %c0_14, %c0_15] : memref<2x16x32xf32, #tpu.memory_space<vmem>>, vector<1x16x32xf32>
    %58 = vector.shape_cast %57 : vector<1x16x32xf32> to vector<16x32xf32>
    %cst_16 = arith.constant dense<0.000000e+00> : vector<16x64xf32>
    %59 = tpu.matmul %58, %55, %cst_16 {dimension_numbers = #tpu.dot_dimension_numbers<[1], [0], [0], [1], [0, 0, 1, 1], [], []>} : vector<16x32xf32>, vector<32x64xf32>, vector<16x64xf32> -> vector<16x64xf32>
    %cst_17 = arith.constant 0.000000e+00 : f32
    %60 = vector.broadcast %cst_17 : f32 to vector<16x64xf32>
    %61 = arith.maximumf %59, %60 : vector<16x64xf32>
    %cst_18 = arith.constant dense<0.000000e+00> : vector<16x32xf32>
    %62 = tpu.matmul %61, %56, %cst_18 {dimension_numbers = #tpu.dot_dimension_numbers<[1], [0], [0], [1], [0, 0, 1, 1], [], []>} : vector<16x64xf32>, vector<64x32xf32>, vector<16x32xf32> -> vector<16x32xf32>
    %63 = arith.addf %58, %62 : vector<16x32xf32>
    %cst_19 = arith.constant dense<0.000000e+00> : vector<16x32xf32>
    %64 = tpu.matmul %54, %63, %cst_19 {dimension_numbers = #tpu.dot_dimension_numbers<[1], [0], [0], [1], [0, 0, 1, 1], [], []>} : vector<16x16xf32>, vector<16x32xf32>, vector<16x32xf32> -> vector<16x32xf32>
    %c0_20 = arith.constant 0 : index
    %c0_21 = arith.constant 0 : index
    %c0_22 = arith.constant 0 : index
    %65 = vector.load %arg5[%c0_20, %c0_21, %c0_22] : memref<2x16x32xf32, #tpu.memory_space<vmem>>, vector<1x16x32xf32>
    %66 = vector.shape_cast %65 : vector<1x16x32xf32> to vector<16x32xf32>
    %67 = vector.shape_cast %64 : vector<16x32xf32> to vector<1x16x32xf32>
    tpu.vector_store %arg5[%c0_20, %c0_21, %c0_22], %67 {strides = array<i32>} : memref<2x16x32xf32, #tpu.memory_space<vmem>>, vector<1x16x32xf32>,
    %68 = arith.subf %63, %64 : vector<16x32xf32>
    %c0_23 = arith.constant 0 : index
    %c0_24 = arith.constant 0 : index
    %c0_25 = arith.constant 0 : index
    %69 = vector.load %arg4[%c0_23, %c0_24, %c0_25] : memref<2x16x32xf32, #tpu.memory_space<vmem>>, vector<1x16x32xf32>
    %70 = vector.shape_cast %69 : vector<1x16x32xf32> to vector<16x32xf32>
    %71 = vector.shape_cast %68 : vector<16x32xf32> to vector<1x16x32xf32>
    tpu.vector_store %arg4[%c0_23, %c0_24, %c0_25], %71 {strides = array<i32>} : memref<2x16x32xf32, #tpu.memory_space<vmem>>, vector<1x16x32xf32>,
    %c1 = arith.constant 1 : index
    %c0_26 = arith.constant 0 : index
    %c0_27 = arith.constant 0 : index
    %72 = vector.load %arg1[%c1, %c0_26, %c0_27] : memref<2x16x32xf32, #tpu.memory_space<vmem>>, vector<1x16x32xf32>
    %73 = vector.shape_cast %72 : vector<1x16x32xf32> to vector<16x32xf32>
    %cst_28 = arith.constant dense<0.000000e+00> : vector<16x64xf32>
    %74 = tpu.matmul %73, %55, %cst_28 {dimension_numbers = #tpu.dot_dimension_numbers<[1], [0], [0], [1], [0, 0, 1, 1], [], []>} : vector<16x32xf32>, vector<32x64xf32>, vector<16x64xf32> -> vector<16x64xf32>
    %cst_29 = arith.constant 0.000000e+00 : f32
    %75 = vector.broadcast %cst_29 : f32 to vector<16x64xf32>
    %76 = arith.maximumf %74, %75 : vector<16x64xf32>
    %cst_30 = arith.constant dense<0.000000e+00> : vector<16x32xf32>
    %77 = tpu.matmul %76, %56, %cst_30 {dimension_numbers = #tpu.dot_dimension_numbers<[1], [0], [0], [1], [0, 0, 1, 1], [], []>} : vector<16x64xf32>, vector<64x32xf32>, vector<16x32xf32> -> vector<16x32xf32>
    %78 = arith.addf %73, %77 : vector<16x32xf32>
    %cst_31 = arith.constant dense<0.000000e+00> : vector<16x32xf32>
    %79 = tpu.matmul %54, %78, %cst_31 {dimension_numbers = #tpu.dot_dimension_numbers<[1], [0], [0], [1], [0, 0, 1, 1], [], []>} : vector<16x16xf32>, vector<16x32xf32>, vector<16x32xf32> -> vector<16x32xf32>
    %c1_32 = arith.constant 1 : index
    %c0_33 = arith.constant 0 : index
    %c0_34 = arith.constant 0 : index
    %80 = vector.load %arg5[%c1_32, %c0_33, %c0_34] : memref<2x16x32xf32, #tpu.memory_space<vmem>>, vector<1x16x32xf32>
    %81 = vector.shape_cast %80 : vector<1x16x32xf32> to vector<16x32xf32>
    %82 = vector.shape_cast %79 : vector<16x32xf32> to vector<1x16x32xf32>
    tpu.vector_store %arg5[%c1_32, %c0_33, %c0_34], %82 {strides = array<i32>} : memref<2x16x32xf32, #tpu.memory_space<vmem>>, vector<1x16x32xf32>,
    %83 = arith.subf %78, %79 : vector<16x32xf32>
    %c1_35 = arith.constant 1 : index
    %c0_36 = arith.constant 0 : index
    %c0_37 = arith.constant 0 : index
    %84 = vector.load %arg4[%c1_35, %c0_36, %c0_37] : memref<2x16x32xf32, #tpu.memory_space<vmem>>, vector<1x16x32xf32>
    %85 = vector.shape_cast %84 : vector<1x16x32xf32> to vector<16x32xf32>
    %86 = vector.shape_cast %83 : vector<16x32xf32> to vector<1x16x32xf32>
    tpu.vector_store %arg4[%c1_35, %c0_36, %c0_37], %86 {strides = array<i32>} : memref<2x16x32xf32, #tpu.memory_space<vmem>>, vector<1x16x32xf32>,
    return
  }
  func.func @transform_0(%arg0: i32) -> (i32, i32, i32) {
    %c0_i32 = arith.constant 0 : i32
    %c0_i32_0 = arith.constant 0 : i32
    %c0_i32_1 = arith.constant 0 : i32
    %c0_i32_2 = arith.constant 0 : i32
    return %c0_i32, %c0_i32_0, %c0_i32_1 : i32, i32, i32
  }
  func.func @transform_1(%arg0: i32) -> (i32, i32) {
    %c0_i32 = arith.constant 0 : i32
    %c0_i32_0 = arith.constant 0 : i32
    %c0_i32_1 = arith.constant 0 : i32
    return %c0_i32, %c0_i32_0 : i32, i32
  }
  func.func @transform_2(%arg0: i32) -> (i32, i32) {
    %c0_i32 = arith.constant 0 : i32
    %c0_i32_0 = arith.constant 0 : i32
    %c0_i32_1 = arith.constant 0 : i32
    return %c0_i32, %c0_i32_0 : i32, i32
  }
  func.func @transform_3(%arg0: i32) -> (i32, i32, i32) {
    %c0_i32 = arith.constant 0 : i32
    %c0_i32_0 = arith.constant 0 : i32
    %c0_i32_1 = arith.constant 0 : i32
    %c0_i32_2 = arith.constant 0 : i32
    return %c0_i32, %c0_i32_0, %c0_i32_1 : i32, i32, i32
  }
  func.func @transform_4(%arg0: i32) -> (i32, i32, i32) {
    %c0_i32 = arith.constant 0 : i32
    %c0_i32_0 = arith.constant 0 : i32
    %c0_i32_1 = arith.constant 0 : i32
    %c0_i32_2 = arith.constant 0 : i32
    return %c0_i32, %c0_i32_0, %c0_i32_1 : i32, i32, i32
  }
}

module attributes {stable_mosaic.version = 11 : i64} {
  func.func @_my_layernorm_kernel(%arg0: i32, %arg1: memref<2x16x32xf32, #tpu.memory_space<vmem>>, %arg2: memref<1x32xf32, #tpu.memory_space<vmem>>, %arg3: memref<1x32xf32, #tpu.memory_space<vmem>>, %arg4: memref<2x16x32xf32, #tpu.memory_space<vmem>>) attributes {dimension_semantics = [#tpu.dimension_semantics<parallel>], iteration_bounds = array<i64: 1>, scalar_prefetch = 0 : i64, scratch_operands = 0 : i64, tpu.core_type = #tpu.core_type<tc>, window_params = [{pipeline_mode = #tpu.pipeline_mode<synchronous>, transform_indices = @transform_0, window_bounds = array<i64: 2, 16, 32>}, {pipeline_mode = #tpu.pipeline_mode<synchronous>, transform_indices = @transform_1, window_bounds = array<i64: 1, 32>}, {pipeline_mode = #tpu.pipeline_mode<synchronous>, transform_indices = @transform_2, window_bounds = array<i64: 1, 32>}, {pipeline_mode = #tpu.pipeline_mode<synchronous>, transform_indices = @transform_3, window_bounds = array<i64: 2, 16, 32>}]} {
    %c0 = arith.constant 0 : index
    %c0_0 = arith.constant 0 : index
    %0 = vector.load %arg2[%c0, %c0_0] : memref<1x32xf32, #tpu.memory_space<vmem>>, vector<1x32xf32>
    %c0_1 = arith.constant 0 : index
    %c0_2 = arith.constant 0 : index
    %1 = vector.load %arg3[%c0_1, %c0_2] : memref<1x32xf32, #tpu.memory_space<vmem>>, vector<1x32xf32>
    %c0_3 = arith.constant 0 : index
    %c0_4 = arith.constant 0 : index
    %c0_5 = arith.constant 0 : index
    %2 = vector.load %arg1[%c0_3, %c0_4, %c0_5] : memref<2x16x32xf32, #tpu.memory_space<vmem>>, vector<1x16x32xf32>
    %3 = vector.shape_cast %2 : vector<1x16x32xf32> to vector<16x32xf32>
    %cst = arith.constant dense<0.000000e+00> : vector<16xf32>
    %4 = vector.multi_reduction <add>, %3, %cst [1] : vector<16x32xf32> to vector<16xf32>
    %5 = vector.shape_cast %4 : vector<16xf32> to vector<16x1xf32>
    %cst_6 = arith.constant 3.200000e+01 : f32
    %6 = vector.broadcast %cst_6 : f32 to vector<16x1xf32>
    %7 = arith.divf %5, %6 : vector<16x1xf32>
    %8 = vector.broadcast %7 : vector<16x1xf32> to vector<16x32xf32>
    %9 = arith.subf %3, %8 : vector<16x32xf32>
    %10 = arith.mulf %9, %9 : vector<16x32xf32>
    %cst_7 = arith.constant dense<0.000000e+00> : vector<16xf32>
    %11 = vector.multi_reduction <add>, %10, %cst_7 [1] : vector<16x32xf32> to vector<16xf32>
    %12 = vector.shape_cast %11 : vector<16xf32> to vector<16x1xf32>
    %cst_8 = arith.constant 3.200000e+01 : f32
    %13 = vector.broadcast %cst_8 : f32 to vector<16x1xf32>
    %14 = arith.divf %12, %13 : vector<16x1xf32>
    %15 = vector.broadcast %7 : vector<16x1xf32> to vector<16x32xf32>
    %16 = arith.subf %3, %15 : vector<16x32xf32>
    %cst_9 = arith.constant 9.99999974E-6 : f32
    %17 = vector.broadcast %cst_9 : f32 to vector<16x1xf32>
    %18 = arith.addf %14, %17 : vector<16x1xf32>
    %19 = math.rsqrt %18 : vector<16x1xf32>
    %20 = vector.broadcast %19 : vector<16x1xf32> to vector<16x32xf32>
    %21 = arith.mulf %16, %20 : vector<16x32xf32>
    %22 = vector.broadcast %0 : vector<1x32xf32> to vector<16x32xf32>
    %23 = arith.mulf %21, %22 : vector<16x32xf32>
    %24 = vector.broadcast %1 : vector<1x32xf32> to vector<16x32xf32>
    %25 = arith.addf %23, %24 : vector<16x32xf32>
    %cst_10 = arith.constant dense<0.000000e+00> : vector<32xf32>
    %26 = vector.multi_reduction <add>, %25, %cst_10 [0] : vector<16x32xf32> to vector<32xf32>
    %27 = vector.shape_cast %26 : vector<32xf32> to vector<1x32xf32>
    %cst_11 = arith.constant 1.600000e+01 : f32
    %28 = vector.broadcast %cst_11 : f32 to vector<1x32xf32>
    %29 = arith.divf %27, %28 : vector<1x32xf32>
    %30 = vector.broadcast %29 : vector<1x32xf32> to vector<16x32xf32>
    %31 = arith.subf %25, %30 : vector<16x32xf32>
    %c0_12 = arith.constant 0 : index
    %c0_13 = arith.constant 0 : index
    %c0_14 = arith.constant 0 : index
    %32 = vector.load %arg4[%c0_12, %c0_13, %c0_14] : memref<2x16x32xf32, #tpu.memory_space<vmem>>, vector<1x16x32xf32>
    %33 = vector.shape_cast %32 : vector<1x16x32xf32> to vector<16x32xf32>
    %34 = vector.shape_cast %31 : vector<16x32xf32> to vector<1x16x32xf32>
    tpu.vector_store %arg4[%c0_12, %c0_13, %c0_14], %34 {strides = array<i32>} : memref<2x16x32xf32, #tpu.memory_space<vmem>>, vector<1x16x32xf32>,
    %c1 = arith.constant 1 : index
    %c0_15 = arith.constant 0 : index
    %c0_16 = arith.constant 0 : index
    %35 = vector.load %arg1[%c1, %c0_15, %c0_16] : memref<2x16x32xf32, #tpu.memory_space<vmem>>, vector<1x16x32xf32>
    %36 = vector.shape_cast %35 : vector<1x16x32xf32> to vector<16x32xf32>
    %cst_17 = arith.constant dense<0.000000e+00> : vector<16xf32>
    %37 = vector.multi_reduction <add>, %36, %cst_17 [1] : vector<16x32xf32> to vector<16xf32>
    %38 = vector.shape_cast %37 : vector<16xf32> to vector<16x1xf32>
    %cst_18 = arith.constant 3.200000e+01 : f32
    %39 = vector.broadcast %cst_18 : f32 to vector<16x1xf32>
    %40 = arith.divf %38, %39 : vector<16x1xf32>
    %41 = vector.broadcast %40 : vector<16x1xf32> to vector<16x32xf32>
    %42 = arith.subf %36, %41 : vector<16x32xf32>
    %43 = arith.mulf %42, %42 : vector<16x32xf32>
    %cst_19 = arith.constant dense<0.000000e+00> : vector<16xf32>
    %44 = vector.multi_reduction <add>, %43, %cst_19 [1] : vector<16x32xf32> to vector<16xf32>
    %45 = vector.shape_cast %44 : vector<16xf32> to vector<16x1xf32>
    %cst_20 = arith.constant 3.200000e+01 : f32
    %46 = vector.broadcast %cst_20 : f32 to vector<16x1xf32>
    %47 = arith.divf %45, %46 : vector<16x1xf32>
    %48 = vector.broadcast %40 : vector<16x1xf32> to vector<16x32xf32>
    %49 = arith.subf %36, %48 : vector<16x32xf32>
    %cst_21 = arith.constant 9.99999974E-6 : f32
    %50 = vector.broadcast %cst_21 : f32 to vector<16x1xf32>
    %51 = arith.addf %47, %50 : vector<16x1xf32>
    %52 = math.rsqrt %51 : vector<16x1xf32>
    %53 = vector.broadcast %52 : vector<16x1xf32> to vector<16x32xf32>
    %54 = arith.mulf %49, %53 : vector<16x32xf32>
    %55 = vector.broadcast %0 : vector<1x32xf32> to vector<16x32xf32>
    %56 = arith.mulf %54, %55 : vector<16x32xf32>
    %57 = vector.broadcast %1 : vector<1x32xf32> to vector<16x32xf32>
    %58 = arith.addf %56, %57 : vector<16x32xf32>
    %cst_22 = arith.constant dense<0.000000e+00> : vector<32xf32>
    %59 = vector.multi_reduction <add>, %58, %cst_22 [0] : vector<16x32xf32> to vector<32xf32>
    %60 = vector.shape_cast %59 : vector<32xf32> to vector<1x32xf32>
    %cst_23 = arith.constant 1.600000e+01 : f32
    %61 = vector.broadcast %cst_23 : f32 to vector<1x32xf32>
    %62 = arith.divf %60, %61 : vector<1x32xf32>
    %63 = vector.broadcast %62 : vector<1x32xf32> to vector<16x32xf32>
    %64 = arith.subf %58, %63 : vector<16x32xf32>
    %c1_24 = arith.constant 1 : index
    %c0_25 = arith.constant 0 : index
    %c0_26 = arith.constant 0 : index
    %65 = vector.load %arg4[%c1_24, %c0_25, %c0_26] : memref<2x16x32xf32, #tpu.memory_space<vmem>>, vector<1x16x32xf32>
    %66 = vector.shape_cast %65 : vector<1x16x32xf32> to vector<16x32xf32>
    %67 = vector.shape_cast %64 : vector<16x32xf32> to vector<1x16x32xf32>
    tpu.vector_store %arg4[%c1_24, %c0_25, %c0_26], %67 {strides = array<i32>} : memref<2x16x32xf32, #tpu.memory_space<vmem>>, vector<1x16x32xf32>,
    return
  }
  func.func @transform_0(%arg0: i32) -> (i32, i32, i32) {
    %c0_i32 = arith.constant 0 : i32
    %c0_i32_0 = arith.constant 0 : i32
    %c0_i32_1 = arith.constant 0 : i32
    %c0_i32_2 = arith.constant 0 : i32
    return %c0_i32, %c0_i32_0, %c0_i32_1 : i32, i32, i32
  }
  func.func @transform_1(%arg0: i32) -> (i32, i32) {
    %c0_i32 = arith.constant 0 : i32
    %c0_i32_0 = arith.constant 0 : i32
    %c0_i32_1 = arith.constant 0 : i32
    return %c0_i32, %c0_i32_0 : i32, i32
  }
  func.func @transform_2(%arg0: i32) -> (i32, i32) {
    %c0_i32 = arith.constant 0 : i32
    %c0_i32_0 = arith.constant 0 : i32
    %c0_i32_1 = arith.constant 0 : i32
    return %c0_i32, %c0_i32_0 : i32, i32
  }
  func.func @transform_3(%arg0: i32) -> (i32, i32, i32) {
    %c0_i32 = arith.constant 0 : i32
    %c0_i32_0 = arith.constant 0 : i32
    %c0_i32_1 = arith.constant 0 : i32
    %c0_i32_2 = arith.constant 0 : i32
    return %c0_i32, %c0_i32_0, %c0_i32_1 : i32, i32, i32
  }
}

module attributes {stable_mosaic.version = 11 : i64} {
  func.func @_add_decomp_kernel(%arg0: i32, %arg1: memref<2x16x32xf32, #tpu.memory_space<vmem>>, %arg2: memref<2x16x32xf32, #tpu.memory_space<vmem>>, %arg3: memref<2x16x32xf32, #tpu.memory_space<vmem>>, %arg4: memref<2x16x32xf32, #tpu.memory_space<vmem>>) attributes {dimension_semantics = [#tpu.dimension_semantics<parallel>], iteration_bounds = array<i64: 1>, scalar_prefetch = 0 : i64, scratch_operands = 0 : i64, tpu.core_type = #tpu.core_type<tc>, window_params = [{pipeline_mode = #tpu.pipeline_mode<synchronous>, transform_indices = @transform_0, window_bounds = array<i64: 2, 16, 32>}, {pipeline_mode = #tpu.pipeline_mode<synchronous>, transform_indices = @transform_1, window_bounds = array<i64: 2, 16, 32>}, {pipeline_mode = #tpu.pipeline_mode<synchronous>, transform_indices = @transform_2, window_bounds = array<i64: 2, 16, 32>}, {pipeline_mode = #tpu.pipeline_mode<synchronous>, transform_indices = @transform_3, window_bounds = array<i64: 2, 16, 32>}]} {
    %0 = tpu.iota {dimensions = array<i32: 0>} : vector<16x16xi32>
    %1 = tpu.iota {dimensions = array<i32: 1>} : vector<16x16xi32>
    %cst = arith.constant 0.000000e+00 : f32
    %2 = vector.broadcast %cst : f32 to vector<16x16xf32>
    %c-2_i32 = arith.constant -2 : i32
    %3 = vector.broadcast %c-2_i32 : i32 to vector<16x16xi32>
    %4 = arith.addi %0, %3 : vector<16x16xi32>
    %c0_i32 = arith.constant 0 : i32
    %c15_i32 = arith.constant 15 : i32
    %5 = vector.broadcast %c0_i32 : i32 to vector<16x16xi32>
    %6 = arith.maxsi %5, %4 : vector<16x16xi32>
    %7 = vector.broadcast %c15_i32 : i32 to vector<16x16xi32>
    %8 = arith.minsi %7, %6 : vector<16x16xi32>
    %9 = arith.cmpi eq, %1, %8 : vector<16x16xi32>
    %10 = arith.extui %9 : vector<16x16xi1> to vector<16x16xi32>
    %11 = arith.sitofp %10 : vector<16x16xi32> to vector<16x16xf32>
    %12 = arith.addf %2, %11 : vector<16x16xf32>
    %c-1_i32 = arith.constant -1 : i32
    %13 = vector.broadcast %c-1_i32 : i32 to vector<16x16xi32>
    %14 = arith.addi %0, %13 : vector<16x16xi32>
    %c0_i32_0 = arith.constant 0 : i32
    %c15_i32_1 = arith.constant 15 : i32
    %15 = vector.broadcast %c0_i32_0 : i32 to vector<16x16xi32>
    %16 = arith.maxsi %15, %14 : vector<16x16xi32>
    %17 = vector.broadcast %c15_i32_1 : i32 to vector<16x16xi32>
    %18 = arith.minsi %17, %16 : vector<16x16xi32>
    %19 = arith.cmpi eq, %1, %18 : vector<16x16xi32>
    %20 = arith.extui %19 : vector<16x16xi1> to vector<16x16xi32>
    %21 = arith.sitofp %20 : vector<16x16xi32> to vector<16x16xf32>
    %22 = arith.addf %12, %21 : vector<16x16xf32>
    %c0_i32_2 = arith.constant 0 : i32
    %23 = vector.broadcast %c0_i32_2 : i32 to vector<16x16xi32>
    %24 = arith.addi %0, %23 : vector<16x16xi32>
    %c0_i32_3 = arith.constant 0 : i32
    %c15_i32_4 = arith.constant 15 : i32
    %25 = vector.broadcast %c0_i32_3 : i32 to vector<16x16xi32>
    %26 = arith.maxsi %25, %24 : vector<16x16xi32>
    %27 = vector.broadcast %c15_i32_4 : i32 to vector<16x16xi32>
    %28 = arith.minsi %27, %26 : vector<16x16xi32>
    %29 = arith.cmpi eq, %1, %28 : vector<16x16xi32>
    %30 = arith.extui %29 : vector<16x16xi1> to vector<16x16xi32>
    %31 = arith.sitofp %30 : vector<16x16xi32> to vector<16x16xf32>
    %32 = arith.addf %22, %31 : vector<16x16xf32>
    %c1_i32 = arith.constant 1 : i32
    %33 = vector.broadcast %c1_i32 : i32 to vector<16x16xi32>
    %34 = arith.addi %0, %33 : vector<16x16xi32>
    %c0_i32_5 = arith.constant 0 : i32
    %c15_i32_6 = arith.constant 15 : i32
    %35 = vector.broadcast %c0_i32_5 : i32 to vector<16x16xi32>
    %36 = arith.maxsi %35, %34 : vector<16x16xi32>
    %37 = vector.broadcast %c15_i32_6 : i32 to vector<16x16xi32>
    %38 = arith.minsi %37, %36 : vector<16x16xi32>
    %39 = arith.cmpi eq, %1, %38 : vector<16x16xi32>
    %40 = arith.extui %39 : vector<16x16xi1> to vector<16x16xi32>
    %41 = arith.sitofp %40 : vector<16x16xi32> to vector<16x16xf32>
    %42 = arith.addf %32, %41 : vector<16x16xf32>
    %c2_i32 = arith.constant 2 : i32
    %43 = vector.broadcast %c2_i32 : i32 to vector<16x16xi32>
    %44 = arith.addi %0, %43 : vector<16x16xi32>
    %c0_i32_7 = arith.constant 0 : i32
    %c15_i32_8 = arith.constant 15 : i32
    %45 = vector.broadcast %c0_i32_7 : i32 to vector<16x16xi32>
    %46 = arith.maxsi %45, %44 : vector<16x16xi32>
    %47 = vector.broadcast %c15_i32_8 : i32 to vector<16x16xi32>
    %48 = arith.minsi %47, %46 : vector<16x16xi32>
    %49 = arith.cmpi eq, %1, %48 : vector<16x16xi32>
    %50 = arith.extui %49 : vector<16x16xi1> to vector<16x16xi32>
    %51 = arith.sitofp %50 : vector<16x16xi32> to vector<16x16xf32>
    %52 = arith.addf %42, %51 : vector<16x16xf32>
    %cst_9 = arith.constant 2.000000e-01 : f32
    %53 = vector.broadcast %cst_9 : f32 to vector<16x16xf32>
    %54 = arith.mulf %52, %53 : vector<16x16xf32>
    %c0 = arith.constant 0 : index
    %c0_10 = arith.constant 0 : index
    %c0_11 = arith.constant 0 : index
    %55 = vector.load %arg1[%c0, %c0_10, %c0_11] : memref<2x16x32xf32, #tpu.memory_space<vmem>>, vector<1x16x32xf32>
    %56 = vector.shape_cast %55 : vector<1x16x32xf32> to vector<16x32xf32>
    %c0_12 = arith.constant 0 : index
    %c0_13 = arith.constant 0 : index
    %c0_14 = arith.constant 0 : index
    %57 = vector.load %arg2[%c0_12, %c0_13, %c0_14] : memref<2x16x32xf32, #tpu.memory_space<vmem>>, vector<1x16x32xf32>
    %58 = vector.shape_cast %57 : vector<1x16x32xf32> to vector<16x32xf32>
    %59 = arith.addf %56, %58 : vector<16x32xf32>
    %cst_15 = arith.constant dense<0.000000e+00> : vector<16x32xf32>
    %60 = tpu.matmul %54, %59, %cst_15 {dimension_numbers = #tpu.dot_dimension_numbers<[1], [0], [0], [1], [0, 0, 1, 1], [], []>} : vector<16x16xf32>, vector<16x32xf32>, vector<16x32xf32> -> vector<16x32xf32>
    %c0_16 = arith.constant 0 : index
    %c0_17 = arith.constant 0 : index
    %c0_18 = arith.constant 0 : index
    %61 = vector.load %arg4[%c0_16, %c0_17, %c0_18] : memref<2x16x32xf32, #tpu.memory_space<vmem>>, vector<1x16x32xf32>
    %62 = vector.shape_cast %61 : vector<1x16x32xf32> to vector<16x32xf32>
    %63 = vector.shape_cast %60 : vector<16x32xf32> to vector<1x16x32xf32>
    tpu.vector_store %arg4[%c0_16, %c0_17, %c0_18], %63 {strides = array<i32>} : memref<2x16x32xf32, #tpu.memory_space<vmem>>, vector<1x16x32xf32>,
    %64 = arith.subf %59, %60 : vector<16x32xf32>
    %c0_19 = arith.constant 0 : index
    %c0_20 = arith.constant 0 : index
    %c0_21 = arith.constant 0 : index
    %65 = vector.load %arg3[%c0_19, %c0_20, %c0_21] : memref<2x16x32xf32, #tpu.memory_space<vmem>>, vector<1x16x32xf32>
    %66 = vector.shape_cast %65 : vector<1x16x32xf32> to vector<16x32xf32>
    %67 = vector.shape_cast %64 : vector<16x32xf32> to vector<1x16x32xf32>
    tpu.vector_store %arg3[%c0_19, %c0_20, %c0_21], %67 {strides = array<i32>} : memref<2x16x32xf32, #tpu.memory_space<vmem>>, vector<1x16x32xf32>,
    %c1 = arith.constant 1 : index
    %c0_22 = arith.constant 0 : index
    %c0_23 = arith.constant 0 : index
    %68 = vector.load %arg1[%c1, %c0_22, %c0_23] : memref<2x16x32xf32, #tpu.memory_space<vmem>>, vector<1x16x32xf32>
    %69 = vector.shape_cast %68 : vector<1x16x32xf32> to vector<16x32xf32>
    %c1_24 = arith.constant 1 : index
    %c0_25 = arith.constant 0 : index
    %c0_26 = arith.constant 0 : index
    %70 = vector.load %arg2[%c1_24, %c0_25, %c0_26] : memref<2x16x32xf32, #tpu.memory_space<vmem>>, vector<1x16x32xf32>
    %71 = vector.shape_cast %70 : vector<1x16x32xf32> to vector<16x32xf32>
    %72 = arith.addf %69, %71 : vector<16x32xf32>
    %cst_27 = arith.constant dense<0.000000e+00> : vector<16x32xf32>
    %73 = tpu.matmul %54, %72, %cst_27 {dimension_numbers = #tpu.dot_dimension_numbers<[1], [0], [0], [1], [0, 0, 1, 1], [], []>} : vector<16x16xf32>, vector<16x32xf32>, vector<16x32xf32> -> vector<16x32xf32>
    %c1_28 = arith.constant 1 : index
    %c0_29 = arith.constant 0 : index
    %c0_30 = arith.constant 0 : index
    %74 = vector.load %arg4[%c1_28, %c0_29, %c0_30] : memref<2x16x32xf32, #tpu.memory_space<vmem>>, vector<1x16x32xf32>
    %75 = vector.shape_cast %74 : vector<1x16x32xf32> to vector<16x32xf32>
    %76 = vector.shape_cast %73 : vector<16x32xf32> to vector<1x16x32xf32>
    tpu.vector_store %arg4[%c1_28, %c0_29, %c0_30], %76 {strides = array<i32>} : memref<2x16x32xf32, #tpu.memory_space<vmem>>, vector<1x16x32xf32>,
    %77 = arith.subf %72, %73 : vector<16x32xf32>
    %c1_31 = arith.constant 1 : index
    %c0_32 = arith.constant 0 : index
    %c0_33 = arith.constant 0 : index
    %78 = vector.load %arg3[%c1_31, %c0_32, %c0_33] : memref<2x16x32xf32, #tpu.memory_space<vmem>>, vector<1x16x32xf32>
    %79 = vector.shape_cast %78 : vector<1x16x32xf32> to vector<16x32xf32>
    %80 = vector.shape_cast %77 : vector<16x32xf32> to vector<1x16x32xf32>
    tpu.vector_store %arg3[%c1_31, %c0_32, %c0_33], %80 {strides = array<i32>} : memref<2x16x32xf32, #tpu.memory_space<vmem>>, vector<1x16x32xf32>,
    return
  }
  func.func @transform_0(%arg0: i32) -> (i32, i32, i32) {
    %c0_i32 = arith.constant 0 : i32
    %c0_i32_0 = arith.constant 0 : i32
    %c0_i32_1 = arith.constant 0 : i32
    %c0_i32_2 = arith.constant 0 : i32
    return %c0_i32, %c0_i32_0, %c0_i32_1 : i32, i32, i32
  }
  func.func @transform_1(%arg0: i32) -> (i32, i32, i32) {
    %c0_i32 = arith.constant 0 : i32
    %c0_i32_0 = arith.constant 0 : i32
    %c0_i32_1 = arith.constant 0 : i32
    %c0_i32_2 = arith.constant 0 : i32
    return %c0_i32, %c0_i32_0, %c0_i32_1 : i32, i32, i32
  }
  func.func @transform_2(%arg0: i32) -> (i32, i32, i32) {
    %c0_i32 = arith.constant 0 : i32
    %c0_i32_0 = arith.constant 0 : i32
    %c0_i32_1 = arith.constant 0 : i32
    %c0_i32_2 = arith.constant 0 : i32
    return %c0_i32, %c0_i32_0, %c0_i32_1 : i32, i32, i32
  }
  func.func @transform_3(%arg0: i32) -> (i32, i32, i32) {
    %c0_i32 = arith.constant 0 : i32
    %c0_i32_0 = arith.constant 0 : i32
    %c0_i32_1 = arith.constant 0 : i32
    %c0_i32_2 = arith.constant 0 : i32
    return %c0_i32, %c0_i32_0, %c0_i32_1 : i32, i32, i32
  }
}

module attributes {stable_mosaic.version = 11 : i64} {
  func.func @_ffn_decomp_kernel(%arg0: i32, %arg1: memref<2x16x32xf32, #tpu.memory_space<vmem>>, %arg2: memref<32x64xf32, #tpu.memory_space<vmem>>, %arg3: memref<64x32xf32, #tpu.memory_space<vmem>>, %arg4: memref<2x16x32xf32, #tpu.memory_space<vmem>>, %arg5: memref<2x16x32xf32, #tpu.memory_space<vmem>>) attributes {dimension_semantics = [#tpu.dimension_semantics<parallel>], iteration_bounds = array<i64: 1>, scalar_prefetch = 0 : i64, scratch_operands = 0 : i64, tpu.core_type = #tpu.core_type<tc>, window_params = [{pipeline_mode = #tpu.pipeline_mode<synchronous>, transform_indices = @transform_0, window_bounds = array<i64: 2, 16, 32>}, {pipeline_mode = #tpu.pipeline_mode<synchronous>, transform_indices = @transform_1, window_bounds = array<i64: 32, 64>}, {pipeline_mode = #tpu.pipeline_mode<synchronous>, transform_indices = @transform_2, window_bounds = array<i64: 64, 32>}, {pipeline_mode = #tpu.pipeline_mode<synchronous>, transform_indices = @transform_3, window_bounds = array<i64: 2, 16, 32>}, {pipeline_mode = #tpu.pipeline_mode<synchronous>, transform_indices = @transform_4, window_bounds = array<i64: 2, 16, 32>}]} {
    %0 = tpu.iota {dimensions = array<i32: 0>} : vector<16x16xi32>
    %1 = tpu.iota {dimensions = array<i32: 1>} : vector<16x16xi32>
    %cst = arith.constant 0.000000e+00 : f32
    %2 = vector.broadcast %cst : f32 to vector<16x16xf32>
    %c-2_i32 = arith.constant -2 : i32
    %3 = vector.broadcast %c-2_i32 : i32 to vector<16x16xi32>
    %4 = arith.addi %0, %3 : vector<16x16xi32>
    %c0_i32 = arith.constant 0 : i32
    %c15_i32 = arith.constant 15 : i32
    %5 = vector.broadcast %c0_i32 : i32 to vector<16x16xi32>
    %6 = arith.maxsi %5, %4 : vector<16x16xi32>
    %7 = vector.broadcast %c15_i32 : i32 to vector<16x16xi32>
    %8 = arith.minsi %7, %6 : vector<16x16xi32>
    %9 = arith.cmpi eq, %1, %8 : vector<16x16xi32>
    %10 = arith.extui %9 : vector<16x16xi1> to vector<16x16xi32>
    %11 = arith.sitofp %10 : vector<16x16xi32> to vector<16x16xf32>
    %12 = arith.addf %2, %11 : vector<16x16xf32>
    %c-1_i32 = arith.constant -1 : i32
    %13 = vector.broadcast %c-1_i32 : i32 to vector<16x16xi32>
    %14 = arith.addi %0, %13 : vector<16x16xi32>
    %c0_i32_0 = arith.constant 0 : i32
    %c15_i32_1 = arith.constant 15 : i32
    %15 = vector.broadcast %c0_i32_0 : i32 to vector<16x16xi32>
    %16 = arith.maxsi %15, %14 : vector<16x16xi32>
    %17 = vector.broadcast %c15_i32_1 : i32 to vector<16x16xi32>
    %18 = arith.minsi %17, %16 : vector<16x16xi32>
    %19 = arith.cmpi eq, %1, %18 : vector<16x16xi32>
    %20 = arith.extui %19 : vector<16x16xi1> to vector<16x16xi32>
    %21 = arith.sitofp %20 : vector<16x16xi32> to vector<16x16xf32>
    %22 = arith.addf %12, %21 : vector<16x16xf32>
    %c0_i32_2 = arith.constant 0 : i32
    %23 = vector.broadcast %c0_i32_2 : i32 to vector<16x16xi32>
    %24 = arith.addi %0, %23 : vector<16x16xi32>
    %c0_i32_3 = arith.constant 0 : i32
    %c15_i32_4 = arith.constant 15 : i32
    %25 = vector.broadcast %c0_i32_3 : i32 to vector<16x16xi32>
    %26 = arith.maxsi %25, %24 : vector<16x16xi32>
    %27 = vector.broadcast %c15_i32_4 : i32 to vector<16x16xi32>
    %28 = arith.minsi %27, %26 : vector<16x16xi32>
    %29 = arith.cmpi eq, %1, %28 : vector<16x16xi32>
    %30 = arith.extui %29 : vector<16x16xi1> to vector<16x16xi32>
    %31 = arith.sitofp %30 : vector<16x16xi32> to vector<16x16xf32>
    %32 = arith.addf %22, %31 : vector<16x16xf32>
    %c1_i32 = arith.constant 1 : i32
    %33 = vector.broadcast %c1_i32 : i32 to vector<16x16xi32>
    %34 = arith.addi %0, %33 : vector<16x16xi32>
    %c0_i32_5 = arith.constant 0 : i32
    %c15_i32_6 = arith.constant 15 : i32
    %35 = vector.broadcast %c0_i32_5 : i32 to vector<16x16xi32>
    %36 = arith.maxsi %35, %34 : vector<16x16xi32>
    %37 = vector.broadcast %c15_i32_6 : i32 to vector<16x16xi32>
    %38 = arith.minsi %37, %36 : vector<16x16xi32>
    %39 = arith.cmpi eq, %1, %38 : vector<16x16xi32>
    %40 = arith.extui %39 : vector<16x16xi1> to vector<16x16xi32>
    %41 = arith.sitofp %40 : vector<16x16xi32> to vector<16x16xf32>
    %42 = arith.addf %32, %41 : vector<16x16xf32>
    %c2_i32 = arith.constant 2 : i32
    %43 = vector.broadcast %c2_i32 : i32 to vector<16x16xi32>
    %44 = arith.addi %0, %43 : vector<16x16xi32>
    %c0_i32_7 = arith.constant 0 : i32
    %c15_i32_8 = arith.constant 15 : i32
    %45 = vector.broadcast %c0_i32_7 : i32 to vector<16x16xi32>
    %46 = arith.maxsi %45, %44 : vector<16x16xi32>
    %47 = vector.broadcast %c15_i32_8 : i32 to vector<16x16xi32>
    %48 = arith.minsi %47, %46 : vector<16x16xi32>
    %49 = arith.cmpi eq, %1, %48 : vector<16x16xi32>
    %50 = arith.extui %49 : vector<16x16xi1> to vector<16x16xi32>
    %51 = arith.sitofp %50 : vector<16x16xi32> to vector<16x16xf32>
    %52 = arith.addf %42, %51 : vector<16x16xf32>
    %cst_9 = arith.constant 2.000000e-01 : f32
    %53 = vector.broadcast %cst_9 : f32 to vector<16x16xf32>
    %54 = arith.mulf %52, %53 : vector<16x16xf32>
    %c0 = arith.constant 0 : index
    %c0_10 = arith.constant 0 : index
    %55 = vector.load %arg2[%c0, %c0_10] : memref<32x64xf32, #tpu.memory_space<vmem>>, vector<32x64xf32>
    %c0_11 = arith.constant 0 : index
    %c0_12 = arith.constant 0 : index
    %56 = vector.load %arg3[%c0_11, %c0_12] : memref<64x32xf32, #tpu.memory_space<vmem>>, vector<64x32xf32>
    %c0_13 = arith.constant 0 : index
    %c0_14 = arith.constant 0 : index
    %c0_15 = arith.constant 0 : index
    %57 = vector.load %arg1[%c0_13, %c0_14, %c0_15] : memref<2x16x32xf32, #tpu.memory_space<vmem>>, vector<1x16x32xf32>
    %58 = vector.shape_cast %57 : vector<1x16x32xf32> to vector<16x32xf32>
    %cst_16 = arith.constant dense<0.000000e+00> : vector<16x64xf32>
    %59 = tpu.matmul %58, %55, %cst_16 {dimension_numbers = #tpu.dot_dimension_numbers<[1], [0], [0], [1], [0, 0, 1, 1], [], []>} : vector<16x32xf32>, vector<32x64xf32>, vector<16x64xf32> -> vector<16x64xf32>
    %cst_17 = arith.constant 0.000000e+00 : f32
    %60 = vector.broadcast %cst_17 : f32 to vector<16x64xf32>
    %61 = arith.maximumf %59, %60 : vector<16x64xf32>
    %cst_18 = arith.constant dense<0.000000e+00> : vector<16x32xf32>
    %62 = tpu.matmul %61, %56, %cst_18 {dimension_numbers = #tpu.dot_dimension_numbers<[1], [0], [0], [1], [0, 0, 1, 1], [], []>} : vector<16x64xf32>, vector<64x32xf32>, vector<16x32xf32> -> vector<16x32xf32>
    %63 = arith.addf %58, %62 : vector<16x32xf32>
    %cst_19 = arith.constant dense<0.000000e+00> : vector<16x32xf32>
    %64 = tpu.matmul %54, %63, %cst_19 {dimension_numbers = #tpu.dot_dimension_numbers<[1], [0], [0], [1], [0, 0, 1, 1], [], []>} : vector<16x16xf32>, vector<16x32xf32>, vector<16x32xf32> -> vector<16x32xf32>
    %c0_20 = arith.constant 0 : index
    %c0_21 = arith.constant 0 : index
    %c0_22 = arith.constant 0 : index
    %65 = vector.load %arg5[%c0_20, %c0_21, %c0_22] : memref<2x16x32xf32, #tpu.memory_space<vmem>>, vector<1x16x32xf32>
    %66 = vector.shape_cast %65 : vector<1x16x32xf32> to vector<16x32xf32>
    %67 = vector.shape_cast %64 : vector<16x32xf32> to vector<1x16x32xf32>
    tpu.vector_store %arg5[%c0_20, %c0_21, %c0_22], %67 {strides = array<i32>} : memref<2x16x32xf32, #tpu.memory_space<vmem>>, vector<1x16x32xf32>,
    %68 = arith.subf %63, %64 : vector<16x32xf32>
    %c0_23 = arith.constant 0 : index
    %c0_24 = arith.constant 0 : index
    %c0_25 = arith.constant 0 : index
    %69 = vector.load %arg4[%c0_23, %c0_24, %c0_25] : memref<2x16x32xf32, #tpu.memory_space<vmem>>, vector<1x16x32xf32>
    %70 = vector.shape_cast %69 : vector<1x16x32xf32> to vector<16x32xf32>
    %71 = vector.shape_cast %68 : vector<16x32xf32> to vector<1x16x32xf32>
    tpu.vector_store %arg4[%c0_23, %c0_24, %c0_25], %71 {strides = array<i32>} : memref<2x16x32xf32, #tpu.memory_space<vmem>>, vector<1x16x32xf32>,
    %c1 = arith.constant 1 : index
    %c0_26 = arith.constant 0 : index
    %c0_27 = arith.constant 0 : index
    %72 = vector.load %arg1[%c1, %c0_26, %c0_27] : memref<2x16x32xf32, #tpu.memory_space<vmem>>, vector<1x16x32xf32>
    %73 = vector.shape_cast %72 : vector<1x16x32xf32> to vector<16x32xf32>
    %cst_28 = arith.constant dense<0.000000e+00> : vector<16x64xf32>
    %74 = tpu.matmul %73, %55, %cst_28 {dimension_numbers = #tpu.dot_dimension_numbers<[1], [0], [0], [1], [0, 0, 1, 1], [], []>} : vector<16x32xf32>, vector<32x64xf32>, vector<16x64xf32> -> vector<16x64xf32>
    %cst_29 = arith.constant 0.000000e+00 : f32
    %75 = vector.broadcast %cst_29 : f32 to vector<16x64xf32>
    %76 = arith.maximumf %74, %75 : vector<16x64xf32>
    %cst_30 = arith.constant dense<0.000000e+00> : vector<16x32xf32>
    %77 = tpu.matmul %76, %56, %cst_30 {dimension_numbers = #tpu.dot_dimension_numbers<[1], [0], [0], [1], [0, 0, 1, 1], [], []>} : vector<16x64xf32>, vector<64x32xf32>, vector<16x32xf32> -> vector<16x32xf32>
    %78 = arith.addf %73, %77 : vector<16x32xf32>
    %cst_31 = arith.constant dense<0.000000e+00> : vector<16x32xf32>
    %79 = tpu.matmul %54, %78, %cst_31 {dimension_numbers = #tpu.dot_dimension_numbers<[1], [0], [0], [1], [0, 0, 1, 1], [], []>} : vector<16x16xf32>, vector<16x32xf32>, vector<16x32xf32> -> vector<16x32xf32>
    %c1_32 = arith.constant 1 : index
    %c0_33 = arith.constant 0 : index
    %c0_34 = arith.constant 0 : index
    %80 = vector.load %arg5[%c1_32, %c0_33, %c0_34] : memref<2x16x32xf32, #tpu.memory_space<vmem>>, vector<1x16x32xf32>
    %81 = vector.shape_cast %80 : vector<1x16x32xf32> to vector<16x32xf32>
    %82 = vector.shape_cast %79 : vector<16x32xf32> to vector<1x16x32xf32>
    tpu.vector_store %arg5[%c1_32, %c0_33, %c0_34], %82 {strides = array<i32>} : memref<2x16x32xf32, #tpu.memory_space<vmem>>, vector<1x16x32xf32>,
    %83 = arith.subf %78, %79 : vector<16x32xf32>
    %c1_35 = arith.constant 1 : index
    %c0_36 = arith.constant 0 : index
    %c0_37 = arith.constant 0 : index
    %84 = vector.load %arg4[%c1_35, %c0_36, %c0_37] : memref<2x16x32xf32, #tpu.memory_space<vmem>>, vector<1x16x32xf32>
    %85 = vector.shape_cast %84 : vector<1x16x32xf32> to vector<16x32xf32>
    %86 = vector.shape_cast %83 : vector<16x32xf32> to vector<1x16x32xf32>
    tpu.vector_store %arg4[%c1_35, %c0_36, %c0_37], %86 {strides = array<i32>} : memref<2x16x32xf32, #tpu.memory_space<vmem>>, vector<1x16x32xf32>,
    return
  }
  func.func @transform_0(%arg0: i32) -> (i32, i32, i32) {
    %c0_i32 = arith.constant 0 : i32
    %c0_i32_0 = arith.constant 0 : i32
    %c0_i32_1 = arith.constant 0 : i32
    %c0_i32_2 = arith.constant 0 : i32
    return %c0_i32, %c0_i32_0, %c0_i32_1 : i32, i32, i32
  }
  func.func @transform_1(%arg0: i32) -> (i32, i32) {
    %c0_i32 = arith.constant 0 : i32
    %c0_i32_0 = arith.constant 0 : i32
    %c0_i32_1 = arith.constant 0 : i32
    return %c0_i32, %c0_i32_0 : i32, i32
  }
  func.func @transform_2(%arg0: i32) -> (i32, i32) {
    %c0_i32 = arith.constant 0 : i32
    %c0_i32_0 = arith.constant 0 : i32
    %c0_i32_1 = arith.constant 0 : i32
    return %c0_i32, %c0_i32_0 : i32, i32
  }
  func.func @transform_3(%arg0: i32) -> (i32, i32, i32) {
    %c0_i32 = arith.constant 0 : i32
    %c0_i32_0 = arith.constant 0 : i32
    %c0_i32_1 = arith.constant 0 : i32
    %c0_i32_2 = arith.constant 0 : i32
    return %c0_i32, %c0_i32_0, %c0_i32_1 : i32, i32, i32
  }
  func.func @transform_4(%arg0: i32) -> (i32, i32, i32) {
    %c0_i32 = arith.constant 0 : i32
    %c0_i32_0 = arith.constant 0 : i32
    %c0_i32_1 = arith.constant 0 : i32
    %c0_i32_2 = arith.constant 0 : i32
    return %c0_i32, %c0_i32_0, %c0_i32_1 : i32, i32, i32
  }
}

module attributes {stable_mosaic.version = 11 : i64} {
  func.func @_circ_conv_kernel(%arg0: i32, %arg1: memref<2x16x32xf32, #tpu.memory_space<vmem>>, %arg2: memref<3x32x4xf32, #tpu.memory_space<vmem>>, %arg3: memref<2x16x4xf32, #tpu.memory_space<vmem>>) attributes {dimension_semantics = [#tpu.dimension_semantics<parallel>], iteration_bounds = array<i64: 1>, scalar_prefetch = 0 : i64, scratch_operands = 0 : i64, tpu.core_type = #tpu.core_type<tc>, window_params = [{pipeline_mode = #tpu.pipeline_mode<synchronous>, transform_indices = @transform_0, window_bounds = array<i64: 2, 16, 32>}, {pipeline_mode = #tpu.pipeline_mode<synchronous>, transform_indices = @transform_1, window_bounds = array<i64: 3, 32, 4>}, {pipeline_mode = #tpu.pipeline_mode<synchronous>, transform_indices = @transform_2, window_bounds = array<i64: 2, 16, 4>}]} {
    %0 = tpu.iota {dimensions = array<i32: 0>} : vector<16x16xi32>
    %1 = tpu.iota {dimensions = array<i32: 1>} : vector<16x16xi32>
    %c15_i32 = arith.constant 15 : i32
    %2 = vector.broadcast %c15_i32 : i32 to vector<16x16xi32>
    %3 = arith.addi %0, %2 : vector<16x16xi32>
    %c16_i32 = arith.constant 16 : i32
    %c0_i32 = arith.constant 0 : i32
    %4 = arith.cmpi eq, %c16_i32, %c0_i32 : i32
    %c1_i32 = arith.constant 1 : i32
    %5 = arith.select %4, %c1_i32, %c16_i32 : i32
    %6 = vector.broadcast %5 : i32 to vector<16x16xi32>
    %7 = arith.remsi %3, %6 : vector<16x16xi32>
    %c0_i32_0 = arith.constant 0 : i32
    %8 = vector.broadcast %c0_i32_0 : i32 to vector<16x16xi32>
    %9 = arith.cmpi ne, %7, %8 : vector<16x16xi32>
    %c0_i32_1 = arith.constant 0 : i32
    %10 = vector.broadcast %c0_i32_1 : i32 to vector<16x16xi32>
    %11 = arith.cmpi slt, %7, %10 : vector<16x16xi32>
    %c0_i32_2 = arith.constant 0 : i32
    %12 = arith.cmpi slt, %5, %c0_i32_2 : i32
    %13 = vector.broadcast %12 : i1 to vector<16x16xi1>
    %14 = vector.broadcast %13 : vector<16x16xi1> to vector<16x16xi1>
    %15 = arith.xori %11, %14 : vector<16x16xi1>
    %16 = arith.andi %15, %9 : vector<16x16xi1>
    %17 = vector.broadcast %5 : i32 to vector<16x16xi32>
    %18 = arith.addi %7, %17 : vector<16x16xi32>
    %19 = arith.select %16, %18, %7 : vector<16x16xi1>, vector<16x16xi32>
    %20 = arith.cmpi eq, %1, %19 : vector<16x16xi32>
    %21 = arith.extui %20 : vector<16x16xi1> to vector<16x16xi32>
    %22 = arith.sitofp %21 : vector<16x16xi32> to vector<16x16xf32>
    %23 = tpu.iota {dimensions = array<i32: 0>} : vector<16x16xi32>
    %24 = tpu.iota {dimensions = array<i32: 1>} : vector<16x16xi32>
    %c17_i32 = arith.constant 17 : i32
    %25 = vector.broadcast %c17_i32 : i32 to vector<16x16xi32>
    %26 = arith.addi %23, %25 : vector<16x16xi32>
    %c16_i32_3 = arith.constant 16 : i32
    %c0_i32_4 = arith.constant 0 : i32
    %27 = arith.cmpi eq, %c16_i32_3, %c0_i32_4 : i32
    %c1_i32_5 = arith.constant 1 : i32
    %28 = arith.select %27, %c1_i32_5, %c16_i32_3 : i32
    %29 = vector.broadcast %28 : i32 to vector<16x16xi32>
    %30 = arith.remsi %26, %29 : vector<16x16xi32>
    %c0_i32_6 = arith.constant 0 : i32
    %31 = vector.broadcast %c0_i32_6 : i32 to vector<16x16xi32>
    %32 = arith.cmpi ne, %30, %31 : vector<16x16xi32>
    %c0_i32_7 = arith.constant 0 : i32
    %33 = vector.broadcast %c0_i32_7 : i32 to vector<16x16xi32>
    %34 = arith.cmpi slt, %30, %33 : vector<16x16xi32>
    %c0_i32_8 = arith.constant 0 : i32
    %35 = arith.cmpi slt, %28, %c0_i32_8 : i32
    %36 = vector.broadcast %35 : i1 to vector<16x16xi1>
    %37 = vector.broadcast %36 : vector<16x16xi1> to vector<16x16xi1>
    %38 = arith.xori %34, %37 : vector<16x16xi1>
    %39 = arith.andi %38, %32 : vector<16x16xi1>
    %40 = vector.broadcast %28 : i32 to vector<16x16xi32>
    %41 = arith.addi %30, %40 : vector<16x16xi32>
    %42 = arith.select %39, %41, %30 : vector<16x16xi1>, vector<16x16xi32>
    %43 = arith.cmpi eq, %24, %42 : vector<16x16xi32>
    %44 = arith.extui %43 : vector<16x16xi1> to vector<16x16xi32>
    %45 = arith.sitofp %44 : vector<16x16xi32> to vector<16x16xf32>
    %c0 = arith.constant 0 : index
    %c0_9 = arith.constant 0 : index
    %c0_10 = arith.constant 0 : index
    %46 = vector.load %arg2[%c0, %c0_9, %c0_10] : memref<3x32x4xf32, #tpu.memory_space<vmem>>, vector<1x32x4xf32>
    %47 = vector.shape_cast %46 : vector<1x32x4xf32> to vector<32x4xf32>
    %c1 = arith.constant 1 : index
    %c0_11 = arith.constant 0 : index
    %c0_12 = arith.constant 0 : index
    %48 = vector.load %arg2[%c1, %c0_11, %c0_12] : memref<3x32x4xf32, #tpu.memory_space<vmem>>, vector<1x32x4xf32>
    %49 = vector.shape_cast %48 : vector<1x32x4xf32> to vector<32x4xf32>
    %c2 = arith.constant 2 : index
    %c0_13 = arith.constant 0 : index
    %c0_14 = arith.constant 0 : index
    %50 = vector.load %arg2[%c2, %c0_13, %c0_14] : memref<3x32x4xf32, #tpu.memory_space<vmem>>, vector<1x32x4xf32>
    %51 = vector.shape_cast %50 : vector<1x32x4xf32> to vector<32x4xf32>
    %c0_15 = arith.constant 0 : index
    %c0_16 = arith.constant 0 : index
    %c0_17 = arith.constant 0 : index
    %52 = vector.load %arg1[%c0_15, %c0_16, %c0_17] : memref<2x16x32xf32, #tpu.memory_space<vmem>>, vector<1x16x32xf32>
    %53 = vector.shape_cast %52 : vector<1x16x32xf32> to vector<16x32xf32>
    %cst = arith.constant dense<0.000000e+00> : vector<16x32xf32>
    %54 = tpu.matmul %22, %53, %cst {dimension_numbers = #tpu.dot_dimension_numbers<[1], [0], [0], [1], [0, 0, 1, 1], [], []>} : vector<16x16xf32>, vector<16x32xf32>, vector<16x32xf32> -> vector<16x32xf32>
    %cst_18 = arith.constant dense<0.000000e+00> : vector<16x4xf32>
    %55 = tpu.matmul %54, %47, %cst_18 {dimension_numbers = #tpu.dot_dimension_numbers<[1], [0], [0], [1], [0, 0, 1, 1], [], []>} : vector<16x32xf32>, vector<32x4xf32>, vector<16x4xf32> -> vector<16x4xf32>
    %cst_19 = arith.constant dense<0.000000e+00> : vector<16x4xf32>
    %56 = tpu.matmul %53, %49, %cst_19 {dimension_numbers = #tpu.dot_dimension_numbers<[1], [0], [0], [1], [0, 0, 1, 1], [], []>} : vector<16x32xf32>, vector<32x4xf32>, vector<16x4xf32> -> vector<16x4xf32>
    %57 = arith.addf %55, %56 : vector<16x4xf32>
    %cst_20 = arith.constant dense<0.000000e+00> : vector<16x32xf32>
    %58 = tpu.matmul %45, %53, %cst_20 {dimension_numbers = #tpu.dot_dimension_numbers<[1], [0], [0], [1], [0, 0, 1, 1], [], []>} : vector<16x16xf32>, vector<16x32xf32>, vector<16x32xf32> -> vector<16x32xf32>
    %cst_21 = arith.constant dense<0.000000e+00> : vector<16x4xf32>
    %59 = tpu.matmul %58, %51, %cst_21 {dimension_numbers = #tpu.dot_dimension_numbers<[1], [0], [0], [1], [0, 0, 1, 1], [], []>} : vector<16x32xf32>, vector<32x4xf32>, vector<16x4xf32> -> vector<16x4xf32>
    %60 = arith.addf %57, %59 : vector<16x4xf32>
    %c0_22 = arith.constant 0 : index
    %c0_23 = arith.constant 0 : index
    %c0_24 = arith.constant 0 : index
    %61 = vector.load %arg3[%c0_22, %c0_23, %c0_24] : memref<2x16x4xf32, #tpu.memory_space<vmem>>, vector<1x16x4xf32>
    %62 = vector.shape_cast %61 : vector<1x16x4xf32> to vector<16x4xf32>
    %63 = vector.shape_cast %60 : vector<16x4xf32> to vector<1x16x4xf32>
    tpu.vector_store %arg3[%c0_22, %c0_23, %c0_24], %63 {strides = array<i32>} : memref<2x16x4xf32, #tpu.memory_space<vmem>>, vector<1x16x4xf32>,
    %c1_25 = arith.constant 1 : index
    %c0_26 = arith.constant 0 : index
    %c0_27 = arith.constant 0 : index
    %64 = vector.load %arg1[%c1_25, %c0_26, %c0_27] : memref<2x16x32xf32, #tpu.memory_space<vmem>>, vector<1x16x32xf32>
    %65 = vector.shape_cast %64 : vector<1x16x32xf32> to vector<16x32xf32>
    %cst_28 = arith.constant dense<0.000000e+00> : vector<16x32xf32>
    %66 = tpu.matmul %22, %65, %cst_28 {dimension_numbers = #tpu.dot_dimension_numbers<[1], [0], [0], [1], [0, 0, 1, 1], [], []>} : vector<16x16xf32>, vector<16x32xf32>, vector<16x32xf32> -> vector<16x32xf32>
    %cst_29 = arith.constant dense<0.000000e+00> : vector<16x4xf32>
    %67 = tpu.matmul %66, %47, %cst_29 {dimension_numbers = #tpu.dot_dimension_numbers<[1], [0], [0], [1], [0, 0, 1, 1], [], []>} : vector<16x32xf32>, vector<32x4xf32>, vector<16x4xf32> -> vector<16x4xf32>
    %cst_30 = arith.constant dense<0.000000e+00> : vector<16x4xf32>
    %68 = tpu.matmul %65, %49, %cst_30 {dimension_numbers = #tpu.dot_dimension_numbers<[1], [0], [0], [1], [0, 0, 1, 1], [], []>} : vector<16x32xf32>, vector<32x4xf32>, vector<16x4xf32> -> vector<16x4xf32>
    %69 = arith.addf %67, %68 : vector<16x4xf32>
    %cst_31 = arith.constant dense<0.000000e+00> : vector<16x32xf32>
    %70 = tpu.matmul %45, %65, %cst_31 {dimension_numbers = #tpu.dot_dimension_numbers<[1], [0], [0], [1], [0, 0, 1, 1], [], []>} : vector<16x16xf32>, vector<16x32xf32>, vector<16x32xf32> -> vector<16x32xf32>
    %cst_32 = arith.constant dense<0.000000e+00> : vector<16x4xf32>
    %71 = tpu.matmul %70, %51, %cst_32 {dimension_numbers = #tpu.dot_dimension_numbers<[1], [0], [0], [1], [0, 0, 1, 1], [], []>} : vector<16x32xf32>, vector<32x4xf32>, vector<16x4xf32> -> vector<16x4xf32>
    %72 = arith.addf %69, %71 : vector<16x4xf32>
    %c1_33 = arith.constant 1 : index
    %c0_34 = arith.constant 0 : index
    %c0_35 = arith.constant 0 : index
    %73 = vector.load %arg3[%c1_33, %c0_34, %c0_35] : memref<2x16x4xf32, #tpu.memory_space<vmem>>, vector<1x16x4xf32>
    %74 = vector.shape_cast %73 : vector<1x16x4xf32> to vector<16x4xf32>
    %75 = vector.shape_cast %72 : vector<16x4xf32> to vector<1x16x4xf32>
    tpu.vector_store %arg3[%c1_33, %c0_34, %c0_35], %75 {strides = array<i32>} : memref<2x16x4xf32, #tpu.memory_space<vmem>>, vector<1x16x4xf32>,
    return
  }
  func.func @transform_0(%arg0: i32) -> (i32, i32, i32) {
    %c0_i32 = arith.constant 0 : i32
    %c0_i32_0 = arith.constant 0 : i32
    %c0_i32_1 = arith.constant 0 : i32
    %c0_i32_2 = arith.constant 0 : i32
    return %c0_i32, %c0_i32_0, %c0_i32_1 : i32, i32, i32
  }
  func.func @transform_1(%arg0: i32) -> (i32, i32, i32) {
    %c0_i32 = arith.constant 0 : i32
    %c0_i32_0 = arith.constant 0 : i32
    %c0_i32_1 = arith.constant 0 : i32
    %c0_i32_2 = arith.constant 0 : i32
    return %c0_i32, %c0_i32_0, %c0_i32_1 : i32, i32, i32
  }
  func.func @transform_2(%arg0: i32) -> (i32, i32, i32) {
    %c0_i32 = arith.constant 0 : i32
    %c0_i32_0 = arith.constant 0 : i32
    %c0_i32_1 = arith.constant 0 : i32
    %c0_i32_2 = arith.constant 0 : i32
    return %c0_i32, %c0_i32_0, %c0_i32_1 : i32, i32, i32
  }
}

</mosaic_0001>

<llo_original>
// kernel: _lambda_.19
$region0: #{_lambda_.19}
  #allocation0 [shape = 'u32[]', space=smem, size = 0x4, offset = 0x4, fixed_abs, tag = 'smem constant byte address 0x4 - core index']
  #allocation1 [shape = 'u32[144,128]{1,0:T(1,128)}', space=vmem, size = 0x12000, scoped, tag = 'internal scratch']
  %s0 = inlined_call_operand.vmem [shape: f32[2,16,4], index: 0, kind: input, shape index: {}]
  %s1 = inlined_call_operand.vmem [shape: f32[2,16,4], index: 1, kind: output, shape index: {0}]
  %s2 = inlined_call_operand.vmem [shape: f32[2,16,4], index: 2, kind: output, shape index: {1}]
  %3 = xla_tuple %s1, %s2
  %s4 = sld [smem:[#allocation0]]
  $region22: #{_lambda_.19} parent=0
    _
  %s6 = ssub.s32 1, %s4
  %s7 = scalar_select 0, %s6, %s4
  // Predicated region
  $region2: #{_lambda_.19} parent=0 // pred_check
    _
  $region3: #{_lambda_.19} parent=0 // pred_check_branch
    %9 = sbr.rel (0) target = $region5
  $region4: #{_lambda_.19} parent=0 // pred_region
    _
  $region5: #{_lambda_.19} parent=0 // pred_fallthru
    _
  %v10 = vlaneseq
  %v11 = vshrl.u32 %v10, 7
  %v12 = vadd.s32 %v11, 8
  %v13 = vlaneseq
  %v14 = vand.u32 %v13, 127
  %v15 = vadd.s32 %v11, 4294967294
  %v16 = vadd.s32 %v12, 4294967294
  %vm17 = vcmp.gt.s32.totalorder %v15, 0
  %v18 = vsel %vm17, %v15, 0
  %vm19 = vcmp.gt.s32.totalorder %v16, 0
  %v20 = vsel %vm19, %v16, 0
  %vm21 = vcmp.lt.s32.totalorder %v18, 15
  %v22 = vsel %vm21, %v18, 15
  %vm23 = vcmp.lt.s32.totalorder %v20, 15
  %v24 = vsel %vm23, %v20, 15
  %vm25 = vcmp.eq.s32.totalorder %v14, %v22
  %vm26 = vcmp.eq.s32.totalorder %v14, %v24
  %v27 = vsel %vm25, 1, 0
  %v28 = vsel %vm26, 1, 0
  %v29 = vcvt.s32.f32 %v27
  %v30 = vcvt.s32.f32 %v28
  %v31 = vadd.f32 %v29, 0.0
  %v32 = vadd.f32 %v30, 0.0
  %v33 = vadd.s32 %v11, 4294967295
  %v34 = vadd.s32 %v12, 4294967295
  %vm35 = vcmp.gt.s32.totalorder %v33, 0
  %v36 = vsel %vm35, %v33, 0
  %vm37 = vcmp.gt.s32.totalorder %v34, 0
  %v38 = vsel %vm37, %v34, 0
  %vm39 = vcmp.lt.s32.totalorder %v36, 15
  %v40 = vsel %vm39, %v36, 15
  %vm41 = vcmp.lt.s32.totalorder %v38, 15
  %v42 = vsel %vm41, %v38, 15
  %vm43 = vcmp.eq.s32.totalorder %v14, %v40
  %vm44 = vcmp.eq.s32.totalorder %v14, %v42
  %v45 = vsel %vm43, 1, 0
  %v46 = vsel %vm44, 1, 0
  %v47 = vcvt.s32.f32 %v45
  %v48 = vcvt.s32.f32 %v46
  %v49 = vadd.f32 %v31, %v47
  %v50 = vadd.f32 %v32, %v48
  %vm51 = vcmp.gt.s32.totalorder %v11, 0
  %v52 = vsel %vm51, %v11, 0
  %vm53 = vcmp.gt.s32.totalorder %v12, 0
  %v54 = vsel %vm53, %v12, 0
  %vm55 = vcmp.lt.s32.totalorder %v52, 15
  %v56 = vsel %vm55, %v52, 15
  %vm57 = vcmp.lt.s32.totalorder %v54, 15
  %v58 = vsel %vm57, %v54, 15
  %vm59 = vcmp.eq.s32.totalorder %v14, %v56
  %vm60 = vcmp.eq.s32.totalorder %v14, %v58
  %v61 = vsel %vm59, 1, 0
  %v62 = vsel %vm60, 1, 0
  %v63 = vcvt.s32.f32 %v61
  %v64 = vcvt.s32.f32 %v62
  %v65 = vadd.f32 %v49, %v63
  %v66 = vadd.f32 %v50, %v64
  %v67 = vadd.s32 %v11, 1
  %v68 = vadd.s32 %v12, 1
  %vm69 = vcmp.gt.s32.totalorder %v67, 0
  %v70 = vsel %vm69, %v67, 0
  %vm71 = vcmp.gt.s32.totalorder %v68, 0
  %v72 = vsel %vm71, %v68, 0
  %vm73 = vcmp.lt.s32.totalorder %v70, 15
  %v74 = vsel %vm73, %v70, 15
  %vm75 = vcmp.lt.s32.totalorder %v72, 15
  %v76 = vsel %vm75, %v72, 15
  %vm77 = vcmp.eq.s32.totalorder %v14, %v74
  %vm78 = vcmp.eq.s32.totalorder %v14, %v76
  %v79 = vsel %vm77, 1, 0
  %v80 = vsel %vm78, 1, 0
  %v81 = vcvt.s32.f32 %v79
  %v82 = vcvt.s32.f32 %v80
  %v83 = vadd.f32 %v65, %v81
  %v84 = vadd.f32 %v66, %v82
  %v85 = vadd.s32 %v11, 2
  %v86 = vadd.s32 %v12, 2
  %vm87 = vcmp.gt.s32.totalorder %v85, 0
  %v88 = vsel %vm87, %v85, 0
  %vm89 = vcmp.gt.s32.totalorder %v86, 0
  %v90 = vsel %vm89, %v86, 0
  %vm91 = vcmp.lt.s32.totalorder %v88, 15
  %v92 = vsel %vm91, %v88, 15
  %vm93 = vcmp.lt.s32.totalorder %v90, 15
  %v94 = vsel %vm93, %v90, 15
  %vm95 = vcmp.eq.s32.totalorder %v14, %v92
  %vm96 = vcmp.eq.s32.totalorder %v14, %v94
  %v97 = vsel %vm95, 1, 0
  %v98 = vsel %vm96, 1, 0
  %v99 = vcvt.s32.f32 %v97
  %v100 = vcvt.s32.f32 %v98
  %v101 = vadd.f32 %v83, %v99
  %v102 = vadd.f32 %v84, %v100
  %v103 = vmul.f32 %v101, 0.2
  %v104 = vmul.f32 %v102, 0.2
  %v105 = vld [vmem:[%s0] sm:$0xff]
  %v106 = vld [vmem:[%s0 + $0x8] sm:$0xff]
  %vm107 = vcmask 130048
  %v109 = vsel %vm107, %v103, 0
  %v112 = vsel %vm107, %v104, 0
  %114 = vmatprep.subr.mxu0 0.0
  %115 = vmatpush1.msra.mxu0 0.0
  %116 = vmatprep.subr.mxu0 0.0
  %117 = vmatpush1.msra.mxu0 0.0
  %118 = vmatprep.subr.mxu0 0.0
  %119 = vmatpush1.msra.mxu0 0.0
  %120 = vmatprep.subr.mxu0 0.0
  %121 = vmatpush1.msra.mxu0 0.0
  %122 = vmatprep.subr.mxu0 0.0
  %123 = vmatpush1.msra.mxu0 0.0
  %124 = vmatprep.subr.mxu0 0.0
  %125 = vmatpush1.msra.mxu0 0.0
  %126 = vmatprep.subr.mxu0 0.0
  %127 = vmatpush1.msra.mxu0 0.0
  %128 = vmatprep.subr.mxu0 0.0
  %129 = vmatpush1.msra.mxu0 0.0
  %130 = vmatprep.subr.mxu0 0.0
  %131 = vmatpush1.msra.mxu0 0.0
  %132 = vmatprep.subr.mxu0 0.0
  %133 = vmatpush1.msra.mxu0 0.0
  %134 = vmatprep.subr.mxu0 0.0
  %135 = vmatpush1.msra.mxu0 0.0
  %136 = vmatprep.subr.mxu0 0.0
  %137 = vmatpush1.msra.mxu0 0.0
  %138 = vmatprep.subr.mxu0 0.0
  %139 = vmatpush1.msra.mxu0 0.0
  %140 = vmatprep.subr.mxu0 0.0
  %141 = vmatpush1.msra.mxu0 0.0
  %142 = vmatprep.subr.mxu0 0.0
  %143 = vmatpush1.msra.mxu0 %v106
  %144 = vmatprep.subr.mxu0 0.0
  %145 = vmatpush1.msra.mxu0 %v105
  %146 = vmatprep.subr.mxu0 0.0
  %147 = vmatpush2.msra.mxu0 0.0
  %148 = vmatprep.subr.mxu0 0.0
  %149 = vmatpush2.msra.mxu0 0.0
  %150 = vmatprep.subr.mxu0 0.0
  %151 = vmatpush2.msra.mxu0 0.0
  %152 = vmatprep.subr.mxu0 0.0
  %153 = vmatpush2.msra.mxu0 0.0
  %154 = vmatprep.subr.mxu0 0.0
  %155 = vmatpush2.msra.mxu0 0.0
  %156 = vmatprep.subr.mxu0 0.0
  %157 = vmatpush2.msra.mxu0 0.0
  %158 = vmatprep.subr.mxu0 0.0
  %159 = vmatpush2.msra.mxu0 0.0
  %160 = vmatprep.subr.mxu0 0.0
  %161 = vmatpush2.msra.mxu0 0.0
  %162 = vmatprep.subr.mxu0 0.0
  %163 = vmatpush2.msra.mxu0 0.0
  %164 = vmatprep.subr.mxu0 0.0
  %165 = vmatpush2.msra.mxu0 0.0
  %166 = vmatprep.subr.mxu0 0.0
  %167 = vmatpush2.msra.mxu0 0.0
  %168 = vmatprep.subr.mxu0 0.0
  %169 = vmatpush2.msra.mxu0 0.0
  %170 = vmatprep.subr.mxu0 0.0
  %171 = vmatpush2.msra.mxu0 0.0
  %172 = vmatprep.subr.mxu0 0.0
  %173 = vmatpush2.msra.mxu0 0.0
  %174 = vmatprep.subr.mxu0 0.0
  %175 = vmatpush2.msra.mxu0 0.0
  %176 = vmatprep.subr.mxu0 0.0
  %177 = vmatpush2.msra.mxu0 0.0
  %178 = vmatprep.mubr.f32.mxu0 0.0
  %179 = vmatmul.mubr.f32.gmra.mxu0 %v109
  %v180 = vpop.f32.mrf.mxu0
  %v181 = vadd.f32 0.0, %v180
  %v182 = vpop.f32.mrf.mxu0
  %183 = vmatprep.mubr.f32.mxu0 0.0
  %184 = vmatmul.mubr.f32.gmra.mxu0 %v112
  %v185 = vpop.f32.mrf.mxu0
  %v186 = vadd.f32 0.0, %v185
  %v187 = vpop.f32.mrf.mxu0
  %188 = vdwg.mxu0
  %vm189 = vcmask 31744
  %190 = vst.msk [vmem:[%s2] sm:$0xff] %vm189, %v181
  %191 = vst.msk [vmem:[%s2 + $0x8] sm:$0xff] %vm189, %v186
  %v192 = vsub.f32 %v105, %v181
  %v193 = vsub.f32 %v106, %v186
  %194 = vst.msk [vmem:[%s1] sm:$0xff] %vm189, %v192
  %195 = vst.msk [vmem:[%s1 + $0x8] sm:$0xff] %vm189, %v193
  %s196 = scalar_lea.vmem %s0, 16
  %v197 = vld [vmem:[%s196] sm:$0xff]
  %v198 = vld [vmem:[%s196 + $0x8] sm:$0xff]
  %199 = vmatprep.subr.mxu0 0.0
  %200 = vmatpush1.msra.mxu0 0.0
  %201 = vmatprep.subr.mxu0 0.0
  %202 = vmatpush1.msra.mxu0 0.0
  %203 = vmatprep.subr.mxu0 0.0
  %204 = vmatpush1.msra.mxu0 0.0
  %205 = vmatprep.subr.mxu0 0.0
  %206 = vmatpush1.msra.mxu0 0.0
  %207 = vmatprep.subr.mxu0 0.0
  %208 = vmatpush1.msra.mxu0 0.0
  %209 = vmatprep.subr.mxu0 0.0
  %210 = vmatpush1.msra.mxu0 0.0
  %211 = vmatprep.subr.mxu0 0.0
  %212 = vmatpush1.msra.mxu0 0.0
  %213 = vmatprep.subr.mxu0 0.0
  %214 = vmatpush1.msra.mxu0 0.0
  %215 = vmatprep.subr.mxu0 0.0
  %216 = vmatpush1.msra.mxu0 0.0
  %217 = vmatprep.subr.mxu0 0.0
  %218 = vmatpush1.msra.mxu0 0.0
  %219 = vmatprep.subr.mxu0 0.0
  %220 = vmatpush1.msra.mxu0 0.0
  %221 = vmatprep.subr.mxu0 0.0
  %222 = vmatpush1.msra.mxu0 0.0
  %223 = vmatprep.subr.mxu0 0.0
  %224 = vmatpush1.msra.mxu0 0.0
  %225 = vmatprep.subr.mxu0 0.0
  %226 = vmatpush1.msra.mxu0 0.0
  %227 = vmatprep.subr.mxu0 0.0
  %228 = vmatpush1.msra.mxu0 %v198
  %229 = vmatprep.subr.mxu0 0.0
  %230 = vmatpush1.msra.mxu0 %v197
  %231 = vmatprep.subr.mxu0 0.0
  %232 = vmatpush2.msra.mxu0 0.0
  %233 = vmatprep.subr.mxu0 0.0
  %234 = vmatpush2.msra.mxu0 0.0
  %235 = vmatprep.subr.mxu0 0.0
  %236 = vmatpush2.msra.mxu0 0.0
  %237 = vmatprep.subr.mxu0 0.0
  %238 = vmatpush2.msra.mxu0 0.0
  %239 = vmatprep.subr.mxu0 0.0
  %240 = vmatpush2.msra.mxu0 0.0
  %241 = vmatprep.subr.mxu0 0.0
  %242 = vmatpush2.msra.mxu0 0.0
  %243 = vmatprep.subr.mxu0 0.0
  %244 = vmatpush2.msra.mxu0 0.0
  %245 = vmatprep.subr.mxu0 0.0
  %246 = vmatpush2.msra.mxu0 0.0
  %247 = vmatprep.subr.mxu0 0.0
  %248 = vmatpush2.msra.mxu0 0.0
  %249 = vmatprep.subr.mxu0 0.0
  %250 = vmatpush2.msra.mxu0 0.0
  %251 = vmatprep.subr.mxu0 0.0
  %252 = vmatpush2.msra.mxu0 0.0
  %253 = vmatprep.subr.mxu0 0.0
  %254 = vmatpush2.msra.mxu0 0.0
  %255 = vmatprep.subr.mxu0 0.0
  %256 = vmatpush2.msra.mxu0 0.0
  %257 = vmatprep.subr.mxu0 0.0
  %258 = vmatpush2.msra.mxu0 0.0
  %259 = vmatprep.subr.mxu0 0.0
  %260 = vmatpush2.msra.mxu0 0.0
  %261 = vmatprep.subr.mxu0 0.0
  %262 = vmatpush2.msra.mxu0 0.0
  %263 = vmatprep.mubr.f32.mxu0 0.0
  %264 = vmatmul.mubr.f32.gmra.mxu0 %v109
  %v265 = vpop.f32.mrf.mxu0
  %v266 = vadd.f32 0.0, %v265
  %v267 = vpop.f32.mrf.mxu0
  %268 = vmatprep.mubr.f32.mxu0 0.0
  %269 = vmatmul.mubr.f32.gmra.mxu0 %v112
  %v270 = vpop.f32.mrf.mxu0
  %v271 = vadd.f32 0.0, %v270
  %v272 = vpop.f32.mrf.mxu0
  %273 = vdwg.mxu0
  %s274 = scalar_lea.vmem %s2, 16
  %275 = vst.msk [vmem:[%s274] sm:$0xff] %vm189, %v266
  %276 = vst.msk [vmem:[%s274 + $0x8] sm:$0xff] %vm189, %v271
  %v277 = vsub.f32 %v197, %v266
  %v278 = vsub.f32 %v198, %v271
  %s279 = scalar_lea.vmem %s1, 16
  %280 = vst.msk [vmem:[%s279] sm:$0xff] %vm189, %v277
  %281 = vst.msk [vmem:[%s279 + $0x8] sm:$0xff] %vm189, %v278
  // Predicated region
  $region6: #{_lambda_.19} parent=0 // pred_check
    _
  $region7: #{_lambda_.19} parent=0 // pred_check_branch
    %283 = sbr.rel (0) target = $region9
  $region8: #{_lambda_.19} parent=0 // pred_region
    _
  $region9: #{_lambda_.19} parent=0 // pred_fallthru
    _
  // Predicated region
  $region10: #{_lambda_.19} parent=0 // pred_check
    _
  $region11: #{_lambda_.19} parent=0 // pred_check_branch
    %285 = sbr.rel (0) target = $region13
  $region12: #{_lambda_.19} parent=0 // pred_region
    _
  $region13: #{_lambda_.19} parent=0 // pred_fallthru
    _
  // Predicated region
  $region14: #{_lambda_.19} parent=0 // pred_check
    _
  $region15: #{_lambda_.19} parent=0 // pred_check_branch
    %287 = sbr.rel (0) target = $region17
  $region16: #{_lambda_.19} parent=0 // pred_region
    _
  $region17: #{_lambda_.19} parent=0 // pred_fallthru
    _
  // Predicated region
  $region18: #{_lambda_.19} parent=0 // pred_check
    _
  $region19: #{_lambda_.19} parent=0 // pred_check_branch
    %289 = sbr.rel (0) target = $region21
  $region20: #{_lambda_.19} parent=0 // pred_region
    _
  $region21: #{_lambda_.19} parent=0 // pred_fallthru
    _

// kernel: _lambda_.21
$region0: #{_lambda_.21}
  #allocation0 [shape = 'u32[]', space=smem, size = 0x4, offset = 0x4, fixed_abs, tag = 'smem constant byte address 0x4 - core index']
  #allocation1 [shape = 'u32[144,128]{1,0:T(1,128)}', space=vmem, size = 0x12000, scoped, tag = 'internal scratch']
  %s0 = inlined_call_operand.vmem [shape: f32[32,32], index: 0, kind: input, shape index: {}]
  %s1 = inlined_call_operand.vmem [shape: f32[32,128], index: 1, kind: input, shape index: {}]
  %s2 = inlined_call_operand.vmem [shape: f32[1,128], index: 2, kind: input, shape index: {}]
  %s3 = inlined_call_operand.vmem [shape: f32[32,128], index: 3, kind: output, shape index: {}]
  %s4 = sld [smem:[#allocation0]]
  $region22: #{_lambda_.21} parent=0
    _
  %s6 = ssub.s32 1, %s4
  %s7 = scalar_select 0, %s6, %s4
  // Predicated region
  $region2: #{_lambda_.21} parent=0 // pred_check
    _
  $region3: #{_lambda_.21} parent=0 // pred_check_branch
    %9 = sbr.rel (0) target = $region5
  $region4: #{_lambda_.21} parent=0 // pred_region
    _
  $region5: #{_lambda_.21} parent=0 // pred_fallthru
    _
  // Predicated region
  $region6: #{_lambda_.21} parent=0 // pred_check
    _
  $region7: #{_lambda_.21} parent=0 // pred_check_branch
    %11 = sbr.rel (0) target = $region9
  $region8: #{_lambda_.21} parent=0 // pred_region
    _
  $region9: #{_lambda_.21} parent=0 // pred_fallthru
    _
  // Predicated region
  $region10: #{_lambda_.21} parent=0 // pred_check
    _
  $region11: #{_lambda_.21} parent=0 // pred_check_branch
    %13 = sbr.rel (0) target = $region13
  $region12: #{_lambda_.21} parent=0 // pred_region
    _
  $region13: #{_lambda_.21} parent=0 // pred_fallthru
    _
  %v14 = vld [vmem:[%s0] sm:$0xff]
  %v15 = vld [vmem:[%s0 + $0x8] sm:$0xff]
  %v16 = vld [vmem:[%s0 + $0x10] sm:$0xff]
  %v17 = vld [vmem:[%s0 + $0x18] sm:$0xff]
  %v18 = vld [vmem:[%s1] sm:$0xff]
  %v19 = vld [vmem:[%s1 + $0x8] sm:$0xff]
  %v20 = vld [vmem:[%s1 + $0x10] sm:$0xff]
  %v21 = vld [vmem:[%s1 + $0x18] sm:$0xff]
  %v22 = vld [vmem:[%s2] sm:$0x1]
  %v24 = vlaneseq
  %v25 = vshrl.u32 %v24, 7
  %v26 = vsub.s32 0, %v25
  %v27 = vrot.slane %v22, %v26
  %vm29 = vcmask 261120
  %v31 = vsel %vm29, %v14, 0
  %v34 = vsel %vm29, %v15, 0
  %v37 = vsel %vm29, %v16, 0
  %v40 = vsel %vm29, %v17, 0
  %42 = vmatprep.subr.mxu0 0.0
  %43 = vmatpush1.msra.mxu0 0.0
  %44 = vmatprep.subr.mxu0 0.0
  %45 = vmatpush1.msra.mxu0 0.0
  %46 = vmatprep.subr.mxu0 0.0
  %47 = vmatpush1.msra.mxu0 0.0
  %48 = vmatprep.subr.mxu0 0.0
  %49 = vmatpush1.msra.mxu0 0.0
  %50 = vmatprep.subr.mxu0 0.0
  %51 = vmatpush1.msra.mxu0 0.0
  %52 = vmatprep.subr.mxu0 0.0
  %53 = vmatpush1.msra.mxu0 0.0
  %54 = vmatprep.subr.mxu0 0.0
  %55 = vmatpush1.msra.mxu0 0.0
  %56 = vmatprep.subr.mxu0 0.0
  %57 = vmatpush1.msra.mxu0 0.0
  %58 = vmatprep.subr.mxu0 0.0
  %59 = vmatpush1.msra.mxu0 0.0
  %60 = vmatprep.subr.mxu0 0.0
  %61 = vmatpush1.msra.mxu0 0.0
  %62 = vmatprep.subr.mxu0 0.0
  %63 = vmatpush1.msra.mxu0 0.0
  %64 = vmatprep.subr.mxu0 0.0
  %65 = vmatpush1.msra.mxu0 0.0
  %66 = vmatprep.subr.mxu0 0.0
  %67 = vmatpush1.msra.mxu0 %v21
  %68 = vmatprep.subr.mxu0 0.0
  %69 = vmatpush1.msra.mxu0 %v20
  %70 = vmatprep.subr.mxu0 0.0
  %71 = vmatpush1.msra.mxu0 %v19
  %72 = vmatprep.subr.mxu0 0.0
  %73 = vmatpush1.msra.mxu0 %v18
  %74 = vmatprep.subr.mxu0 0.0
  %75 = vmatpush2.msra.mxu0 0.0
  %76 = vmatprep.subr.mxu0 0.0
  %77 = vmatpush2.msra.mxu0 0.0
  %78 = vmatprep.subr.mxu0 0.0
  %79 = vmatpush2.msra.mxu0 0.0
  %80 = vmatprep.subr.mxu0 0.0
  %81 = vmatpush2.msra.mxu0 0.0
  %82 = vmatprep.subr.mxu0 0.0
  %83 = vmatpush2.msra.mxu0 0.0
  %84 = vmatprep.subr.mxu0 0.0
  %85 = vmatpush2.msra.mxu0 0.0
  %86 = vmatprep.subr.mxu0 0.0
  %87 = vmatpush2.msra.mxu0 0.0
  %88 = vmatprep.subr.mxu0 0.0
  %89 = vmatpush2.msra.mxu0 0.0
  %90 = vmatprep.subr.mxu0 0.0
  %91 = vmatpush2.msra.mxu0 0.0
  %92 = vmatprep.subr.mxu0 0.0
  %93 = vmatpush2.msra.mxu0 0.0
  %94 = vmatprep.subr.mxu0 0.0
  %95 = vmatpush2.msra.mxu0 0.0
  %96 = vmatprep.subr.mxu0 0.0
  %97 = vmatpush2.msra.mxu0 0.0
  %98 = vmatprep.subr.mxu0 0.0
  %99 = vmatpush2.msra.mxu0 0.0
  %100 = vmatprep.subr.mxu0 0.0
  %101 = vmatpush2.msra.mxu0 0.0
  %102 = vmatprep.subr.mxu0 0.0
  %103 = vmatpush2.msra.mxu0 0.0
  %104 = vmatprep.subr.mxu0 0.0
  %105 = vmatpush2.msra.mxu0 0.0
  %106 = vmatprep.mubr.f32.mxu0 0.0
  %107 = vmatmul.mubr.f32.gmra.mxu0 %v31
  %v108 = vpop.f32.mrf.mxu0
  %v109 = vadd.f32 %v27, %v108
  %v110 = vpop.f32.mrf.mxu0
  %111 = vmatprep.mubr.f32.mxu0 0.0
  %112 = vmatmul.mubr.f32.gmra.mxu0 %v34
  %v113 = vpop.f32.mrf.mxu0
  %v114 = vadd.f32 %v27, %v113
  %v115 = vpop.f32.mrf.mxu0
  %116 = vmatprep.mubr.f32.mxu0 0.0
  %117 = vmatmul.mubr.f32.gmra.mxu0 %v37
  %v118 = vpop.f32.mrf.mxu0
  %v119 = vadd.f32 %v27, %v118
  %v120 = vpop.f32.mrf.mxu0
  %121 = vmatprep.mubr.f32.mxu0 0.0
  %122 = vmatmul.mubr.f32.gmra.mxu0 %v40
  %v123 = vpop.f32.mrf.mxu0
  %v124 = vadd.f32 %v27, %v123
  %v125 = vpop.f32.mrf.mxu0
  %126 = vdwg.mxu0
  %127 = vst [vmem:[%s3] sm:$0xff] %v109
  %128 = vst [vmem:[%s3 + $0x8] sm:$0xff] %v114
  %129 = vst [vmem:[%s3 + $0x10] sm:$0xff] %v119
  %130 = vst [vmem:[%s3 + $0x18] sm:$0xff] %v124
  // Predicated region
  $region14: #{_lambda_.21} parent=0 // pred_check
    _
  $region15: #{_lambda_.21} parent=0 // pred_check_branch
    %132 = sbr.rel (0) target = $region17
  $region16: #{_lambda_.21} parent=0 // pred_region
    _
  $region17: #{_lambda_.21} parent=0 // pred_fallthru
    _
  // Predicated region
  $region18: #{_lambda_.21} parent=0 // pred_check
    _
  $region19: #{_lambda_.21} parent=0 // pred_check_branch
    %134 = sbr.rel (0) target = $region21
  $region20: #{_lambda_.21} parent=0 // pred_region
    _
  $region21: #{_lambda_.21} parent=0 // pred_fallthru
    _

// kernel: _lambda_.20
$region0: #{_lambda_.20}
  #allocation0 [shape = 'u32[]', space=smem, size = 0x4, offset = 0x4, fixed_abs, tag = 'smem constant byte address 0x4 - core index']
  #allocation1 [shape = 'u32[144,128]{1,0:T(1,128)}', space=vmem, size = 0x12000, scoped, tag = 'internal scratch']
  %s0 = inlined_call_operand.vmem [shape: f32[2,16,4], index: 0, kind: input, shape index: {}]
  %s1 = inlined_call_operand.vmem [shape: f32[2,16,4], index: 1, kind: input, shape index: {}]
  %s2 = inlined_call_operand.vmem [shape: f32[3,4,32], index: 2, kind: input, shape index: {}]
  %s3 = inlined_call_operand.vmem [shape: f32[4,32], index: 3, kind: input, shape index: {}]
  %s4 = inlined_call_operand.vmem [shape: f32[2,16,32], index: 4, kind: output, shape index: {}]
  %s5 = sld [smem:[#allocation0]]
  $region26: #{_lambda_.20} parent=0
    _
  %s7 = ssub.s32 1, %s5
  %s8 = scalar_select 0, %s7, %s5
  // Predicated region
  $region2: #{_lambda_.20} parent=0 // pred_check
    _
  $region3: #{_lambda_.20} parent=0 // pred_check_branch
    %10 = sbr.rel (0) target = $region5
  $region4: #{_lambda_.20} parent=0 // pred_region
    _
  $region5: #{_lambda_.20} parent=0 // pred_fallthru
    _
  // Predicated region
  $region6: #{_lambda_.20} parent=0 // pred_check
    _
  $region7: #{_lambda_.20} parent=0 // pred_check_branch
    %12 = sbr.rel (0) target = $region9
  $region8: #{_lambda_.20} parent=0 // pred_region
    _
  $region9: #{_lambda_.20} parent=0 // pred_fallthru
    _
  // Predicated region
  $region10: #{_lambda_.20} parent=0 // pred_check
    _
  $region11: #{_lambda_.20} parent=0 // pred_check_branch
    %14 = sbr.rel (0) target = $region13
  $region12: #{_lambda_.20} parent=0 // pred_region
    _
  $region13: #{_lambda_.20} parent=0 // pred_fallthru
    _
  // Predicated region
  $region14: #{_lambda_.20} parent=0 // pred_check
    _
  $region15: #{_lambda_.20} parent=0 // pred_check_branch
    %16 = sbr.rel (0) target = $region17
  $region16: #{_lambda_.20} parent=0 // pred_region
    _
  $region17: #{_lambda_.20} parent=0 // pred_fallthru
    _
  %v17 = vlaneseq
  %v18 = vshrl.u32 %v17, 7
  %v19 = vadd.s32 %v18, 8
  %v20 = vlaneseq
  %v21 = vand.u32 %v20, 127
  %v22 = vadd.s32 %v18, 15
  %v23 = vadd.s32 %v19, 15
  %vm24 = vcmp.lt.s32.totalorder %v22, 0
  %v25 = vsub.s32 0, %v22
  %v26 = vsel %vm24, %v25, %v22
  %v27 = vshrl.u32 %v26, 4
  %v28 = vand.u32 %v26, 15
  %v29 = vsub.s32 0, %v28
  %v30 = vsel %vm24, %v29, %v28
  %vm31 = vcmp.lt.s32.totalorder %v23, 0
  %v32 = vsub.s32 0, %v23
  %v33 = vsel %vm31, %v32, %v23
  %v34 = vshrl.u32 %v33, 4
  %v35 = vand.u32 %v33, 15
  %v36 = vsub.s32 0, %v35
  %v37 = vsel %vm31, %v36, %v35
  %vm38 = vcmp.ne.s32.totalorder %v30, 0
  %vm39 = vcmp.ne.s32.totalorder %v37, 0
  %vm40 = vcmp.lt.s32.totalorder %v30, 0
  %vm41 = vcmp.lt.s32.totalorder %v37, 0
  %vm42 = vmand %vm40, %vm38
  %vm43 = vmand %vm41, %vm39
  %v44 = vadd.s32 %v30, 16
  %v45 = vadd.s32 %v37, 16
  %v46 = vsel %vm42, %v44, %v30
  %v47 = vsel %vm43, %v45, %v37
  %vm48 = vcmp.eq.s32.totalorder %v21, %v46
  %vm49 = vcmp.eq.s32.totalorder %v21, %v47
  %v50 = vsel %vm48, 1, 0
  %v51 = vsel %vm49, 1, 0
  %v52 = vcvt.s32.f32 %v50
  %v53 = vcvt.s32.f32 %v51
  %v54 = vadd.s32 %v18, 17
  %v55 = vadd.s32 %v19, 17
  %vm56 = vcmp.lt.s32.totalorder %v54, 0
  %v57 = vsub.s32 0, %v54
  %v58 = vsel %vm56, %v57, %v54
  %v59 = vshrl.u32 %v58, 4
  %v60 = vand.u32 %v58, 15
  %v61 = vsub.s32 0, %v60
  %v62 = vsel %vm56, %v61, %v60
  %vm63 = vcmp.lt.s32.totalorder %v55, 0
  %v64 = vsub.s32 0, %v55
  %v65 = vsel %vm63, %v64, %v55
  %v66 = vshrl.u32 %v65, 4
  %v67 = vand.u32 %v65, 15
  %v68 = vsub.s32 0, %v67
  %v69 = vsel %vm63, %v68, %v67
  %vm70 = vcmp.ne.s32.totalorder %v62, 0
  %vm71 = vcmp.ne.s32.totalorder %v69, 0
  %vm72 = vcmp.lt.s32.totalorder %v62, 0
  %vm73 = vcmp.lt.s32.totalorder %v69, 0
  %vm74 = vmand %vm72, %vm70
  %vm75 = vmand %vm73, %vm71
  %v76 = vadd.s32 %v62, 16
  %v77 = vadd.s32 %v69, 16
  %v78 = vsel %vm74, %v76, %v62
  %v79 = vsel %vm75, %v77, %v69
  %vm80 = vcmp.eq.s32.totalorder %v21, %v78
  %vm81 = vcmp.eq.s32.totalorder %v21, %v79
  %v82 = vsel %vm80, 1, 0
  %v83 = vsel %vm81, 1, 0
  %v84 = vcvt.s32.f32 %v82
  %v85 = vcvt.s32.f32 %v83
  %v86 = vld [vmem:[%s2] sm:$0xf]
  %s87 = scalar_lea.vmem %s2, 4
  %v88 = vld [vmem:[%s87] sm:$0xf]
  %s89 = scalar_lea.vmem %s2, 8
  %v90 = vld [vmem:[%s89] sm:$0xf]
  %v91 = vld [vmem:[%s3] sm:$0xf]
  %v92 = vld [vmem:[%s0] sm:$0xff]
  %v93 = vld [vmem:[%s0 + $0x8] sm:$0xff]
  %v94 = vld [vmem:[%s1] sm:$0xff]
  %v95 = vld [vmem:[%s1 + $0x8] sm:$0xff]
  %vm96 = vcmask 130048
  %v98 = vsel %vm96, %v52, 0
  %v101 = vsel %vm96, %v53, 0
  %103 = vmatprep.subr.mxu0 0.0
  %104 = vmatpush1.msra.mxu0 0.0
  %105 = vmatprep.subr.mxu0 0.0
  %106 = vmatpush1.msra.mxu0 0.0
  %107 = vmatprep.subr.mxu0 0.0
  %108 = vmatpush1.msra.mxu0 0.0
  %109 = vmatprep.subr.mxu0 0.0
  %110 = vmatpush1.msra.mxu0 0.0
  %111 = vmatprep.subr.mxu0 0.0
  %112 = vmatpush1.msra.mxu0 0.0
  %113 = vmatprep.subr.mxu0 0.0
  %114 = vmatpush1.msra.mxu0 0.0
  %115 = vmatprep.subr.mxu0 0.0
  %116 = vmatpush1.msra.mxu0 0.0
  %117 = vmatprep.subr.mxu0 0.0
  %118 = vmatpush1.msra.mxu0 0.0
  %119 = vmatprep.subr.mxu0 0.0
  %120 = vmatpush1.msra.mxu0 0.0
  %121 = vmatprep.subr.mxu0 0.0
  %122 = vmatpush1.msra.mxu0 0.0
  %123 = vmatprep.subr.mxu0 0.0
  %124 = vmatpush1.msra.mxu0 0.0
  %125 = vmatprep.subr.mxu0 0.0
  %126 = vmatpush1.msra.mxu0 0.0
  %127 = vmatprep.subr.mxu0 0.0
  %128 = vmatpush1.msra.mxu0 0.0
  %129 = vmatprep.subr.mxu0 0.0
  %130 = vmatpush1.msra.mxu0 0.0
  %131 = vmatprep.subr.mxu0 0.0
  %132 = vmatpush1.msra.mxu0 %v93
  %133 = vmatprep.subr.mxu0 0.0
  %134 = vmatpush1.msra.mxu0 %v92
  %135 = vmatprep.subr.mxu0 0.0
  %136 = vmatpush2.msra.mxu0 0.0
  %137 = vmatprep.subr.mxu0 0.0
  %138 = vmatpush2.msra.mxu0 0.0
  %139 = vmatprep.subr.mxu0 0.0
  %140 = vmatpush2.msra.mxu0 0.0
  %141 = vmatprep.subr.mxu0 0.0
  %142 = vmatpush2.msra.mxu0 0.0
  %143 = vmatprep.subr.mxu0 0.0
  %144 = vmatpush2.msra.mxu0 0.0
  %145 = vmatprep.subr.mxu0 0.0
  %146 = vmatpush2.msra.mxu0 0.0
  %147 = vmatprep.subr.mxu0 0.0
  %148 = vmatpush2.msra.mxu0 0.0
  %149 = vmatprep.subr.mxu0 0.0
  %150 = vmatpush2.msra.mxu0 0.0
  %151 = vmatprep.subr.mxu0 0.0
  %152 = vmatpush2.msra.mxu0 0.0
  %153 = vmatprep.subr.mxu0 0.0
  %154 = vmatpush2.msra.mxu0 0.0
  %155 = vmatprep.subr.mxu0 0.0
  %156 = vmatpush2.msra.mxu0 0.0
  %157 = vmatprep.subr.mxu0 0.0
  %158 = vmatpush2.msra.mxu0 0.0
  %159 = vmatprep.subr.mxu0 0.0
  %160 = vmatpush2.msra.mxu0 0.0
  %161 = vmatprep.subr.mxu0 0.0
  %162 = vmatpush2.msra.mxu0 0.0
  %163 = vmatprep.subr.mxu0 0.0
  %164 = vmatpush2.msra.mxu0 0.0
  %165 = vmatprep.subr.mxu0 0.0
  %166 = vmatpush2.msra.mxu0 0.0
  %167 = vmatprep.mubr.f32.mxu0 0.0
  %168 = vmatmul.mubr.f32.gmra.mxu0 %v98
  %v169 = vpop.f32.mrf.mxu0
  %v170 = vadd.f32 0.0, %v169
  %v171 = vpop.f32.mrf.mxu0
  %172 = vmatprep.mubr.f32.mxu0 0.0
  %173 = vmatmul.mubr.f32.gmra.mxu0 %v101
  %v174 = vpop.f32.mrf.mxu0
  %v175 = vadd.f32 0.0, %v174
  %v176 = vpop.f32.mrf.mxu0
  %177 = vdwg.mxu0
  %vm178 = vcmask 31744
  %v180 = vsel %vm178, %v92, 0
  %v183 = vsel %vm178, %v93, 0
  %vm185 = vcmask 1043456
  %v187 = vsel %vm185, %v88, 0
  %189 = vmatprep.subr.mxu0 0.0
  %190 = vmatpush1.msra.mxu0 0.0
  %191 = vmatprep.subr.mxu0 0.0
  %192 = vmatpush1.msra.mxu0 0.0
  %193 = vmatprep.subr.mxu0 0.0
  %194 = vmatpush1.msra.mxu0 0.0
  %195 = vmatprep.subr.mxu0 0.0
  %196 = vmatpush1.msra.mxu0 0.0
  %197 = vmatprep.subr.mxu0 0.0
  %198 = vmatpush1.msra.mxu0 0.0
  %199 = vmatprep.subr.mxu0 0.0
  %200 = vmatpush1.msra.mxu0 0.0
  %201 = vmatprep.subr.mxu0 0.0
  %202 = vmatpush1.msra.mxu0 0.0
  %203 = vmatprep.subr.mxu0 0.0
  %204 = vmatpush1.msra.mxu0 0.0
  %205 = vmatprep.subr.mxu0 0.0
  %206 = vmatpush1.msra.mxu0 0.0
  %207 = vmatprep.subr.mxu0 0.0
  %208 = vmatpush1.msra.mxu0 0.0
  %209 = vmatprep.subr.mxu0 0.0
  %210 = vmatpush1.msra.mxu0 0.0
  %211 = vmatprep.subr.mxu0 0.0
  %212 = vmatpush1.msra.mxu0 0.0
  %213 = vmatprep.subr.mxu0 0.0
  %214 = vmatpush1.msra.mxu0 0.0
  %215 = vmatprep.subr.mxu0 0.0
  %216 = vmatpush1.msra.mxu0 0.0
  %217 = vmatprep.subr.mxu0 0.0
  %218 = vmatpush1.msra.mxu0 0.0
  %219 = vmatprep.subr.mxu0 0.0
  %220 = vmatpush1.msra.mxu0 %v187
  %221 = vmatprep.subr.mxu0 0.0
  %222 = vmatpush2.msra.mxu0 0.0
  %223 = vmatprep.subr.mxu0 0.0
  %224 = vmatpush2.msra.mxu0 0.0
  %225 = vmatprep.subr.mxu0 0.0
  %226 = vmatpush2.msra.mxu0 0.0
  %227 = vmatprep.subr.mxu0 0.0
  %228 = vmatpush2.msra.mxu0 0.0
  %229 = vmatprep.subr.mxu0 0.0
  %230 = vmatpush2.msra.mxu0 0.0
  %231 = vmatprep.subr.mxu0 0.0
  %232 = vmatpush2.msra.mxu0 0.0
  %233 = vmatprep.subr.mxu0 0.0
  %234 = vmatpush2.msra.mxu0 0.0
  %235 = vmatprep.subr.mxu0 0.0
  %236 = vmatpush2.msra.mxu0 0.0
  %237 = vmatprep.subr.mxu0 0.0
  %238 = vmatpush2.msra.mxu0 0.0
  %239 = vmatprep.subr.mxu0 0.0
  %240 = vmatpush2.msra.mxu0 0.0
  %241 = vmatprep.subr.mxu0 0.0
  %242 = vmatpush2.msra.mxu0 0.0
  %243 = vmatprep.subr.mxu0 0.0
  %244 = vmatpush2.msra.mxu0 0.0
  %245 = vmatprep.subr.mxu0 0.0
  %246 = vmatpush2.msra.mxu0 0.0
  %247 = vmatprep.subr.mxu0 0.0
  %248 = vmatpush2.msra.mxu0 0.0
  %249 = vmatprep.subr.mxu0 0.0
  %250 = vmatpush2.msra.mxu0 0.0
  %251 = vmatprep.subr.mxu0 0.0
  %252 = vmatpush2.msra.mxu0 0.0
  %253 = vmatprep.mubr.f32.mxu0 0.0
  %254 = vmatmul.mubr.f32.gmra.mxu0 %v180
  %v255 = vpop.f32.mrf.mxu0
  %v256 = vadd.f32 0.0, %v255
  %v257 = vpop.f32.mrf.mxu0
  %258 = vmatprep.mubr.f32.mxu0 0.0
  %259 = vmatmul.mubr.f32.gmra.mxu0 %v183
  %v260 = vpop.f32.mrf.mxu0
  %v261 = vadd.f32 0.0, %v260
  %v262 = vpop.f32.mrf.mxu0
  %263 = vdwg.mxu0
  %v265 = vsel %vm178, %v170, 0
  %v268 = vsel %vm178, %v175, 0
  %v271 = vsel %vm185, %v86, 0
  %273 = vmatprep.subr.mxu0 0.0
  %274 = vmatpush1.msra.mxu0 0.0
  %275 = vmatprep.subr.mxu0 0.0
  %276 = vmatpush1.msra.mxu0 0.0
  %277 = vmatprep.subr.mxu0 0.0
  %278 = vmatpush1.msra.mxu0 0.0
  %279 = vmatprep.subr.mxu0 0.0
  %280 = vmatpush1.msra.mxu0 0.0
  %281 = vmatprep.subr.mxu0 0.0
  %282 = vmatpush1.msra.mxu0 0.0
  %283 = vmatprep.subr.mxu0 0.0
  %284 = vmatpush1.msra.mxu0 0.0
  %285 = vmatprep.subr.mxu0 0.0
  %286 = vmatpush1.msra.mxu0 0.0
  %287 = vmatprep.subr.mxu0 0.0
  %288 = vmatpush1.msra.mxu0 0.0
  %289 = vmatprep.subr.mxu0 0.0
  %290 = vmatpush1.msra.mxu0 0.0
  %291 = vmatprep.subr.mxu0 0.0
  %292 = vmatpush1.msra.mxu0 0.0
  %293 = vmatprep.subr.mxu0 0.0
  %294 = vmatpush1.msra.mxu0 0.0
  %295 = vmatprep.subr.mxu0 0.0
  %296 = vmatpush1.msra.mxu0 0.0
  %297 = vmatprep.subr.mxu0 0.0
  %298 = vmatpush1.msra.mxu0 0.0
  %299 = vmatprep.subr.mxu0 0.0
  %300 = vmatpush1.msra.mxu0 0.0
  %301 = vmatprep.subr.mxu0 0.0
  %302 = vmatpush1.msra.mxu0 0.0
  %303 = vmatprep.subr.mxu0 0.0
  %304 = vmatpush1.msra.mxu0 %v271
  %305 = vmatprep.subr.mxu0 0.0
  %306 = vmatpush2.msra.mxu0 0.0
  %307 = vmatprep.subr.mxu0 0.0
  %308 = vmatpush2.msra.mxu0 0.0
  %309 = vmatprep.subr.mxu0 0.0
  %310 = vmatpush2.msra.mxu0 0.0
  %311 = vmatprep.subr.mxu0 0.0
  %312 = vmatpush2.msra.mxu0 0.0
  %313 = vmatprep.subr.mxu0 0.0
  %314 = vmatpush2.msra.mxu0 0.0
  %315 = vmatprep.subr.mxu0 0.0
  %316 = vmatpush2.msra.mxu0 0.0
  %317 = vmatprep.subr.mxu0 0.0
  %318 = vmatpush2.msra.mxu0 0.0
  %319 = vmatprep.subr.mxu0 0.0
  %320 = vmatpush2.msra.mxu0 0.0
  %321 = vmatprep.subr.mxu0 0.0
  %322 = vmatpush2.msra.mxu0 0.0
  %323 = vmatprep.subr.mxu0 0.0
  %324 = vmatpush2.msra.mxu0 0.0
  %325 = vmatprep.subr.mxu0 0.0
  %326 = vmatpush2.msra.mxu0 0.0
  %327 = vmatprep.subr.mxu0 0.0
  %328 = vmatpush2.msra.mxu0 0.0
  %329 = vmatprep.subr.mxu0 0.0
  %330 = vmatpush2.msra.mxu0 0.0
  %331 = vmatprep.subr.mxu0 0.0
  %332 = vmatpush2.msra.mxu0 0.0
  %333 = vmatprep.subr.mxu0 0.0
  %334 = vmatpush2.msra.mxu0 0.0
  %335 = vmatprep.subr.mxu0 0.0
  %336 = vmatpush2.msra.mxu0 0.0
  %337 = vmatprep.mubr.f32.mxu0 0.0
  %338 = vmatmul.mubr.f32.gmra.mxu0 %v265
  %v339 = vpop.f32.mrf.mxu0
  %v340 = vadd.f32 %v256, %v339
  %v341 = vpop.f32.mrf.mxu0
  %342 = vmatprep.mubr.f32.mxu0 0.0
  %343 = vmatmul.mubr.f32.gmra.mxu0 %v268
  %v344 = vpop.f32.mrf.mxu0
  %v345 = vadd.f32 %v261, %v344
  %v346 = vpop.f32.mrf.mxu0
  %347 = vdwg.mxu0
  %v349 = vsel %vm96, %v84, 0
  %v352 = vsel %vm96, %v85, 0
  %354 = vmatprep.subr.mxu0 0.0
  %355 = vmatpush1.msra.mxu0 0.0
  %356 = vmatprep.subr.mxu0 0.0
  %357 = vmatpush1.msra.mxu0 0.0
  %358 = vmatprep.subr.mxu0 0.0
  %359 = vmatpush1.msra.mxu0 0.0
  %360 = vmatprep.subr.mxu0 0.0
  %361 = vmatpush1.msra.mxu0 0.0
  %362 = vmatprep.subr.mxu0 0.0
  %363 = vmatpush1.msra.mxu0 0.0
  %364 = vmatprep.subr.mxu0 0.0
  %365 = vmatpush1.msra.mxu0 0.0
  %366 = vmatprep.subr.mxu0 0.0
  %367 = vmatpush1.msra.mxu0 0.0
  %368 = vmatprep.subr.mxu0 0.0
  %369 = vmatpush1.msra.mxu0 0.0
  %370 = vmatprep.subr.mxu0 0.0
  %371 = vmatpush1.msra.mxu0 0.0
  %372 = vmatprep.subr.mxu0 0.0
  %373 = vmatpush1.msra.mxu0 0.0
  %374 = vmatprep.subr.mxu0 0.0
  %375 = vmatpush1.msra.mxu0 0.0
  %376 = vmatprep.subr.mxu0 0.0
  %377 = vmatpush1.msra.mxu0 0.0
  %378 = vmatprep.subr.mxu0 0.0
  %379 = vmatpush1.msra.mxu0 0.0
  %380 = vmatprep.subr.mxu0 0.0
  %381 = vmatpush1.msra.mxu0 0.0
  %382 = vmatprep.subr.mxu0 0.0
  %383 = vmatpush1.msra.mxu0 %v93
  %384 = vmatprep.subr.mxu0 0.0
  %385 = vmatpush1.msra.mxu0 %v92
  %386 = vmatprep.subr.mxu0 0.0
  %387 = vmatpush2.msra.mxu0 0.0
  %388 = vmatprep.subr.mxu0 0.0
  %389 = vmatpush2.msra.mxu0 0.0
  %390 = vmatprep.subr.mxu0 0.0
  %391 = vmatpush2.msra.mxu0 0.0
  %392 = vmatprep.subr.mxu0 0.0
  %393 = vmatpush2.msra.mxu0 0.0
  %394 = vmatprep.subr.mxu0 0.0
  %395 = vmatpush2.msra.mxu0 0.0
  %396 = vmatprep.subr.mxu0 0.0
  %397 = vmatpush2.msra.mxu0 0.0
  %398 = vmatprep.subr.mxu0 0.0
  %399 = vmatpush2.msra.mxu0 0.0
  %400 = vmatprep.subr.mxu0 0.0
  %401 = vmatpush2.msra.mxu0 0.0
  %402 = vmatprep.subr.mxu0 0.0
  %403 = vmatpush2.msra.mxu0 0.0
  %404 = vmatprep.subr.mxu0 0.0
  %405 = vmatpush2.msra.mxu0 0.0
  %406 = vmatprep.subr.mxu0 0.0
  %407 = vmatpush2.msra.mxu0 0.0
  %408 = vmatprep.subr.mxu0 0.0
  %409 = vmatpush2.msra.mxu0 0.0
  %410 = vmatprep.subr.mxu0 0.0
  %411 = vmatpush2.msra.mxu0 0.0
  %412 = vmatprep.subr.mxu0 0.0
  %413 = vmatpush2.msra.mxu0 0.0
  %414 = vmatprep.subr.mxu0 0.0
  %415 = vmatpush2.msra.mxu0 0.0
  %416 = vmatprep.subr.mxu0 0.0
  %417 = vmatpush2.msra.mxu0 0.0
  %418 = vmatprep.mubr.f32.mxu0 0.0
  %419 = vmatmul.mubr.f32.gmra.mxu0 %v349
  %v420 = vpop.f32.mrf.mxu0
  %v421 = vadd.f32 0.0, %v420
  %v422 = vpop.f32.mrf.mxu0
  %423 = vmatprep.mubr.f32.mxu0 0.0
  %424 = vmatmul.mubr.f32.gmra.mxu0 %v352
  %v425 = vpop.f32.mrf.mxu0
  %v426 = vadd.f32 0.0, %v425
  %v427 = vpop.f32.mrf.mxu0
  %428 = vdwg.mxu0
  %v430 = vsel %vm178, %v421, 0
  %v433 = vsel %vm178, %v426, 0
  %v436 = vsel %vm185, %v90, 0
  %438 = vmatprep.subr.mxu0 0.0
  %439 = vmatpush1.msra.mxu0 0.0
  %440 = vmatprep.subr.mxu0 0.0
  %441 = vmatpush1.msra.mxu0 0.0
  %442 = vmatprep.subr.mxu0 0.0
  %443 = vmatpush1.msra.mxu0 0.0
  %444 = vmatprep.subr.mxu0 0.0
  %445 = vmatpush1.msra.mxu0 0.0
  %446 = vmatprep.subr.mxu0 0.0
  %447 = vmatpush1.msra.mxu0 0.0
  %448 = vmatprep.subr.mxu0 0.0
  %449 = vmatpush1.msra.mxu0 0.0
  %450 = vmatprep.subr.mxu0 0.0
  %451 = vmatpush1.msra.mxu0 0.0
  %452 = vmatprep.subr.mxu0 0.0
  %453 = vmatpush1.msra.mxu0 0.0
  %454 = vmatprep.subr.mxu0 0.0
  %455 = vmatpush1.msra.mxu0 0.0
  %456 = vmatprep.subr.mxu0 0.0
  %457 = vmatpush1.msra.mxu0 0.0
  %458 = vmatprep.subr.mxu0 0.0
  %459 = vmatpush1.msra.mxu0 0.0
  %460 = vmatprep.subr.mxu0 0.0
  %461 = vmatpush1.msra.mxu0 0.0
  %462 = vmatprep.subr.mxu0 0.0
  %463 = vmatpush1.msra.mxu0 0.0
  %464 = vmatprep.subr.mxu0 0.0
  %465 = vmatpush1.msra.mxu0 0.0
  %466 = vmatprep.subr.mxu0 0.0
  %467 = vmatpush1.msra.mxu0 0.0
  %468 = vmatprep.subr.mxu0 0.0
  %469 = vmatpush1.msra.mxu0 %v436
  %470 = vmatprep.subr.mxu0 0.0
  %471 = vmatpush2.msra.mxu0 0.0
  %472 = vmatprep.subr.mxu0 0.0
  %473 = vmatpush2.msra.mxu0 0.0
  %474 = vmatprep.subr.mxu0 0.0
  %475 = vmatpush2.msra.mxu0 0.0
  %476 = vmatprep.subr.mxu0 0.0
  %477 = vmatpush2.msra.mxu0 0.0
  %478 = vmatprep.subr.mxu0 0.0
  %479 = vmatpush2.msra.mxu0 0.0
  %480 = vmatprep.subr.mxu0 0.0
  %481 = vmatpush2.msra.mxu0 0.0
  %482 = vmatprep.subr.mxu0 0.0
  %483 = vmatpush2.msra.mxu0 0.0
  %484 = vmatprep.subr.mxu0 0.0
  %485 = vmatpush2.msra.mxu0 0.0
  %486 = vmatprep.subr.mxu0 0.0
  %487 = vmatpush2.msra.mxu0 0.0
  %488 = vmatprep.subr.mxu0 0.0
  %489 = vmatpush2.msra.mxu0 0.0
  %490 = vmatprep.subr.mxu0 0.0
  %491 = vmatpush2.msra.mxu0 0.0
  %492 = vmatprep.subr.mxu0 0.0
  %493 = vmatpush2.msra.mxu0 0.0
  %494 = vmatprep.subr.mxu0 0.0
  %495 = vmatpush2.msra.mxu0 0.0
  %496 = vmatprep.subr.mxu0 0.0
  %497 = vmatpush2.msra.mxu0 0.0
  %498 = vmatprep.subr.mxu0 0.0
  %499 = vmatpush2.msra.mxu0 0.0
  %500 = vmatprep.subr.mxu0 0.0
  %501 = vmatpush2.msra.mxu0 0.0
  %502 = vmatprep.mubr.f32.mxu0 0.0
  %503 = vmatmul.mubr.f32.gmra.mxu0 %v430
  %v504 = vpop.f32.mrf.mxu0
  %v505 = vadd.f32 0.0, %v504
  %v506 = vpop.f32.mrf.mxu0
  %507 = vmatprep.mubr.f32.mxu0 0.0
  %508 = vmatmul.mubr.f32.gmra.mxu0 %v433
  %v509 = vpop.f32.mrf.mxu0
  %v510 = vadd.f32 0.0, %v509
  %v511 = vpop.f32.mrf.mxu0
  %512 = vdwg.mxu0
  %v513 = vadd.f32 %v340, %v505
  %v514 = vadd.f32 %v345, %v510
  %v516 = vsel %vm178, %v94, 0
  %v519 = vsel %vm178, %v95, 0
  %v522 = vsel %vm185, %v91, 0
  %524 = vmatprep.subr.mxu0 0.0
  %525 = vmatpush1.msra.mxu0 0.0
  %526 = vmatprep.subr.mxu0 0.0
  %527 = vmatpush1.msra.mxu0 0.0
  %528 = vmatprep.subr.mxu0 0.0
  %529 = vmatpush1.msra.mxu0 0.0
  %530 = vmatprep.subr.mxu0 0.0
  %531 = vmatpush1.msra.mxu0 0.0
  %532 = vmatprep.subr.mxu0 0.0
  %533 = vmatpush1.msra.mxu0 0.0
  %534 = vmatprep.subr.mxu0 0.0
  %535 = vmatpush1.msra.mxu0 0.0
  %536 = vmatprep.subr.mxu0 0.0
  %537 = vmatpush1.msra.mxu0 0.0
  %538 = vmatprep.subr.mxu0 0.0
  %539 = vmatpush1.msra.mxu0 0.0
  %540 = vmatprep.subr.mxu0 0.0
  %541 = vmatpush1.msra.mxu0 0.0
  %542 = vmatprep.subr.mxu0 0.0
  %543 = vmatpush1.msra.mxu0 0.0
  %544 = vmatprep.subr.mxu0 0.0
  %545 = vmatpush1.msra.mxu0 0.0
  %546 = vmatprep.subr.mxu0 0.0
  %547 = vmatpush1.msra.mxu0 0.0
  %548 = vmatprep.subr.mxu0 0.0
  %549 = vmatpush1.msra.mxu0 0.0
  %550 = vmatprep.subr.mxu0 0.0
  %551 = vmatpush1.msra.mxu0 0.0
  %552 = vmatprep.subr.mxu0 0.0
  %553 = vmatpush1.msra.mxu0 0.0
  %554 = vmatprep.subr.mxu0 0.0
  %555 = vmatpush1.msra.mxu0 %v522
  %556 = vmatprep.subr.mxu0 0.0
  %557 = vmatpush2.msra.mxu0 0.0
  %558 = vmatprep.subr.mxu0 0.0
  %559 = vmatpush2.msra.mxu0 0.0
  %560 = vmatprep.subr.mxu0 0.0
  %561 = vmatpush2.msra.mxu0 0.0
  %562 = vmatprep.subr.mxu0 0.0
  %563 = vmatpush2.msra.mxu0 0.0
  %564 = vmatprep.subr.mxu0 0.0
  %565 = vmatpush2.msra.mxu0 0.0
  %566 = vmatprep.subr.mxu0 0.0
  %567 = vmatpush2.msra.mxu0 0.0
  %568 = vmatprep.subr.mxu0 0.0
  %569 = vmatpush2.msra.mxu0 0.0
  %570 = vmatprep.subr.mxu0 0.0
  %571 = vmatpush2.msra.mxu0 0.0
  %572 = vmatprep.subr.mxu0 0.0
  %573 = vmatpush2.msra.mxu0 0.0
  %574 = vmatprep.subr.mxu0 0.0
  %575 = vmatpush2.msra.mxu0 0.0
  %576 = vmatprep.subr.mxu0 0.0
  %577 = vmatpush2.msra.mxu0 0.0
  %578 = vmatprep.subr.mxu0 0.0
  %579 = vmatpush2.msra.mxu0 0.0
  %580 = vmatprep.subr.mxu0 0.0
  %581 = vmatpush2.msra.mxu0 0.0
  %582 = vmatprep.subr.mxu0 0.0
  %583 = vmatpush2.msra.mxu0 0.0
  %584 = vmatprep.subr.mxu0 0.0
  %585 = vmatpush2.msra.mxu0 0.0
  %586 = vmatprep.subr.mxu0 0.0
  %587 = vmatpush2.msra.mxu0 0.0
  %588 = vmatprep.mubr.f32.mxu0 0.0
  %589 = vmatmul.mubr.f32.gmra.mxu0 %v516
  %v590 = vpop.f32.mrf.mxu0
  %v591 = vadd.f32 0.0, %v590
  %v592 = vpop.f32.mrf.mxu0
  %593 = vmatprep.mubr.f32.mxu0 0.0
  %594 = vmatmul.mubr.f32.gmra.mxu0 %v519
  %v595 = vpop.f32.mrf.mxu0
  %v596 = vadd.f32 0.0, %v595
  %v597 = vpop.f32.mrf.mxu0
  %598 = vdwg.mxu0
  %v599 = vadd.f32 %v513, %v591
  %v600 = vadd.f32 %v514, %v596
  %vm601 = vcmask 261120
  %602 = vst.msk [vmem:[%s4] sm:$0xff] %vm601, %v599
  %603 = vst.msk [vmem:[%s4 + $0x8] sm:$0xff] %vm601, %v600
  %s604 = scalar_lea.vmem %s0, 16
  %v605 = vld [vmem:[%s604] sm:$0xff]
  %v606 = vld [vmem:[%s604 + $0x8] sm:$0xff]
  %s607 = scalar_lea.vmem %s1, 16
  %v608 = vld [vmem:[%s607] sm:$0xff]
  %v609 = vld [vmem:[%s607 + $0x8] sm:$0xff]
  %610 = vmatprep.subr.mxu0 0.0
  %611 = vmatpush1.msra.mxu0 0.0
  %612 = vmatprep.subr.mxu0 0.0
  %613 = vmatpush1.msra.mxu0 0.0
  %614 = vmatprep.subr.mxu0 0.0
  %615 = vmatpush1.msra.mxu0 0.0
  %616 = vmatprep.subr.mxu0 0.0
  %617 = vmatpush1.msra.mxu0 0.0
  %618 = vmatprep.subr.mxu0 0.0
  %619 = vmatpush1.msra.mxu0 0.0
  %620 = vmatprep.subr.mxu0 0.0
  %621 = vmatpush1.msra.mxu0 0.0
  %622 = vmatprep.subr.mxu0 0.0
  %623 = vmatpush1.msra.mxu0 0.0
  %624 = vmatprep.subr.mxu0 0.0
  %625 = vmatpush1.msra.mxu0 0.0
  %626 = vmatprep.subr.mxu0 0.0
  %627 = vmatpush1.msra.mxu0 0.0
  %628 = vmatprep.subr.mxu0 0.0
  %629 = vmatpush1.msra.mxu0 0.0
  %630 = vmatprep.subr.mxu0 0.0
  %631 = vmatpush1.msra.mxu0 0.0
  %632 = vmatprep.subr.mxu0 0.0
  %633 = vmatpush1.msra.mxu0 0.0
  %634 = vmatprep.subr.mxu0 0.0
  %635 = vmatpush1.msra.mxu0 0.0
  %636 = vmatprep.subr.mxu0 0.0
  %637 = vmatpush1.msra.mxu0 0.0
  %638 = vmatprep.subr.mxu0 0.0
  %639 = vmatpush1.msra.mxu0 %v606
  %640 = vmatprep.subr.mxu0 0.0
  %641 = vmatpush1.msra.mxu0 %v605
  %642 = vmatprep.subr.mxu0 0.0
  %643 = vmatpush2.msra.mxu0 0.0
  %644 = vmatprep.subr.mxu0 0.0
  %645 = vmatpush2.msra.mxu0 0.0
  %646 = vmatprep.subr.mxu0 0.0
  %647 = vmatpush2.msra.mxu0 0.0
  %648 = vmatprep.subr.mxu0 0.0
  %649 = vmatpush2.msra.mxu0 0.0
  %650 = vmatprep.subr.mxu0 0.0
  %651 = vmatpush2.msra.mxu0 0.0
  %652 = vmatprep.subr.mxu0 0.0
  %653 = vmatpush2.msra.mxu0 0.0
  %654 = vmatprep.subr.mxu0 0.0
  %655 = vmatpush2.msra.mxu0 0.0
  %656 = vmatprep.subr.mxu0 0.0
  %657 = vmatpush2.msra.mxu0 0.0
  %658 = vmatprep.subr.mxu0 0.0
  %659 = vmatpush2.msra.mxu0 0.0
  %660 = vmatprep.subr.mxu0 0.0
  %661 = vmatpush2.msra.mxu0 0.0
  %662 = vmatprep.subr.mxu0 0.0
  %663 = vmatpush2.msra.mxu0 0.0
  %664 = vmatprep.subr.mxu0 0.0
  %665 = vmatpush2.msra.mxu0 0.0
  %666 = vmatprep.subr.mxu0 0.0
  %667 = vmatpush2.msra.mxu0 0.0
  %668 = vmatprep.subr.mxu0 0.0
  %669 = vmatpush2.msra.mxu0 0.0
  %670 = vmatprep.subr.mxu0 0.0
  %671 = vmatpush2.msra.mxu0 0.0
  %672 = vmatprep.subr.mxu0 0.0
  %673 = vmatpush2.msra.mxu0 0.0
  %674 = vmatprep.mubr.f32.mxu0 0.0
  %675 = vmatmul.mubr.f32.gmra.mxu0 %v98
  %v676 = vpop.f32.mrf.mxu0
  %v677 = vadd.f32 0.0, %v676
  %v678 = vpop.f32.mrf.mxu0
  %679 = vmatprep.mubr.f32.mxu0 0.0
  %680 = vmatmul.mubr.f32.gmra.mxu0 %v101
  %v681 = vpop.f32.mrf.mxu0
  %v682 = vadd.f32 0.0, %v681
  %v683 = vpop.f32.mrf.mxu0
  %684 = vdwg.mxu0
  %v686 = vsel %vm178, %v605, 0
  %v689 = vsel %vm178, %v606, 0
  %691 = vmatprep.subr.mxu0 0.0
  %692 = vmatpush1.msra.mxu0 0.0
  %693 = vmatprep.subr.mxu0 0.0
  %694 = vmatpush1.msra.mxu0 0.0
  %695 = vmatprep.subr.mxu0 0.0
  %696 = vmatpush1.msra.mxu0 0.0
  %697 = vmatprep.subr.mxu0 0.0
  %698 = vmatpush1.msra.mxu0 0.0
  %699 = vmatprep.subr.mxu0 0.0
  %700 = vmatpush1.msra.mxu0 0.0
  %701 = vmatprep.subr.mxu0 0.0
  %702 = vmatpush1.msra.mxu0 0.0
  %703 = vmatprep.subr.mxu0 0.0
  %704 = vmatpush1.msra.mxu0 0.0
  %705 = vmatprep.subr.mxu0 0.0
  %706 = vmatpush1.msra.mxu0 0.0
  %707 = vmatprep.subr.mxu0 0.0
  %708 = vmatpush1.msra.mxu0 0.0
  %709 = vmatprep.subr.mxu0 0.0
  %710 = vmatpush1.msra.mxu0 0.0
  %711 = vmatprep.subr.mxu0 0.0
  %712 = vmatpush1.msra.mxu0 0.0
  %713 = vmatprep.subr.mxu0 0.0
  %714 = vmatpush1.msra.mxu0 0.0
  %715 = vmatprep.subr.mxu0 0.0
  %716 = vmatpush1.msra.mxu0 0.0
  %717 = vmatprep.subr.mxu0 0.0
  %718 = vmatpush1.msra.mxu0 0.0
  %719 = vmatprep.subr.mxu0 0.0
  %720 = vmatpush1.msra.mxu0 0.0
  %721 = vmatprep.subr.mxu0 0.0
  %722 = vmatpush1.msra.mxu0 %v187
  %723 = vmatprep.subr.mxu0 0.0
  %724 = vmatpush2.msra.mxu0 0.0
  %725 = vmatprep.subr.mxu0 0.0
  %726 = vmatpush2.msra.mxu0 0.0
  %727 = vmatprep.subr.mxu0 0.0
  %728 = vmatpush2.msra.mxu0 0.0
  %729 = vmatprep.subr.mxu0 0.0
  %730 = vmatpush2.msra.mxu0 0.0
  %731 = vmatprep.subr.mxu0 0.0
  %732 = vmatpush2.msra.mxu0 0.0
  %733 = vmatprep.subr.mxu0 0.0
  %734 = vmatpush2.msra.mxu0 0.0
  %735 = vmatprep.subr.mxu0 0.0
  %736 = vmatpush2.msra.mxu0 0.0
  %737 = vmatprep.subr.mxu0 0.0
  %738 = vmatpush2.msra.mxu0 0.0
  %739 = vmatprep.subr.mxu0 0.0
  %740 = vmatpush2.msra.mxu0 0.0
  %741 = vmatprep.subr.mxu0 0.0
  %742 = vmatpush2.msra.mxu0 0.0
  %743 = vmatprep.subr.mxu0 0.0
  %744 = vmatpush2.msra.mxu0 0.0
  %745 = vmatprep.subr.mxu0 0.0
  %746 = vmatpush2.msra.mxu0 0.0
  %747 = vmatprep.subr.mxu0 0.0
  %748 = vmatpush2.msra.mxu0 0.0
  %749 = vmatprep.subr.mxu0 0.0
  %750 = vmatpush2.msra.mxu0 0.0
  %751 = vmatprep.subr.mxu0 0.0
  %752 = vmatpush2.msra.mxu0 0.0
  %753 = vmatprep.subr.mxu0 0.0
  %754 = vmatpush2.msra.mxu0 0.0
  %755 = vmatprep.mubr.f32.mxu0 0.0
  %756 = vmatmul.mubr.f32.gmra.mxu0 %v686
  %v757 = vpop.f32.mrf.mxu0
  %v758 = vadd.f32 0.0, %v757
  %v759 = vpop.f32.mrf.mxu0
  %760 = vmatprep.mubr.f32.mxu0 0.0
  %761 = vmatmul.mubr.f32.gmra.mxu0 %v689
  %v762 = vpop.f32.mrf.mxu0
  %v763 = vadd.f32 0.0, %v762
  %v764 = vpop.f32.mrf.mxu0
  %765 = vdwg.mxu0
  %v767 = vsel %vm178, %v677, 0
  %v770 = vsel %vm178, %v682, 0
  %772 = vmatprep.subr.mxu0 0.0
  %773 = vmatpush1.msra.mxu0 0.0
  %774 = vmatprep.subr.mxu0 0.0
  %775 = vmatpush1.msra.mxu0 0.0
  %776 = vmatprep.subr.mxu0 0.0
  %777 = vmatpush1.msra.mxu0 0.0
  %778 = vmatprep.subr.mxu0 0.0
  %779 = vmatpush1.msra.mxu0 0.0
  %780 = vmatprep.subr.mxu0 0.0
  %781 = vmatpush1.msra.mxu0 0.0
  %782 = vmatprep.subr.mxu0 0.0
  %783 = vmatpush1.msra.mxu0 0.0
  %784 = vmatprep.subr.mxu0 0.0
  %785 = vmatpush1.msra.mxu0 0.0
  %786 = vmatprep.subr.mxu0 0.0
  %787 = vmatpush1.msra.mxu0 0.0
  %788 = vmatprep.subr.mxu0 0.0
  %789 = vmatpush1.msra.mxu0 0.0
  %790 = vmatprep.subr.mxu0 0.0
  %791 = vmatpush1.msra.mxu0 0.0
  %792 = vmatprep.subr.mxu0 0.0
  %793 = vmatpush1.msra.mxu0 0.0
  %794 = vmatprep.subr.mxu0 0.0
  %795 = vmatpush1.msra.mxu0 0.0
  %796 = vmatprep.subr.mxu0 0.0
  %797 = vmatpush1.msra.mxu0 0.0
  %798 = vmatprep.subr.mxu0 0.0
  %799 = vmatpush1.msra.mxu0 0.0
  %800 = vmatprep.subr.mxu0 0.0
  %801 = vmatpush1.msra.mxu0 0.0
  %802 = vmatprep.subr.mxu0 0.0
  %803 = vmatpush1.msra.mxu0 %v271
  %804 = vmatprep.subr.mxu0 0.0
  %805 = vmatpush2.msra.mxu0 0.0
  %806 = vmatprep.subr.mxu0 0.0
  %807 = vmatpush2.msra.mxu0 0.0
  %808 = vmatprep.subr.mxu0 0.0
  %809 = vmatpush2.msra.mxu0 0.0
  %810 = vmatprep.subr.mxu0 0.0
  %811 = vmatpush2.msra.mxu0 0.0
  %812 = vmatprep.subr.mxu0 0.0
  %813 = vmatpush2.msra.mxu0 0.0
  %814 = vmatprep.subr.mxu0 0.0
  %815 = vmatpush2.msra.mxu0 0.0
  %816 = vmatprep.subr.mxu0 0.0
  %817 = vmatpush2.msra.mxu0 0.0
  %818 = vmatprep.subr.mxu0 0.0
  %819 = vmatpush2.msra.mxu0 0.0
  %820 = vmatprep.subr.mxu0 0.0
  %821 = vmatpush2.msra.mxu0 0.0
  %822 = vmatprep.subr.mxu0 0.0
  %823 = vmatpush2.msra.mxu0 0.0
  %824 = vmatprep.subr.mxu0 0.0
  %825 = vmatpush2.msra.mxu0 0.0
  %826 = vmatprep.subr.mxu0 0.0
  %827 = vmatpush2.msra.mxu0 0.0
  %828 = vmatprep.subr.mxu0 0.0
  %829 = vmatpush2.msra.mxu0 0.0
  %830 = vmatprep.subr.mxu0 0.0
  %831 = vmatpush2.msra.mxu0 0.0
  %832 = vmatprep.subr.mxu0 0.0
  %833 = vmatpush2.msra.mxu0 0.0
  %834 = vmatprep.subr.mxu0 0.0
  %835 = vmatpush2.msra.mxu0 0.0
  %836 = vmatprep.mubr.f32.mxu0 0.0
  %837 = vmatmul.mubr.f32.gmra.mxu0 %v767
  %v838 = vpop.f32.mrf.mxu0
  %v839 = vadd.f32 %v758, %v838
  %v840 = vpop.f32.mrf.mxu0
  %841 = vmatprep.mubr.f32.mxu0 0.0
  %842 = vmatmul.mubr.f32.gmra.mxu0 %v770
  %v843 = vpop.f32.mrf.mxu0
  %v844 = vadd.f32 %v763, %v843
  %v845 = vpop.f32.mrf.mxu0
  %846 = vdwg.mxu0
  %847 = vmatprep.subr.mxu0 0.0
  %848 = vmatpush1.msra.mxu0 0.0
  %849 = vmatprep.subr.mxu0 0.0
  %850 = vmatpush1.msra.mxu0 0.0
  %851 = vmatprep.subr.mxu0 0.0
  %852 = vmatpush1.msra.mxu0 0.0
  %853 = vmatprep.subr.mxu0 0.0
  %854 = vmatpush1.msra.mxu0 0.0
  %855 = vmatprep.subr.mxu0 0.0
  %856 = vmatpush1.msra.mxu0 0.0
  %857 = vmatprep.subr.mxu0 0.0
  %858 = vmatpush1.msra.mxu0 0.0
  %859 = vmatprep.subr.mxu0 0.0
  %860 = vmatpush1.msra.mxu0 0.0
  %861 = vmatprep.subr.mxu0 0.0
  %862 = vmatpush1.msra.mxu0 0.0
  %863 = vmatprep.subr.mxu0 0.0
  %864 = vmatpush1.msra.mxu0 0.0
  %865 = vmatprep.subr.mxu0 0.0
  %866 = vmatpush1.msra.mxu0 0.0
  %867 = vmatprep.subr.mxu0 0.0
  %868 = vmatpush1.msra.mxu0 0.0
  %869 = vmatprep.subr.mxu0 0.0
  %870 = vmatpush1.msra.mxu0 0.0
  %871 = vmatprep.subr.mxu0 0.0
  %872 = vmatpush1.msra.mxu0 0.0
  %873 = vmatprep.subr.mxu0 0.0
  %874 = vmatpush1.msra.mxu0 0.0
  %875 = vmatprep.subr.mxu0 0.0
  %876 = vmatpush1.msra.mxu0 %v606
  %877 = vmatprep.subr.mxu0 0.0
  %878 = vmatpush1.msra.mxu0 %v605
  %879 = vmatprep.subr.mxu0 0.0
  %880 = vmatpush2.msra.mxu0 0.0
  %881 = vmatprep.subr.mxu0 0.0
  %882 = vmatpush2.msra.mxu0 0.0
  %883 = vmatprep.subr.mxu0 0.0
  %884 = vmatpush2.msra.mxu0 0.0
  %885 = vmatprep.subr.mxu0 0.0
  %886 = vmatpush2.msra.mxu0 0.0
  %887 = vmatprep.subr.mxu0 0.0
  %888 = vmatpush2.msra.mxu0 0.0
  %889 = vmatprep.subr.mxu0 0.0
  %890 = vmatpush2.msra.mxu0 0.0
  %891 = vmatprep.subr.mxu0 0.0
  %892 = vmatpush2.msra.mxu0 0.0
  %893 = vmatprep.subr.mxu0 0.0
  %894 = vmatpush2.msra.mxu0 0.0
  %895 = vmatprep.subr.mxu0 0.0
  %896 = vmatpush2.msra.mxu0 0.0
  %897 = vmatprep.subr.mxu0 0.0
  %898 = vmatpush2.msra.mxu0 0.0
  %899 = vmatprep.subr.mxu0 0.0
  %900 = vmatpush2.msra.mxu0 0.0
  %901 = vmatprep.subr.mxu0 0.0
  %902 = vmatpush2.msra.mxu0 0.0
  %903 = vmatprep.subr.mxu0 0.0
  %904 = vmatpush2.msra.mxu0 0.0
  %905 = vmatprep.subr.mxu0 0.0
  %906 = vmatpush2.msra.mxu0 0.0
  %907 = vmatprep.subr.mxu0 0.0
  %908 = vmatpush2.msra.mxu0 0.0
  %909 = vmatprep.subr.mxu0 0.0
  %910 = vmatpush2.msra.mxu0 0.0
  %911 = vmatprep.mubr.f32.mxu0 0.0
  %912 = vmatmul.mubr.f32.gmra.mxu0 %v349
  %v913 = vpop.f32.mrf.mxu0
  %v914 = vadd.f32 0.0, %v913
  %v915 = vpop.f32.mrf.mxu0
  %916 = vmatprep.mubr.f32.mxu0 0.0
  %917 = vmatmul.mubr.f32.gmra.mxu0 %v352
  %v918 = vpop.f32.mrf.mxu0
  %v919 = vadd.f32 0.0, %v918
  %v920 = vpop.f32.mrf.mxu0
  %921 = vdwg.mxu0
  %v923 = vsel %vm178, %v914, 0
  %v926 = vsel %vm178, %v919, 0
  %928 = vmatprep.subr.mxu0 0.0
  %929 = vmatpush1.msra.mxu0 0.0
  %930 = vmatprep.subr.mxu0 0.0
  %931 = vmatpush1.msra.mxu0 0.0
  %932 = vmatprep.subr.mxu0 0.0
  %933 = vmatpush1.msra.mxu0 0.0
  %934 = vmatprep.subr.mxu0 0.0
  %935 = vmatpush1.msra.mxu0 0.0
  %936 = vmatprep.subr.mxu0 0.0
  %937 = vmatpush1.msra.mxu0 0.0
  %938 = vmatprep.subr.mxu0 0.0
  %939 = vmatpush1.msra.mxu0 0.0
  %940 = vmatprep.subr.mxu0 0.0
  %941 = vmatpush1.msra.mxu0 0.0
  %942 = vmatprep.subr.mxu0 0.0
  %943 = vmatpush1.msra.mxu0 0.0
  %944 = vmatprep.subr.mxu0 0.0
  %945 = vmatpush1.msra.mxu0 0.0
  %946 = vmatprep.subr.mxu0 0.0
  %947 = vmatpush1.msra.mxu0 0.0
  %948 = vmatprep.subr.mxu0 0.0
  %949 = vmatpush1.msra.mxu0 0.0
  %950 = vmatprep.subr.mxu0 0.0
  %951 = vmatpush1.msra.mxu0 0.0
  %952 = vmatprep.subr.mxu0 0.0
  %953 = vmatpush1.msra.mxu0 0.0
  %954 = vmatprep.subr.mxu0 0.0
  %955 = vmatpush1.msra.mxu0 0.0
  %956 = vmatprep.subr.mxu0 0.0
  %957 = vmatpush1.msra.mxu0 0.0
  %958 = vmatprep.subr.mxu0 0.0
  %959 = vmatpush1.msra.mxu0 %v436
  %960 = vmatprep.subr.mxu0 0.0
  %961 = vmatpush2.msra.mxu0 0.0
  %962 = vmatprep.subr.mxu0 0.0
  %963 = vmatpush2.msra.mxu0 0.0
  %964 = vmatprep.subr.mxu0 0.0
  %965 = vmatpush2.msra.mxu0 0.0
  %966 = vmatprep.subr.mxu0 0.0
  %967 = vmatpush2.msra.mxu0 0.0
  %968 = vmatprep.subr.mxu0 0.0
  %969 = vmatpush2.msra.mxu0 0.0
  %970 = vmatprep.subr.mxu0 0.0
  %971 = vmatpush2.msra.mxu0 0.0
  %972 = vmatprep.subr.mxu0 0.0
  %973 = vmatpush2.msra.mxu0 0.0
  %974 = vmatprep.subr.mxu0 0.0
  %975 = vmatpush2.msra.mxu0 0.0
  %976 = vmatprep.subr.mxu0 0.0
  %977 = vmatpush2.msra.mxu0 0.0
  %978 = vmatprep.subr.mxu0 0.0
  %979 = vmatpush2.msra.mxu0 0.0
  %980 = vmatprep.subr.mxu0 0.0
  %981 = vmatpush2.msra.mxu0 0.0
  %982 = vmatprep.subr.mxu0 0.0
  %983 = vmatpush2.msra.mxu0 0.0
  %984 = vmatprep.subr.mxu0 0.0
  %985 = vmatpush2.msra.mxu0 0.0
  %986 = vmatprep.subr.mxu0 0.0
  %987 = vmatpush2.msra.mxu0 0.0
  %988 = vmatprep.subr.mxu0 0.0
  %989 = vmatpush2.msra.mxu0 0.0
  %990 = vmatprep.subr.mxu0 0.0
  %991 = vmatpush2.msra.mxu0 0.0
  %992 = vmatprep.mubr.f32.mxu0 0.0
  %993 = vmatmul.mubr.f32.gmra.mxu0 %v923
  %v994 = vpop.f32.mrf.mxu0
  %v995 = vadd.f32 0.0, %v994
  %v996 = vpop.f32.mrf.mxu0
  %997 = vmatprep.mubr.f32.mxu0 0.0
  %998 = vmatmul.mubr.f32.gmra.mxu0 %v926
  %v999 = vpop.f32.mrf.mxu0
  %v1000 = vadd.f32 0.0, %v999
  %v1001 = vpop.f32.mrf.mxu0
  %1002 = vdwg.mxu0
  %v1003 = vadd.f32 %v839, %v995
  %v1004 = vadd.f32 %v844, %v1000
  %v1006 = vsel %vm178, %v608, 0
  %v1009 = vsel %vm178, %v609, 0
  %1011 = vmatprep.subr.mxu0 0.0
  %1012 = vmatpush1.msra.mxu0 0.0
  %1013 = vmatprep.subr.mxu0 0.0
  %1014 = vmatpush1.msra.mxu0 0.0
  %1015 = vmatprep.subr.mxu0 0.0
  %1016 = vmatpush1.msra.mxu0 0.0
  %1017 = vmatprep.subr.mxu0 0.0
  %1018 = vmatpush1.msra.mxu0 0.0
  %1019 = vmatprep.subr.mxu0 0.0
  %1020 = vmatpush1.msra.mxu0 0.0
  %1021 = vmatprep.subr.mxu0 0.0
  %1022 = vmatpush1.msra.mxu0 0.0
  %1023 = vmatprep.subr.mxu0 0.0
  %1024 = vmatpush1.msra.mxu0 0.0
  %1025 = vmatprep.subr.mxu0 0.0
  %1026 = vmatpush1.msra.mxu0 0.0
  %1027 = vmatprep.subr.mxu0 0.0
  %1028 = vmatpush1.msra.mxu0 0.0
  %1029 = vmatprep.subr.mxu0 0.0
  %1030 = vmatpush1.msra.mxu0 0.0
  %1031 = vmatprep.subr.mxu0 0.0
  %1032 = vmatpush1.msra.mxu0 0.0
  %1033 = vmatprep.subr.mxu0 0.0
  %1034 = vmatpush1.msra.mxu0 0.0
  %1035 = vmatprep.subr.mxu0 0.0
  %1036 = vmatpush1.msra.mxu0 0.0
  %1037 = vmatprep.subr.mxu0 0.0
  %1038 = vmatpush1.msra.mxu0 0.0
  %1039 = vmatprep.subr.mxu0 0.0
  %1040 = vmatpush1.msra.mxu0 0.0
  %1041 = vmatprep.subr.mxu0 0.0
  %1042 = vmatpush1.msra.mxu0 %v522
  %1043 = vmatprep.subr.mxu0 0.0
  %1044 = vmatpush2.msra.mxu0 0.0
  %1045 = vmatprep.subr.mxu0 0.0
  %1046 = vmatpush2.msra.mxu0 0.0
  %1047 = vmatprep.subr.mxu0 0.0
  %1048 = vmatpush2.msra.mxu0 0.0
  %1049 = vmatprep.subr.mxu0 0.0
  %1050 = vmatpush2.msra.mxu0 0.0
  %1051 = vmatprep.subr.mxu0 0.0
  %1052 = vmatpush2.msra.mxu0 0.0
  %1053 = vmatprep.subr.mxu0 0.0
  %1054 = vmatpush2.msra.mxu0 0.0
  %1055 = vmatprep.subr.mxu0 0.0
  %1056 = vmatpush2.msra.mxu0 0.0
  %1057 = vmatprep.subr.mxu0 0.0
  %1058 = vmatpush2.msra.mxu0 0.0
  %1059 = vmatprep.subr.mxu0 0.0
  %1060 = vmatpush2.msra.mxu0 0.0
  %1061 = vmatprep.subr.mxu0 0.0
  %1062 = vmatpush2.msra.mxu0 0.0
  %1063 = vmatprep.subr.mxu0 0.0
  %1064 = vmatpush2.msra.mxu0 0.0
  %1065 = vmatprep.subr.mxu0 0.0
  %1066 = vmatpush2.msra.mxu0 0.0
  %1067 = vmatprep.subr.mxu0 0.0
  %1068 = vmatpush2.msra.mxu0 0.0
  %1069 = vmatprep.subr.mxu0 0.0
  %1070 = vmatpush2.msra.mxu0 0.0
  %1071 = vmatprep.subr.mxu0 0.0
  %1072 = vmatpush2.msra.mxu0 0.0
  %1073 = vmatprep.subr.mxu0 0.0
  %1074 = vmatpush2.msra.mxu0 0.0
  %1075 = vmatprep.mubr.f32.mxu0 0.0
  %1076 = vmatmul.mubr.f32.gmra.mxu0 %v1006
  %v1077 = vpop.f32.mrf.mxu0
  %v1078 = vadd.f32 0.0, %v1077
  %v1079 = vpop.f32.mrf.mxu0
  %1080 = vmatprep.mubr.f32.mxu0 0.0
  %1081 = vmatmul.mubr.f32.gmra.mxu0 %v1009
  %v1082 = vpop.f32.mrf.mxu0
  %v1083 = vadd.f32 0.0, %v1082
  %v1084 = vpop.f32.mrf.mxu0
  %1085 = vdwg.mxu0
  %v1086 = vadd.f32 %v1003, %v1078
  %v1087 = vadd.f32 %v1004, %v1083
  %s1088 = scalar_lea.vmem %s4, 16
  %1089 = vst.msk [vmem:[%s1088] sm:$0xff] %vm601, %v1086
  %1090 = vst.msk [vmem:[%s1088 + $0x8] sm:$0xff] %vm601, %v1087
  // Predicated region
  $region18: #{_lambda_.20} parent=0 // pred_check
    _
  $region19: #{_lambda_.20} parent=0 // pred_check_branch
    %1092 = sbr.rel (0) target = $region21
  $region20: #{_lambda_.20} parent=0 // pred_region
    _
  $region21: #{_lambda_.20} parent=0 // pred_fallthru
    _
  // Predicated region
  $region22: #{_lambda_.20} parent=0 // pred_check
    _
  $region23: #{_lambda_.20} parent=0 // pred_check_branch
    %1094 = sbr.rel (0) target = $region25
  $region24: #{_lambda_.20} parent=0 // pred_region
    _
  $region25: #{_lambda_.20} parent=0 // pred_fallthru
    _

// kernel: reverse.8
$region0: #{reverse.8}
  #allocation0 [shape = 's32[1]{0}', space=sflag, size = 0x4, scoped, tag = 'scoped memory for reverse.8']
  %s0 = inlined_call_operand.vmem [shape: f32[2,8,4,7], index: 0, kind: input, shape index: {}]
  %s1 = inlined_call_operand.vmem [shape: f32[2,8,4,7], index: 1, kind: output, shape index: {}]
  %s2 = scalar_lea.vmem %s0, 24
  %v3 = vld [vmem:[%s2] sm:$0xf]
  %4 = vst [vmem:[%s1] sm:$0xf] %v3
  %s5 = scalar_lea.vmem %s0, 52
  %v6 = vld [vmem:[%s5] sm:$0xf]
  %s7 = scalar_lea.vmem %s1, 28
  %8 = vst [vmem:[%s7] sm:$0xf] %v6
  %s9 = scalar_lea.vmem %s0, 20
  %v10 = vld [vmem:[%s9] sm:$0xf]
  %s11 = scalar_lea.vmem %s1, 4
  %12 = vst [vmem:[%s11] sm:$0xf] %v10
  %s13 = scalar_lea.vmem %s0, 48
  %v14 = vld [vmem:[%s13] sm:$0xf]
  %s15 = scalar_lea.vmem %s1, 32
  %16 = vst [vmem:[%s15] sm:$0xf] %v14
  %s17 = scalar_lea.vmem %s0, 16
  %v18 = vld [vmem:[%s17] sm:$0xf]
  %s19 = scalar_lea.vmem %s1, 8
  %20 = vst [vmem:[%s19] sm:$0xf] %v18
  %s21 = scalar_lea.vmem %s0, 44
  %v22 = vld [vmem:[%s21] sm:$0xf]
  %s23 = scalar_lea.vmem %s1, 36
  %24 = vst [vmem:[%s23] sm:$0xf] %v22
  %s25 = scalar_lea.vmem %s0, 12
  %v26 = vld [vmem:[%s25] sm:$0xf]
  %s27 = scalar_lea.vmem %s1, 12
  %28 = vst [vmem:[%s27] sm:$0xf] %v26
  %s29 = scalar_lea.vmem %s0, 40
  %v30 = vld [vmem:[%s29] sm:$0xf]
  %s31 = scalar_lea.vmem %s1, 40
  %32 = vst [vmem:[%s31] sm:$0xf] %v30
  %s33 = scalar_lea.vmem %s0, 8
  %v34 = vld [vmem:[%s33] sm:$0xf]
  %s35 = scalar_lea.vmem %s1, 16
  %36 = vst [vmem:[%s35] sm:$0xf] %v34
  %s37 = scalar_lea.vmem %s0, 36
  %v38 = vld [vmem:[%s37] sm:$0xf]
  %s39 = scalar_lea.vmem %s1, 44
  %40 = vst [vmem:[%s39] sm:$0xf] %v38
  %s41 = scalar_lea.vmem %s0, 4
  %v42 = vld [vmem:[%s41] sm:$0xf]
  %s43 = scalar_lea.vmem %s1, 20
  %44 = vst [vmem:[%s43] sm:$0xf] %v42
  %s45 = scalar_lea.vmem %s0, 32
  %v46 = vld [vmem:[%s45] sm:$0xf]
  %s47 = scalar_lea.vmem %s1, 48
  %48 = vst [vmem:[%s47] sm:$0xf] %v46
  %v49 = vld [vmem:[%s0] sm:$0xf]
  %s50 = scalar_lea.vmem %s1, 24
  %51 = vst [vmem:[%s50] sm:$0xf] %v49
  %s52 = scalar_lea.vmem %s0, 28
  %v53 = vld [vmem:[%s52] sm:$0xf]
  %s54 = scalar_lea.vmem %s1, 52
  %55 = vst [vmem:[%s54] sm:$0xf] %v53

// kernel: _lambda_.27
$region0: #{_lambda_.27}
  #allocation0 [shape = 'u32[]', space=smem, size = 0x4, offset = 0x4, fixed_abs, tag = 'smem constant byte address 0x4 - core index']
  #allocation1 [shape = 'u32[144,128]{1,0:T(1,128)}', space=vmem, size = 0x12000, scoped, tag = 'internal scratch']
  %s0 = inlined_call_operand.vmem [shape: f32[2,16,32], index: 0, kind: input, shape index: {}]
  %s1 = inlined_call_operand.vmem [shape: f32[2,16,32], index: 1, kind: input, shape index: {}]
  %s2 = inlined_call_operand.vmem [shape: f32[2,16,32], index: 2, kind: output, shape index: {0}]
  %s3 = inlined_call_operand.hbm [shape: f32[2,16,32], index: 3, kind: output, shape index: {1}]
  %4 = xla_tuple %s2, %s3
  %s5 = sld [smem:[#allocation0]]
  $region26: #{_lambda_.27} parent=0
    _
  %s7 = ssub.s32 1, %s5
  %s8 = scalar_select 0, %s7, %s5
  $region1: #{_lambda_.27} parent=0
    #allocation2 [shape = 'u8[16384]{0}', space=vmem, size = 0x4000, scoped, tag = 'output window, operand 1, single buffered']
    #allocation3 [shape = 's32[1]{0}', space=sflag, size = 0x4, scoped, tag = 'scoped memory for _lambda_.27']
    %9 = vsyncpa [#allocation3], 0
    // Predicated region
    $region2: #{_lambda_.27} parent=1 // pred_check
      _
    $region3: #{_lambda_.27} parent=1 // pred_check_branch
      %11 = sbr.rel (0) target = $region5
    $region4: #{_lambda_.27} parent=1 // pred_region
      _
    $region5: #{_lambda_.27} parent=1 // pred_fallthru
      _
    // Predicated region
    $region6: #{_lambda_.27} parent=1 // pred_check
      _
    $region7: #{_lambda_.27} parent=1 // pred_check_branch
      %13 = sbr.rel (0) target = $region9
    $region8: #{_lambda_.27} parent=1 // pred_region
      _
    $region9: #{_lambda_.27} parent=1 // pred_fallthru
      _
    %v14 = vlaneseq
    %v15 = vshrl.u32 %v14, 7
    %v16 = vadd.s32 %v15, 8
    %v17 = vlaneseq
    %v18 = vand.u32 %v17, 127
    %v19 = vadd.s32 %v15, 4294967294
    %v20 = vadd.s32 %v16, 4294967294
    %vm21 = vcmp.gt.s32.totalorder %v19, 0
    %v22 = vsel %vm21, %v19, 0
    %vm23 = vcmp.gt.s32.totalorder %v20, 0
    %v24 = vsel %vm23, %v20, 0
    %vm25 = vcmp.lt.s32.totalorder %v22, 15
    %v26 = vsel %vm25, %v22, 15
    %vm27 = vcmp.lt.s32.totalorder %v24, 15
    %v28 = vsel %vm27, %v24, 15
    %vm29 = vcmp.eq.s32.totalorder %v18, %v26
    %vm30 = vcmp.eq.s32.totalorder %v18, %v28
    %v31 = vsel %vm29, 1, 0
    %v32 = vsel %vm30, 1, 0
    %v33 = vcvt.s32.f32 %v31
    %v34 = vcvt.s32.f32 %v32
    %v35 = vadd.f32 %v33, 0.0
    %v36 = vadd.f32 %v34, 0.0
    %v37 = vadd.s32 %v15, 4294967295
    %v38 = vadd.s32 %v16, 4294967295
    %vm39 = vcmp.gt.s32.totalorder %v37, 0
    %v40 = vsel %vm39, %v37, 0
    %vm41 = vcmp.gt.s32.totalorder %v38, 0
    %v42 = vsel %vm41, %v38, 0
    %vm43 = vcmp.lt.s32.totalorder %v40, 15
    %v44 = vsel %vm43, %v40, 15
    %vm45 = vcmp.lt.s32.totalorder %v42, 15
    %v46 = vsel %vm45, %v42, 15
    %vm47 = vcmp.eq.s32.totalorder %v18, %v44
    %vm48 = vcmp.eq.s32.totalorder %v18, %v46
    %v49 = vsel %vm47, 1, 0
    %v50 = vsel %vm48, 1, 0
    %v51 = vcvt.s32.f32 %v49
    %v52 = vcvt.s32.f32 %v50
    %v53 = vadd.f32 %v35, %v51
    %v54 = vadd.f32 %v36, %v52
    %vm55 = vcmp.gt.s32.totalorder %v15, 0
    %v56 = vsel %vm55, %v15, 0
    %vm57 = vcmp.gt.s32.totalorder %v16, 0
    %v58 = vsel %vm57, %v16, 0
    %vm59 = vcmp.lt.s32.totalorder %v56, 15
    %v60 = vsel %vm59, %v56, 15
    %vm61 = vcmp.lt.s32.totalorder %v58, 15
    %v62 = vsel %vm61, %v58, 15
    %vm63 = vcmp.eq.s32.totalorder %v18, %v60
    %vm64 = vcmp.eq.s32.totalorder %v18, %v62
    %v65 = vsel %vm63, 1, 0
    %v66 = vsel %vm64, 1, 0
    %v67 = vcvt.s32.f32 %v65
    %v68 = vcvt.s32.f32 %v66
    %v69 = vadd.f32 %v53, %v67
    %v70 = vadd.f32 %v54, %v68
    %v71 = vadd.s32 %v15, 1
    %v72 = vadd.s32 %v16, 1
    %vm73 = vcmp.gt.s32.totalorder %v71, 0
    %v74 = vsel %vm73, %v71, 0
    %vm75 = vcmp.gt.s32.totalorder %v72, 0
    %v76 = vsel %vm75, %v72, 0
    %vm77 = vcmp.lt.s32.totalorder %v74, 15
    %v78 = vsel %vm77, %v74, 15
    %vm79 = vcmp.lt.s32.totalorder %v76, 15
    %v80 = vsel %vm79, %v76, 15
    %vm81 = vcmp.eq.s32.totalorder %v18, %v78
    %vm82 = vcmp.eq.s32.totalorder %v18, %v80
    %v83 = vsel %vm81, 1, 0
    %v84 = vsel %vm82, 1, 0
    %v85 = vcvt.s32.f32 %v83
    %v86 = vcvt.s32.f32 %v84
    %v87 = vadd.f32 %v69, %v85
    %v88 = vadd.f32 %v70, %v86
    %v89 = vadd.s32 %v15, 2
    %v90 = vadd.s32 %v16, 2
    %vm91 = vcmp.gt.s32.totalorder %v89, 0
    %v92 = vsel %vm91, %v89, 0
    %vm93 = vcmp.gt.s32.totalorder %v90, 0
    %v94 = vsel %vm93, %v90, 0
    %vm95 = vcmp.lt.s32.totalorder %v92, 15
    %v96 = vsel %vm95, %v92, 15
    %vm97 = vcmp.lt.s32.totalorder %v94, 15
    %v98 = vsel %vm97, %v94, 15
    %vm99 = vcmp.eq.s32.totalorder %v18, %v96
    %vm100 = vcmp.eq.s32.totalorder %v18, %v98
    %v101 = vsel %vm99, 1, 0
    %v102 = vsel %vm100, 1, 0
    %v103 = vcvt.s32.f32 %v101
    %v104 = vcvt.s32.f32 %v102
    %v105 = vadd.f32 %v87, %v103
    %v106 = vadd.f32 %v88, %v104
    %v107 = vmul.f32 %v105, 0.2
    %v108 = vmul.f32 %v106, 0.2
    %v109 = vld [vmem:[%s0] sm:$0xff]
    %v110 = vld [vmem:[%s0 + $0x8] sm:$0xff]
    %v111 = vld [vmem:[%s1] sm:$0xff]
    %v112 = vld [vmem:[%s1 + $0x8] sm:$0xff]
    %v113 = vadd.f32 %v109, %v111
    %v114 = vadd.f32 %v110, %v112
    %vm115 = vcmask 130048
    %v117 = vsel %vm115, %v107, 0
    %v120 = vsel %vm115, %v108, 0
    %122 = vmatprep.subr.mxu0 0.0
    %123 = vmatpush1.msra.mxu0 0.0
    %124 = vmatprep.subr.mxu0 0.0
    %125 = vmatpush1.msra.mxu0 0.0
    %126 = vmatprep.subr.mxu0 0.0
    %127 = vmatpush1.msra.mxu0 0.0
    %128 = vmatprep.subr.mxu0 0.0
    %129 = vmatpush1.msra.mxu0 0.0
    %130 = vmatprep.subr.mxu0 0.0
    %131 = vmatpush1.msra.mxu0 0.0
    %132 = vmatprep.subr.mxu0 0.0
    %133 = vmatpush1.msra.mxu0 0.0
    %134 = vmatprep.subr.mxu0 0.0
    %135 = vmatpush1.msra.mxu0 0.0
    %136 = vmatprep.subr.mxu0 0.0
    %137 = vmatpush1.msra.mxu0 0.0
    %138 = vmatprep.subr.mxu0 0.0
    %139 = vmatpush1.msra.mxu0 0.0
    %140 = vmatprep.subr.mxu0 0.0
    %141 = vmatpush1.msra.mxu0 0.0
    %142 = vmatprep.subr.mxu0 0.0
    %143 = vmatpush1.msra.mxu0 0.0
    %144 = vmatprep.subr.mxu0 0.0
    %145 = vmatpush1.msra.mxu0 0.0
    %146 = vmatprep.subr.mxu0 0.0
    %147 = vmatpush1.msra.mxu0 0.0
    %148 = vmatprep.subr.mxu0 0.0
    %149 = vmatpush1.msra.mxu0 0.0
    %150 = vmatprep.subr.mxu0 0.0
    %151 = vmatpush1.msra.mxu0 %v114
    %152 = vmatprep.subr.mxu0 0.0
    %153 = vmatpush1.msra.mxu0 %v113
    %154 = vmatprep.subr.mxu0 0.0
    %155 = vmatpush2.msra.mxu0 0.0
    %156 = vmatprep.subr.mxu0 0.0
    %157 = vmatpush2.msra.mxu0 0.0
    %158 = vmatprep.subr.mxu0 0.0
    %159 = vmatpush2.msra.mxu0 0.0
    %160 = vmatprep.subr.mxu0 0.0
    %161 = vmatpush2.msra.mxu0 0.0
    %162 = vmatprep.subr.mxu0 0.0
    %163 = vmatpush2.msra.mxu0 0.0
    %164 = vmatprep.subr.mxu0 0.0
    %165 = vmatpush2.msra.mxu0 0.0
    %166 = vmatprep.subr.mxu0 0.0
    %167 = vmatpush2.msra.mxu0 0.0
    %168 = vmatprep.subr.mxu0 0.0
    %169 = vmatpush2.msra.mxu0 0.0
    %170 = vmatprep.subr.mxu0 0.0
    %171 = vmatpush2.msra.mxu0 0.0
    %172 = vmatprep.subr.mxu0 0.0
    %173 = vmatpush2.msra.mxu0 0.0
    %174 = vmatprep.subr.mxu0 0.0
    %175 = vmatpush2.msra.mxu0 0.0
    %176 = vmatprep.subr.mxu0 0.0
    %177 = vmatpush2.msra.mxu0 0.0
    %178 = vmatprep.subr.mxu0 0.0
    %179 = vmatpush2.msra.mxu0 0.0
    %180 = vmatprep.subr.mxu0 0.0
    %181 = vmatpush2.msra.mxu0 0.0
    %182 = vmatprep.subr.mxu0 0.0
    %183 = vmatpush2.msra.mxu0 0.0
    %184 = vmatprep.subr.mxu0 0.0
    %185 = vmatpush2.msra.mxu0 0.0
    %186 = vmatprep.mubr.f32.mxu0 0.0
    %187 = vmatmul.mubr.f32.gmra.mxu0 %v117
    %v188 = vpop.f32.mrf.mxu0
    %v189 = vadd.f32 0.0, %v188
    %v190 = vpop.f32.mrf.mxu0
    %191 = vmatprep.mubr.f32.mxu0 0.0
    %192 = vmatmul.mubr.f32.gmra.mxu0 %v120
    %v193 = vpop.f32.mrf.mxu0
    %v194 = vadd.f32 0.0, %v193
    %v195 = vpop.f32.mrf.mxu0
    %196 = vdwg.mxu0
    %vm197 = vcmask 261120
    %198 = vst.msk [vmem:[#allocation2] sm:$0xff] %vm197, %v189
    %199 = vst.msk [vmem:[#allocation2 + $0x8] sm:$0xff] %vm197, %v194
    %v200 = vsub.f32 %v113, %v189
    %v201 = vsub.f32 %v114, %v194
    %202 = vst.msk [vmem:[%s2] sm:$0xff] %vm197, %v200
    %203 = vst.msk [vmem:[%s2 + $0x8] sm:$0xff] %vm197, %v201
    %s204 = scalar_lea.vmem %s0, 16
    %v205 = vld [vmem:[%s204] sm:$0xff]
    %v206 = vld [vmem:[%s204 + $0x8] sm:$0xff]
    %s207 = scalar_lea.vmem %s1, 16
    %v208 = vld [vmem:[%s207] sm:$0xff]
    %v209 = vld [vmem:[%s207 + $0x8] sm:$0xff]
    %v210 = vadd.f32 %v205, %v208
    %v211 = vadd.f32 %v206, %v209
    %212 = vmatprep.subr.mxu0 0.0
    %213 = vmatpush1.msra.mxu0 0.0
    %214 = vmatprep.subr.mxu0 0.0
    %215 = vmatpush1.msra.mxu0 0.0
    %216 = vmatprep.subr.mxu0 0.0
    %217 = vmatpush1.msra.mxu0 0.0
    %218 = vmatprep.subr.mxu0 0.0
    %219 = vmatpush1.msra.mxu0 0.0
    %220 = vmatprep.subr.mxu0 0.0
    %221 = vmatpush1.msra.mxu0 0.0
    %222 = vmatprep.subr.mxu0 0.0
    %223 = vmatpush1.msra.mxu0 0.0
    %224 = vmatprep.subr.mxu0 0.0
    %225 = vmatpush1.msra.mxu0 0.0
    %226 = vmatprep.subr.mxu0 0.0
    %227 = vmatpush1.msra.mxu0 0.0
    %228 = vmatprep.subr.mxu0 0.0
    %229 = vmatpush1.msra.mxu0 0.0
    %230 = vmatprep.subr.mxu0 0.0
    %231 = vmatpush1.msra.mxu0 0.0
    %232 = vmatprep.subr.mxu0 0.0
    %233 = vmatpush1.msra.mxu0 0.0
    %234 = vmatprep.subr.mxu0 0.0
    %235 = vmatpush1.msra.mxu0 0.0
    %236 = vmatprep.subr.mxu0 0.0
    %237 = vmatpush1.msra.mxu0 0.0
    %238 = vmatprep.subr.mxu0 0.0
    %239 = vmatpush1.msra.mxu0 0.0
    %240 = vmatprep.subr.mxu0 0.0
    %241 = vmatpush1.msra.mxu0 %v211
    %242 = vmatprep.subr.mxu0 0.0
    %243 = vmatpush1.msra.mxu0 %v210
    %244 = vmatprep.subr.mxu0 0.0
    %245 = vmatpush2.msra.mxu0 0.0
    %246 = vmatprep.subr.mxu0 0.0
    %247 = vmatpush2.msra.mxu0 0.0
    %248 = vmatprep.subr.mxu0 0.0
    %249 = vmatpush2.msra.mxu0 0.0
    %250 = vmatprep.subr.mxu0 0.0
    %251 = vmatpush2.msra.mxu0 0.0
    %252 = vmatprep.subr.mxu0 0.0
    %253 = vmatpush2.msra.mxu0 0.0
    %254 = vmatprep.subr.mxu0 0.0
    %255 = vmatpush2.msra.mxu0 0.0
    %256 = vmatprep.subr.mxu0 0.0
    %257 = vmatpush2.msra.mxu0 0.0
    %258 = vmatprep.subr.mxu0 0.0
    %259 = vmatpush2.msra.mxu0 0.0
    %260 = vmatprep.subr.mxu0 0.0
    %261 = vmatpush2.msra.mxu0 0.0
    %262 = vmatprep.subr.mxu0 0.0
    %263 = vmatpush2.msra.mxu0 0.0
    %264 = vmatprep.subr.mxu0 0.0
    %265 = vmatpush2.msra.mxu0 0.0
    %266 = vmatprep.subr.mxu0 0.0
    %267 = vmatpush2.msra.mxu0 0.0
    %268 = vmatprep.subr.mxu0 0.0
    %269 = vmatpush2.msra.mxu0 0.0
    %270 = vmatprep.subr.mxu0 0.0
    %271 = vmatpush2.msra.mxu0 0.0
    %272 = vmatprep.subr.mxu0 0.0
    %273 = vmatpush2.msra.mxu0 0.0
    %274 = vmatprep.subr.mxu0 0.0
    %275 = vmatpush2.msra.mxu0 0.0
    %276 = vmatprep.mubr.f32.mxu0 0.0
    %277 = vmatmul.mubr.f32.gmra.mxu0 %v117
    %v278 = vpop.f32.mrf.mxu0
    %v279 = vadd.f32 0.0, %v278
    %v280 = vpop.f32.mrf.mxu0
    %281 = vmatprep.mubr.f32.mxu0 0.0
    %282 = vmatmul.mubr.f32.gmra.mxu0 %v120
    %v283 = vpop.f32.mrf.mxu0
    %v284 = vadd.f32 0.0, %v283
    %v285 = vpop.f32.mrf.mxu0
    %286 = vdwg.mxu0
    %s287 = scalar_lea.vmem [#allocation2], 16
    %288 = vst.msk [vmem:[%s287] sm:$0xff] %vm197, %v279
    %289 = vst.msk [vmem:[%s287 + $0x8] sm:$0xff] %vm197, %v284
    %v290 = vsub.f32 %v210, %v279
    %v291 = vsub.f32 %v211, %v284
    %s292 = scalar_lea.vmem %s2, 16
    %293 = vst.msk [vmem:[%s292] sm:$0xff] %vm197, %v290
    %294 = vst.msk [vmem:[%s292 + $0x8] sm:$0xff] %vm197, %v291
    // Predicated region
    $region10: #{_lambda_.27} parent=1 // pred_check
      _
    $region11: #{_lambda_.27} parent=1 // pred_check_branch
      %296 = sbr.rel (0) target = $region13
    $region12: #{_lambda_.27} parent=1 // pred_region
      _
    $region13: #{_lambda_.27} parent=1 // pred_fallthru
      _
    // Predicated region
    $region14: #{_lambda_.27} parent=1 // pred_check
      _
    $region15: #{_lambda_.27} parent=1 // pred_check_branch
      %298 = sbr.rel (0) target = $region17
    $region16: #{_lambda_.27} parent=1 // pred_region
      %s300 = ssub.s32 512, 512
      %301 = vsyncadd [#allocation3], %s300
      %s302 = sshll.u32 [#allocation2], 4
      %s303 = int_to_ptr.vmem [resolvable:$true] %s302
      %308 = dma.vmem_to_hbm [thread:$0]  %s303, 512, %s3, [#allocation3], 128, 128, 8
    $region17: #{_lambda_.27} parent=1 // pred_fallthru
      _
    // Predicated region
    $region18: #{_lambda_.27} parent=1 // pred_check
      _
    $region19: #{_lambda_.27} parent=1 // pred_check_branch
      %310 = sbr.rel (0) target = $region21
    $region20: #{_lambda_.27} parent=1 // pred_region
      _
    $region21: #{_lambda_.27} parent=1 // pred_fallthru
      _
    // Predicated region
    $region22: #{_lambda_.27} parent=1 // pred_check
      _
    $region23: #{_lambda_.27} parent=1 // pred_check_branch
      %312 = sbr.rel (0) target = $region25
    $region24: #{_lambda_.27} parent=1 // pred_region
      %313 = dma.done [#allocation3], 512
    $region25: #{_lambda_.27} parent=1 // pred_fallthru
      _
    %314 = vsyncpa [#allocation3], 1

// kernel: _lambda_.29
$region0: #{_lambda_.29}
  #allocation0 [shape = 'u32[]', space=smem, size = 0x4, offset = 0x4, fixed_abs, tag = 'smem constant byte address 0x4 - core index']
  #allocation1 [shape = 'u32[144,128]{1,0:T(1,128)}', space=vmem, size = 0x12000, scoped, tag = 'internal scratch']
  %s0 = inlined_call_operand.vmem [shape: f32[2,16,32], index: 0, kind: input, shape index: {}]
  %s1 = inlined_call_operand.vmem [shape: f32[1,32], index: 1, kind: input, shape index: {}]
  %s2 = inlined_call_operand.vmem [shape: f32[1,32], index: 2, kind: input, shape index: {}]
  %s3 = inlined_call_operand.vmem [shape: f32[2,16,32], index: 3, kind: output, shape index: {}]
  %s4 = sld [smem:[#allocation0]]
  $region22: #{_lambda_.29} parent=0
    _
  %s6 = ssub.s32 1, %s4
  %s7 = scalar_select 0, %s6, %s4
  // Predicated region
  $region2: #{_lambda_.29} parent=0 // pred_check
    _
  $region3: #{_lambda_.29} parent=0 // pred_check_branch
    %9 = sbr.rel (0) target = $region5
  $region4: #{_lambda_.29} parent=0 // pred_region
    _
  $region5: #{_lambda_.29} parent=0 // pred_fallthru
    _
  // Predicated region
  $region6: #{_lambda_.29} parent=0 // pred_check
    _
  $region7: #{_lambda_.29} parent=0 // pred_check_branch
    %11 = sbr.rel (0) target = $region9
  $region8: #{_lambda_.29} parent=0 // pred_region
    _
  $region9: #{_lambda_.29} parent=0 // pred_fallthru
    _
  // Predicated region
  $region10: #{_lambda_.29} parent=0 // pred_check
    _
  $region11: #{_lambda_.29} parent=0 // pred_check_branch
    %13 = sbr.rel (0) target = $region13
  $region12: #{_lambda_.29} parent=0 // pred_region
    _
  $region13: #{_lambda_.29} parent=0 // pred_fallthru
    _
  %v14 = vld [vmem:[%s1] sm:$0x1]
  %v15 = vld [vmem:[%s2] sm:$0x1]
  %v16 = vld [vmem:[%s0] sm:$0xff]
  %v17 = vld [vmem:[%s0 + $0x8] sm:$0xff]
  %vm18 = vcmask 261120
  %v19 = vsel %vm18, %v16, 0.0
  %20 = vadd.xlane.f32.xlu0 %v19
  %v21 = vpop.xlane.xlu0 %20
  %v22 = vsel %vm18, %v17, 0.0
  %23 = vadd.xlane.f32.xlu0 %v22
  %v24 = vpop.xlane.xlu0 %23
  %v25 = vrcp.pop 32.0
  %v26 = vmul.f32 %v21, %v25
  %v27 = vmul.f32 %v24, %v25
  %v28 = vsub.f32 %v16, %v26
  %v29 = vsub.f32 %v17, %v27
  %v30 = vmul.f32 %v28, %v28
  %v31 = vmul.f32 %v29, %v29
  %v32 = vsel %vm18, %v30, 0.0
  %33 = vadd.xlane.f32.xlu0 %v32
  %v34 = vpop.xlane.xlu0 %33
  %v35 = vsel %vm18, %v31, 0.0
  %36 = vadd.xlane.f32.xlu0 %v35
  %v37 = vpop.xlane.xlu0 %36
  %v38 = vmul.f32 %v34, %v25
  %v39 = vmul.f32 %v37, %v25
  %v40 = vadd.f32 %v38, 1e-05
  %v41 = vadd.f32 %v39, 1e-05
  %v42 = vrsqrt.pop %v40
  %v43 = vrsqrt.pop %v41
  %v44 = vmul.f32 %v28, %v42
  %v45 = vmul.f32 %v29, %v43
  %v47 = vlaneseq
  %v48 = vshrl.u32 %v47, 7
  %v49 = vsub.s32 0, %v48
  %v50 = vrot.slane %v14, %v49
  %v52 = vmul.f32 %v44, %v50
  %v53 = vmul.f32 %v45, %v50
  %v55 = vlaneseq
  %v56 = vshrl.u32 %v55, 7
  %v57 = vsub.s32 0, %v56
  %v58 = vrot.slane %v15, %v57
  %v60 = vadd.f32 %v52, %v58
  %v61 = vadd.f32 %v53, %v58
  %v62 = vsel %vm18, %v60, 0.0
  %v63 = vsel %vm18, %v61, 0.0
  %v64 = vadd.f32 %v62, %v63
  %v65 = vrot.slane %v64, 4
  %v66 = vadd.f32 %v64, %v65
  %v67 = vrot.slane %v66, 2
  %v68 = vadd.f32 %v66, %v67
  %v69 = vrot.slane %v68, 1
  %v70 = vadd.f32 %v68, %v69
  %v71 = vrcp.pop 16.0
  %v72 = vmul.f32 %v70, %v71
  %v73 = vsub.f32 %v60, %v72
  %v74 = vsub.f32 %v61, %v72
  %75 = vst.msk [vmem:[%s3] sm:$0xff] %vm18, %v73
  %76 = vst.msk [vmem:[%s3 + $0x8] sm:$0xff] %vm18, %v74
  %s77 = scalar_lea.vmem %s0, 16
  %v78 = vld [vmem:[%s77] sm:$0xff]
  %v79 = vld [vmem:[%s77 + $0x8] sm:$0xff]
  %v80 = vsel %vm18, %v78, 0.0
  %81 = vadd.xlane.f32.xlu0 %v80
  %v82 = vpop.xlane.xlu0 %81
  %v83 = vsel %vm18, %v79, 0.0
  %84 = vadd.xlane.f32.xlu0 %v83
  %v85 = vpop.xlane.xlu0 %84
  %v86 = vmul.f32 %v82, %v25
  %v87 = vmul.f32 %v85, %v25
  %v88 = vsub.f32 %v78, %v86
  %v89 = vsub.f32 %v79, %v87
  %v90 = vmul.f32 %v88, %v88
  %v91 = vmul.f32 %v89, %v89
  %v92 = vsel %vm18, %v90, 0.0
  %93 = vadd.xlane.f32.xlu0 %v92
  %v94 = vpop.xlane.xlu0 %93
  %v95 = vsel %vm18, %v91, 0.0
  %96 = vadd.xlane.f32.xlu0 %v95
  %v97 = vpop.xlane.xlu0 %96
  %v98 = vmul.f32 %v94, %v25
  %v99 = vmul.f32 %v97, %v25
  %v100 = vadd.f32 %v98, 1e-05
  %v101 = vadd.f32 %v99, 1e-05
  %v102 = vrsqrt.pop %v100
  %v103 = vrsqrt.pop %v101
  %v104 = vmul.f32 %v88, %v102
  %v105 = vmul.f32 %v89, %v103
  %v106 = vmul.f32 %v104, %v50
  %v107 = vmul.f32 %v105, %v50
  %v108 = vadd.f32 %v106, %v58
  %v109 = vadd.f32 %v107, %v58
  %v110 = vsel %vm18, %v108, 0.0
  %v111 = vsel %vm18, %v109, 0.0
  %v112 = vadd.f32 %v110, %v111
  %v113 = vrot.slane %v112, 4
  %v114 = vadd.f32 %v112, %v113
  %v115 = vrot.slane %v114, 2
  %v116 = vadd.f32 %v114, %v115
  %v117 = vrot.slane %v116, 1
  %v118 = vadd.f32 %v116, %v117
  %v119 = vmul.f32 %v118, %v71
  %v120 = vsub.f32 %v108, %v119
  %v121 = vsub.f32 %v109, %v119
  %s122 = scalar_lea.vmem %s3, 16
  %123 = vst.msk [vmem:[%s122] sm:$0xff] %vm18, %v120
  %124 = vst.msk [vmem:[%s122 + $0x8] sm:$0xff] %vm18, %v121
  // Predicated region
  $region14: #{_lambda_.29} parent=0 // pred_check
    _
  $region15: #{_lambda_.29} parent=0 // pred_check_branch
    %126 = sbr.rel (0) target = $region17
  $region16: #{_lambda_.29} parent=0 // pred_region
    _
  $region17: #{_lambda_.29} parent=0 // pred_fallthru
    _
  // Predicated region
  $region18: #{_lambda_.29} parent=0 // pred_check
    _
  $region19: #{_lambda_.29} parent=0 // pred_check_branch
    %128 = sbr.rel (0) target = $region21
  $region20: #{_lambda_.29} parent=0 // pred_region
    _
  $region21: #{_lambda_.29} parent=0 // pred_fallthru
    _

// kernel: _lambda_.28
$region0: #{_lambda_.28}
  #allocation0 [shape = 'u32[]', space=smem, size = 0x4, offset = 0x4, fixed_abs, tag = 'smem constant byte address 0x4 - core index']
  #allocation1 [shape = 'u32[144,128]{1,0:T(1,128)}', space=vmem, size = 0x12000, scoped, tag = 'internal scratch']
  %s0 = inlined_call_operand.vmem [shape: f32[2,16,32], index: 0, kind: input, shape index: {}]
  %s1 = inlined_call_operand.vmem [shape: f32[32,64], index: 1, kind: input, shape index: {}]
  %s2 = inlined_call_operand.vmem [shape: f32[64,32], index: 2, kind: input, shape index: {}]
  %s3 = inlined_call_operand.vmem [shape: f32[2,16,32], index: 3, kind: output, shape index: {0}]
  %s4 = inlined_call_operand.hbm [shape: f32[2,16,32], index: 4, kind: output, shape index: {1}]
  %5 = xla_tuple %s3, %s4
  %s6 = sld [smem:[#allocation0]]
  $region30: #{_lambda_.28} parent=0
    _
  %s8 = ssub.s32 1, %s6
  %s9 = scalar_select 0, %s8, %s6
  $region1: #{_lambda_.28} parent=0
    #allocation2 [shape = 'u8[16384]{0}', space=vmem, size = 0x4000, scoped, tag = 'output window, operand 1, single buffered']
    #allocation3 [shape = 's32[1]{0}', space=sflag, size = 0x4, scoped, tag = 'scoped memory for _lambda_.28']
    %10 = vsyncpa [#allocation3], 0
    // Predicated region
    $region2: #{_lambda_.28} parent=1 // pred_check
      _
    $region3: #{_lambda_.28} parent=1 // pred_check_branch
      %12 = sbr.rel (0) target = $region5
    $region4: #{_lambda_.28} parent=1 // pred_region
      _
    $region5: #{_lambda_.28} parent=1 // pred_fallthru
      _
    // Predicated region
    $region6: #{_lambda_.28} parent=1 // pred_check
      _
    $region7: #{_lambda_.28} parent=1 // pred_check_branch
      %14 = sbr.rel (0) target = $region9
    $region8: #{_lambda_.28} parent=1 // pred_region
      _
    $region9: #{_lambda_.28} parent=1 // pred_fallthru
      _
    // Predicated region
    $region10: #{_lambda_.28} parent=1 // pred_check
      _
    $region11: #{_lambda_.28} parent=1 // pred_check_branch
      %16 = sbr.rel (0) target = $region13
    $region12: #{_lambda_.28} parent=1 // pred_region
      _
    $region13: #{_lambda_.28} parent=1 // pred_fallthru
      _
    %v17 = vlaneseq
    %v18 = vshrl.u32 %v17, 7
    %v19 = vadd.s32 %v18, 8
    %v20 = vlaneseq
    %v21 = vand.u32 %v20, 127
    %v22 = vadd.s32 %v18, 4294967294
    %v23 = vadd.s32 %v19, 4294967294
    %vm24 = vcmp.gt.s32.totalorder %v22, 0
    %v25 = vsel %vm24, %v22, 0
    %vm26 = vcmp.gt.s32.totalorder %v23, 0
    %v27 = vsel %vm26, %v23, 0
    %vm28 = vcmp.lt.s32.totalorder %v25, 15
    %v29 = vsel %vm28, %v25, 15
    %vm30 = vcmp.lt.s32.totalorder %v27, 15
    %v31 = vsel %vm30, %v27, 15
    %vm32 = vcmp.eq.s32.totalorder %v21, %v29
    %vm33 = vcmp.eq.s32.totalorder %v21, %v31
    %v34 = vsel %vm32, 1, 0
    %v35 = vsel %vm33, 1, 0
    %v36 = vcvt.s32.f32 %v34
    %v37 = vcvt.s32.f32 %v35
    %v38 = vadd.f32 %v36, 0.0
    %v39 = vadd.f32 %v37, 0.0
    %v40 = vadd.s32 %v18, 4294967295
    %v41 = vadd.s32 %v19, 4294967295
    %vm42 = vcmp.gt.s32.totalorder %v40, 0
    %v43 = vsel %vm42, %v40, 0
    %vm44 = vcmp.gt.s32.totalorder %v41, 0
    %v45 = vsel %vm44, %v41, 0
    %vm46 = vcmp.lt.s32.totalorder %v43, 15
    %v47 = vsel %vm46, %v43, 15
    %vm48 = vcmp.lt.s32.totalorder %v45, 15
    %v49 = vsel %vm48, %v45, 15
    %vm50 = vcmp.eq.s32.totalorder %v21, %v47
    %vm51 = vcmp.eq.s32.totalorder %v21, %v49
    %v52 = vsel %vm50, 1, 0
    %v53 = vsel %vm51, 1, 0
    %v54 = vcvt.s32.f32 %v52
    %v55 = vcvt.s32.f32 %v53
    %v56 = vadd.f32 %v38, %v54
    %v57 = vadd.f32 %v39, %v55
    %vm58 = vcmp.gt.s32.totalorder %v18, 0
    %v59 = vsel %vm58, %v18, 0
    %vm60 = vcmp.gt.s32.totalorder %v19, 0
    %v61 = vsel %vm60, %v19, 0
    %vm62 = vcmp.lt.s32.totalorder %v59, 15
    %v63 = vsel %vm62, %v59, 15
    %vm64 = vcmp.lt.s32.totalorder %v61, 15
    %v65 = vsel %vm64, %v61, 15
    %vm66 = vcmp.eq.s32.totalorder %v21, %v63
    %vm67 = vcmp.eq.s32.totalorder %v21, %v65
    %v68 = vsel %vm66, 1, 0
    %v69 = vsel %vm67, 1, 0
    %v70 = vcvt.s32.f32 %v68
    %v71 = vcvt.s32.f32 %v69
    %v72 = vadd.f32 %v56, %v70
    %v73 = vadd.f32 %v57, %v71
    %v74 = vadd.s32 %v18, 1
    %v75 = vadd.s32 %v19, 1
    %vm76 = vcmp.gt.s32.totalorder %v74, 0
    %v77 = vsel %vm76, %v74, 0
    %vm78 = vcmp.gt.s32.totalorder %v75, 0
    %v79 = vsel %vm78, %v75, 0
    %vm80 = vcmp.lt.s32.totalorder %v77, 15
    %v81 = vsel %vm80, %v77, 15
    %vm82 = vcmp.lt.s32.totalorder %v79, 15
    %v83 = vsel %vm82, %v79, 15
    %vm84 = vcmp.eq.s32.totalorder %v21, %v81
    %vm85 = vcmp.eq.s32.totalorder %v21, %v83
    %v86 = vsel %vm84, 1, 0
    %v87 = vsel %vm85, 1, 0
    %v88 = vcvt.s32.f32 %v86
    %v89 = vcvt.s32.f32 %v87
    %v90 = vadd.f32 %v72, %v88
    %v91 = vadd.f32 %v73, %v89
    %v92 = vadd.s32 %v18, 2
    %v93 = vadd.s32 %v19, 2
    %vm94 = vcmp.gt.s32.totalorder %v92, 0
    %v95 = vsel %vm94, %v92, 0
    %vm96 = vcmp.gt.s32.totalorder %v93, 0
    %v97 = vsel %vm96, %v93, 0
    %vm98 = vcmp.lt.s32.totalorder %v95, 15
    %v99 = vsel %vm98, %v95, 15
    %vm100 = vcmp.lt.s32.totalorder %v97, 15
    %v101 = vsel %vm100, %v97, 15
    %vm102 = vcmp.eq.s32.totalorder %v21, %v99
    %vm103 = vcmp.eq.s32.totalorder %v21, %v101
    %v104 = vsel %vm102, 1, 0
    %v105 = vsel %vm103, 1, 0
    %v106 = vcvt.s32.f32 %v104
    %v107 = vcvt.s32.f32 %v105
    %v108 = vadd.f32 %v90, %v106
    %v109 = vadd.f32 %v91, %v107
    %v110 = vmul.f32 %v108, 0.2
    %v111 = vmul.f32 %v109, 0.2
    %v112 = vld [vmem:[%s1] sm:$0xff]
    %v113 = vld [vmem:[%s1 + $0x8] sm:$0xff]
    %v114 = vld [vmem:[%s1 + $0x10] sm:$0xff]
    %v115 = vld [vmem:[%s1 + $0x18] sm:$0xff]
    %v116 = vld [vmem:[%s2] sm:$0xff]
    %v117 = vld [vmem:[%s2 + $0x8] sm:$0xff]
    %v118 = vld [vmem:[%s2 + $0x10] sm:$0xff]
    %v119 = vld [vmem:[%s2 + $0x18] sm:$0xff]
    %v120 = vld [vmem:[%s2 + $0x20] sm:$0xff]
    %v121 = vld [vmem:[%s2 + $0x28] sm:$0xff]
    %v122 = vld [vmem:[%s2 + $0x30] sm:$0xff]
    %v123 = vld [vmem:[%s2 + $0x38] sm:$0xff]
    %v124 = vld [vmem:[%s0] sm:$0xff]
    %v125 = vld [vmem:[%s0 + $0x8] sm:$0xff]
    %vm126 = vcmask 261120
    %v128 = vsel %vm126, %v124, 0
    %v131 = vsel %vm126, %v125, 0
    %133 = vmatprep.subr.mxu0 0.0
    %134 = vmatpush1.msra.mxu0 0.0
    %135 = vmatprep.subr.mxu0 0.0
    %136 = vmatpush1.msra.mxu0 0.0
    %137 = vmatprep.subr.mxu0 0.0
    %138 = vmatpush1.msra.mxu0 0.0
    %139 = vmatprep.subr.mxu0 0.0
    %140 = vmatpush1.msra.mxu0 0.0
    %141 = vmatprep.subr.mxu0 0.0
    %142 = vmatpush1.msra.mxu0 0.0
    %143 = vmatprep.subr.mxu0 0.0
    %144 = vmatpush1.msra.mxu0 0.0
    %145 = vmatprep.subr.mxu0 0.0
    %146 = vmatpush1.msra.mxu0 0.0
    %147 = vmatprep.subr.mxu0 0.0
    %148 = vmatpush1.msra.mxu0 0.0
    %149 = vmatprep.subr.mxu0 0.0
    %150 = vmatpush1.msra.mxu0 0.0
    %151 = vmatprep.subr.mxu0 0.0
    %152 = vmatpush1.msra.mxu0 0.0
    %153 = vmatprep.subr.mxu0 0.0
    %154 = vmatpush1.msra.mxu0 0.0
    %155 = vmatprep.subr.mxu0 0.0
    %156 = vmatpush1.msra.mxu0 0.0
    %157 = vmatprep.subr.mxu0 0.0
    %158 = vmatpush1.msra.mxu0 %v115
    %159 = vmatprep.subr.mxu0 0.0
    %160 = vmatpush1.msra.mxu0 %v114
    %161 = vmatprep.subr.mxu0 0.0
    %162 = vmatpush1.msra.mxu0 %v113
    %163 = vmatprep.subr.mxu0 0.0
    %164 = vmatpush1.msra.mxu0 %v112
    %165 = vmatprep.subr.mxu0 0.0
    %166 = vmatpush2.msra.mxu0 0.0
    %167 = vmatprep.subr.mxu0 0.0
    %168 = vmatpush2.msra.mxu0 0.0
    %169 = vmatprep.subr.mxu0 0.0
    %170 = vmatpush2.msra.mxu0 0.0
    %171 = vmatprep.subr.mxu0 0.0
    %172 = vmatpush2.msra.mxu0 0.0
    %173 = vmatprep.subr.mxu0 0.0
    %174 = vmatpush2.msra.mxu0 0.0
    %175 = vmatprep.subr.mxu0 0.0
    %176 = vmatpush2.msra.mxu0 0.0
    %177 = vmatprep.subr.mxu0 0.0
    %178 = vmatpush2.msra.mxu0 0.0
    %179 = vmatprep.subr.mxu0 0.0
    %180 = vmatpush2.msra.mxu0 0.0
    %181 = vmatprep.subr.mxu0 0.0
    %182 = vmatpush2.msra.mxu0 0.0
    %183 = vmatprep.subr.mxu0 0.0
    %184 = vmatpush2.msra.mxu0 0.0
    %185 = vmatprep.subr.mxu0 0.0
    %186 = vmatpush2.msra.mxu0 0.0
    %187 = vmatprep.subr.mxu0 0.0
    %188 = vmatpush2.msra.mxu0 0.0
    %189 = vmatprep.subr.mxu0 0.0
    %190 = vmatpush2.msra.mxu0 0.0
    %191 = vmatprep.subr.mxu0 0.0
    %192 = vmatpush2.msra.mxu0 0.0
    %193 = vmatprep.subr.mxu0 0.0
    %194 = vmatpush2.msra.mxu0 0.0
    %195 = vmatprep.subr.mxu0 0.0
    %196 = vmatpush2.msra.mxu0 0.0
    %197 = vmatprep.mubr.f32.mxu0 0.0
    %198 = vmatmul.mubr.f32.gmra.mxu0 %v128
    %v199 = vpop.f32.mrf.mxu0
    %v200 = vadd.f32 0.0, %v199
    %v201 = vpop.f32.mrf.mxu0
    %202 = vmatprep.mubr.f32.mxu0 0.0
    %203 = vmatmul.mubr.f32.gmra.mxu0 %v131
    %v204 = vpop.f32.mrf.mxu0
    %v205 = vadd.f32 0.0, %v204
    %v206 = vpop.f32.mrf.mxu0
    %207 = vdwg.mxu0
    %v208 = vmax.f32 %v200, 0.0
    %v209 = vmax.f32 %v205, 0.0
    %vm210 = vcmask 523264
    %v212 = vsel %vm210, %v208, 0
    %v215 = vsel %vm210, %v209, 0
    %217 = vmatprep.subr.mxu0 0.0
    %218 = vmatpush1.msra.mxu0 0.0
    %219 = vmatprep.subr.mxu0 0.0
    %220 = vmatpush1.msra.mxu0 0.0
    %221 = vmatprep.subr.mxu0 0.0
    %222 = vmatpush1.msra.mxu0 0.0
    %223 = vmatprep.subr.mxu0 0.0
    %224 = vmatpush1.msra.mxu0 0.0
    %225 = vmatprep.subr.mxu0 0.0
    %226 = vmatpush1.msra.mxu0 0.0
    %227 = vmatprep.subr.mxu0 0.0
    %228 = vmatpush1.msra.mxu0 0.0
    %229 = vmatprep.subr.mxu0 0.0
    %230 = vmatpush1.msra.mxu0 0.0
    %231 = vmatprep.subr.mxu0 0.0
    %232 = vmatpush1.msra.mxu0 0.0
    %233 = vmatprep.subr.mxu0 0.0
    %234 = vmatpush1.msra.mxu0 %v123
    %235 = vmatprep.subr.mxu0 0.0
    %236 = vmatpush1.msra.mxu0 %v122
    %237 = vmatprep.subr.mxu0 0.0
    %238 = vmatpush1.msra.mxu0 %v121
    %239 = vmatprep.subr.mxu0 0.0
    %240 = vmatpush1.msra.mxu0 %v120
    %241 = vmatprep.subr.mxu0 0.0
    %242 = vmatpush1.msra.mxu0 %v119
    %243 = vmatprep.subr.mxu0 0.0
    %244 = vmatpush1.msra.mxu0 %v118
    %245 = vmatprep.subr.mxu0 0.0
    %246 = vmatpush1.msra.mxu0 %v117
    %247 = vmatprep.subr.mxu0 0.0
    %248 = vmatpush1.msra.mxu0 %v116
    %249 = vmatprep.subr.mxu0 0.0
    %250 = vmatpush2.msra.mxu0 0.0
    %251 = vmatprep.subr.mxu0 0.0
    %252 = vmatpush2.msra.mxu0 0.0
    %253 = vmatprep.subr.mxu0 0.0
    %254 = vmatpush2.msra.mxu0 0.0
    %255 = vmatprep.subr.mxu0 0.0
    %256 = vmatpush2.msra.mxu0 0.0
    %257 = vmatprep.subr.mxu0 0.0
    %258 = vmatpush2.msra.mxu0 0.0
    %259 = vmatprep.subr.mxu0 0.0
    %260 = vmatpush2.msra.mxu0 0.0
    %261 = vmatprep.subr.mxu0 0.0
    %262 = vmatpush2.msra.mxu0 0.0
    %263 = vmatprep.subr.mxu0 0.0
    %264 = vmatpush2.msra.mxu0 0.0
    %265 = vmatprep.subr.mxu0 0.0
    %266 = vmatpush2.msra.mxu0 0.0
    %267 = vmatprep.subr.mxu0 0.0
    %268 = vmatpush2.msra.mxu0 0.0
    %269 = vmatprep.subr.mxu0 0.0
    %270 = vmatpush2.msra.mxu0 0.0
    %271 = vmatprep.subr.mxu0 0.0
    %272 = vmatpush2.msra.mxu0 0.0
    %273 = vmatprep.subr.mxu0 0.0
    %274 = vmatpush2.msra.mxu0 0.0
    %275 = vmatprep.subr.mxu0 0.0
    %276 = vmatpush2.msra.mxu0 0.0
    %277 = vmatprep.subr.mxu0 0.0
    %278 = vmatpush2.msra.mxu0 0.0
    %279 = vmatprep.subr.mxu0 0.0
    %280 = vmatpush2.msra.mxu0 0.0
    %281 = vmatprep.mubr.f32.mxu0 0.0
    %282 = vmatmul.mubr.f32.gmra.mxu0 %v212
    %v283 = vpop.f32.mrf.mxu0
    %v284 = vadd.f32 0.0, %v283
    %v285 = vpop.f32.mrf.mxu0
    %286 = vmatprep.mubr.f32.mxu0 0.0
    %287 = vmatmul.mubr.f32.gmra.mxu0 %v215
    %v288 = vpop.f32.mrf.mxu0
    %v289 = vadd.f32 0.0, %v288
    %v290 = vpop.f32.mrf.mxu0
    %291 = vdwg.mxu0
    %v292 = vadd.f32 %v124, %v284
    %v293 = vadd.f32 %v125, %v289
    %vm294 = vcmask 130048
    %v296 = vsel %vm294, %v110, 0
    %v299 = vsel %vm294, %v111, 0
    %301 = vmatprep.subr.mxu0 0.0
    %302 = vmatpush1.msra.mxu0 0.0
    %303 = vmatprep.subr.mxu0 0.0
    %304 = vmatpush1.msra.mxu0 0.0
    %305 = vmatprep.subr.mxu0 0.0
    %306 = vmatpush1.msra.mxu0 0.0
    %307 = vmatprep.subr.mxu0 0.0
    %308 = vmatpush1.msra.mxu0 0.0
    %309 = vmatprep.subr.mxu0 0.0
    %310 = vmatpush1.msra.mxu0 0.0
    %311 = vmatprep.subr.mxu0 0.0
    %312 = vmatpush1.msra.mxu0 0.0
    %313 = vmatprep.subr.mxu0 0.0
    %314 = vmatpush1.msra.mxu0 0.0
    %315 = vmatprep.subr.mxu0 0.0
    %316 = vmatpush1.msra.mxu0 0.0
    %317 = vmatprep.subr.mxu0 0.0
    %318 = vmatpush1.msra.mxu0 0.0
    %319 = vmatprep.subr.mxu0 0.0
    %320 = vmatpush1.msra.mxu0 0.0
    %321 = vmatprep.subr.mxu0 0.0
    %322 = vmatpush1.msra.mxu0 0.0
    %323 = vmatprep.subr.mxu0 0.0
    %324 = vmatpush1.msra.mxu0 0.0
    %325 = vmatprep.subr.mxu0 0.0
    %326 = vmatpush1.msra.mxu0 0.0
    %327 = vmatprep.subr.mxu0 0.0
    %328 = vmatpush1.msra.mxu0 0.0
    %329 = vmatprep.subr.mxu0 0.0
    %330 = vmatpush1.msra.mxu0 %v293
    %331 = vmatprep.subr.mxu0 0.0
    %332 = vmatpush1.msra.mxu0 %v292
    %333 = vmatprep.subr.mxu0 0.0
    %334 = vmatpush2.msra.mxu0 0.0
    %335 = vmatprep.subr.mxu0 0.0
    %336 = vmatpush2.msra.mxu0 0.0
    %337 = vmatprep.subr.mxu0 0.0
    %338 = vmatpush2.msra.mxu0 0.0
    %339 = vmatprep.subr.mxu0 0.0
    %340 = vmatpush2.msra.mxu0 0.0
    %341 = vmatprep.subr.mxu0 0.0
    %342 = vmatpush2.msra.mxu0 0.0
    %343 = vmatprep.subr.mxu0 0.0
    %344 = vmatpush2.msra.mxu0 0.0
    %345 = vmatprep.subr.mxu0 0.0
    %346 = vmatpush2.msra.mxu0 0.0
    %347 = vmatprep.subr.mxu0 0.0
    %348 = vmatpush2.msra.mxu0 0.0
    %349 = vmatprep.subr.mxu0 0.0
    %350 = vmatpush2.msra.mxu0 0.0
    %351 = vmatprep.subr.mxu0 0.0
    %352 = vmatpush2.msra.mxu0 0.0
    %353 = vmatprep.subr.mxu0 0.0
    %354 = vmatpush2.msra.mxu0 0.0
    %355 = vmatprep.subr.mxu0 0.0
    %356 = vmatpush2.msra.mxu0 0.0
    %357 = vmatprep.subr.mxu0 0.0
    %358 = vmatpush2.msra.mxu0 0.0
    %359 = vmatprep.subr.mxu0 0.0
    %360 = vmatpush2.msra.mxu0 0.0
    %361 = vmatprep.subr.mxu0 0.0
    %362 = vmatpush2.msra.mxu0 0.0
    %363 = vmatprep.subr.mxu0 0.0
    %364 = vmatpush2.msra.mxu0 0.0
    %365 = vmatprep.mubr.f32.mxu0 0.0
    %366 = vmatmul.mubr.f32.gmra.mxu0 %v296
    %v367 = vpop.f32.mrf.mxu0
    %v368 = vadd.f32 0.0, %v367
    %v369 = vpop.f32.mrf.mxu0
    %370 = vmatprep.mubr.f32.mxu0 0.0
    %371 = vmatmul.mubr.f32.gmra.mxu0 %v299
    %v372 = vpop.f32.mrf.mxu0
    %v373 = vadd.f32 0.0, %v372
    %v374 = vpop.f32.mrf.mxu0
    %375 = vdwg.mxu0
    %376 = vst.msk [vmem:[#allocation2] sm:$0xff] %vm126, %v368
    %377 = vst.msk [vmem:[#allocation2 + $0x8] sm:$0xff] %vm126, %v373
    %v378 = vsub.f32 %v292, %v368
    %v379 = vsub.f32 %v293, %v373
    %380 = vst.msk [vmem:[%s3] sm:$0xff] %vm126, %v378
    %381 = vst.msk [vmem:[%s3 + $0x8] sm:$0xff] %vm126, %v379
    %s382 = scalar_lea.vmem %s0, 16
    %v383 = vld [vmem:[%s382] sm:$0xff]
    %v384 = vld [vmem:[%s382 + $0x8] sm:$0xff]
    %v386 = vsel %vm126, %v383, 0
    %v389 = vsel %vm126, %v384, 0
    %391 = vmatprep.subr.mxu0 0.0
    %392 = vmatpush1.msra.mxu0 0.0
    %393 = vmatprep.subr.mxu0 0.0
    %394 = vmatpush1.msra.mxu0 0.0
    %395 = vmatprep.subr.mxu0 0.0
    %396 = vmatpush1.msra.mxu0 0.0
    %397 = vmatprep.subr.mxu0 0.0
    %398 = vmatpush1.msra.mxu0 0.0
    %399 = vmatprep.subr.mxu0 0.0
    %400 = vmatpush1.msra.mxu0 0.0
    %401 = vmatprep.subr.mxu0 0.0
    %402 = vmatpush1.msra.mxu0 0.0
    %403 = vmatprep.subr.mxu0 0.0
    %404 = vmatpush1.msra.mxu0 0.0
    %405 = vmatprep.subr.mxu0 0.0
    %406 = vmatpush1.msra.mxu0 0.0
    %407 = vmatprep.subr.mxu0 0.0
    %408 = vmatpush1.msra.mxu0 0.0
    %409 = vmatprep.subr.mxu0 0.0
    %410 = vmatpush1.msra.mxu0 0.0
    %411 = vmatprep.subr.mxu0 0.0
    %412 = vmatpush1.msra.mxu0 0.0
    %413 = vmatprep.subr.mxu0 0.0
    %414 = vmatpush1.msra.mxu0 0.0
    %415 = vmatprep.subr.mxu0 0.0
    %416 = vmatpush1.msra.mxu0 %v115
    %417 = vmatprep.subr.mxu0 0.0
    %418 = vmatpush1.msra.mxu0 %v114
    %419 = vmatprep.subr.mxu0 0.0
    %420 = vmatpush1.msra.mxu0 %v113
    %421 = vmatprep.subr.mxu0 0.0
    %422 = vmatpush1.msra.mxu0 %v112
    %423 = vmatprep.subr.mxu0 0.0
    %424 = vmatpush2.msra.mxu0 0.0
    %425 = vmatprep.subr.mxu0 0.0
    %426 = vmatpush2.msra.mxu0 0.0
    %427 = vmatprep.subr.mxu0 0.0
    %428 = vmatpush2.msra.mxu0 0.0
    %429 = vmatprep.subr.mxu0 0.0
    %430 = vmatpush2.msra.mxu0 0.0
    %431 = vmatprep.subr.mxu0 0.0
    %432 = vmatpush2.msra.mxu0 0.0
    %433 = vmatprep.subr.mxu0 0.0
    %434 = vmatpush2.msra.mxu0 0.0
    %435 = vmatprep.subr.mxu0 0.0
    %436 = vmatpush2.msra.mxu0 0.0
    %437 = vmatprep.subr.mxu0 0.0
    %438 = vmatpush2.msra.mxu0 0.0
    %439 = vmatprep.subr.mxu0 0.0
    %440 = vmatpush2.msra.mxu0 0.0
    %441 = vmatprep.subr.mxu0 0.0
    %442 = vmatpush2.msra.mxu0 0.0
    %443 = vmatprep.subr.mxu0 0.0
    %444 = vmatpush2.msra.mxu0 0.0
    %445 = vmatprep.subr.mxu0 0.0
    %446 = vmatpush2.msra.mxu0 0.0
    %447 = vmatprep.subr.mxu0 0.0
    %448 = vmatpush2.msra.mxu0 0.0
    %449 = vmatprep.subr.mxu0 0.0
    %450 = vmatpush2.msra.mxu0 0.0
    %451 = vmatprep.subr.mxu0 0.0
    %452 = vmatpush2.msra.mxu0 0.0
    %453 = vmatprep.subr.mxu0 0.0
    %454 = vmatpush2.msra.mxu0 0.0
    %455 = vmatprep.mubr.f32.mxu0 0.0
    %456 = vmatmul.mubr.f32.gmra.mxu0 %v386
    %v457 = vpop.f32.mrf.mxu0
    %v458 = vadd.f32 0.0, %v457
    %v459 = vpop.f32.mrf.mxu0
    %460 = vmatprep.mubr.f32.mxu0 0.0
    %461 = vmatmul.mubr.f32.gmra.mxu0 %v389
    %v462 = vpop.f32.mrf.mxu0
    %v463 = vadd.f32 0.0, %v462
    %v464 = vpop.f32.mrf.mxu0
    %465 = vdwg.mxu0
    %v466 = vmax.f32 %v458, 0.0
    %v467 = vmax.f32 %v463, 0.0
    %v469 = vsel %vm210, %v466, 0
    %v472 = vsel %vm210, %v467, 0
    %474 = vmatprep.subr.mxu0 0.0
    %475 = vmatpush1.msra.mxu0 0.0
    %476 = vmatprep.subr.mxu0 0.0
    %477 = vmatpush1.msra.mxu0 0.0
    %478 = vmatprep.subr.mxu0 0.0
    %479 = vmatpush1.msra.mxu0 0.0
    %480 = vmatprep.subr.mxu0 0.0
    %481 = vmatpush1.msra.mxu0 0.0
    %482 = vmatprep.subr.mxu0 0.0
    %483 = vmatpush1.msra.mxu0 0.0
    %484 = vmatprep.subr.mxu0 0.0
    %485 = vmatpush1.msra.mxu0 0.0
    %486 = vmatprep.subr.mxu0 0.0
    %487 = vmatpush1.msra.mxu0 0.0
    %488 = vmatprep.subr.mxu0 0.0
    %489 = vmatpush1.msra.mxu0 0.0
    %490 = vmatprep.subr.mxu0 0.0
    %491 = vmatpush1.msra.mxu0 %v123
    %492 = vmatprep.subr.mxu0 0.0
    %493 = vmatpush1.msra.mxu0 %v122
    %494 = vmatprep.subr.mxu0 0.0
    %495 = vmatpush1.msra.mxu0 %v121
    %496 = vmatprep.subr.mxu0 0.0
    %497 = vmatpush1.msra.mxu0 %v120
    %498 = vmatprep.subr.mxu0 0.0
    %499 = vmatpush1.msra.mxu0 %v119
    %500 = vmatprep.subr.mxu0 0.0
    %501 = vmatpush1.msra.mxu0 %v118
    %502 = vmatprep.subr.mxu0 0.0
    %503 = vmatpush1.msra.mxu0 %v117
    %504 = vmatprep.subr.mxu0 0.0
    %505 = vmatpush1.msra.mxu0 %v116
    %506 = vmatprep.subr.mxu0 0.0
    %507 = vmatpush2.msra.mxu0 0.0
    %508 = vmatprep.subr.mxu0 0.0
    %509 = vmatpush2.msra.mxu0 0.0
    %510 = vmatprep.subr.mxu0 0.0
    %511 = vmatpush2.msra.mxu0 0.0
    %512 = vmatprep.subr.mxu0 0.0
    %513 = vmatpush2.msra.mxu0 0.0
    %514 = vmatprep.subr.mxu0 0.0
    %515 = vmatpush2.msra.mxu0 0.0
    %516 = vmatprep.subr.mxu0 0.0
    %517 = vmatpush2.msra.mxu0 0.0
    %518 = vmatprep.subr.mxu0 0.0
    %519 = vmatpush2.msra.mxu0 0.0
    %520 = vmatprep.subr.mxu0 0.0
    %521 = vmatpush2.msra.mxu0 0.0
    %522 = vmatprep.subr.mxu0 0.0
    %523 = vmatpush2.msra.mxu0 0.0
    %524 = vmatprep.subr.mxu0 0.0
    %525 = vmatpush2.msra.mxu0 0.0
    %526 = vmatprep.subr.mxu0 0.0
    %527 = vmatpush2.msra.mxu0 0.0
    %528 = vmatprep.subr.mxu0 0.0
    %529 = vmatpush2.msra.mxu0 0.0
    %530 = vmatprep.subr.mxu0 0.0
    %531 = vmatpush2.msra.mxu0 0.0
    %532 = vmatprep.subr.mxu0 0.0
    %533 = vmatpush2.msra.mxu0 0.0
    %534 = vmatprep.subr.mxu0 0.0
    %535 = vmatpush2.msra.mxu0 0.0
    %536 = vmatprep.subr.mxu0 0.0
    %537 = vmatpush2.msra.mxu0 0.0
    %538 = vmatprep.mubr.f32.mxu0 0.0
    %539 = vmatmul.mubr.f32.gmra.mxu0 %v469
    %v540 = vpop.f32.mrf.mxu0
    %v541 = vadd.f32 0.0, %v540
    %v542 = vpop.f32.mrf.mxu0
    %543 = vmatprep.mubr.f32.mxu0 0.0
    %544 = vmatmul.mubr.f32.gmra.mxu0 %v472
    %v545 = vpop.f32.mrf.mxu0
    %v546 = vadd.f32 0.0, %v545
    %v547 = vpop.f32.mrf.mxu0
    %548 = vdwg.mxu0
    %v549 = vadd.f32 %v383, %v541
    %v550 = vadd.f32 %v384, %v546
    %551 = vmatprep.subr.mxu0 0.0
    %552 = vmatpush1.msra.mxu0 0.0
    %553 = vmatprep.subr.mxu0 0.0
    %554 = vmatpush1.msra.mxu0 0.0
    %555 = vmatprep.subr.mxu0 0.0
    %556 = vmatpush1.msra.mxu0 0.0
    %557 = vmatprep.subr.mxu0 0.0
    %558 = vmatpush1.msra.mxu0 0.0
    %559 = vmatprep.subr.mxu0 0.0
    %560 = vmatpush1.msra.mxu0 0.0
    %561 = vmatprep.subr.mxu0 0.0
    %562 = vmatpush1.msra.mxu0 0.0
    %563 = vmatprep.subr.mxu0 0.0
    %564 = vmatpush1.msra.mxu0 0.0
    %565 = vmatprep.subr.mxu0 0.0
    %566 = vmatpush1.msra.mxu0 0.0
    %567 = vmatprep.subr.mxu0 0.0
    %568 = vmatpush1.msra.mxu0 0.0
    %569 = vmatprep.subr.mxu0 0.0
    %570 = vmatpush1.msra.mxu0 0.0
    %571 = vmatprep.subr.mxu0 0.0
    %572 = vmatpush1.msra.mxu0 0.0
    %573 = vmatprep.subr.mxu0 0.0
    %574 = vmatpush1.msra.mxu0 0.0
    %575 = vmatprep.subr.mxu0 0.0
    %576 = vmatpush1.msra.mxu0 0.0
    %577 = vmatprep.subr.mxu0 0.0
    %578 = vmatpush1.msra.mxu0 0.0
    %579 = vmatprep.subr.mxu0 0.0
    %580 = vmatpush1.msra.mxu0 %v550
    %581 = vmatprep.subr.mxu0 0.0
    %582 = vmatpush1.msra.mxu0 %v549
    %583 = vmatprep.subr.mxu0 0.0
    %584 = vmatpush2.msra.mxu0 0.0
    %585 = vmatprep.subr.mxu0 0.0
    %586 = vmatpush2.msra.mxu0 0.0
    %587 = vmatprep.subr.mxu0 0.0
    %588 = vmatpush2.msra.mxu0 0.0
    %589 = vmatprep.subr.mxu0 0.0
    %590 = vmatpush2.msra.mxu0 0.0
    %591 = vmatprep.subr.mxu0 0.0
    %592 = vmatpush2.msra.mxu0 0.0
    %593 = vmatprep.subr.mxu0 0.0
    %594 = vmatpush2.msra.mxu0 0.0
    %595 = vmatprep.subr.mxu0 0.0
    %596 = vmatpush2.msra.mxu0 0.0
    %597 = vmatprep.subr.mxu0 0.0
    %598 = vmatpush2.msra.mxu0 0.0
    %599 = vmatprep.subr.mxu0 0.0
    %600 = vmatpush2.msra.mxu0 0.0
    %601 = vmatprep.subr.mxu0 0.0
    %602 = vmatpush2.msra.mxu0 0.0
    %603 = vmatprep.subr.mxu0 0.0
    %604 = vmatpush2.msra.mxu0 0.0
    %605 = vmatprep.subr.mxu0 0.0
    %606 = vmatpush2.msra.mxu0 0.0
    %607 = vmatprep.subr.mxu0 0.0
    %608 = vmatpush2.msra.mxu0 0.0
    %609 = vmatprep.subr.mxu0 0.0
    %610 = vmatpush2.msra.mxu0 0.0
    %611 = vmatprep.subr.mxu0 0.0
    %612 = vmatpush2.msra.mxu0 0.0
    %613 = vmatprep.subr.mxu0 0.0
    %614 = vmatpush2.msra.mxu0 0.0
    %615 = vmatprep.mubr.f32.mxu0 0.0
    %616 = vmatmul.mubr.f32.gmra.mxu0 %v296
    %v617 = vpop.f32.mrf.mxu0
    %v618 = vadd.f32 0.0, %v617
    %v619 = vpop.f32.mrf.mxu0
    %620 = vmatprep.mubr.f32.mxu0 0.0
    %621 = vmatmul.mubr.f32.gmra.mxu0 %v299
    %v622 = vpop.f32.mrf.mxu0
    %v623 = vadd.f32 0.0, %v622
    %v624 = vpop.f32.mrf.mxu0
    %625 = vdwg.mxu0
    %s626 = scalar_lea.vmem [#allocation2], 16
    %627 = vst.msk [vmem:[%s626] sm:$0xff] %vm126, %v618
    %628 = vst.msk [vmem:[%s626 + $0x8] sm:$0xff] %vm126, %v623
    %v629 = vsub.f32 %v549, %v618
    %v630 = vsub.f32 %v550, %v623
    %s631 = scalar_lea.vmem %s3, 16
    %632 = vst.msk [vmem:[%s631] sm:$0xff] %vm126, %v629
    %633 = vst.msk [vmem:[%s631 + $0x8] sm:$0xff] %vm126, %v630
    // Predicated region
    $region14: #{_lambda_.28} parent=1 // pred_check
      _
    $region15: #{_lambda_.28} parent=1 // pred_check_branch
      %635 = sbr.rel (0) target = $region17
    $region16: #{_lambda_.28} parent=1 // pred_region
      _
    $region17: #{_lambda_.28} parent=1 // pred_fallthru
      _
    // Predicated region
    $region18: #{_lambda_.28} parent=1 // pred_check
      _
    $region19: #{_lambda_.28} parent=1 // pred_check_branch
      %637 = sbr.rel (0) target = $region21
    $region20: #{_lambda_.28} parent=1 // pred_region
      %s639 = ssub.s32 512, 512
      %640 = vsyncadd [#allocation3], %s639
      %s641 = sshll.u32 [#allocation2], 4
      %s642 = int_to_ptr.vmem [resolvable:$true] %s641
      %647 = dma.vmem_to_hbm [thread:$0]  %s642, 512, %s4, [#allocation3], 128, 128, 8
    $region21: #{_lambda_.28} parent=1 // pred_fallthru
      _
    // Predicated region
    $region22: #{_lambda_.28} parent=1 // pred_check
      _
    $region23: #{_lambda_.28} parent=1 // pred_check_branch
      %649 = sbr.rel (0) target = $region25
    $region24: #{_lambda_.28} parent=1 // pred_region
      _
    $region25: #{_lambda_.28} parent=1 // pred_fallthru
      _
    // Predicated region
    $region26: #{_lambda_.28} parent=1 // pred_check
      _
    $region27: #{_lambda_.28} parent=1 // pred_check_branch
      %651 = sbr.rel (0) target = $region29
    $region28: #{_lambda_.28} parent=1 // pred_region
      %652 = dma.done [#allocation3], 512
    $region29: #{_lambda_.28} parent=1 // pred_fallthru
      _
    %653 = vsyncpa [#allocation3], 1

// kernel: _lambda_.23
$region0: #{_lambda_.23}
  #allocation0 [shape = 'u32[]', space=smem, size = 0x4, offset = 0x4, fixed_abs, tag = 'smem constant byte address 0x4 - core index']
  #allocation1 [shape = 'u32[144,128]{1,0:T(1,128)}', space=vmem, size = 0x12000, scoped, tag = 'internal scratch']
  %s0 = inlined_call_operand.vmem [shape: f32[2,16,32], index: 0, kind: input, shape index: {}]
  %s1 = inlined_call_operand.vmem [shape: f32[2,16,32], index: 1, kind: input, shape index: {}]
  %s2 = inlined_call_operand.vmem [shape: f32[2,16,32], index: 2, kind: output, shape index: {0}]
  %s3 = inlined_call_operand.vmem [shape: f32[2,16,32], index: 3, kind: output, shape index: {1}]
  %4 = xla_tuple %s2, %s3
  %s5 = sld [smem:[#allocation0]]
  $region26: #{_lambda_.23} parent=0
    _
  %s7 = ssub.s32 1, %s5
  %s8 = scalar_select 0, %s7, %s5
  // Predicated region
  $region2: #{_lambda_.23} parent=0 // pred_check
    _
  $region3: #{_lambda_.23} parent=0 // pred_check_branch
    %10 = sbr.rel (0) target = $region5
  $region4: #{_lambda_.23} parent=0 // pred_region
    _
  $region5: #{_lambda_.23} parent=0 // pred_fallthru
    _
  // Predicated region
  $region6: #{_lambda_.23} parent=0 // pred_check
    _
  $region7: #{_lambda_.23} parent=0 // pred_check_branch
    %12 = sbr.rel (0) target = $region9
  $region8: #{_lambda_.23} parent=0 // pred_region
    _
  $region9: #{_lambda_.23} parent=0 // pred_fallthru
    _
  %v13 = vlaneseq
  %v14 = vshrl.u32 %v13, 7
  %v15 = vadd.s32 %v14, 8
  %v16 = vlaneseq
  %v17 = vand.u32 %v16, 127
  %v18 = vadd.s32 %v14, 4294967294
  %v19 = vadd.s32 %v15, 4294967294
  %vm20 = vcmp.gt.s32.totalorder %v18, 0
  %v21 = vsel %vm20, %v18, 0
  %vm22 = vcmp.gt.s32.totalorder %v19, 0
  %v23 = vsel %vm22, %v19, 0
  %vm24 = vcmp.lt.s32.totalorder %v21, 15
  %v25 = vsel %vm24, %v21, 15
  %vm26 = vcmp.lt.s32.totalorder %v23, 15
  %v27 = vsel %vm26, %v23, 15
  %vm28 = vcmp.eq.s32.totalorder %v17, %v25
  %vm29 = vcmp.eq.s32.totalorder %v17, %v27
  %v30 = vsel %vm28, 1, 0
  %v31 = vsel %vm29, 1, 0
  %v32 = vcvt.s32.f32 %v30
  %v33 = vcvt.s32.f32 %v31
  %v34 = vadd.f32 %v32, 0.0
  %v35 = vadd.f32 %v33, 0.0
  %v36 = vadd.s32 %v14, 4294967295
  %v37 = vadd.s32 %v15, 4294967295
  %vm38 = vcmp.gt.s32.totalorder %v36, 0
  %v39 = vsel %vm38, %v36, 0
  %vm40 = vcmp.gt.s32.totalorder %v37, 0
  %v41 = vsel %vm40, %v37, 0
  %vm42 = vcmp.lt.s32.totalorder %v39, 15
  %v43 = vsel %vm42, %v39, 15
  %vm44 = vcmp.lt.s32.totalorder %v41, 15
  %v45 = vsel %vm44, %v41, 15
  %vm46 = vcmp.eq.s32.totalorder %v17, %v43
  %vm47 = vcmp.eq.s32.totalorder %v17, %v45
  %v48 = vsel %vm46, 1, 0
  %v49 = vsel %vm47, 1, 0
  %v50 = vcvt.s32.f32 %v48
  %v51 = vcvt.s32.f32 %v49
  %v52 = vadd.f32 %v34, %v50
  %v53 = vadd.f32 %v35, %v51
  %vm54 = vcmp.gt.s32.totalorder %v14, 0
  %v55 = vsel %vm54, %v14, 0
  %vm56 = vcmp.gt.s32.totalorder %v15, 0
  %v57 = vsel %vm56, %v15, 0
  %vm58 = vcmp.lt.s32.totalorder %v55, 15
  %v59 = vsel %vm58, %v55, 15
  %vm60 = vcmp.lt.s32.totalorder %v57, 15
  %v61 = vsel %vm60, %v57, 15
  %vm62 = vcmp.eq.s32.totalorder %v17, %v59
  %vm63 = vcmp.eq.s32.totalorder %v17, %v61
  %v64 = vsel %vm62, 1, 0
  %v65 = vsel %vm63, 1, 0
  %v66 = vcvt.s32.f32 %v64
  %v67 = vcvt.s32.f32 %v65
  %v68 = vadd.f32 %v52, %v66
  %v69 = vadd.f32 %v53, %v67
  %v70 = vadd.s32 %v14, 1
  %v71 = vadd.s32 %v15, 1
  %vm72 = vcmp.gt.s32.totalorder %v70, 0
  %v73 = vsel %vm72, %v70, 0
  %vm74 = vcmp.gt.s32.totalorder %v71, 0
  %v75 = vsel %vm74, %v71, 0
  %vm76 = vcmp.lt.s32.totalorder %v73, 15
  %v77 = vsel %vm76, %v73, 15
  %vm78 = vcmp.lt.s32.totalorder %v75, 15
  %v79 = vsel %vm78, %v75, 15
  %vm80 = vcmp.eq.s32.totalorder %v17, %v77
  %vm81 = vcmp.eq.s32.totalorder %v17, %v79
  %v82 = vsel %vm80, 1, 0
  %v83 = vsel %vm81, 1, 0
  %v84 = vcvt.s32.f32 %v82
  %v85 = vcvt.s32.f32 %v83
  %v86 = vadd.f32 %v68, %v84
  %v87 = vadd.f32 %v69, %v85
  %v88 = vadd.s32 %v14, 2
  %v89 = vadd.s32 %v15, 2
  %vm90 = vcmp.gt.s32.totalorder %v88, 0
  %v91 = vsel %vm90, %v88, 0
  %vm92 = vcmp.gt.s32.totalorder %v89, 0
  %v93 = vsel %vm92, %v89, 0
  %vm94 = vcmp.lt.s32.totalorder %v91, 15
  %v95 = vsel %vm94, %v91, 15
  %vm96 = vcmp.lt.s32.totalorder %v93, 15
  %v97 = vsel %vm96, %v93, 15
  %vm98 = vcmp.eq.s32.totalorder %v17, %v95
  %vm99 = vcmp.eq.s32.totalorder %v17, %v97
  %v100 = vsel %vm98, 1, 0
  %v101 = vsel %vm99, 1, 0
  %v102 = vcvt.s32.f32 %v100
  %v103 = vcvt.s32.f32 %v101
  %v104 = vadd.f32 %v86, %v102
  %v105 = vadd.f32 %v87, %v103
  %v106 = vmul.f32 %v104, 0.2
  %v107 = vmul.f32 %v105, 0.2
  %v108 = vld [vmem:[%s0] sm:$0xff]
  %v109 = vld [vmem:[%s0 + $0x8] sm:$0xff]
  %v110 = vld [vmem:[%s1] sm:$0xff]
  %v111 = vld [vmem:[%s1 + $0x8] sm:$0xff]
  %v112 = vadd.f32 %v108, %v110
  %v113 = vadd.f32 %v109, %v111
  %vm114 = vcmask 130048
  %v116 = vsel %vm114, %v106, 0
  %v119 = vsel %vm114, %v107, 0
  %121 = vmatprep.subr.mxu0 0.0
  %122 = vmatpush1.msra.mxu0 0.0
  %123 = vmatprep.subr.mxu0 0.0
  %124 = vmatpush1.msra.mxu0 0.0
  %125 = vmatprep.subr.mxu0 0.0
  %126 = vmatpush1.msra.mxu0 0.0
  %127 = vmatprep.subr.mxu0 0.0
  %128 = vmatpush1.msra.mxu0 0.0
  %129 = vmatprep.subr.mxu0 0.0
  %130 = vmatpush1.msra.mxu0 0.0
  %131 = vmatprep.subr.mxu0 0.0
  %132 = vmatpush1.msra.mxu0 0.0
  %133 = vmatprep.subr.mxu0 0.0
  %134 = vmatpush1.msra.mxu0 0.0
  %135 = vmatprep.subr.mxu0 0.0
  %136 = vmatpush1.msra.mxu0 0.0
  %137 = vmatprep.subr.mxu0 0.0
  %138 = vmatpush1.msra.mxu0 0.0
  %139 = vmatprep.subr.mxu0 0.0
  %140 = vmatpush1.msra.mxu0 0.0
  %141 = vmatprep.subr.mxu0 0.0
  %142 = vmatpush1.msra.mxu0 0.0
  %143 = vmatprep.subr.mxu0 0.0
  %144 = vmatpush1.msra.mxu0 0.0
  %145 = vmatprep.subr.mxu0 0.0
  %146 = vmatpush1.msra.mxu0 0.0
  %147 = vmatprep.subr.mxu0 0.0
  %148 = vmatpush1.msra.mxu0 0.0
  %149 = vmatprep.subr.mxu0 0.0
  %150 = vmatpush1.msra.mxu0 %v113
  %151 = vmatprep.subr.mxu0 0.0
  %152 = vmatpush1.msra.mxu0 %v112
  %153 = vmatprep.subr.mxu0 0.0
  %154 = vmatpush2.msra.mxu0 0.0
  %155 = vmatprep.subr.mxu0 0.0
  %156 = vmatpush2.msra.mxu0 0.0
  %157 = vmatprep.subr.mxu0 0.0
  %158 = vmatpush2.msra.mxu0 0.0
  %159 = vmatprep.subr.mxu0 0.0
  %160 = vmatpush2.msra.mxu0 0.0
  %161 = vmatprep.subr.mxu0 0.0
  %162 = vmatpush2.msra.mxu0 0.0
  %163 = vmatprep.subr.mxu0 0.0
  %164 = vmatpush2.msra.mxu0 0.0
  %165 = vmatprep.subr.mxu0 0.0
  %166 = vmatpush2.msra.mxu0 0.0
  %167 = vmatprep.subr.mxu0 0.0
  %168 = vmatpush2.msra.mxu0 0.0
  %169 = vmatprep.subr.mxu0 0.0
  %170 = vmatpush2.msra.mxu0 0.0
  %171 = vmatprep.subr.mxu0 0.0
  %172 = vmatpush2.msra.mxu0 0.0
  %173 = vmatprep.subr.mxu0 0.0
  %174 = vmatpush2.msra.mxu0 0.0
  %175 = vmatprep.subr.mxu0 0.0
  %176 = vmatpush2.msra.mxu0 0.0
  %177 = vmatprep.subr.mxu0 0.0
  %178 = vmatpush2.msra.mxu0 0.0
  %179 = vmatprep.subr.mxu0 0.0
  %180 = vmatpush2.msra.mxu0 0.0
  %181 = vmatprep.subr.mxu0 0.0
  %182 = vmatpush2.msra.mxu0 0.0
  %183 = vmatprep.subr.mxu0 0.0
  %184 = vmatpush2.msra.mxu0 0.0
  %185 = vmatprep.mubr.f32.mxu0 0.0
  %186 = vmatmul.mubr.f32.gmra.mxu0 %v116
  %v187 = vpop.f32.mrf.mxu0
  %v188 = vadd.f32 0.0, %v187
  %v189 = vpop.f32.mrf.mxu0
  %190 = vmatprep.mubr.f32.mxu0 0.0
  %191 = vmatmul.mubr.f32.gmra.mxu0 %v119
  %v192 = vpop.f32.mrf.mxu0
  %v193 = vadd.f32 0.0, %v192
  %v194 = vpop.f32.mrf.mxu0
  %195 = vdwg.mxu0
  %vm196 = vcmask 261120
  %197 = vst.msk [vmem:[%s3] sm:$0xff] %vm196, %v188
  %198 = vst.msk [vmem:[%s3 + $0x8] sm:$0xff] %vm196, %v193
  %v199 = vsub.f32 %v112, %v188
  %v200 = vsub.f32 %v113, %v193
  %201 = vst.msk [vmem:[%s2] sm:$0xff] %vm196, %v199
  %202 = vst.msk [vmem:[%s2 + $0x8] sm:$0xff] %vm196, %v200
  %s203 = scalar_lea.vmem %s0, 16
  %v204 = vld [vmem:[%s203] sm:$0xff]
  %v205 = vld [vmem:[%s203 + $0x8] sm:$0xff]
  %s206 = scalar_lea.vmem %s1, 16
  %v207 = vld [vmem:[%s206] sm:$0xff]
  %v208 = vld [vmem:[%s206 + $0x8] sm:$0xff]
  %v209 = vadd.f32 %v204, %v207
  %v210 = vadd.f32 %v205, %v208
  %211 = vmatprep.subr.mxu0 0.0
  %212 = vmatpush1.msra.mxu0 0.0
  %213 = vmatprep.subr.mxu0 0.0
  %214 = vmatpush1.msra.mxu0 0.0
  %215 = vmatprep.subr.mxu0 0.0
  %216 = vmatpush1.msra.mxu0 0.0
  %217 = vmatprep.subr.mxu0 0.0
  %218 = vmatpush1.msra.mxu0 0.0
  %219 = vmatprep.subr.mxu0 0.0
  %220 = vmatpush1.msra.mxu0 0.0
  %221 = vmatprep.subr.mxu0 0.0
  %222 = vmatpush1.msra.mxu0 0.0
  %223 = vmatprep.subr.mxu0 0.0
  %224 = vmatpush1.msra.mxu0 0.0
  %225 = vmatprep.subr.mxu0 0.0
  %226 = vmatpush1.msra.mxu0 0.0
  %227 = vmatprep.subr.mxu0 0.0
  %228 = vmatpush1.msra.mxu0 0.0
  %229 = vmatprep.subr.mxu0 0.0
  %230 = vmatpush1.msra.mxu0 0.0
  %231 = vmatprep.subr.mxu0 0.0
  %232 = vmatpush1.msra.mxu0 0.0
  %233 = vmatprep.subr.mxu0 0.0
  %234 = vmatpush1.msra.mxu0 0.0
  %235 = vmatprep.subr.mxu0 0.0
  %236 = vmatpush1.msra.mxu0 0.0
  %237 = vmatprep.subr.mxu0 0.0
  %238 = vmatpush1.msra.mxu0 0.0
  %239 = vmatprep.subr.mxu0 0.0
  %240 = vmatpush1.msra.mxu0 %v210
  %241 = vmatprep.subr.mxu0 0.0
  %242 = vmatpush1.msra.mxu0 %v209
  %243 = vmatprep.subr.mxu0 0.0
  %244 = vmatpush2.msra.mxu0 0.0
  %245 = vmatprep.subr.mxu0 0.0
  %246 = vmatpush2.msra.mxu0 0.0
  %247 = vmatprep.subr.mxu0 0.0
  %248 = vmatpush2.msra.mxu0 0.0
  %249 = vmatprep.subr.mxu0 0.0
  %250 = vmatpush2.msra.mxu0 0.0
  %251 = vmatprep.subr.mxu0 0.0
  %252 = vmatpush2.msra.mxu0 0.0
  %253 = vmatprep.subr.mxu0 0.0
  %254 = vmatpush2.msra.mxu0 0.0
  %255 = vmatprep.subr.mxu0 0.0
  %256 = vmatpush2.msra.mxu0 0.0
  %257 = vmatprep.subr.mxu0 0.0
  %258 = vmatpush2.msra.mxu0 0.0
  %259 = vmatprep.subr.mxu0 0.0
  %260 = vmatpush2.msra.mxu0 0.0
  %261 = vmatprep.subr.mxu0 0.0
  %262 = vmatpush2.msra.mxu0 0.0
  %263 = vmatprep.subr.mxu0 0.0
  %264 = vmatpush2.msra.mxu0 0.0
  %265 = vmatprep.subr.mxu0 0.0
  %266 = vmatpush2.msra.mxu0 0.0
  %267 = vmatprep.subr.mxu0 0.0
  %268 = vmatpush2.msra.mxu0 0.0
  %269 = vmatprep.subr.mxu0 0.0
  %270 = vmatpush2.msra.mxu0 0.0
  %271 = vmatprep.subr.mxu0 0.0
  %272 = vmatpush2.msra.mxu0 0.0
  %273 = vmatprep.subr.mxu0 0.0
  %274 = vmatpush2.msra.mxu0 0.0
  %275 = vmatprep.mubr.f32.mxu0 0.0
  %276 = vmatmul.mubr.f32.gmra.mxu0 %v116
  %v277 = vpop.f32.mrf.mxu0
  %v278 = vadd.f32 0.0, %v277
  %v279 = vpop.f32.mrf.mxu0
  %280 = vmatprep.mubr.f32.mxu0 0.0
  %281 = vmatmul.mubr.f32.gmra.mxu0 %v119
  %v282 = vpop.f32.mrf.mxu0
  %v283 = vadd.f32 0.0, %v282
  %v284 = vpop.f32.mrf.mxu0
  %285 = vdwg.mxu0
  %s286 = scalar_lea.vmem %s3, 16
  %287 = vst.msk [vmem:[%s286] sm:$0xff] %vm196, %v278
  %288 = vst.msk [vmem:[%s286 + $0x8] sm:$0xff] %vm196, %v283
  %v289 = vsub.f32 %v209, %v278
  %v290 = vsub.f32 %v210, %v283
  %s291 = scalar_lea.vmem %s2, 16
  %292 = vst.msk [vmem:[%s291] sm:$0xff] %vm196, %v289
  %293 = vst.msk [vmem:[%s291 + $0x8] sm:$0xff] %vm196, %v290
  // Predicated region
  $region10: #{_lambda_.23} parent=0 // pred_check
    _
  $region11: #{_lambda_.23} parent=0 // pred_check_branch
    %295 = sbr.rel (0) target = $region13
  $region12: #{_lambda_.23} parent=0 // pred_region
    _
  $region13: #{_lambda_.23} parent=0 // pred_fallthru
    _
  // Predicated region
  $region14: #{_lambda_.23} parent=0 // pred_check
    _
  $region15: #{_lambda_.23} parent=0 // pred_check_branch
    %297 = sbr.rel (0) target = $region17
  $region16: #{_lambda_.23} parent=0 // pred_region
    _
  $region17: #{_lambda_.23} parent=0 // pred_fallthru
    _
  // Predicated region
  $region18: #{_lambda_.23} parent=0 // pred_check
    _
  $region19: #{_lambda_.23} parent=0 // pred_check_branch
    %299 = sbr.rel (0) target = $region21
  $region20: #{_lambda_.23} parent=0 // pred_region
    _
  $region21: #{_lambda_.23} parent=0 // pred_fallthru
    _
  // Predicated region
  $region22: #{_lambda_.23} parent=0 // pred_check
    _
  $region23: #{_lambda_.23} parent=0 // pred_check_branch
    %301 = sbr.rel (0) target = $region25
  $region24: #{_lambda_.23} parent=0 // pred_region
    _
  $region25: #{_lambda_.23} parent=0 // pred_fallthru
    _

// kernel: reverse.11
$region0: #{reverse.11}
  %s0 = inlined_call_operand.vmem [shape: f32[2,8,4,7], index: 0, kind: input, shape index: {}]
  %s1 = inlined_call_operand.vmem [shape: f32[2,8,4,7], index: 1, kind: output, shape index: {}]
  %v2 = vlaneseq
  %v3 = vsub.s32 6, %v2
  %4 = vset.pattern.permute.xlu0 %v3
  $region1: #{reverse.11} parent=0
    #allocation0 [shape = 'u8[32768]{0}', space=vmem, size = 0x8000, scoped, tag = 'operand span for operand 0']
    #allocation1 [shape = 'u8[32768]{0}', space=vmem, size = 0x8000, scoped, tag = 'operand span for operand 1']
    // Predicated region
    $region2: #{reverse.11} parent=1 // pred_check
      _
    $region3: #{reverse.11} parent=1 // pred_check_branch
      %6 = sbr.rel (0) target = $region5
    $region4: #{reverse.11} parent=1 // pred_region
      // Predicated region
      $region6: #{reverse.11} parent=4 // pred_check
        _
      $region7: #{reverse.11} parent=4 // pred_check_branch
        %8 = sbr.rel (0) target = $region9
      $region8: #{reverse.11} parent=4 // pred_region
        // Predicated region
        $region21: #{reverse.11} parent=8 // pred_check
          _
        $region22: #{reverse.11} parent=8 // pred_check_branch
          %38 = sbr.rel (0) target = $region24
        $region23: #{reverse.11} parent=8 // pred_region
          loop: start=0, step=1, limit=1
          $region25: #{reverse.11} parent=23 // loop_pre_header
            _
          $region26: #{reverse.11} parent=23 // loop_header
            %s40 = sphi 0, %s44
            %p41 = scmp.ge.s32.totalorder %s40, 1
            %s45 = sphi %s0, %s0
            %s46 = sphi [#allocation0], [#allocation0]
          $region27: #{reverse.11} parent=23 // loop_header_branch
            %43 = sbr.rel (%p41) target = $region31
          $region28: #{reverse.11} parent=23 // loop_body
            %v47 = vld [vmem:[%s45] sm:$0xff]
            %48 = vst [vmem:[%s46] sm:$0xff] %v47
            %v49 = vld [vmem:[%s45 + $0x8] sm:$0xff]
            %50 = vst [vmem:[%s46 + $0x8] sm:$0xff] %v49
            %v51 = vld [vmem:[%s45 + $0x10] sm:$0xff]
            %52 = vst [vmem:[%s46 + $0x10] sm:$0xff] %v51
            %v53 = vld [vmem:[%s45 + $0x18] sm:$0xff]
            %54 = vst [vmem:[%s46 + $0x18] sm:$0xff] %v53
            %v55 = vld [vmem:[%s45 + $0x20] sm:$0xff]
            %56 = vst [vmem:[%s46 + $0x20] sm:$0xff] %v55
            %v57 = vld [vmem:[%s45 + $0x28] sm:$0xff]
            %58 = vst [vmem:[%s46 + $0x28] sm:$0xff] %v57
            %v59 = vld [vmem:[%s45 + $0x30] sm:$0xff]
            %60 = vst [vmem:[%s46 + $0x30] sm:$0xff] %v59
            %v61 = vld [vmem:[%s45 + $0x38] sm:$0xff]
            %62 = vst [vmem:[%s46 + $0x38] sm:$0xff] %v61
          $region29: #{reverse.11} parent=23 // loop_footer
            %s44 = sadd.s32 1, %s40
          $region30: #{reverse.11} parent=23 // loop_footer_branch
            %39 = sbr.rel target = $region26
          $region31: #{reverse.11} parent=23 // loop_exit
            _
        $region24: #{reverse.11} parent=8 // pred_fallthru
          _
        // Predicated region
        $region32: #{reverse.11} parent=8 // pred_check
          _
        $region33: #{reverse.11} parent=8 // pred_check_branch
          %64 = sbr.rel target = $region35
        $region34: #{reverse.11} parent=8 // pred_region
          _
        $region35: #{reverse.11} parent=8 // pred_fallthru
          _
      $region9: #{reverse.11} parent=4 // pred_fallthru
        _
      // Predicated region
      $region10: #{reverse.11} parent=4 // pred_check
        _
      $region11: #{reverse.11} parent=4 // pred_check_branch
        %10 = sbr.rel target = $region13
      $region12: #{reverse.11} parent=4 // pred_region
        %s12 = ssub.s32 256, 1
        loop: start=0, step=1, limit=1
        $region14: #{reverse.11} parent=12 // loop_pre_header
          _
        $region15: #{reverse.11} parent=12 // loop_header
          %s14 = sphi 0, %s18
          %p15 = scmp.ge.s32.totalorder %s14, 1
          %s19 = sphi %s0, %s0
          %s20 = sphi [#allocation0], [#allocation0]
        $region16: #{reverse.11} parent=12 // loop_header_branch
          %17 = sbr.rel (%p15) target = $region20
        $region17: #{reverse.11} parent=12 // loop_body
          %v21 = vld [vmem:[%s19] sm:%s12]
          %22 = vst [vmem:[%s20] sm:%s12] %v21
          %v23 = vld [vmem:[%s19 + $0x8] sm:%s12]
          %24 = vst [vmem:[%s20 + $0x8] sm:%s12] %v23
          %v25 = vld [vmem:[%s19 + $0x10] sm:%s12]
          %26 = vst [vmem:[%s20 + $0x10] sm:%s12] %v25
          %v27 = vld [vmem:[%s19 + $0x18] sm:%s12]
          %28 = vst [vmem:[%s20 + $0x18] sm:%s12] %v27
          %v29 = vld [vmem:[%s19 + $0x20] sm:%s12]
          %30 = vst [vmem:[%s20 + $0x20] sm:%s12] %v29
          %v31 = vld [vmem:[%s19 + $0x28] sm:%s12]
          %32 = vst [vmem:[%s20 + $0x28] sm:%s12] %v31
          %v33 = vld [vmem:[%s19 + $0x30] sm:%s12]
          %34 = vst [vmem:[%s20 + $0x30] sm:%s12] %v33
          %v35 = vld [vmem:[%s19 + $0x38] sm:%s12]
          %36 = vst [vmem:[%s20 + $0x38] sm:%s12] %v35
        $region18: #{reverse.11} parent=12 // loop_footer
          %s18 = sadd.s32 1, %s14
        $region19: #{reverse.11} parent=12 // loop_footer_branch
          %13 = sbr.rel target = $region15
        $region20: #{reverse.11} parent=12 // loop_exit
          _
      $region13: #{reverse.11} parent=4 // pred_fallthru
        _
    $region5: #{reverse.11} parent=1 // pred_fallthru
      _
    %65 = vnop
    %v66 = vld [vmem:[#allocation0] sm:$0xff]
    %67 = vperm.xlu0 %4, %v66
    %v68 = vpop.permute.xlu0 %67
    %69 = vst [vmem:[#allocation1] sm:$0xff] %v68
    %s70 = scalar_lea.vmem [#allocation1], 8
    %s71 = scalar_lea.vmem [#allocation0], 8
    %v72 = vld [vmem:[%s71] sm:$0xff]
    %73 = vperm.xlu0 %4, %v72
    %v74 = vpop.permute.xlu0 %73
    %75 = vst [vmem:[%s70] sm:$0xff] %v74
    %s76 = scalar_lea.vmem [#allocation1], 16
    %s77 = scalar_lea.vmem [#allocation0], 16
    %v78 = vld [vmem:[%s77] sm:$0xff]
    %79 = vperm.xlu0 %4, %v78
    %v80 = vpop.permute.xlu0 %79
    %81 = vst [vmem:[%s76] sm:$0xff] %v80
    %s82 = scalar_lea.vmem [#allocation1], 24
    %s83 = scalar_lea.vmem [#allocation0], 24
    %v84 = vld [vmem:[%s83] sm:$0xff]
    %85 = vperm.xlu0 %4, %v84
    %v86 = vpop.permute.xlu0 %85
    %87 = vst [vmem:[%s82] sm:$0xff] %v86
    %s88 = scalar_lea.vmem [#allocation1], 32
    %s89 = scalar_lea.vmem [#allocation0], 32
    %v90 = vld [vmem:[%s89] sm:$0xff]
    %91 = vperm.xlu0 %4, %v90
    %v92 = vpop.permute.xlu0 %91
    %93 = vst [vmem:[%s88] sm:$0xff] %v92
    %s94 = scalar_lea.vmem [#allocation1], 40
    %s95 = scalar_lea.vmem [#allocation0], 40
    %v96 = vld [vmem:[%s95] sm:$0xff]
    %97 = vperm.xlu0 %4, %v96
    %v98 = vpop.permute.xlu0 %97
    %99 = vst [vmem:[%s94] sm:$0xff] %v98
    %s100 = scalar_lea.vmem [#allocation1], 48
    %s101 = scalar_lea.vmem [#allocation0], 48
    %v102 = vld [vmem:[%s101] sm:$0xff]
    %103 = vperm.xlu0 %4, %v102
    %v104 = vpop.permute.xlu0 %103
    %105 = vst [vmem:[%s100] sm:$0xff] %v104
    %s106 = scalar_lea.vmem [#allocation1], 56
    %s107 = scalar_lea.vmem [#allocation0], 56
    %v108 = vld [vmem:[%s107] sm:$0xff]
    %109 = vperm.xlu0 %4, %v108
    %v110 = vpop.permute.xlu0 %109
    %111 = vst [vmem:[%s106] sm:$0xff] %v110
    // Predicated region
    $region36: #{reverse.11} parent=1 // pred_check
      _
    $region37: #{reverse.11} parent=1 // pred_check_branch
      %113 = sbr.rel (0) target = $region39
    $region38: #{reverse.11} parent=1 // pred_region
      // Predicated region
      $region40: #{reverse.11} parent=38 // pred_check
        _
      $region41: #{reverse.11} parent=38 // pred_check_branch
        %115 = sbr.rel (0) target = $region43
      $region42: #{reverse.11} parent=38 // pred_region
        // Predicated region
        $region55: #{reverse.11} parent=42 // pred_check
          _
        $region56: #{reverse.11} parent=42 // pred_check_branch
          %145 = sbr.rel (0) target = $region58
        $region57: #{reverse.11} parent=42 // pred_region
          loop: start=0, step=1, limit=1
          $region59: #{reverse.11} parent=57 // loop_pre_header
            _
          $region60: #{reverse.11} parent=57 // loop_header
            %s147 = sphi 0, %s151
            %p148 = scmp.ge.s32.totalorder %s147, 1
            %s152 = sphi [#allocation1], [#allocation1]
            %s153 = sphi %s1, %s1
          $region61: #{reverse.11} parent=57 // loop_header_branch
            %150 = sbr.rel (%p148) target = $region65
          $region62: #{reverse.11} parent=57 // loop_body
            %v154 = vld [vmem:[%s152] sm:$0xff]
            %155 = vst [vmem:[%s153] sm:$0xff] %v154
            %v156 = vld [vmem:[%s152 + $0x8] sm:$0xff]
            %157 = vst [vmem:[%s153 + $0x8] sm:$0xff] %v156
            %v158 = vld [vmem:[%s152 + $0x10] sm:$0xff]
            %159 = vst [vmem:[%s153 + $0x10] sm:$0xff] %v158
            %v160 = vld [vmem:[%s152 + $0x18] sm:$0xff]
            %161 = vst [vmem:[%s153 + $0x18] sm:$0xff] %v160
            %v162 = vld [vmem:[%s152 + $0x20] sm:$0xff]
            %163 = vst [vmem:[%s153 + $0x20] sm:$0xff] %v162
            %v164 = vld [vmem:[%s152 + $0x28] sm:$0xff]
            %165 = vst [vmem:[%s153 + $0x28] sm:$0xff] %v164
            %v166 = vld [vmem:[%s152 + $0x30] sm:$0xff]
            %167 = vst [vmem:[%s153 + $0x30] sm:$0xff] %v166
            %v168 = vld [vmem:[%s152 + $0x38] sm:$0xff]
            %169 = vst [vmem:[%s153 + $0x38] sm:$0xff] %v168
          $region63: #{reverse.11} parent=57 // loop_footer
            %s151 = sadd.s32 1, %s147
          $region64: #{reverse.11} parent=57 // loop_footer_branch
            %146 = sbr.rel target = $region60
          $region65: #{reverse.11} parent=57 // loop_exit
            _
        $region58: #{reverse.11} parent=42 // pred_fallthru
          _
        // Predicated region
        $region66: #{reverse.11} parent=42 // pred_check
          _
        $region67: #{reverse.11} parent=42 // pred_check_branch
          %171 = sbr.rel target = $region69
        $region68: #{reverse.11} parent=42 // pred_region
          _
        $region69: #{reverse.11} parent=42 // pred_fallthru
          _
      $region43: #{reverse.11} parent=38 // pred_fallthru
        _
      // Predicated region
      $region44: #{reverse.11} parent=38 // pred_check
        _
      $region45: #{reverse.11} parent=38 // pred_check_branch
        %117 = sbr.rel target = $region47
      $region46: #{reverse.11} parent=38 // pred_region
        %s119 = ssub.s32 256, 1
        loop: start=0, step=1, limit=1
        $region48: #{reverse.11} parent=46 // loop_pre_header
          _
        $region49: #{reverse.11} parent=46 // loop_header
          %s121 = sphi 0, %s125
          %p122 = scmp.ge.s32.totalorder %s121, 1
          %s126 = sphi [#allocation1], [#allocation1]
          %s127 = sphi %s1, %s1
        $region50: #{reverse.11} parent=46 // loop_header_branch
          %124 = sbr.rel (%p122) target = $region54
        $region51: #{reverse.11} parent=46 // loop_body
          %v128 = vld [vmem:[%s126] sm:%s119]
          %129 = vst [vmem:[%s127] sm:%s119] %v128
          %v130 = vld [vmem:[%s126 + $0x8] sm:%s119]
          %131 = vst [vmem:[%s127 + $0x8] sm:%s119] %v130
          %v132 = vld [vmem:[%s126 + $0x10] sm:%s119]
          %133 = vst [vmem:[%s127 + $0x10] sm:%s119] %v132
          %v134 = vld [vmem:[%s126 + $0x18] sm:%s119]
          %135 = vst [vmem:[%s127 + $0x18] sm:%s119] %v134
          %v136 = vld [vmem:[%s126 + $0x20] sm:%s119]
          %137 = vst [vmem:[%s127 + $0x20] sm:%s119] %v136
          %v138 = vld [vmem:[%s126 + $0x28] sm:%s119]
          %139 = vst [vmem:[%s127 + $0x28] sm:%s119] %v138
          %v140 = vld [vmem:[%s126 + $0x30] sm:%s119]
          %141 = vst [vmem:[%s127 + $0x30] sm:%s119] %v140
          %v142 = vld [vmem:[%s126 + $0x38] sm:%s119]
          %143 = vst [vmem:[%s127 + $0x38] sm:%s119] %v142
        $region52: #{reverse.11} parent=46 // loop_footer
          %s125 = sadd.s32 1, %s121
        $region53: #{reverse.11} parent=46 // loop_footer_branch
          %120 = sbr.rel target = $region49
        $region54: #{reverse.11} parent=46 // loop_exit
          _
      $region47: #{reverse.11} parent=38 // pred_fallthru
        _
    $region39: #{reverse.11} parent=1 // pred_fallthru
      _
    %172 = vnop

// kernel: _lambda_.34
$region0: #{_lambda_.34}
  #allocation0 [shape = 'u32[]', space=smem, size = 0x4, offset = 0x4, fixed_abs, tag = 'smem constant byte address 0x4 - core index']
  #allocation1 [shape = 'u32[144,128]{1,0:T(1,128)}', space=vmem, size = 0x12000, scoped, tag = 'internal scratch']
  %s0 = inlined_call_operand.vmem [shape: f32[2,16,32], index: 0, kind: input, shape index: {}]
  %s1 = inlined_call_operand.vmem [shape: f32[32,64], index: 1, kind: input, shape index: {}]
  %s2 = inlined_call_operand.vmem [shape: f32[64,32], index: 2, kind: input, shape index: {}]
  %s3 = inlined_call_operand.vmem [shape: f32[2,16,32], index: 3, kind: output, shape index: {0}]
  %s4 = inlined_call_operand.vmem [shape: f32[2,16,32], index: 4, kind: output, shape index: {1}]
  %5 = xla_tuple %s3, %s4
  %s6 = sld [smem:[#allocation0]]
  $region30: #{_lambda_.34} parent=0
    _
  %s8 = ssub.s32 1, %s6
  %s9 = scalar_select 0, %s8, %s6
  // Predicated region
  $region2: #{_lambda_.34} parent=0 // pred_check
    _
  $region3: #{_lambda_.34} parent=0 // pred_check_branch
    %11 = sbr.rel (0) target = $region5
  $region4: #{_lambda_.34} parent=0 // pred_region
    _
  $region5: #{_lambda_.34} parent=0 // pred_fallthru
    _
  // Predicated region
  $region6: #{_lambda_.34} parent=0 // pred_check
    _
  $region7: #{_lambda_.34} parent=0 // pred_check_branch
    %13 = sbr.rel (0) target = $region9
  $region8: #{_lambda_.34} parent=0 // pred_region
    _
  $region9: #{_lambda_.34} parent=0 // pred_fallthru
    _
  // Predicated region
  $region10: #{_lambda_.34} parent=0 // pred_check
    _
  $region11: #{_lambda_.34} parent=0 // pred_check_branch
    %15 = sbr.rel (0) target = $region13
  $region12: #{_lambda_.34} parent=0 // pred_region
    _
  $region13: #{_lambda_.34} parent=0 // pred_fallthru
    _
  %v16 = vlaneseq
  %v17 = vshrl.u32 %v16, 7
  %v18 = vadd.s32 %v17, 8
  %v19 = vlaneseq
  %v20 = vand.u32 %v19, 127
  %v21 = vadd.s32 %v17, 4294967294
  %v22 = vadd.s32 %v18, 4294967294
  %vm23 = vcmp.gt.s32.totalorder %v21, 0
  %v24 = vsel %vm23, %v21, 0
  %vm25 = vcmp.gt.s32.totalorder %v22, 0
  %v26 = vsel %vm25, %v22, 0
  %vm27 = vcmp.lt.s32.totalorder %v24, 15
  %v28 = vsel %vm27, %v24, 15
  %vm29 = vcmp.lt.s32.totalorder %v26, 15
  %v30 = vsel %vm29, %v26, 15
  %vm31 = vcmp.eq.s32.totalorder %v20, %v28
  %vm32 = vcmp.eq.s32.totalorder %v20, %v30
  %v33 = vsel %vm31, 1, 0
  %v34 = vsel %vm32, 1, 0
  %v35 = vcvt.s32.f32 %v33
  %v36 = vcvt.s32.f32 %v34
  %v37 = vadd.f32 %v35, 0.0
  %v38 = vadd.f32 %v36, 0.0
  %v39 = vadd.s32 %v17, 4294967295
  %v40 = vadd.s32 %v18, 4294967295
  %vm41 = vcmp.gt.s32.totalorder %v39, 0
  %v42 = vsel %vm41, %v39, 0
  %vm43 = vcmp.gt.s32.totalorder %v40, 0
  %v44 = vsel %vm43, %v40, 0
  %vm45 = vcmp.lt.s32.totalorder %v42, 15
  %v46 = vsel %vm45, %v42, 15
  %vm47 = vcmp.lt.s32.totalorder %v44, 15
  %v48 = vsel %vm47, %v44, 15
  %vm49 = vcmp.eq.s32.totalorder %v20, %v46
  %vm50 = vcmp.eq.s32.totalorder %v20, %v48
  %v51 = vsel %vm49, 1, 0
  %v52 = vsel %vm50, 1, 0
  %v53 = vcvt.s32.f32 %v51
  %v54 = vcvt.s32.f32 %v52
  %v55 = vadd.f32 %v37, %v53
  %v56 = vadd.f32 %v38, %v54
  %vm57 = vcmp.gt.s32.totalorder %v17, 0
  %v58 = vsel %vm57, %v17, 0
  %vm59 = vcmp.gt.s32.totalorder %v18, 0
  %v60 = vsel %vm59, %v18, 0
  %vm61 = vcmp.lt.s32.totalorder %v58, 15
  %v62 = vsel %vm61, %v58, 15
  %vm63 = vcmp.lt.s32.totalorder %v60, 15
  %v64 = vsel %vm63, %v60, 15
  %vm65 = vcmp.eq.s32.totalorder %v20, %v62
  %vm66 = vcmp.eq.s32.totalorder %v20, %v64
  %v67 = vsel %vm65, 1, 0
  %v68 = vsel %vm66, 1, 0
  %v69 = vcvt.s32.f32 %v67
  %v70 = vcvt.s32.f32 %v68
  %v71 = vadd.f32 %v55, %v69
  %v72 = vadd.f32 %v56, %v70
  %v73 = vadd.s32 %v17, 1
  %v74 = vadd.s32 %v18, 1
  %vm75 = vcmp.gt.s32.totalorder %v73, 0
  %v76 = vsel %vm75, %v73, 0
  %vm77 = vcmp.gt.s32.totalorder %v74, 0
  %v78 = vsel %vm77, %v74, 0
  %vm79 = vcmp.lt.s32.totalorder %v76, 15
  %v80 = vsel %vm79, %v76, 15
  %vm81 = vcmp.lt.s32.totalorder %v78, 15
  %v82 = vsel %vm81, %v78, 15
  %vm83 = vcmp.eq.s32.totalorder %v20, %v80
  %vm84 = vcmp.eq.s32.totalorder %v20, %v82
  %v85 = vsel %vm83, 1, 0
  %v86 = vsel %vm84, 1, 0
  %v87 = vcvt.s32.f32 %v85
  %v88 = vcvt.s32.f32 %v86
  %v89 = vadd.f32 %v71, %v87
  %v90 = vadd.f32 %v72, %v88
  %v91 = vadd.s32 %v17, 2
  %v92 = vadd.s32 %v18, 2
  %vm93 = vcmp.gt.s32.totalorder %v91, 0
  %v94 = vsel %vm93, %v91, 0
  %vm95 = vcmp.gt.s32.totalorder %v92, 0
  %v96 = vsel %vm95, %v92, 0
  %vm97 = vcmp.lt.s32.totalorder %v94, 15
  %v98 = vsel %vm97, %v94, 15
  %vm99 = vcmp.lt.s32.totalorder %v96, 15
  %v100 = vsel %vm99, %v96, 15
  %vm101 = vcmp.eq.s32.totalorder %v20, %v98
  %vm102 = vcmp.eq.s32.totalorder %v20, %v100
  %v103 = vsel %vm101, 1, 0
  %v104 = vsel %vm102, 1, 0
  %v105 = vcvt.s32.f32 %v103
  %v106 = vcvt.s32.f32 %v104
  %v107 = vadd.f32 %v89, %v105
  %v108 = vadd.f32 %v90, %v106
  %v109 = vmul.f32 %v107, 0.2
  %v110 = vmul.f32 %v108, 0.2
  %v111 = vld [vmem:[%s1] sm:$0xff]
  %v112 = vld [vmem:[%s1 + $0x8] sm:$0xff]
  %v113 = vld [vmem:[%s1 + $0x10] sm:$0xff]
  %v114 = vld [vmem:[%s1 + $0x18] sm:$0xff]
  %v115 = vld [vmem:[%s2] sm:$0xff]
  %v116 = vld [vmem:[%s2 + $0x8] sm:$0xff]
  %v117 = vld [vmem:[%s2 + $0x10] sm:$0xff]
  %v118 = vld [vmem:[%s2 + $0x18] sm:$0xff]
  %v119 = vld [vmem:[%s2 + $0x20] sm:$0xff]
  %v120 = vld [vmem:[%s2 + $0x28] sm:$0xff]
  %v121 = vld [vmem:[%s2 + $0x30] sm:$0xff]
  %v122 = vld [vmem:[%s2 + $0x38] sm:$0xff]
  %v123 = vld [vmem:[%s0] sm:$0xff]
  %v124 = vld [vmem:[%s0 + $0x8] sm:$0xff]
  %vm125 = vcmask 261120
  %v127 = vsel %vm125, %v123, 0
  %v130 = vsel %vm125, %v124, 0
  %132 = vmatprep.subr.mxu0 0.0
  %133 = vmatpush1.msra.mxu0 0.0
  %134 = vmatprep.subr.mxu0 0.0
  %135 = vmatpush1.msra.mxu0 0.0
  %136 = vmatprep.subr.mxu0 0.0
  %137 = vmatpush1.msra.mxu0 0.0
  %138 = vmatprep.subr.mxu0 0.0
  %139 = vmatpush1.msra.mxu0 0.0
  %140 = vmatprep.subr.mxu0 0.0
  %141 = vmatpush1.msra.mxu0 0.0
  %142 = vmatprep.subr.mxu0 0.0
  %143 = vmatpush1.msra.mxu0 0.0
  %144 = vmatprep.subr.mxu0 0.0
  %145 = vmatpush1.msra.mxu0 0.0
  %146 = vmatprep.subr.mxu0 0.0
  %147 = vmatpush1.msra.mxu0 0.0
  %148 = vmatprep.subr.mxu0 0.0
  %149 = vmatpush1.msra.mxu0 0.0
  %150 = vmatprep.subr.mxu0 0.0
  %151 = vmatpush1.msra.mxu0 0.0
  %152 = vmatprep.subr.mxu0 0.0
  %153 = vmatpush1.msra.mxu0 0.0
  %154 = vmatprep.subr.mxu0 0.0
  %155 = vmatpush1.msra.mxu0 0.0
  %156 = vmatprep.subr.mxu0 0.0
  %157 = vmatpush1.msra.mxu0 %v114
  %158 = vmatprep.subr.mxu0 0.0
  %159 = vmatpush1.msra.mxu0 %v113
  %160 = vmatprep.subr.mxu0 0.0
  %161 = vmatpush1.msra.mxu0 %v112
  %162 = vmatprep.subr.mxu0 0.0
  %163 = vmatpush1.msra.mxu0 %v111
  %164 = vmatprep.subr.mxu0 0.0
  %165 = vmatpush2.msra.mxu0 0.0
  %166 = vmatprep.subr.mxu0 0.0
  %167 = vmatpush2.msra.mxu0 0.0
  %168 = vmatprep.subr.mxu0 0.0
  %169 = vmatpush2.msra.mxu0 0.0
  %170 = vmatprep.subr.mxu0 0.0
  %171 = vmatpush2.msra.mxu0 0.0
  %172 = vmatprep.subr.mxu0 0.0
  %173 = vmatpush2.msra.mxu0 0.0
  %174 = vmatprep.subr.mxu0 0.0
  %175 = vmatpush2.msra.mxu0 0.0
  %176 = vmatprep.subr.mxu0 0.0
  %177 = vmatpush2.msra.mxu0 0.0
  %178 = vmatprep.subr.mxu0 0.0
  %179 = vmatpush2.msra.mxu0 0.0
  %180 = vmatprep.subr.mxu0 0.0
  %181 = vmatpush2.msra.mxu0 0.0
  %182 = vmatprep.subr.mxu0 0.0
  %183 = vmatpush2.msra.mxu0 0.0
  %184 = vmatprep.subr.mxu0 0.0
  %185 = vmatpush2.msra.mxu0 0.0
  %186 = vmatprep.subr.mxu0 0.0
  %187 = vmatpush2.msra.mxu0 0.0
  %188 = vmatprep.subr.mxu0 0.0
  %189 = vmatpush2.msra.mxu0 0.0
  %190 = vmatprep.subr.mxu0 0.0
  %191 = vmatpush2.msra.mxu0 0.0
  %192 = vmatprep.subr.mxu0 0.0
  %193 = vmatpush2.msra.mxu0 0.0
  %194 = vmatprep.subr.mxu0 0.0
  %195 = vmatpush2.msra.mxu0 0.0
  %196 = vmatprep.mubr.f32.mxu0 0.0
  %197 = vmatmul.mubr.f32.gmra.mxu0 %v127
  %v198 = vpop.f32.mrf.mxu0
  %v199 = vadd.f32 0.0, %v198
  %v200 = vpop.f32.mrf.mxu0
  %201 = vmatprep.mubr.f32.mxu0 0.0
  %202 = vmatmul.mubr.f32.gmra.mxu0 %v130
  %v203 = vpop.f32.mrf.mxu0
  %v204 = vadd.f32 0.0, %v203
  %v205 = vpop.f32.mrf.mxu0
  %206 = vdwg.mxu0
  %v207 = vmax.f32 %v199, 0.0
  %v208 = vmax.f32 %v204, 0.0
  %vm209 = vcmask 523264
  %v211 = vsel %vm209, %v207, 0
  %v214 = vsel %vm209, %v208, 0
  %216 = vmatprep.subr.mxu0 0.0
  %217 = vmatpush1.msra.mxu0 0.0
  %218 = vmatprep.subr.mxu0 0.0
  %219 = vmatpush1.msra.mxu0 0.0
  %220 = vmatprep.subr.mxu0 0.0
  %221 = vmatpush1.msra.mxu0 0.0
  %222 = vmatprep.subr.mxu0 0.0
  %223 = vmatpush1.msra.mxu0 0.0
  %224 = vmatprep.subr.mxu0 0.0
  %225 = vmatpush1.msra.mxu0 0.0
  %226 = vmatprep.subr.mxu0 0.0
  %227 = vmatpush1.msra.mxu0 0.0
  %228 = vmatprep.subr.mxu0 0.0
  %229 = vmatpush1.msra.mxu0 0.0
  %230 = vmatprep.subr.mxu0 0.0
  %231 = vmatpush1.msra.mxu0 0.0
  %232 = vmatprep.subr.mxu0 0.0
  %233 = vmatpush1.msra.mxu0 %v122
  %234 = vmatprep.subr.mxu0 0.0
  %235 = vmatpush1.msra.mxu0 %v121
  %236 = vmatprep.subr.mxu0 0.0
  %237 = vmatpush1.msra.mxu0 %v120
  %238 = vmatprep.subr.mxu0 0.0
  %239 = vmatpush1.msra.mxu0 %v119
  %240 = vmatprep.subr.mxu0 0.0
  %241 = vmatpush1.msra.mxu0 %v118
  %242 = vmatprep.subr.mxu0 0.0
  %243 = vmatpush1.msra.mxu0 %v117
  %244 = vmatprep.subr.mxu0 0.0
  %245 = vmatpush1.msra.mxu0 %v116
  %246 = vmatprep.subr.mxu0 0.0
  %247 = vmatpush1.msra.mxu0 %v115
  %248 = vmatprep.subr.mxu0 0.0
  %249 = vmatpush2.msra.mxu0 0.0
  %250 = vmatprep.subr.mxu0 0.0
  %251 = vmatpush2.msra.mxu0 0.0
  %252 = vmatprep.subr.mxu0 0.0
  %253 = vmatpush2.msra.mxu0 0.0
  %254 = vmatprep.subr.mxu0 0.0
  %255 = vmatpush2.msra.mxu0 0.0
  %256 = vmatprep.subr.mxu0 0.0
  %257 = vmatpush2.msra.mxu0 0.0
  %258 = vmatprep.subr.mxu0 0.0
  %259 = vmatpush2.msra.mxu0 0.0
  %260 = vmatprep.subr.mxu0 0.0
  %261 = vmatpush2.msra.mxu0 0.0
  %262 = vmatprep.subr.mxu0 0.0
  %263 = vmatpush2.msra.mxu0 0.0
  %264 = vmatprep.subr.mxu0 0.0
  %265 = vmatpush2.msra.mxu0 0.0
  %266 = vmatprep.subr.mxu0 0.0
  %267 = vmatpush2.msra.mxu0 0.0
  %268 = vmatprep.subr.mxu0 0.0
  %269 = vmatpush2.msra.mxu0 0.0
  %270 = vmatprep.subr.mxu0 0.0
  %271 = vmatpush2.msra.mxu0 0.0
  %272 = vmatprep.subr.mxu0 0.0
  %273 = vmatpush2.msra.mxu0 0.0
  %274 = vmatprep.subr.mxu0 0.0
  %275 = vmatpush2.msra.mxu0 0.0
  %276 = vmatprep.subr.mxu0 0.0
  %277 = vmatpush2.msra.mxu0 0.0
  %278 = vmatprep.subr.mxu0 0.0
  %279 = vmatpush2.msra.mxu0 0.0
  %280 = vmatprep.mubr.f32.mxu0 0.0
  %281 = vmatmul.mubr.f32.gmra.mxu0 %v211
  %v282 = vpop.f32.mrf.mxu0
  %v283 = vadd.f32 0.0, %v282
  %v284 = vpop.f32.mrf.mxu0
  %285 = vmatprep.mubr.f32.mxu0 0.0
  %286 = vmatmul.mubr.f32.gmra.mxu0 %v214
  %v287 = vpop.f32.mrf.mxu0
  %v288 = vadd.f32 0.0, %v287
  %v289 = vpop.f32.mrf.mxu0
  %290 = vdwg.mxu0
  %v291 = vadd.f32 %v123, %v283
  %v292 = vadd.f32 %v124, %v288
  %vm293 = vcmask 130048
  %v295 = vsel %vm293, %v109, 0
  %v298 = vsel %vm293, %v110, 0
  %300 = vmatprep.subr.mxu0 0.0
  %301 = vmatpush1.msra.mxu0 0.0
  %302 = vmatprep.subr.mxu0 0.0
  %303 = vmatpush1.msra.mxu0 0.0
  %304 = vmatprep.subr.mxu0 0.0
  %305 = vmatpush1.msra.mxu0 0.0
  %306 = vmatprep.subr.mxu0 0.0
  %307 = vmatpush1.msra.mxu0 0.0
  %308 = vmatprep.subr.mxu0 0.0
  %309 = vmatpush1.msra.mxu0 0.0
  %310 = vmatprep.subr.mxu0 0.0
  %311 = vmatpush1.msra.mxu0 0.0
  %312 = vmatprep.subr.mxu0 0.0
  %313 = vmatpush1.msra.mxu0 0.0
  %314 = vmatprep.subr.mxu0 0.0
  %315 = vmatpush1.msra.mxu0 0.0
  %316 = vmatprep.subr.mxu0 0.0
  %317 = vmatpush1.msra.mxu0 0.0
  %318 = vmatprep.subr.mxu0 0.0
  %319 = vmatpush1.msra.mxu0 0.0
  %320 = vmatprep.subr.mxu0 0.0
  %321 = vmatpush1.msra.mxu0 0.0
  %322 = vmatprep.subr.mxu0 0.0
  %323 = vmatpush1.msra.mxu0 0.0
  %324 = vmatprep.subr.mxu0 0.0
  %325 = vmatpush1.msra.mxu0 0.0
  %326 = vmatprep.subr.mxu0 0.0
  %327 = vmatpush1.msra.mxu0 0.0
  %328 = vmatprep.subr.mxu0 0.0
  %329 = vmatpush1.msra.mxu0 %v292
  %330 = vmatprep.subr.mxu0 0.0
  %331 = vmatpush1.msra.mxu0 %v291
  %332 = vmatprep.subr.mxu0 0.0
  %333 = vmatpush2.msra.mxu0 0.0
  %334 = vmatprep.subr.mxu0 0.0
  %335 = vmatpush2.msra.mxu0 0.0
  %336 = vmatprep.subr.mxu0 0.0
  %337 = vmatpush2.msra.mxu0 0.0
  %338 = vmatprep.subr.mxu0 0.0
  %339 = vmatpush2.msra.mxu0 0.0
  %340 = vmatprep.subr.mxu0 0.0
  %341 = vmatpush2.msra.mxu0 0.0
  %342 = vmatprep.subr.mxu0 0.0
  %343 = vmatpush2.msra.mxu0 0.0
  %344 = vmatprep.subr.mxu0 0.0
  %345 = vmatpush2.msra.mxu0 0.0
  %346 = vmatprep.subr.mxu0 0.0
  %347 = vmatpush2.msra.mxu0 0.0
  %348 = vmatprep.subr.mxu0 0.0
  %349 = vmatpush2.msra.mxu0 0.0
  %350 = vmatprep.subr.mxu0 0.0
  %351 = vmatpush2.msra.mxu0 0.0
  %352 = vmatprep.subr.mxu0 0.0
  %353 = vmatpush2.msra.mxu0 0.0
  %354 = vmatprep.subr.mxu0 0.0
  %355 = vmatpush2.msra.mxu0 0.0
  %356 = vmatprep.subr.mxu0 0.0
  %357 = vmatpush2.msra.mxu0 0.0
  %358 = vmatprep.subr.mxu0 0.0
  %359 = vmatpush2.msra.mxu0 0.0
  %360 = vmatprep.subr.mxu0 0.0
  %361 = vmatpush2.msra.mxu0 0.0
  %362 = vmatprep.subr.mxu0 0.0
  %363 = vmatpush2.msra.mxu0 0.0
  %364 = vmatprep.mubr.f32.mxu0 0.0
  %365 = vmatmul.mubr.f32.gmra.mxu0 %v295
  %v366 = vpop.f32.mrf.mxu0
  %v367 = vadd.f32 0.0, %v366
  %v368 = vpop.f32.mrf.mxu0
  %369 = vmatprep.mubr.f32.mxu0 0.0
  %370 = vmatmul.mubr.f32.gmra.mxu0 %v298
  %v371 = vpop.f32.mrf.mxu0
  %v372 = vadd.f32 0.0, %v371
  %v373 = vpop.f32.mrf.mxu0
  %374 = vdwg.mxu0
  %375 = vst.msk [vmem:[%s4] sm:$0xff] %vm125, %v367
  %376 = vst.msk [vmem:[%s4 + $0x8] sm:$0xff] %vm125, %v372
  %v377 = vsub.f32 %v291, %v367
  %v378 = vsub.f32 %v292, %v372
  %379 = vst.msk [vmem:[%s3] sm:$0xff] %vm125, %v377
  %380 = vst.msk [vmem:[%s3 + $0x8] sm:$0xff] %vm125, %v378
  %s381 = scalar_lea.vmem %s0, 16
  %v382 = vld [vmem:[%s381] sm:$0xff]
  %v383 = vld [vmem:[%s381 + $0x8] sm:$0xff]
  %v385 = vsel %vm125, %v382, 0
  %v388 = vsel %vm125, %v383, 0
  %390 = vmatprep.subr.mxu0 0.0
  %391 = vmatpush1.msra.mxu0 0.0
  %392 = vmatprep.subr.mxu0 0.0
  %393 = vmatpush1.msra.mxu0 0.0
  %394 = vmatprep.subr.mxu0 0.0
  %395 = vmatpush1.msra.mxu0 0.0
  %396 = vmatprep.subr.mxu0 0.0
  %397 = vmatpush1.msra.mxu0 0.0
  %398 = vmatprep.subr.mxu0 0.0
  %399 = vmatpush1.msra.mxu0 0.0
  %400 = vmatprep.subr.mxu0 0.0
  %401 = vmatpush1.msra.mxu0 0.0
  %402 = vmatprep.subr.mxu0 0.0
  %403 = vmatpush1.msra.mxu0 0.0
  %404 = vmatprep.subr.mxu0 0.0
  %405 = vmatpush1.msra.mxu0 0.0
  %406 = vmatprep.subr.mxu0 0.0
  %407 = vmatpush1.msra.mxu0 0.0
  %408 = vmatprep.subr.mxu0 0.0
  %409 = vmatpush1.msra.mxu0 0.0
  %410 = vmatprep.subr.mxu0 0.0
  %411 = vmatpush1.msra.mxu0 0.0
  %412 = vmatprep.subr.mxu0 0.0
  %413 = vmatpush1.msra.mxu0 0.0
  %414 = vmatprep.subr.mxu0 0.0
  %415 = vmatpush1.msra.mxu0 %v114
  %416 = vmatprep.subr.mxu0 0.0
  %417 = vmatpush1.msra.mxu0 %v113
  %418 = vmatprep.subr.mxu0 0.0
  %419 = vmatpush1.msra.mxu0 %v112
  %420 = vmatprep.subr.mxu0 0.0
  %421 = vmatpush1.msra.mxu0 %v111
  %422 = vmatprep.subr.mxu0 0.0
  %423 = vmatpush2.msra.mxu0 0.0
  %424 = vmatprep.subr.mxu0 0.0
  %425 = vmatpush2.msra.mxu0 0.0
  %426 = vmatprep.subr.mxu0 0.0
  %427 = vmatpush2.msra.mxu0 0.0
  %428 = vmatprep.subr.mxu0 0.0
  %429 = vmatpush2.msra.mxu0 0.0
  %430 = vmatprep.subr.mxu0 0.0
  %431 = vmatpush2.msra.mxu0 0.0
  %432 = vmatprep.subr.mxu0 0.0
  %433 = vmatpush2.msra.mxu0 0.0
  %434 = vmatprep.subr.mxu0 0.0
  %435 = vmatpush2.msra.mxu0 0.0
  %436 = vmatprep.subr.mxu0 0.0
  %437 = vmatpush2.msra.mxu0 0.0
  %438 = vmatprep.subr.mxu0 0.0
  %439 = vmatpush2.msra.mxu0 0.0
  %440 = vmatprep.subr.mxu0 0.0
  %441 = vmatpush2.msra.mxu0 0.0
  %442 = vmatprep.subr.mxu0 0.0
  %443 = vmatpush2.msra.mxu0 0.0
  %444 = vmatprep.subr.mxu0 0.0
  %445 = vmatpush2.msra.mxu0 0.0
  %446 = vmatprep.subr.mxu0 0.0
  %447 = vmatpush2.msra.mxu0 0.0
  %448 = vmatprep.subr.mxu0 0.0
  %449 = vmatpush2.msra.mxu0 0.0
  %450 = vmatprep.subr.mxu0 0.0
  %451 = vmatpush2.msra.mxu0 0.0
  %452 = vmatprep.subr.mxu0 0.0
  %453 = vmatpush2.msra.mxu0 0.0
  %454 = vmatprep.mubr.f32.mxu0 0.0
  %455 = vmatmul.mubr.f32.gmra.mxu0 %v385
  %v456 = vpop.f32.mrf.mxu0
  %v457 = vadd.f32 0.0, %v456
  %v458 = vpop.f32.mrf.mxu0
  %459 = vmatprep.mubr.f32.mxu0 0.0
  %460 = vmatmul.mubr.f32.gmra.mxu0 %v388
  %v461 = vpop.f32.mrf.mxu0
  %v462 = vadd.f32 0.0, %v461
  %v463 = vpop.f32.mrf.mxu0
  %464 = vdwg.mxu0
  %v465 = vmax.f32 %v457, 0.0
  %v466 = vmax.f32 %v462, 0.0
  %v468 = vsel %vm209, %v465, 0
  %v471 = vsel %vm209, %v466, 0
  %473 = vmatprep.subr.mxu0 0.0
  %474 = vmatpush1.msra.mxu0 0.0
  %475 = vmatprep.subr.mxu0 0.0
  %476 = vmatpush1.msra.mxu0 0.0
  %477 = vmatprep.subr.mxu0 0.0
  %478 = vmatpush1.msra.mxu0 0.0
  %479 = vmatprep.subr.mxu0 0.0
  %480 = vmatpush1.msra.mxu0 0.0
  %481 = vmatprep.subr.mxu0 0.0
  %482 = vmatpush1.msra.mxu0 0.0
  %483 = vmatprep.subr.mxu0 0.0
  %484 = vmatpush1.msra.mxu0 0.0
  %485 = vmatprep.subr.mxu0 0.0
  %486 = vmatpush1.msra.mxu0 0.0
  %487 = vmatprep.subr.mxu0 0.0
  %488 = vmatpush1.msra.mxu0 0.0
  %489 = vmatprep.subr.mxu0 0.0
  %490 = vmatpush1.msra.mxu0 %v122
  %491 = vmatprep.subr.mxu0 0.0
  %492 = vmatpush1.msra.mxu0 %v121
  %493 = vmatprep.subr.mxu0 0.0
  %494 = vmatpush1.msra.mxu0 %v120
  %495 = vmatprep.subr.mxu0 0.0
  %496 = vmatpush1.msra.mxu0 %v119
  %497 = vmatprep.subr.mxu0 0.0
  %498 = vmatpush1.msra.mxu0 %v118
  %499 = vmatprep.subr.mxu0 0.0
  %500 = vmatpush1.msra.mxu0 %v117
  %501 = vmatprep.subr.mxu0 0.0
  %502 = vmatpush1.msra.mxu0 %v116
  %503 = vmatprep.subr.mxu0 0.0
  %504 = vmatpush1.msra.mxu0 %v115
  %505 = vmatprep.subr.mxu0 0.0
  %506 = vmatpush2.msra.mxu0 0.0
  %507 = vmatprep.subr.mxu0 0.0
  %508 = vmatpush2.msra.mxu0 0.0
  %509 = vmatprep.subr.mxu0 0.0
  %510 = vmatpush2.msra.mxu0 0.0
  %511 = vmatprep.subr.mxu0 0.0
  %512 = vmatpush2.msra.mxu0 0.0
  %513 = vmatprep.subr.mxu0 0.0
  %514 = vmatpush2.msra.mxu0 0.0
  %515 = vmatprep.subr.mxu0 0.0
  %516 = vmatpush2.msra.mxu0 0.0
  %517 = vmatprep.subr.mxu0 0.0
  %518 = vmatpush2.msra.mxu0 0.0
  %519 = vmatprep.subr.mxu0 0.0
  %520 = vmatpush2.msra.mxu0 0.0
  %521 = vmatprep.subr.mxu0 0.0
  %522 = vmatpush2.msra.mxu0 0.0
  %523 = vmatprep.subr.mxu0 0.0
  %524 = vmatpush2.msra.mxu0 0.0
  %525 = vmatprep.subr.mxu0 0.0
  %526 = vmatpush2.msra.mxu0 0.0
  %527 = vmatprep.subr.mxu0 0.0
  %528 = vmatpush2.msra.mxu0 0.0
  %529 = vmatprep.subr.mxu0 0.0
  %530 = vmatpush2.msra.mxu0 0.0
  %531 = vmatprep.subr.mxu0 0.0
  %532 = vmatpush2.msra.mxu0 0.0
  %533 = vmatprep.subr.mxu0 0.0
  %534 = vmatpush2.msra.mxu0 0.0
  %535 = vmatprep.subr.mxu0 0.0
  %536 = vmatpush2.msra.mxu0 0.0
  %537 = vmatprep.mubr.f32.mxu0 0.0
  %538 = vmatmul.mubr.f32.gmra.mxu0 %v468
  %v539 = vpop.f32.mrf.mxu0
  %v540 = vadd.f32 0.0, %v539
  %v541 = vpop.f32.mrf.mxu0
  %542 = vmatprep.mubr.f32.mxu0 0.0
  %543 = vmatmul.mubr.f32.gmra.mxu0 %v471
  %v544 = vpop.f32.mrf.mxu0
  %v545 = vadd.f32 0.0, %v544
  %v546 = vpop.f32.mrf.mxu0
  %547 = vdwg.mxu0
  %v548 = vadd.f32 %v382, %v540
  %v549 = vadd.f32 %v383, %v545
  %550 = vmatprep.subr.mxu0 0.0
  %551 = vmatpush1.msra.mxu0 0.0
  %552 = vmatprep.subr.mxu0 0.0
  %553 = vmatpush1.msra.mxu0 0.0
  %554 = vmatprep.subr.mxu0 0.0
  %555 = vmatpush1.msra.mxu0 0.0
  %556 = vmatprep.subr.mxu0 0.0
  %557 = vmatpush1.msra.mxu0 0.0
  %558 = vmatprep.subr.mxu0 0.0
  %559 = vmatpush1.msra.mxu0 0.0
  %560 = vmatprep.subr.mxu0 0.0
  %561 = vmatpush1.msra.mxu0 0.0
  %562 = vmatprep.subr.mxu0 0.0
  %563 = vmatpush1.msra.mxu0 0.0
  %564 = vmatprep.subr.mxu0 0.0
  %565 = vmatpush1.msra.mxu0 0.0
  %566 = vmatprep.subr.mxu0 0.0
  %567 = vmatpush1.msra.mxu0 0.0
  %568 = vmatprep.subr.mxu0 0.0
  %569 = vmatpush1.msra.mxu0 0.0
  %570 = vmatprep.subr.mxu0 0.0
  %571 = vmatpush1.msra.mxu0 0.0
  %572 = vmatprep.subr.mxu0 0.0
  %573 = vmatpush1.msra.mxu0 0.0
  %574 = vmatprep.subr.mxu0 0.0
  %575 = vmatpush1.msra.mxu0 0.0
  %576 = vmatprep.subr.mxu0 0.0
  %577 = vmatpush1.msra.mxu0 0.0
  %578 = vmatprep.subr.mxu0 0.0
  %579 = vmatpush1.msra.mxu0 %v549
  %580 = vmatprep.subr.mxu0 0.0
  %581 = vmatpush1.msra.mxu0 %v548
  %582 = vmatprep.subr.mxu0 0.0
  %583 = vmatpush2.msra.mxu0 0.0
  %584 = vmatprep.subr.mxu0 0.0
  %585 = vmatpush2.msra.mxu0 0.0
  %586 = vmatprep.subr.mxu0 0.0
  %587 = vmatpush2.msra.mxu0 0.0
  %588 = vmatprep.subr.mxu0 0.0
  %589 = vmatpush2.msra.mxu0 0.0
  %590 = vmatprep.subr.mxu0 0.0
  %591 = vmatpush2.msra.mxu0 0.0
  %592 = vmatprep.subr.mxu0 0.0
  %593 = vmatpush2.msra.mxu0 0.0
  %594 = vmatprep.subr.mxu0 0.0
  %595 = vmatpush2.msra.mxu0 0.0
  %596 = vmatprep.subr.mxu0 0.0
  %597 = vmatpush2.msra.mxu0 0.0
  %598 = vmatprep.subr.mxu0 0.0
  %599 = vmatpush2.msra.mxu0 0.0
  %600 = vmatprep.subr.mxu0 0.0
  %601 = vmatpush2.msra.mxu0 0.0
  %602 = vmatprep.subr.mxu0 0.0
  %603 = vmatpush2.msra.mxu0 0.0
  %604 = vmatprep.subr.mxu0 0.0
  %605 = vmatpush2.msra.mxu0 0.0
  %606 = vmatprep.subr.mxu0 0.0
  %607 = vmatpush2.msra.mxu0 0.0
  %608 = vmatprep.subr.mxu0 0.0
  %609 = vmatpush2.msra.mxu0 0.0
  %610 = vmatprep.subr.mxu0 0.0
  %611 = vmatpush2.msra.mxu0 0.0
  %612 = vmatprep.subr.mxu0 0.0
  %613 = vmatpush2.msra.mxu0 0.0
  %614 = vmatprep.mubr.f32.mxu0 0.0
  %615 = vmatmul.mubr.f32.gmra.mxu0 %v295
  %v616 = vpop.f32.mrf.mxu0
  %v617 = vadd.f32 0.0, %v616
  %v618 = vpop.f32.mrf.mxu0
  %619 = vmatprep.mubr.f32.mxu0 0.0
  %620 = vmatmul.mubr.f32.gmra.mxu0 %v298
  %v621 = vpop.f32.mrf.mxu0
  %v622 = vadd.f32 0.0, %v621
  %v623 = vpop.f32.mrf.mxu0
  %624 = vdwg.mxu0
  %s625 = scalar_lea.vmem %s4, 16
  %626 = vst.msk [vmem:[%s625] sm:$0xff] %vm125, %v617
  %627 = vst.msk [vmem:[%s625 + $0x8] sm:$0xff] %vm125, %v622
  %v628 = vsub.f32 %v548, %v617
  %v629 = vsub.f32 %v549, %v622
  %s630 = scalar_lea.vmem %s3, 16
  %631 = vst.msk [vmem:[%s630] sm:$0xff] %vm125, %v628
  %632 = vst.msk [vmem:[%s630 + $0x8] sm:$0xff] %vm125, %v629
  // Predicated region
  $region14: #{_lambda_.34} parent=0 // pred_check
    _
  $region15: #{_lambda_.34} parent=0 // pred_check_branch
    %634 = sbr.rel (0) target = $region17
  $region16: #{_lambda_.34} parent=0 // pred_region
    _
  $region17: #{_lambda_.34} parent=0 // pred_fallthru
    _
  // Predicated region
  $region18: #{_lambda_.34} parent=0 // pred_check
    _
  $region19: #{_lambda_.34} parent=0 // pred_check_branch
    %636 = sbr.rel (0) target = $region21
  $region20: #{_lambda_.34} parent=0 // pred_region
    _
  $region21: #{_lambda_.34} parent=0 // pred_fallthru
    _
  // Predicated region
  $region22: #{_lambda_.34} parent=0 // pred_check
    _
  $region23: #{_lambda_.34} parent=0 // pred_check_branch
    %638 = sbr.rel (0) target = $region25
  $region24: #{_lambda_.34} parent=0 // pred_region
    _
  $region25: #{_lambda_.34} parent=0 // pred_fallthru
    _
  // Predicated region
  $region26: #{_lambda_.34} parent=0 // pred_check
    _
  $region27: #{_lambda_.34} parent=0 // pred_check_branch
    %640 = sbr.rel (0) target = $region29
  $region28: #{_lambda_.34} parent=0 // pred_region
    _
  $region29: #{_lambda_.34} parent=0 // pred_fallthru
    _

// kernel: _lambda_.35
$region0: #{_lambda_.35}
  #allocation0 [shape = 'u32[]', space=smem, size = 0x4, offset = 0x4, fixed_abs, tag = 'smem constant byte address 0x4 - core index']
  #allocation1 [shape = 'u32[144,128]{1,0:T(1,128)}', space=vmem, size = 0x12000, scoped, tag = 'internal scratch']
  %s0 = inlined_call_operand.vmem [shape: f32[2,16,32], index: 0, kind: input, shape index: {}]
  %s1 = inlined_call_operand.vmem [shape: f32[3,32,4], index: 1, kind: input, shape index: {}]
  %s2 = inlined_call_operand.vmem [shape: f32[2,16,4], index: 2, kind: output, shape index: {}]
  %s3 = sld [smem:[#allocation0]]
  $region18: #{_lambda_.35} parent=0
    _
  %s5 = ssub.s32 1, %s3
  %s6 = scalar_select 0, %s5, %s3
  // Predicated region
  $region2: #{_lambda_.35} parent=0 // pred_check
    _
  $region3: #{_lambda_.35} parent=0 // pred_check_branch
    %8 = sbr.rel (0) target = $region5
  $region4: #{_lambda_.35} parent=0 // pred_region
    _
  $region5: #{_lambda_.35} parent=0 // pred_fallthru
    _
  // Predicated region
  $region6: #{_lambda_.35} parent=0 // pred_check
    _
  $region7: #{_lambda_.35} parent=0 // pred_check_branch
    %10 = sbr.rel (0) target = $region9
  $region8: #{_lambda_.35} parent=0 // pred_region
    _
  $region9: #{_lambda_.35} parent=0 // pred_fallthru
    _
  %v11 = vlaneseq
  %v12 = vshrl.u32 %v11, 7
  %v13 = vadd.s32 %v12, 8
  %v14 = vlaneseq
  %v15 = vand.u32 %v14, 127
  %v16 = vadd.s32 %v12, 15
  %v17 = vadd.s32 %v13, 15
  %vm18 = vcmp.lt.s32.totalorder %v16, 0
  %v19 = vsub.s32 0, %v16
  %v20 = vsel %vm18, %v19, %v16
  %v21 = vshrl.u32 %v20, 4
  %v22 = vand.u32 %v20, 15
  %v23 = vsub.s32 0, %v22
  %v24 = vsel %vm18, %v23, %v22
  %vm25 = vcmp.lt.s32.totalorder %v17, 0
  %v26 = vsub.s32 0, %v17
  %v27 = vsel %vm25, %v26, %v17
  %v28 = vshrl.u32 %v27, 4
  %v29 = vand.u32 %v27, 15
  %v30 = vsub.s32 0, %v29
  %v31 = vsel %vm25, %v30, %v29
  %vm32 = vcmp.ne.s32.totalorder %v24, 0
  %vm33 = vcmp.ne.s32.totalorder %v31, 0
  %vm34 = vcmp.lt.s32.totalorder %v24, 0
  %vm35 = vcmp.lt.s32.totalorder %v31, 0
  %vm36 = vmand %vm34, %vm32
  %vm37 = vmand %vm35, %vm33
  %v38 = vadd.s32 %v24, 16
  %v39 = vadd.s32 %v31, 16
  %v40 = vsel %vm36, %v38, %v24
  %v41 = vsel %vm37, %v39, %v31
  %vm42 = vcmp.eq.s32.totalorder %v15, %v40
  %vm43 = vcmp.eq.s32.totalorder %v15, %v41
  %v44 = vsel %vm42, 1, 0
  %v45 = vsel %vm43, 1, 0
  %v46 = vcvt.s32.f32 %v44
  %v47 = vcvt.s32.f32 %v45
  %v48 = vadd.s32 %v12, 17
  %v49 = vadd.s32 %v13, 17
  %vm50 = vcmp.lt.s32.totalorder %v48, 0
  %v51 = vsub.s32 0, %v48
  %v52 = vsel %vm50, %v51, %v48
  %v53 = vshrl.u32 %v52, 4
  %v54 = vand.u32 %v52, 15
  %v55 = vsub.s32 0, %v54
  %v56 = vsel %vm50, %v55, %v54
  %vm57 = vcmp.lt.s32.totalorder %v49, 0
  %v58 = vsub.s32 0, %v49
  %v59 = vsel %vm57, %v58, %v49
  %v60 = vshrl.u32 %v59, 4
  %v61 = vand.u32 %v59, 15
  %v62 = vsub.s32 0, %v61
  %v63 = vsel %vm57, %v62, %v61
  %vm64 = vcmp.ne.s32.totalorder %v56, 0
  %vm65 = vcmp.ne.s32.totalorder %v63, 0
  %vm66 = vcmp.lt.s32.totalorder %v56, 0
  %vm67 = vcmp.lt.s32.totalorder %v63, 0
  %vm68 = vmand %vm66, %vm64
  %vm69 = vmand %vm67, %vm65
  %v70 = vadd.s32 %v56, 16
  %v71 = vadd.s32 %v63, 16
  %v72 = vsel %vm68, %v70, %v56
  %v73 = vsel %vm69, %v71, %v63
  %vm74 = vcmp.eq.s32.totalorder %v15, %v72
  %vm75 = vcmp.eq.s32.totalorder %v15, %v73
  %v76 = vsel %vm74, 1, 0
  %v77 = vsel %vm75, 1, 0
  %v78 = vcvt.s32.f32 %v76
  %v79 = vcvt.s32.f32 %v77
  %v80 = vld [vmem:[%s1] sm:$0xff]
  %v81 = vld [vmem:[%s1 + $0x8] sm:$0xff]
  %v82 = vld [vmem:[%s1 + $0x10] sm:$0xff]
  %v83 = vld [vmem:[%s1 + $0x18] sm:$0xff]
  %s84 = scalar_lea.vmem %s1, 32
  %v85 = vld [vmem:[%s84] sm:$0xff]
  %v86 = vld [vmem:[%s84 + $0x8] sm:$0xff]
  %v87 = vld [vmem:[%s84 + $0x10] sm:$0xff]
  %v88 = vld [vmem:[%s84 + $0x18] sm:$0xff]
  %s89 = scalar_lea.vmem %s1, 64
  %v90 = vld [vmem:[%s89] sm:$0xff]
  %v91 = vld [vmem:[%s89 + $0x8] sm:$0xff]
  %v92 = vld [vmem:[%s89 + $0x10] sm:$0xff]
  %v93 = vld [vmem:[%s89 + $0x18] sm:$0xff]
  %v94 = vld [vmem:[%s0] sm:$0xff]
  %v95 = vld [vmem:[%s0 + $0x8] sm:$0xff]
  %vm96 = vcmask 130048
  %v98 = vsel %vm96, %v46, 0
  %v101 = vsel %vm96, %v47, 0
  %103 = vmatprep.subr.mxu0 0.0
  %104 = vmatpush1.msra.mxu0 0.0
  %105 = vmatprep.subr.mxu0 0.0
  %106 = vmatpush1.msra.mxu0 0.0
  %107 = vmatprep.subr.mxu0 0.0
  %108 = vmatpush1.msra.mxu0 0.0
  %109 = vmatprep.subr.mxu0 0.0
  %110 = vmatpush1.msra.mxu0 0.0
  %111 = vmatprep.subr.mxu0 0.0
  %112 = vmatpush1.msra.mxu0 0.0
  %113 = vmatprep.subr.mxu0 0.0
  %114 = vmatpush1.msra.mxu0 0.0
  %115 = vmatprep.subr.mxu0 0.0
  %116 = vmatpush1.msra.mxu0 0.0
  %117 = vmatprep.subr.mxu0 0.0
  %118 = vmatpush1.msra.mxu0 0.0
  %119 = vmatprep.subr.mxu0 0.0
  %120 = vmatpush1.msra.mxu0 0.0
  %121 = vmatprep.subr.mxu0 0.0
  %122 = vmatpush1.msra.mxu0 0.0
  %123 = vmatprep.subr.mxu0 0.0
  %124 = vmatpush1.msra.mxu0 0.0
  %125 = vmatprep.subr.mxu0 0.0
  %126 = vmatpush1.msra.mxu0 0.0
  %127 = vmatprep.subr.mxu0 0.0
  %128 = vmatpush1.msra.mxu0 0.0
  %129 = vmatprep.subr.mxu0 0.0
  %130 = vmatpush1.msra.mxu0 0.0
  %131 = vmatprep.subr.mxu0 0.0
  %132 = vmatpush1.msra.mxu0 %v95
  %133 = vmatprep.subr.mxu0 0.0
  %134 = vmatpush1.msra.mxu0 %v94
  %135 = vmatprep.subr.mxu0 0.0
  %136 = vmatpush2.msra.mxu0 0.0
  %137 = vmatprep.subr.mxu0 0.0
  %138 = vmatpush2.msra.mxu0 0.0
  %139 = vmatprep.subr.mxu0 0.0
  %140 = vmatpush2.msra.mxu0 0.0
  %141 = vmatprep.subr.mxu0 0.0
  %142 = vmatpush2.msra.mxu0 0.0
  %143 = vmatprep.subr.mxu0 0.0
  %144 = vmatpush2.msra.mxu0 0.0
  %145 = vmatprep.subr.mxu0 0.0
  %146 = vmatpush2.msra.mxu0 0.0
  %147 = vmatprep.subr.mxu0 0.0
  %148 = vmatpush2.msra.mxu0 0.0
  %149 = vmatprep.subr.mxu0 0.0
  %150 = vmatpush2.msra.mxu0 0.0
  %151 = vmatprep.subr.mxu0 0.0
  %152 = vmatpush2.msra.mxu0 0.0
  %153 = vmatprep.subr.mxu0 0.0
  %154 = vmatpush2.msra.mxu0 0.0
  %155 = vmatprep.subr.mxu0 0.0
  %156 = vmatpush2.msra.mxu0 0.0
  %157 = vmatprep.subr.mxu0 0.0
  %158 = vmatpush2.msra.mxu0 0.0
  %159 = vmatprep.subr.mxu0 0.0
  %160 = vmatpush2.msra.mxu0 0.0
  %161 = vmatprep.subr.mxu0 0.0
  %162 = vmatpush2.msra.mxu0 0.0
  %163 = vmatprep.subr.mxu0 0.0
  %164 = vmatpush2.msra.mxu0 0.0
  %165 = vmatprep.subr.mxu0 0.0
  %166 = vmatpush2.msra.mxu0 0.0
  %167 = vmatprep.mubr.f32.mxu0 0.0
  %168 = vmatmul.mubr.f32.gmra.mxu0 %v98
  %v169 = vpop.f32.mrf.mxu0
  %v170 = vadd.f32 0.0, %v169
  %v171 = vpop.f32.mrf.mxu0
  %172 = vmatprep.mubr.f32.mxu0 0.0
  %173 = vmatmul.mubr.f32.gmra.mxu0 %v101
  %v174 = vpop.f32.mrf.mxu0
  %v175 = vadd.f32 0.0, %v174
  %v176 = vpop.f32.mrf.mxu0
  %177 = vdwg.mxu0
  %vm178 = vcmask 261120
  %v180 = vsel %vm178, %v94, 0
  %v183 = vsel %vm178, %v95, 0
  %185 = vmatprep.subr.mxu0 0.0
  %186 = vmatpush1.msra.mxu0 0.0
  %187 = vmatprep.subr.mxu0 0.0
  %188 = vmatpush1.msra.mxu0 0.0
  %189 = vmatprep.subr.mxu0 0.0
  %190 = vmatpush1.msra.mxu0 0.0
  %191 = vmatprep.subr.mxu0 0.0
  %192 = vmatpush1.msra.mxu0 0.0
  %193 = vmatprep.subr.mxu0 0.0
  %194 = vmatpush1.msra.mxu0 0.0
  %195 = vmatprep.subr.mxu0 0.0
  %196 = vmatpush1.msra.mxu0 0.0
  %197 = vmatprep.subr.mxu0 0.0
  %198 = vmatpush1.msra.mxu0 0.0
  %199 = vmatprep.subr.mxu0 0.0
  %200 = vmatpush1.msra.mxu0 0.0
  %201 = vmatprep.subr.mxu0 0.0
  %202 = vmatpush1.msra.mxu0 0.0
  %203 = vmatprep.subr.mxu0 0.0
  %204 = vmatpush1.msra.mxu0 0.0
  %205 = vmatprep.subr.mxu0 0.0
  %206 = vmatpush1.msra.mxu0 0.0
  %207 = vmatprep.subr.mxu0 0.0
  %208 = vmatpush1.msra.mxu0 0.0
  %209 = vmatprep.subr.mxu0 0.0
  %210 = vmatpush1.msra.mxu0 %v88
  %211 = vmatprep.subr.mxu0 0.0
  %212 = vmatpush1.msra.mxu0 %v87
  %213 = vmatprep.subr.mxu0 0.0
  %214 = vmatpush1.msra.mxu0 %v86
  %215 = vmatprep.subr.mxu0 0.0
  %216 = vmatpush1.msra.mxu0 %v85
  %217 = vmatprep.subr.mxu0 0.0
  %218 = vmatpush2.msra.mxu0 0.0
  %219 = vmatprep.subr.mxu0 0.0
  %220 = vmatpush2.msra.mxu0 0.0
  %221 = vmatprep.subr.mxu0 0.0
  %222 = vmatpush2.msra.mxu0 0.0
  %223 = vmatprep.subr.mxu0 0.0
  %224 = vmatpush2.msra.mxu0 0.0
  %225 = vmatprep.subr.mxu0 0.0
  %226 = vmatpush2.msra.mxu0 0.0
  %227 = vmatprep.subr.mxu0 0.0
  %228 = vmatpush2.msra.mxu0 0.0
  %229 = vmatprep.subr.mxu0 0.0
  %230 = vmatpush2.msra.mxu0 0.0
  %231 = vmatprep.subr.mxu0 0.0
  %232 = vmatpush2.msra.mxu0 0.0
  %233 = vmatprep.subr.mxu0 0.0
  %234 = vmatpush2.msra.mxu0 0.0
  %235 = vmatprep.subr.mxu0 0.0
  %236 = vmatpush2.msra.mxu0 0.0
  %237 = vmatprep.subr.mxu0 0.0
  %238 = vmatpush2.msra.mxu0 0.0
  %239 = vmatprep.subr.mxu0 0.0
  %240 = vmatpush2.msra.mxu0 0.0
  %241 = vmatprep.subr.mxu0 0.0
  %242 = vmatpush2.msra.mxu0 0.0
  %243 = vmatprep.subr.mxu0 0.0
  %244 = vmatpush2.msra.mxu0 0.0
  %245 = vmatprep.subr.mxu0 0.0
  %246 = vmatpush2.msra.mxu0 0.0
  %247 = vmatprep.subr.mxu0 0.0
  %248 = vmatpush2.msra.mxu0 0.0
  %249 = vmatprep.mubr.f32.mxu0 0.0
  %250 = vmatmul.mubr.f32.gmra.mxu0 %v180
  %v251 = vpop.f32.mrf.mxu0
  %v252 = vadd.f32 0.0, %v251
  %v253 = vpop.f32.mrf.mxu0
  %254 = vmatprep.mubr.f32.mxu0 0.0
  %255 = vmatmul.mubr.f32.gmra.mxu0 %v183
  %v256 = vpop.f32.mrf.mxu0
  %v257 = vadd.f32 0.0, %v256
  %v258 = vpop.f32.mrf.mxu0
  %259 = vdwg.mxu0
  %v261 = vsel %vm178, %v170, 0
  %v264 = vsel %vm178, %v175, 0
  %266 = vmatprep.subr.mxu0 0.0
  %267 = vmatpush1.msra.mxu0 0.0
  %268 = vmatprep.subr.mxu0 0.0
  %269 = vmatpush1.msra.mxu0 0.0
  %270 = vmatprep.subr.mxu0 0.0
  %271 = vmatpush1.msra.mxu0 0.0
  %272 = vmatprep.subr.mxu0 0.0
  %273 = vmatpush1.msra.mxu0 0.0
  %274 = vmatprep.subr.mxu0 0.0
  %275 = vmatpush1.msra.mxu0 0.0
  %276 = vmatprep.subr.mxu0 0.0
  %277 = vmatpush1.msra.mxu0 0.0
  %278 = vmatprep.subr.mxu0 0.0
  %279 = vmatpush1.msra.mxu0 0.0
  %280 = vmatprep.subr.mxu0 0.0
  %281 = vmatpush1.msra.mxu0 0.0
  %282 = vmatprep.subr.mxu0 0.0
  %283 = vmatpush1.msra.mxu0 0.0
  %284 = vmatprep.subr.mxu0 0.0
  %285 = vmatpush1.msra.mxu0 0.0
  %286 = vmatprep.subr.mxu0 0.0
  %287 = vmatpush1.msra.mxu0 0.0
  %288 = vmatprep.subr.mxu0 0.0
  %289 = vmatpush1.msra.mxu0 0.0
  %290 = vmatprep.subr.mxu0 0.0
  %291 = vmatpush1.msra.mxu0 %v83
  %292 = vmatprep.subr.mxu0 0.0
  %293 = vmatpush1.msra.mxu0 %v82
  %294 = vmatprep.subr.mxu0 0.0
  %295 = vmatpush1.msra.mxu0 %v81
  %296 = vmatprep.subr.mxu0 0.0
  %297 = vmatpush1.msra.mxu0 %v80
  %298 = vmatprep.subr.mxu0 0.0
  %299 = vmatpush2.msra.mxu0 0.0
  %300 = vmatprep.subr.mxu0 0.0
  %301 = vmatpush2.msra.mxu0 0.0
  %302 = vmatprep.subr.mxu0 0.0
  %303 = vmatpush2.msra.mxu0 0.0
  %304 = vmatprep.subr.mxu0 0.0
  %305 = vmatpush2.msra.mxu0 0.0
  %306 = vmatprep.subr.mxu0 0.0
  %307 = vmatpush2.msra.mxu0 0.0
  %308 = vmatprep.subr.mxu0 0.0
  %309 = vmatpush2.msra.mxu0 0.0
  %310 = vmatprep.subr.mxu0 0.0
  %311 = vmatpush2.msra.mxu0 0.0
  %312 = vmatprep.subr.mxu0 0.0
  %313 = vmatpush2.msra.mxu0 0.0
  %314 = vmatprep.subr.mxu0 0.0
  %315 = vmatpush2.msra.mxu0 0.0
  %316 = vmatprep.subr.mxu0 0.0
  %317 = vmatpush2.msra.mxu0 0.0
  %318 = vmatprep.subr.mxu0 0.0
  %319 = vmatpush2.msra.mxu0 0.0
  %320 = vmatprep.subr.mxu0 0.0
  %321 = vmatpush2.msra.mxu0 0.0
  %322 = vmatprep.subr.mxu0 0.0
  %323 = vmatpush2.msra.mxu0 0.0
  %324 = vmatprep.subr.mxu0 0.0
  %325 = vmatpush2.msra.mxu0 0.0
  %326 = vmatprep.subr.mxu0 0.0
  %327 = vmatpush2.msra.mxu0 0.0
  %328 = vmatprep.subr.mxu0 0.0
  %329 = vmatpush2.msra.mxu0 0.0
  %330 = vmatprep.mubr.f32.mxu0 0.0
  %331 = vmatmul.mubr.f32.gmra.mxu0 %v261
  %v332 = vpop.f32.mrf.mxu0
  %v333 = vadd.f32 %v252, %v332
  %v334 = vpop.f32.mrf.mxu0
  %335 = vmatprep.mubr.f32.mxu0 0.0
  %336 = vmatmul.mubr.f32.gmra.mxu0 %v264
  %v337 = vpop.f32.mrf.mxu0
  %v338 = vadd.f32 %v257, %v337
  %v339 = vpop.f32.mrf.mxu0
  %340 = vdwg.mxu0
  %v342 = vsel %vm96, %v78, 0
  %v345 = vsel %vm96, %v79, 0
  %347 = vmatprep.subr.mxu0 0.0
  %348 = vmatpush1.msra.mxu0 0.0
  %349 = vmatprep.subr.mxu0 0.0
  %350 = vmatpush1.msra.mxu0 0.0
  %351 = vmatprep.subr.mxu0 0.0
  %352 = vmatpush1.msra.mxu0 0.0
  %353 = vmatprep.subr.mxu0 0.0
  %354 = vmatpush1.msra.mxu0 0.0
  %355 = vmatprep.subr.mxu0 0.0
  %356 = vmatpush1.msra.mxu0 0.0
  %357 = vmatprep.subr.mxu0 0.0
  %358 = vmatpush1.msra.mxu0 0.0
  %359 = vmatprep.subr.mxu0 0.0
  %360 = vmatpush1.msra.mxu0 0.0
  %361 = vmatprep.subr.mxu0 0.0
  %362 = vmatpush1.msra.mxu0 0.0
  %363 = vmatprep.subr.mxu0 0.0
  %364 = vmatpush1.msra.mxu0 0.0
  %365 = vmatprep.subr.mxu0 0.0
  %366 = vmatpush1.msra.mxu0 0.0
  %367 = vmatprep.subr.mxu0 0.0
  %368 = vmatpush1.msra.mxu0 0.0
  %369 = vmatprep.subr.mxu0 0.0
  %370 = vmatpush1.msra.mxu0 0.0
  %371 = vmatprep.subr.mxu0 0.0
  %372 = vmatpush1.msra.mxu0 0.0
  %373 = vmatprep.subr.mxu0 0.0
  %374 = vmatpush1.msra.mxu0 0.0
  %375 = vmatprep.subr.mxu0 0.0
  %376 = vmatpush1.msra.mxu0 %v95
  %377 = vmatprep.subr.mxu0 0.0
  %378 = vmatpush1.msra.mxu0 %v94
  %379 = vmatprep.subr.mxu0 0.0
  %380 = vmatpush2.msra.mxu0 0.0
  %381 = vmatprep.subr.mxu0 0.0
  %382 = vmatpush2.msra.mxu0 0.0
  %383 = vmatprep.subr.mxu0 0.0
  %384 = vmatpush2.msra.mxu0 0.0
  %385 = vmatprep.subr.mxu0 0.0
  %386 = vmatpush2.msra.mxu0 0.0
  %387 = vmatprep.subr.mxu0 0.0
  %388 = vmatpush2.msra.mxu0 0.0
  %389 = vmatprep.subr.mxu0 0.0
  %390 = vmatpush2.msra.mxu0 0.0
  %391 = vmatprep.subr.mxu0 0.0
  %392 = vmatpush2.msra.mxu0 0.0
  %393 = vmatprep.subr.mxu0 0.0
  %394 = vmatpush2.msra.mxu0 0.0
  %395 = vmatprep.subr.mxu0 0.0
  %396 = vmatpush2.msra.mxu0 0.0
  %397 = vmatprep.subr.mxu0 0.0
  %398 = vmatpush2.msra.mxu0 0.0
  %399 = vmatprep.subr.mxu0 0.0
  %400 = vmatpush2.msra.mxu0 0.0
  %401 = vmatprep.subr.mxu0 0.0
  %402 = vmatpush2.msra.mxu0 0.0
  %403 = vmatprep.subr.mxu0 0.0
  %404 = vmatpush2.msra.mxu0 0.0
  %405 = vmatprep.subr.mxu0 0.0
  %406 = vmatpush2.msra.mxu0 0.0
  %407 = vmatprep.subr.mxu0 0.0
  %408 = vmatpush2.msra.mxu0 0.0
  %409 = vmatprep.subr.mxu0 0.0
  %410 = vmatpush2.msra.mxu0 0.0
  %411 = vmatprep.mubr.f32.mxu0 0.0
  %412 = vmatmul.mubr.f32.gmra.mxu0 %v342
  %v413 = vpop.f32.mrf.mxu0
  %v414 = vadd.f32 0.0, %v413
  %v415 = vpop.f32.mrf.mxu0
  %416 = vmatprep.mubr.f32.mxu0 0.0
  %417 = vmatmul.mubr.f32.gmra.mxu0 %v345
  %v418 = vpop.f32.mrf.mxu0
  %v419 = vadd.f32 0.0, %v418
  %v420 = vpop.f32.mrf.mxu0
  %421 = vdwg.mxu0
  %v423 = vsel %vm178, %v414, 0
  %v426 = vsel %vm178, %v419, 0
  %428 = vmatprep.subr.mxu0 0.0
  %429 = vmatpush1.msra.mxu0 0.0
  %430 = vmatprep.subr.mxu0 0.0
  %431 = vmatpush1.msra.mxu0 0.0
  %432 = vmatprep.subr.mxu0 0.0
  %433 = vmatpush1.msra.mxu0 0.0
  %434 = vmatprep.subr.mxu0 0.0
  %435 = vmatpush1.msra.mxu0 0.0
  %436 = vmatprep.subr.mxu0 0.0
  %437 = vmatpush1.msra.mxu0 0.0
  %438 = vmatprep.subr.mxu0 0.0
  %439 = vmatpush1.msra.mxu0 0.0
  %440 = vmatprep.subr.mxu0 0.0
  %441 = vmatpush1.msra.mxu0 0.0
  %442 = vmatprep.subr.mxu0 0.0
  %443 = vmatpush1.msra.mxu0 0.0
  %444 = vmatprep.subr.mxu0 0.0
  %445 = vmatpush1.msra.mxu0 0.0
  %446 = vmatprep.subr.mxu0 0.0
  %447 = vmatpush1.msra.mxu0 0.0
  %448 = vmatprep.subr.mxu0 0.0
  %449 = vmatpush1.msra.mxu0 0.0
  %450 = vmatprep.subr.mxu0 0.0
  %451 = vmatpush1.msra.mxu0 0.0
  %452 = vmatprep.subr.mxu0 0.0
  %453 = vmatpush1.msra.mxu0 %v93
  %454 = vmatprep.subr.mxu0 0.0
  %455 = vmatpush1.msra.mxu0 %v92
  %456 = vmatprep.subr.mxu0 0.0
  %457 = vmatpush1.msra.mxu0 %v91
  %458 = vmatprep.subr.mxu0 0.0
  %459 = vmatpush1.msra.mxu0 %v90
  %460 = vmatprep.subr.mxu0 0.0
  %461 = vmatpush2.msra.mxu0 0.0
  %462 = vmatprep.subr.mxu0 0.0
  %463 = vmatpush2.msra.mxu0 0.0
  %464 = vmatprep.subr.mxu0 0.0
  %465 = vmatpush2.msra.mxu0 0.0
  %466 = vmatprep.subr.mxu0 0.0
  %467 = vmatpush2.msra.mxu0 0.0
  %468 = vmatprep.subr.mxu0 0.0
  %469 = vmatpush2.msra.mxu0 0.0
  %470 = vmatprep.subr.mxu0 0.0
  %471 = vmatpush2.msra.mxu0 0.0
  %472 = vmatprep.subr.mxu0 0.0
  %473 = vmatpush2.msra.mxu0 0.0
  %474 = vmatprep.subr.mxu0 0.0
  %475 = vmatpush2.msra.mxu0 0.0
  %476 = vmatprep.subr.mxu0 0.0
  %477 = vmatpush2.msra.mxu0 0.0
  %478 = vmatprep.subr.mxu0 0.0
  %479 = vmatpush2.msra.mxu0 0.0
  %480 = vmatprep.subr.mxu0 0.0
  %481 = vmatpush2.msra.mxu0 0.0
  %482 = vmatprep.subr.mxu0 0.0
  %483 = vmatpush2.msra.mxu0 0.0
  %484 = vmatprep.subr.mxu0 0.0
  %485 = vmatpush2.msra.mxu0 0.0
  %486 = vmatprep.subr.mxu0 0.0
  %487 = vmatpush2.msra.mxu0 0.0
  %488 = vmatprep.subr.mxu0 0.0
  %489 = vmatpush2.msra.mxu0 0.0
  %490 = vmatprep.subr.mxu0 0.0
  %491 = vmatpush2.msra.mxu0 0.0
  %492 = vmatprep.mubr.f32.mxu0 0.0
  %493 = vmatmul.mubr.f32.gmra.mxu0 %v423
  %v494 = vpop.f32.mrf.mxu0
  %v495 = vadd.f32 0.0, %v494
  %v496 = vpop.f32.mrf.mxu0
  %497 = vmatprep.mubr.f32.mxu0 0.0
  %498 = vmatmul.mubr.f32.gmra.mxu0 %v426
  %v499 = vpop.f32.mrf.mxu0
  %v500 = vadd.f32 0.0, %v499
  %v501 = vpop.f32.mrf.mxu0
  %502 = vdwg.mxu0
  %v503 = vadd.f32 %v333, %v495
  %v504 = vadd.f32 %v338, %v500
  %vm505 = vcmask 31744
  %506 = vst.msk [vmem:[%s2] sm:$0xff] %vm505, %v503
  %507 = vst.msk [vmem:[%s2 + $0x8] sm:$0xff] %vm505, %v504
  %s508 = scalar_lea.vmem %s0, 16
  %v509 = vld [vmem:[%s508] sm:$0xff]
  %v510 = vld [vmem:[%s508 + $0x8] sm:$0xff]
  %511 = vmatprep.subr.mxu0 0.0
  %512 = vmatpush1.msra.mxu0 0.0
  %513 = vmatprep.subr.mxu0 0.0
  %514 = vmatpush1.msra.mxu0 0.0
  %515 = vmatprep.subr.mxu0 0.0
  %516 = vmatpush1.msra.mxu0 0.0
  %517 = vmatprep.subr.mxu0 0.0
  %518 = vmatpush1.msra.mxu0 0.0
  %519 = vmatprep.subr.mxu0 0.0
  %520 = vmatpush1.msra.mxu0 0.0
  %521 = vmatprep.subr.mxu0 0.0
  %522 = vmatpush1.msra.mxu0 0.0
  %523 = vmatprep.subr.mxu0 0.0
  %524 = vmatpush1.msra.mxu0 0.0
  %525 = vmatprep.subr.mxu0 0.0
  %526 = vmatpush1.msra.mxu0 0.0
  %527 = vmatprep.subr.mxu0 0.0
  %528 = vmatpush1.msra.mxu0 0.0
  %529 = vmatprep.subr.mxu0 0.0
  %530 = vmatpush1.msra.mxu0 0.0
  %531 = vmatprep.subr.mxu0 0.0
  %532 = vmatpush1.msra.mxu0 0.0
  %533 = vmatprep.subr.mxu0 0.0
  %534 = vmatpush1.msra.mxu0 0.0
  %535 = vmatprep.subr.mxu0 0.0
  %536 = vmatpush1.msra.mxu0 0.0
  %537 = vmatprep.subr.mxu0 0.0
  %538 = vmatpush1.msra.mxu0 0.0
  %539 = vmatprep.subr.mxu0 0.0
  %540 = vmatpush1.msra.mxu0 %v510
  %541 = vmatprep.subr.mxu0 0.0
  %542 = vmatpush1.msra.mxu0 %v509
  %543 = vmatprep.subr.mxu0 0.0
  %544 = vmatpush2.msra.mxu0 0.0
  %545 = vmatprep.subr.mxu0 0.0
  %546 = vmatpush2.msra.mxu0 0.0
  %547 = vmatprep.subr.mxu0 0.0
  %548 = vmatpush2.msra.mxu0 0.0
  %549 = vmatprep.subr.mxu0 0.0
  %550 = vmatpush2.msra.mxu0 0.0
  %551 = vmatprep.subr.mxu0 0.0
  %552 = vmatpush2.msra.mxu0 0.0
  %553 = vmatprep.subr.mxu0 0.0
  %554 = vmatpush2.msra.mxu0 0.0
  %555 = vmatprep.subr.mxu0 0.0
  %556 = vmatpush2.msra.mxu0 0.0
  %557 = vmatprep.subr.mxu0 0.0
  %558 = vmatpush2.msra.mxu0 0.0
  %559 = vmatprep.subr.mxu0 0.0
  %560 = vmatpush2.msra.mxu0 0.0
  %561 = vmatprep.subr.mxu0 0.0
  %562 = vmatpush2.msra.mxu0 0.0
  %563 = vmatprep.subr.mxu0 0.0
  %564 = vmatpush2.msra.mxu0 0.0
  %565 = vmatprep.subr.mxu0 0.0
  %566 = vmatpush2.msra.mxu0 0.0
  %567 = vmatprep.subr.mxu0 0.0
  %568 = vmatpush2.msra.mxu0 0.0
  %569 = vmatprep.subr.mxu0 0.0
  %570 = vmatpush2.msra.mxu0 0.0
  %571 = vmatprep.subr.mxu0 0.0
  %572 = vmatpush2.msra.mxu0 0.0
  %573 = vmatprep.subr.mxu0 0.0
  %574 = vmatpush2.msra.mxu0 0.0
  %575 = vmatprep.mubr.f32.mxu0 0.0
  %576 = vmatmul.mubr.f32.gmra.mxu0 %v98
  %v577 = vpop.f32.mrf.mxu0
  %v578 = vadd.f32 0.0, %v577
  %v579 = vpop.f32.mrf.mxu0
  %580 = vmatprep.mubr.f32.mxu0 0.0
  %581 = vmatmul.mubr.f32.gmra.mxu0 %v101
  %v582 = vpop.f32.mrf.mxu0
  %v583 = vadd.f32 0.0, %v582
  %v584 = vpop.f32.mrf.mxu0
  %585 = vdwg.mxu0
  %v587 = vsel %vm178, %v509, 0
  %v590 = vsel %vm178, %v510, 0
  %592 = vmatprep.subr.mxu0 0.0
  %593 = vmatpush1.msra.mxu0 0.0
  %594 = vmatprep.subr.mxu0 0.0
  %595 = vmatpush1.msra.mxu0 0.0
  %596 = vmatprep.subr.mxu0 0.0
  %597 = vmatpush1.msra.mxu0 0.0
  %598 = vmatprep.subr.mxu0 0.0
  %599 = vmatpush1.msra.mxu0 0.0
  %600 = vmatprep.subr.mxu0 0.0
  %601 = vmatpush1.msra.mxu0 0.0
  %602 = vmatprep.subr.mxu0 0.0
  %603 = vmatpush1.msra.mxu0 0.0
  %604 = vmatprep.subr.mxu0 0.0
  %605 = vmatpush1.msra.mxu0 0.0
  %606 = vmatprep.subr.mxu0 0.0
  %607 = vmatpush1.msra.mxu0 0.0
  %608 = vmatprep.subr.mxu0 0.0
  %609 = vmatpush1.msra.mxu0 0.0
  %610 = vmatprep.subr.mxu0 0.0
  %611 = vmatpush1.msra.mxu0 0.0
  %612 = vmatprep.subr.mxu0 0.0
  %613 = vmatpush1.msra.mxu0 0.0
  %614 = vmatprep.subr.mxu0 0.0
  %615 = vmatpush1.msra.mxu0 0.0
  %616 = vmatprep.subr.mxu0 0.0
  %617 = vmatpush1.msra.mxu0 %v88
  %618 = vmatprep.subr.mxu0 0.0
  %619 = vmatpush1.msra.mxu0 %v87
  %620 = vmatprep.subr.mxu0 0.0
  %621 = vmatpush1.msra.mxu0 %v86
  %622 = vmatprep.subr.mxu0 0.0
  %623 = vmatpush1.msra.mxu0 %v85
  %624 = vmatprep.subr.mxu0 0.0
  %625 = vmatpush2.msra.mxu0 0.0
  %626 = vmatprep.subr.mxu0 0.0
  %627 = vmatpush2.msra.mxu0 0.0
  %628 = vmatprep.subr.mxu0 0.0
  %629 = vmatpush2.msra.mxu0 0.0
  %630 = vmatprep.subr.mxu0 0.0
  %631 = vmatpush2.msra.mxu0 0.0
  %632 = vmatprep.subr.mxu0 0.0
  %633 = vmatpush2.msra.mxu0 0.0
  %634 = vmatprep.subr.mxu0 0.0
  %635 = vmatpush2.msra.mxu0 0.0
  %636 = vmatprep.subr.mxu0 0.0
  %637 = vmatpush2.msra.mxu0 0.0
  %638 = vmatprep.subr.mxu0 0.0
  %639 = vmatpush2.msra.mxu0 0.0
  %640 = vmatprep.subr.mxu0 0.0
  %641 = vmatpush2.msra.mxu0 0.0
  %642 = vmatprep.subr.mxu0 0.0
  %643 = vmatpush2.msra.mxu0 0.0
  %644 = vmatprep.subr.mxu0 0.0
  %645 = vmatpush2.msra.mxu0 0.0
  %646 = vmatprep.subr.mxu0 0.0
  %647 = vmatpush2.msra.mxu0 0.0
  %648 = vmatprep.subr.mxu0 0.0
  %649 = vmatpush2.msra.mxu0 0.0
  %650 = vmatprep.subr.mxu0 0.0
  %651 = vmatpush2.msra.mxu0 0.0
  %652 = vmatprep.subr.mxu0 0.0
  %653 = vmatpush2.msra.mxu0 0.0
  %654 = vmatprep.subr.mxu0 0.0
  %655 = vmatpush2.msra.mxu0 0.0
  %656 = vmatprep.mubr.f32.mxu0 0.0
  %657 = vmatmul.mubr.f32.gmra.mxu0 %v587
  %v658 = vpop.f32.mrf.mxu0
  %v659 = vadd.f32 0.0, %v658
  %v660 = vpop.f32.mrf.mxu0
  %661 = vmatprep.mubr.f32.mxu0 0.0
  %662 = vmatmul.mubr.f32.gmra.mxu0 %v590
  %v663 = vpop.f32.mrf.mxu0
  %v664 = vadd.f32 0.0, %v663
  %v665 = vpop.f32.mrf.mxu0
  %666 = vdwg.mxu0
  %v668 = vsel %vm178, %v578, 0
  %v671 = vsel %vm178, %v583, 0
  %673 = vmatprep.subr.mxu0 0.0
  %674 = vmatpush1.msra.mxu0 0.0
  %675 = vmatprep.subr.mxu0 0.0
  %676 = vmatpush1.msra.mxu0 0.0
  %677 = vmatprep.subr.mxu0 0.0
  %678 = vmatpush1.msra.mxu0 0.0
  %679 = vmatprep.subr.mxu0 0.0
  %680 = vmatpush1.msra.mxu0 0.0
  %681 = vmatprep.subr.mxu0 0.0
  %682 = vmatpush1.msra.mxu0 0.0
  %683 = vmatprep.subr.mxu0 0.0
  %684 = vmatpush1.msra.mxu0 0.0
  %685 = vmatprep.subr.mxu0 0.0
  %686 = vmatpush1.msra.mxu0 0.0
  %687 = vmatprep.subr.mxu0 0.0
  %688 = vmatpush1.msra.mxu0 0.0
  %689 = vmatprep.subr.mxu0 0.0
  %690 = vmatpush1.msra.mxu0 0.0
  %691 = vmatprep.subr.mxu0 0.0
  %692 = vmatpush1.msra.mxu0 0.0
  %693 = vmatprep.subr.mxu0 0.0
  %694 = vmatpush1.msra.mxu0 0.0
  %695 = vmatprep.subr.mxu0 0.0
  %696 = vmatpush1.msra.mxu0 0.0
  %697 = vmatprep.subr.mxu0 0.0
  %698 = vmatpush1.msra.mxu0 %v83
  %699 = vmatprep.subr.mxu0 0.0
  %700 = vmatpush1.msra.mxu0 %v82
  %701 = vmatprep.subr.mxu0 0.0
  %702 = vmatpush1.msra.mxu0 %v81
  %703 = vmatprep.subr.mxu0 0.0
  %704 = vmatpush1.msra.mxu0 %v80
  %705 = vmatprep.subr.mxu0 0.0
  %706 = vmatpush2.msra.mxu0 0.0
  %707 = vmatprep.subr.mxu0 0.0
  %708 = vmatpush2.msra.mxu0 0.0
  %709 = vmatprep.subr.mxu0 0.0
  %710 = vmatpush2.msra.mxu0 0.0
  %711 = vmatprep.subr.mxu0 0.0
  %712 = vmatpush2.msra.mxu0 0.0
  %713 = vmatprep.subr.mxu0 0.0
  %714 = vmatpush2.msra.mxu0 0.0
  %715 = vmatprep.subr.mxu0 0.0
  %716 = vmatpush2.msra.mxu0 0.0
  %717 = vmatprep.subr.mxu0 0.0
  %718 = vmatpush2.msra.mxu0 0.0
  %719 = vmatprep.subr.mxu0 0.0
  %720 = vmatpush2.msra.mxu0 0.0
  %721 = vmatprep.subr.mxu0 0.0
  %722 = vmatpush2.msra.mxu0 0.0
  %723 = vmatprep.subr.mxu0 0.0
  %724 = vmatpush2.msra.mxu0 0.0
  %725 = vmatprep.subr.mxu0 0.0
  %726 = vmatpush2.msra.mxu0 0.0
  %727 = vmatprep.subr.mxu0 0.0
  %728 = vmatpush2.msra.mxu0 0.0
  %729 = vmatprep.subr.mxu0 0.0
  %730 = vmatpush2.msra.mxu0 0.0
  %731 = vmatprep.subr.mxu0 0.0
  %732 = vmatpush2.msra.mxu0 0.0
  %733 = vmatprep.subr.mxu0 0.0
  %734 = vmatpush2.msra.mxu0 0.0
  %735 = vmatprep.subr.mxu0 0.0
  %736 = vmatpush2.msra.mxu0 0.0
  %737 = vmatprep.mubr.f32.mxu0 0.0
  %738 = vmatmul.mubr.f32.gmra.mxu0 %v668
  %v739 = vpop.f32.mrf.mxu0
  %v740 = vadd.f32 %v659, %v739
  %v741 = vpop.f32.mrf.mxu0
  %742 = vmatprep.mubr.f32.mxu0 0.0
  %743 = vmatmul.mubr.f32.gmra.mxu0 %v671
  %v744 = vpop.f32.mrf.mxu0
  %v745 = vadd.f32 %v664, %v744
  %v746 = vpop.f32.mrf.mxu0
  %747 = vdwg.mxu0
  %748 = vmatprep.subr.mxu0 0.0
  %749 = vmatpush1.msra.mxu0 0.0
  %750 = vmatprep.subr.mxu0 0.0
  %751 = vmatpush1.msra.mxu0 0.0
  %752 = vmatprep.subr.mxu0 0.0
  %753 = vmatpush1.msra.mxu0 0.0
  %754 = vmatprep.subr.mxu0 0.0
  %755 = vmatpush1.msra.mxu0 0.0
  %756 = vmatprep.subr.mxu0 0.0
  %757 = vmatpush1.msra.mxu0 0.0
  %758 = vmatprep.subr.mxu0 0.0
  %759 = vmatpush1.msra.mxu0 0.0
  %760 = vmatprep.subr.mxu0 0.0
  %761 = vmatpush1.msra.mxu0 0.0
  %762 = vmatprep.subr.mxu0 0.0
  %763 = vmatpush1.msra.mxu0 0.0
  %764 = vmatprep.subr.mxu0 0.0
  %765 = vmatpush1.msra.mxu0 0.0
  %766 = vmatprep.subr.mxu0 0.0
  %767 = vmatpush1.msra.mxu0 0.0
  %768 = vmatprep.subr.mxu0 0.0
  %769 = vmatpush1.msra.mxu0 0.0
  %770 = vmatprep.subr.mxu0 0.0
  %771 = vmatpush1.msra.mxu0 0.0
  %772 = vmatprep.subr.mxu0 0.0
  %773 = vmatpush1.msra.mxu0 0.0
  %774 = vmatprep.subr.mxu0 0.0
  %775 = vmatpush1.msra.mxu0 0.0
  %776 = vmatprep.subr.mxu0 0.0
  %777 = vmatpush1.msra.mxu0 %v510
  %778 = vmatprep.subr.mxu0 0.0
  %779 = vmatpush1.msra.mxu0 %v509
  %780 = vmatprep.subr.mxu0 0.0
  %781 = vmatpush2.msra.mxu0 0.0
  %782 = vmatprep.subr.mxu0 0.0
  %783 = vmatpush2.msra.mxu0 0.0
  %784 = vmatprep.subr.mxu0 0.0
  %785 = vmatpush2.msra.mxu0 0.0
  %786 = vmatprep.subr.mxu0 0.0
  %787 = vmatpush2.msra.mxu0 0.0
  %788 = vmatprep.subr.mxu0 0.0
  %789 = vmatpush2.msra.mxu0 0.0
  %790 = vmatprep.subr.mxu0 0.0
  %791 = vmatpush2.msra.mxu0 0.0
  %792 = vmatprep.subr.mxu0 0.0
  %793 = vmatpush2.msra.mxu0 0.0
  %794 = vmatprep.subr.mxu0 0.0
  %795 = vmatpush2.msra.mxu0 0.0
  %796 = vmatprep.subr.mxu0 0.0
  %797 = vmatpush2.msra.mxu0 0.0
  %798 = vmatprep.subr.mxu0 0.0
  %799 = vmatpush2.msra.mxu0 0.0
  %800 = vmatprep.subr.mxu0 0.0
  %801 = vmatpush2.msra.mxu0 0.0
  %802 = vmatprep.subr.mxu0 0.0
  %803 = vmatpush2.msra.mxu0 0.0
  %804 = vmatprep.subr.mxu0 0.0
  %805 = vmatpush2.msra.mxu0 0.0
  %806 = vmatprep.subr.mxu0 0.0
  %807 = vmatpush2.msra.mxu0 0.0
  %808 = vmatprep.subr.mxu0 0.0
  %809 = vmatpush2.msra.mxu0 0.0
  %810 = vmatprep.subr.mxu0 0.0
  %811 = vmatpush2.msra.mxu0 0.0
  %812 = vmatprep.mubr.f32.mxu0 0.0
  %813 = vmatmul.mubr.f32.gmra.mxu0 %v342
  %v814 = vpop.f32.mrf.mxu0
  %v815 = vadd.f32 0.0, %v814
  %v816 = vpop.f32.mrf.mxu0
  %817 = vmatprep.mubr.f32.mxu0 0.0
  %818 = vmatmul.mubr.f32.gmra.mxu0 %v345
  %v819 = vpop.f32.mrf.mxu0
  %v820 = vadd.f32 0.0, %v819
  %v821 = vpop.f32.mrf.mxu0
  %822 = vdwg.mxu0
  %v824 = vsel %vm178, %v815, 0
  %v827 = vsel %vm178, %v820, 0
  %829 = vmatprep.subr.mxu0 0.0
  %830 = vmatpush1.msra.mxu0 0.0
  %831 = vmatprep.subr.mxu0 0.0
  %832 = vmatpush1.msra.mxu0 0.0
  %833 = vmatprep.subr.mxu0 0.0
  %834 = vmatpush1.msra.mxu0 0.0
  %835 = vmatprep.subr.mxu0 0.0
  %836 = vmatpush1.msra.mxu0 0.0
  %837 = vmatprep.subr.mxu0 0.0
  %838 = vmatpush1.msra.mxu0 0.0
  %839 = vmatprep.subr.mxu0 0.0
  %840 = vmatpush1.msra.mxu0 0.0
  %841 = vmatprep.subr.mxu0 0.0
  %842 = vmatpush1.msra.mxu0 0.0
  %843 = vmatprep.subr.mxu0 0.0
  %844 = vmatpush1.msra.mxu0 0.0
  %845 = vmatprep.subr.mxu0 0.0
  %846 = vmatpush1.msra.mxu0 0.0
  %847 = vmatprep.subr.mxu0 0.0
  %848 = vmatpush1.msra.mxu0 0.0
  %849 = vmatprep.subr.mxu0 0.0
  %850 = vmatpush1.msra.mxu0 0.0
  %851 = vmatprep.subr.mxu0 0.0
  %852 = vmatpush1.msra.mxu0 0.0
  %853 = vmatprep.subr.mxu0 0.0
  %854 = vmatpush1.msra.mxu0 %v93
  %855 = vmatprep.subr.mxu0 0.0
  %856 = vmatpush1.msra.mxu0 %v92
  %857 = vmatprep.subr.mxu0 0.0
  %858 = vmatpush1.msra.mxu0 %v91
  %859 = vmatprep.subr.mxu0 0.0
  %860 = vmatpush1.msra.mxu0 %v90
  %861 = vmatprep.subr.mxu0 0.0
  %862 = vmatpush2.msra.mxu0 0.0
  %863 = vmatprep.subr.mxu0 0.0
  %864 = vmatpush2.msra.mxu0 0.0
  %865 = vmatprep.subr.mxu0 0.0
  %866 = vmatpush2.msra.mxu0 0.0
  %867 = vmatprep.subr.mxu0 0.0
  %868 = vmatpush2.msra.mxu0 0.0
  %869 = vmatprep.subr.mxu0 0.0
  %870 = vmatpush2.msra.mxu0 0.0
  %871 = vmatprep.subr.mxu0 0.0
  %872 = vmatpush2.msra.mxu0 0.0
  %873 = vmatprep.subr.mxu0 0.0
  %874 = vmatpush2.msra.mxu0 0.0
  %875 = vmatprep.subr.mxu0 0.0
  %876 = vmatpush2.msra.mxu0 0.0
  %877 = vmatprep.subr.mxu0 0.0
  %878 = vmatpush2.msra.mxu0 0.0
  %879 = vmatprep.subr.mxu0 0.0
  %880 = vmatpush2.msra.mxu0 0.0
  %881 = vmatprep.subr.mxu0 0.0
  %882 = vmatpush2.msra.mxu0 0.0
  %883 = vmatprep.subr.mxu0 0.0
  %884 = vmatpush2.msra.mxu0 0.0
  %885 = vmatprep.subr.mxu0 0.0
  %886 = vmatpush2.msra.mxu0 0.0
  %887 = vmatprep.subr.mxu0 0.0
  %888 = vmatpush2.msra.mxu0 0.0
  %889 = vmatprep.subr.mxu0 0.0
  %890 = vmatpush2.msra.mxu0 0.0
  %891 = vmatprep.subr.mxu0 0.0
  %892 = vmatpush2.msra.mxu0 0.0
  %893 = vmatprep.mubr.f32.mxu0 0.0
  %894 = vmatmul.mubr.f32.gmra.mxu0 %v824
  %v895 = vpop.f32.mrf.mxu0
  %v896 = vadd.f32 0.0, %v895
  %v897 = vpop.f32.mrf.mxu0
  %898 = vmatprep.mubr.f32.mxu0 0.0
  %899 = vmatmul.mubr.f32.gmra.mxu0 %v827
  %v900 = vpop.f32.mrf.mxu0
  %v901 = vadd.f32 0.0, %v900
  %v902 = vpop.f32.mrf.mxu0
  %903 = vdwg.mxu0
  %v904 = vadd.f32 %v740, %v896
  %v905 = vadd.f32 %v745, %v901
  %s906 = scalar_lea.vmem %s2, 16
  %907 = vst.msk [vmem:[%s906] sm:$0xff] %vm505, %v904
  %908 = vst.msk [vmem:[%s906 + $0x8] sm:$0xff] %vm505, %v905
  // Predicated region
  $region10: #{_lambda_.35} parent=0 // pred_check
    _
  $region11: #{_lambda_.35} parent=0 // pred_check_branch
    %910 = sbr.rel (0) target = $region13
  $region12: #{_lambda_.35} parent=0 // pred_region
    _
  $region13: #{_lambda_.35} parent=0 // pred_fallthru
    _
  // Predicated region
  $region14: #{_lambda_.35} parent=0 // pred_check
    _
  $region15: #{_lambda_.35} parent=0 // pred_check_branch
    %912 = sbr.rel (0) target = $region17
  $region16: #{_lambda_.35} parent=0 // pred_region
    _
  $region17: #{_lambda_.35} parent=0 // pred_fallthru
    _

</llo_original>
